<compile_context>
chip_gen: v7x
topology: tpu7x:2x2x1
jax: 0.10.0
libtpu: 0.0.40
codegen_flags: <defaults>
</compile_context>

<pallas_src>
import functools
import math

import jax
import jax.numpy as jnp
from jax.experimental import pallas as pl
from jax.experimental.pallas import tpu as pltpu

EPS = 1e-6
NEG_INF = -1e18


# ----------------------------------------------------------------------------
# In-kernel helpers (operate on loaded jnp values)
# ----------------------------------------------------------------------------
def _ln(x, g, b):
    mean = jnp.mean(x, axis=-1, keepdims=True)
    var = jnp.mean((x - mean) ** 2, axis=-1, keepdims=True)
    return (x - mean) * jax.lax.rsqrt(var + EPS) * g + b


def _split_heads(x_bf, heads, dph):
    """[L, heads*dph] (bf16) -> head-major [heads, L, dph] (bf16)."""
    L = x_bf.shape[0]
    return x_bf.reshape(L, heads, dph).transpose(1, 0, 2)


def _mha(q, kh, vh, bias, wo_bf, bo):
    """Multi-head scaled-dot attention + single full-width output projection.

    q     : [T, D]           f32  (already projected)
    kh/vh : [H, S, dph]      bf16 (pre-projected, pre-split; shared per bank)
    bias  : [T, S] or [1, S] f32  additive mask bias (0.0 / NEG_INF), hoisted
    wo_bf : [D, D]           bf16
    bo    : [1, D]           f32
    """
    heads, _, dph = kh.shape
    T, D = q.shape
    scale = 1.0 / math.sqrt(dph)

    qh = _split_heads((q * scale).astype(jnp.bfloat16), heads, dph)   # [H,T,dph]
    s = jnp.einsum('htd,hsd->hts', qh, kh,
                   preferred_element_type=jnp.float32)                # [H,T,S]
    s = s + bias                                     # masked_fill(-1e18) equiv.
    s = s - jnp.max(s, axis=-1, keepdims=True)
    p = jnp.exp(s)
    p = p * pl.reciprocal(jnp.sum(p, axis=-1, keepdims=True), approx=True)
    ctx = jnp.einsum('hts,hsd->htd', p.astype(jnp.bfloat16), vh,
                     preferred_element_type=jnp.float32)              # [H,T,dph]
    ctx = ctx.astype(jnp.bfloat16).transpose(1, 0, 2).reshape(T, D)   # [T,D]
    return jnp.dot(ctx, wo_bf, preferred_element_type=jnp.float32) + bo


# ----------------------------------------------------------------------------
# Fused decoder-layer kernel (one grid step == one batch element)
# ----------------------------------------------------------------------------
def _decoder_layer_kernel(
        x_ref, mb1_ref, mb2_ref, mb3_ref,
        tpad_ref, sp1_ref, sp2_ref, sp3_ref,
        ln1_g_ref, ln1_b_ref,
        wqkv_s_ref, bqkv_s_ref, wo_s_ref, bo_s_ref,
        ln2_g_ref, ln2_b_ref,
        wq_c_ref, bq_c_ref, wkv_c_ref, bkv_c_ref, wo_c_ref, bo_c_ref,
        fln_g_ref, fln_b_ref, w1_ref, b1_ref, w2_ref, b2_ref,
        out_ref, saved_ref, *, heads):
    T, D = x_ref.shape[1], x_ref.shape[2]
    dph = D // heads

    x = x_ref[0]                                                      # [T, D]

    # ---- LayerNorm 1 + masked multi-head self attention --------------------
    input_norm = _ln(x, ln1_g_ref[...], ln1_b_ref[...])
    saved_ref[0] = input_norm            # all_input (previous_input is None)

    qkv = jnp.dot(input_norm.astype(jnp.bfloat16), wqkv_s_ref[...],
                  preferred_element_type=jnp.float32) + bqkv_s_ref[...]
    q_s = qkv[:, :D]                                                  # f32
    k_s = _split_heads(qkv[:, D:2 * D].astype(jnp.bfloat16), heads, dph)
    v_s = _split_heads(qkv[:, 2 * D:].astype(jnp.bfloat16), heads, dph)

    # dec_mask = (tgt pad) OR (subsequent positions); built once as an
    # additive bias (no per-head re-broadcast / select).
    row = jax.lax.broadcasted_iota(jnp.int32, (T, T), 0)
    col = jax.lax.broadcasted_iota(jnp.int32, (T, T), 1)
    dec_masked = jnp.logical_or(col > row, tpad_ref[0] > 0.0)          # [T, T]
    self_bias = jnp.where(dec_masked, NEG_INF, 0.0)

    self_out = _mha(q_s, k_s, v_s, self_bias, wo_s_ref[...], bo_s_ref[...])
    query = self_out + x                          # dropout == identity

    # ---- LayerNorm 2 + the 5 context-attention paths (shared weights) ------
    query_norm = _ln(query, ln2_g_ref[...], ln2_b_ref[...])

    wq_c, bq_c = wq_c_ref[...], bq_c_ref[...]
    wkv_c, bkv_c = wkv_c_ref[...], bkv_c_ref[...]
    wo_c, bo_c = wo_c_ref[...], bo_c_ref[...]

    # q of query_norm shared by mid1/mid2/mid3
    q_qn = jnp.dot(query_norm.astype(jnp.bfloat16), wq_c,
                   preferred_element_type=jnp.float32) + bq_c

    # K/V of each memory bank: projected, cast to bf16 and head-split ONCE,
    # then reused by every path that reads that bank.
    def kv_proj(mb):
        kv = jnp.dot(mb.astype(jnp.bfloat16), wkv_c,
                     preferred_element_type=jnp.float32) + bkv_c
        kv_bf = kv.astype(jnp.bfloat16)
        return (_split_heads(kv_bf[:, :D], heads, dph),
                _split_heads(kv_bf[:, D:], heads, dph))

    k1, v1 = kv_proj(mb1_ref[0])
    k2, v2 = kv_proj(mb2_ref[0])
    k3, v3 = kv_proj(mb3_ref[0])

    # Additive pad-mask biases, one per bank (reused by mid4/mid5).
    bias1 = jnp.where(sp1_ref[0] > 0.0, NEG_INF, 0.0)    # [1, S1]
    bias2 = jnp.where(sp2_ref[0] > 0.0, NEG_INF, 0.0)    # [1, S2]
    bias3 = jnp.where(sp3_ref[0] > 0.0, NEG_INF, 0.0)    # [1, S3]

    mid1 = _mha(q_qn, k1, v1, bias1, wo_c, bo_c)
    acc = query + mid1                        # incremental FFN-input accumulator
    acc = acc + _mha(q_qn, k2, v2, bias2, wo_c, bo_c)    # mid2
    acc = acc + _mha(q_qn, k3, v3, bias3, wo_c, bo_c)    # mid3

    # mid4 / mid5 query from mid1 (same ctx-attn weights, reuse k2/v2, k3/v3)
    q_m1 = jnp.dot(mid1.astype(jnp.bfloat16), wq_c,
                   preferred_element_type=jnp.float32) + bq_c
    acc = acc + _mha(q_m1, k2, v2, bias2, wo_c, bo_c)    # mid4
    acc = acc + _mha(q_m1, k3, v3, bias3, wo_c, bo_c)    # mid5

    ffn_in = acc

    # ---- PositionwiseFeedForward: LN -> Linear -> GELU -> Linear -> +resid --
    xn = _ln(ffn_in, fln_g_ref[...], fln_b_ref[...])
    h = jnp.dot(xn.astype(jnp.bfloat16), w1_ref[...],
                preferred_element_type=jnp.float32) + b1_ref[...]
    # PreSumm's gelu (tanh form); tanh runs on the EUP.
    h = 0.5 * h * (1.0 + jnp.tanh(0.7978845608028654 *
                                  (h + 0.044715 * h * h * h)))
    ff = jnp.dot(h.astype(jnp.bfloat16), w2_ref[...],
                 preferred_element_type=jnp.float32) + b2_ref[...]
    out_ref[0] = ff + ffn_in


def _final_ln_kernel(x_ref, g_ref, b_ref, o_ref):
    o_ref[0] = _ln(x_ref[0], g_ref[...], b_ref[...])


# ----------------------------------------------------------------------------
# pallas_call wrappers
# ----------------------------------------------------------------------------
def _vmem_limit_bytes(T, D, F, S1, S2, S3):
    """Explicit VMEM budget derived from the actual footprint (with the
    default double-buffered pipeline blocks), clamped to a sane range."""
    bf16, f32 = 2, 4
    # weights (bf16) + biases / LN params (f32)
    w = (3 * D * D + D * D + D * D + 2 * D * D + D * D + D * F + F * D) * bf16
    w += (3 * D + D + D + 2 * D + D + F + D + 6 * D) * f32
    # per-batch input blocks + pad flags + the two [T, D] outputs
    acts = (T * D + (S1 + S2 + S3) * D + T + S1 + S2 + S3) * f32
    outs = 2 * T * D * f32
    # rough bound on live in-kernel intermediates (qkv, 3 K/V banks, scores,
    # mids, FFN hidden)
    inter = (T * 3 * D + 3 * (S1 + S2 + S3) * D + 8 * T * D
             + T * max(S1, S2, S3, T) + T * F) * f32
    need = 2 * (w + acts + outs) + inter
    return int(min(max(need * 1.5, 32 * 1024 * 1024), 96 * 1024 * 1024))


def decoder_layer(x, mb1, mb2, mb3, tpad, sp1, sp2, sp3, lp, heads):
    B, T, D = x.shape
    assert D % heads == 0, "d_model must be divisible by heads"
    S1, S2, S3 = mb1.shape[1], mb2.shape[1], mb3.shape[1]
    F = lp['w1'].shape[1]

    per_b = lambda b: (b, 0, 0)
    full = lambda b: (0, 0)
    kernel = functools.partial(_decoder_layer_kernel, heads=heads)

    return pl.pallas_call(
        kernel,
        out_shape=(jax.ShapeDtypeStruct((B, T, D), jnp.float32),   # layer out
                   jax.ShapeDtypeStruct((B, T, D), jnp.float32)),  # all_input
        grid=(B,),
        in_specs=[
            pl.BlockSpec((1, T, D), per_b),        # x
            pl.BlockSpec((1, S1, D), per_b),       # memory bank 1
            pl.BlockSpec((1, S2, D), per_b),       # memory bank 2
            pl.BlockSpec((1, S3, D), per_b),       # memory bank 3
            pl.BlockSpec((1, 1, T), per_b),        # tgt pad flags
            pl.BlockSpec((1, 1, S1), per_b),       # src pad flags 1
            pl.BlockSpec((1, 1, S2), per_b),       # src pad flags 2
            pl.BlockSpec((1, 1, S3), per_b),       # src pad flags 3
            pl.BlockSpec((1, D), full),            # ln1 gamma
            pl.BlockSpec((1, D), full),            # ln1 beta
            pl.BlockSpec((D, 3 * D), full),        # self qkv W  (bf16)
            pl.BlockSpec((1, 3 * D), full),        # self qkv b
            pl.BlockSpec((D, D), full),            # self out W  (bf16)
            pl.BlockSpec((1, D), full),            # self out b
            pl.BlockSpec((1, D), full),            # ln2 gamma
            pl.BlockSpec((1, D), full),            # ln2 beta
            pl.BlockSpec((D, D), full),            # ctx q W     (bf16)
            pl.BlockSpec((1, D), full),            # ctx q b
            pl.BlockSpec((D, 2 * D), full),        # ctx kv W    (bf16)
            pl.BlockSpec((1, 2 * D), full),        # ctx kv b
            pl.BlockSpec((D, D), full),            # ctx out W   (bf16)
            pl.BlockSpec((1, D), full),            # ctx out b
            pl.BlockSpec((1, D), full),            # ffn ln gamma
            pl.BlockSpec((1, D), full),            # ffn ln beta
            pl.BlockSpec((D, F), full),            # ffn w1      (bf16)
            pl.BlockSpec((1, F), full),            # ffn b1
            pl.BlockSpec((F, D), full),            # ffn w2      (bf16)
            pl.BlockSpec((1, D), full),            # ffn b2
        ],
        out_specs=(pl.BlockSpec((1, T, D), per_b),
                   pl.BlockSpec((1, T, D), per_b)),
        compiler_params=pltpu.CompilerParams(
            dimension_semantics=("parallel",),
            vmem_limit_bytes=_vmem_limit_bytes(T, D, F, S1, S2, S3)),
    )(x, mb1, mb2, mb3, tpad, sp1, sp2, sp3,
      lp['ln1_g'], lp['ln1_b'],
      lp['w_qkv_s'], lp['b_qkv_s'], lp['wo_s'], lp['bo_s'],
      lp['ln2_g'], lp['ln2_b'],
      lp['wq_c'], lp['bq_c'], lp['w_kv_c'], lp['b_kv_c'], lp['wo_c'], lp['bo_c'],
      lp['fln_g'], lp['fln_b'], lp['w1'], lp['b1'], lp['w2'], lp['b2'])


def final_layer_norm(x, g, b):
    B, T, D = x.shape
    return pl.pallas_call(
        _final_ln_kernel,
        out_shape=jax.ShapeDtypeStruct((B, T, D), jnp.float32),
        grid=(B,),
        in_specs=[pl.BlockSpec((1, T, D), lambda i: (i, 0, 0)),
                  pl.BlockSpec((1, D), lambda i: (0, 0)),
                  pl.BlockSpec((1, D), lambda i: (0, 0))],
        out_specs=pl.BlockSpec((1, T, D), lambda i: (i, 0, 0)),
        compiler_params=pltpu.CompilerParams(dimension_semantics=("parallel",)),
    )(x, g, b)


# ----------------------------------------------------------------------------
# Model glue (parameters, positional encoding, full forward)
# ----------------------------------------------------------------------------
def positional_encoding(T, D):
    position = jnp.arange(T, dtype=jnp.float32)[:, None]
    div_term = jnp.exp(jnp.arange(0, D, 2, dtype=jnp.float32) *
                       (-math.log(10000.0) / D))
    pe = jnp.zeros((T, D), jnp.float32)
    pe = pe.at[:, 0::2].set(jnp.sin(position * div_term))
    pe = pe.at[:, 1::2].set(jnp.cos(position * div_term))
    return pe


def init_params(key, num_layers, d_model, d_ff, vocab, padding_idx=0):
    kit = iter(jax.random.split(key, 32 * num_layers + 8))
    BF = jnp.bfloat16

    def w(shape, scale=0.05, dtype=jnp.float32):
        v = scale * jax.random.normal(next(kit), shape, dtype=jnp.float32)
        return v.astype(dtype)

    layers = []
    for _ in range(num_layers):
        layers.append(dict(
            ln1_g=1.0 + w((1, d_model), 0.01), ln1_b=w((1, d_model), 0.01),
            # self-attn: packed q/k/v projection + output projection
            # NOTE: packed column order is [q | k | v]; match when porting
            # torch checkpoints.
            w_qkv_s=w((d_model, 3 * d_model), dtype=BF),
            b_qkv_s=w((1, 3 * d_model), 0.01),
            wo_s=w((d_model, d_model), dtype=BF), bo_s=w((1, d_model), 0.01),
            ln2_g=1.0 + w((1, d_model), 0.01), ln2_b=w((1, d_model), 0.01),
            # shared context-attn: q projection, packed [k | v] projection, out
            wq_c=w((d_model, d_model), dtype=BF), bq_c=w((1, d_model), 0.01),
            w_kv_c=w((d_model, 2 * d_model), dtype=BF),
            b_kv_c=w((1, 2 * d_model), 0.01),
            wo_c=w((d_model, d_model), dtype=BF), bo_c=w((1, d_model), 0.01),
            # feed-forward
            fln_g=1.0 + w((1, d_model), 0.01), fln_b=w((1, d_model), 0.01),
            w1=w((d_model, d_ff), dtype=BF), b1=w((1, d_ff), 0.01),
            w2=w((d_ff, d_model), dtype=BF), b2=w((1, d_model), 0.01),
        ))
    emb = w((vocab, d_model), 0.1)
    emb = emb.at[padding_idx].set(0.0)               # nn.Embedding(padding_idx)
    return dict(emb=emb, layers=layers,
                ln_g=1.0 + w((1, d_model), 0.01), ln_b=w((1, d_model), 0.01))


def decoder_forward(params, tgt, mb1, src1, mb2, src2, mb3, src3,
                    heads, padding_idx=0):
    B, T = tgt.shape
    D = params['emb'].shape[1]

    # embeddings + positional encoding (host-side glue)
    emb = params['emb'][tgt]                                        # [B, T, D]
    x = emb * math.sqrt(D) + positional_encoding(T, D)[None]

    # pad-flag vectors (1.0 == pad); dense [B,T,S] masks are built in-kernel.
    tpad = (tgt == padding_idx).astype(jnp.float32).reshape(B, 1, T)
    sp1 = (src1 == padding_idx).astype(jnp.float32).reshape(B, 1, src1.shape[1])
    sp2 = (src2 == padding_idx).astype(jnp.float32).reshape(B, 1, src2.shape[1])
    sp3 = (src3 == padding_idx).astype(jnp.float32).reshape(B, 1, src3.shape[1])

    # NOTE: the reference computes key_abs_similarity / key_refs_similarity but
    # the layers never consume them -> dead code, removed.

    saved_inputs = []
    for lp in params['layers']:
        x, all_input = decoder_layer(x, mb1, mb2, mb3, tpad, sp1, sp2, sp3,
                                     lp, heads)
        saved_inputs.append(all_input)

    output = final_layer_norm(x, params['ln_g'], params['ln_b'])
    return output, jnp.stack(saved_inputs)           # (output, saved_inputs)


# ----------------------------------------------------------------------------
if __name__ == "__main__":
    B, T, D, HEADS, D_FF = 2, 8, 32, 4, 64
    VOCAB, NUM_LAYERS = 50, 2
    S1, S2, S3 = 12, 10, 14

    key = jax.random.PRNGKey(0)
    (k_param, k_tgt, k_s1, k_s2, k_s3,
     k_m1, k_m2, k_m3) = jax.random.split(key, 8)

    params = init_params(k_param, NUM_LAYERS, D, D_FF, VOCAB)

    tgt = jax.random.randint(k_tgt, (B, T), 1, VOCAB, dtype=jnp.int32)
    tgt = tgt.at[1, -1].set(0)                       # one trailing tgt pad

    def make_src(k, S, n_pad):
        s = jax.random.randint(k, (B, S), 1, VOCAB, dtype=jnp.int32)
        return s.at[:, S - n_pad:].set(0)            # trailing src pads

    src1 = make_src(k_s1, S1, 2)
    src2 = make_src(k_s2, S2, 1)
    src3 = make_src(k_s3, S3, 3)

    mb1 = jax.random.normal(k_m1, (B, S1, D), jnp.float32)
    mb2 = jax.random.normal(k_m2, (B, S2, D), jnp.float32)
    mb3 = jax.random.normal(k_m3, (B, S3, D), jnp.float32)

    fwd = jax.jit(decoder_forward, static_argnames=("heads", "padding_idx"))
    output, saved_inputs = fwd(params, tgt, mb1, src1, mb2, src2, mb3, src3,
                               heads=HEADS)
    jax.block_until_ready(output)
    jax.block_until_ready(saved_inputs)

    assert output.shape == (B, T, D)
    assert saved_inputs.shape == (NUM_LAYERS, B, T, D)
    assert bool(jnp.all(jnp.isfinite(output)))
    print("KERNEL_OK")
</pallas_src>

<mosaic_0001>
module attributes {stable_mosaic.version = 11 : i64} {
  func.func @_final_ln_kernel(%arg0: i32, %arg1: memref<1x8x32xf32, #tpu.memory_space<vmem>>, %arg2: memref<1x32xf32, #tpu.memory_space<vmem>>, %arg3: memref<1x32xf32, #tpu.memory_space<vmem>>, %arg4: memref<1x8x32xf32, #tpu.memory_space<vmem>>) attributes {dimension_semantics = [#tpu.dimension_semantics<parallel>], iteration_bounds = array<i64: 2>, scalar_prefetch = 0 : i64, scratch_operands = 0 : i64, tpu.core_type = #tpu.core_type<tc>, window_params = [{transform_indices = @transform_0, window_bounds = array<i64: 1, 8, 32>}, {pipeline_mode = #tpu.pipeline_mode<synchronous>, transform_indices = @transform_1, window_bounds = array<i64: 1, 32>}, {pipeline_mode = #tpu.pipeline_mode<synchronous>, transform_indices = @transform_2, window_bounds = array<i64: 1, 32>}, {transform_indices = @transform_3, window_bounds = array<i64: 1, 8, 32>}]} {
    %c0 = arith.constant 0 : index
    %c0_0 = arith.constant 0 : index
    %c0_1 = arith.constant 0 : index
    %0 = vector.load %arg1[%c0, %c0_0, %c0_1] : memref<1x8x32xf32, #tpu.memory_space<vmem>>, vector<1x8x32xf32>
    %1 = vector.shape_cast %0 : vector<1x8x32xf32> to vector<8x32xf32>
    %c0_2 = arith.constant 0 : index
    %c0_3 = arith.constant 0 : index
    %2 = vector.load %arg2[%c0_2, %c0_3] : memref<1x32xf32, #tpu.memory_space<vmem>>, vector<1x32xf32>
    %c0_4 = arith.constant 0 : index
    %c0_5 = arith.constant 0 : index
    %3 = vector.load %arg3[%c0_4, %c0_5] : memref<1x32xf32, #tpu.memory_space<vmem>>, vector<1x32xf32>
    %cst = arith.constant dense<0.000000e+00> : vector<8xf32>
    %4 = vector.multi_reduction <add>, %1, %cst [1] : vector<8x32xf32> to vector<8xf32>
    %5 = vector.shape_cast %4 : vector<8xf32> to vector<8x1xf32>
    %cst_6 = arith.constant 3.200000e+01 : f32
    %6 = vector.broadcast %cst_6 : f32 to vector<8x1xf32>
    %7 = arith.divf %5, %6 : vector<8x1xf32>
    %8 = vector.broadcast %7 : vector<8x1xf32> to vector<8x32xf32>
    %9 = arith.subf %1, %8 : vector<8x32xf32>
    %10 = arith.mulf %9, %9 : vector<8x32xf32>
    %cst_7 = arith.constant dense<0.000000e+00> : vector<8xf32>
    %11 = vector.multi_reduction <add>, %10, %cst_7 [1] : vector<8x32xf32> to vector<8xf32>
    %12 = vector.shape_cast %11 : vector<8xf32> to vector<8x1xf32>
    %cst_8 = arith.constant 3.200000e+01 : f32
    %13 = vector.broadcast %cst_8 : f32 to vector<8x1xf32>
    %14 = arith.divf %12, %13 : vector<8x1xf32>
    %15 = vector.broadcast %7 : vector<8x1xf32> to vector<8x32xf32>
    %16 = arith.subf %1, %15 : vector<8x32xf32>
    %cst_9 = arith.constant 9.99999997E-7 : f32
    %17 = vector.broadcast %cst_9 : f32 to vector<8x1xf32>
    %18 = arith.addf %14, %17 : vector<8x1xf32>
    %19 = math.rsqrt %18 : vector<8x1xf32>
    %20 = vector.broadcast %19 : vector<8x1xf32> to vector<8x32xf32>
    %21 = arith.mulf %16, %20 : vector<8x32xf32>
    %22 = vector.broadcast %2 : vector<1x32xf32> to vector<8x32xf32>
    %23 = arith.mulf %21, %22 : vector<8x32xf32>
    %24 = vector.broadcast %3 : vector<1x32xf32> to vector<8x32xf32>
    %25 = arith.addf %23, %24 : vector<8x32xf32>
    %c0_10 = arith.constant 0 : index
    %c0_11 = arith.constant 0 : index
    %c0_12 = arith.constant 0 : index
    %26 = vector.load %arg4[%c0_10, %c0_11, %c0_12] : memref<1x8x32xf32, #tpu.memory_space<vmem>>, vector<1x8x32xf32>
    %27 = vector.shape_cast %26 : vector<1x8x32xf32> to vector<8x32xf32>
    %28 = vector.shape_cast %25 : vector<8x32xf32> to vector<1x8x32xf32>
    tpu.vector_store %arg4[%c0_10, %c0_11, %c0_12], %28 {strides = array<i32>} : memref<1x8x32xf32, #tpu.memory_space<vmem>>, vector<1x8x32xf32>,
    return
  }
  func.func @transform_0(%arg0: i32) -> (i32, i32, i32) {
    %c0_i32 = arith.constant 0 : i32
    %c0_i32_0 = arith.constant 0 : i32
    %c0_i32_1 = arith.constant 0 : i32
    return %arg0, %c0_i32, %c0_i32_0 : i32, i32, i32
  }
  func.func @transform_1(%arg0: i32) -> (i32, i32) {
    %c0_i32 = arith.constant 0 : i32
    %c0_i32_0 = arith.constant 0 : i32
    %c0_i32_1 = arith.constant 0 : i32
    return %c0_i32, %c0_i32_0 : i32, i32
  }
  func.func @transform_2(%arg0: i32) -> (i32, i32) {
    %c0_i32 = arith.constant 0 : i32
    %c0_i32_0 = arith.constant 0 : i32
    %c0_i32_1 = arith.constant 0 : i32
    return %c0_i32, %c0_i32_0 : i32, i32
  }
  func.func @transform_3(%arg0: i32) -> (i32, i32, i32) {
    %c0_i32 = arith.constant 0 : i32
    %c0_i32_0 = arith.constant 0 : i32
    %c0_i32_1 = arith.constant 0 : i32
    return %arg0, %c0_i32, %c0_i32_0 : i32, i32, i32
  }
}

module attributes {stable_mosaic.version = 11 : i64} {
  func.func @_decoder_layer_kernel(%arg0: i32, %arg1: memref<1x8x32xf32, #tpu.memory_space<vmem>>, %arg2: memref<1x12x32xf32, #tpu.memory_space<vmem>>, %arg3: memref<1x10x32xf32, #tpu.memory_space<vmem>>, %arg4: memref<1x14x32xf32, #tpu.memory_space<vmem>>, %arg5: memref<1x1x8xf32, #tpu.memory_space<vmem>>, %arg6: memref<1x1x12xf32, #tpu.memory_space<vmem>>, %arg7: memref<1x1x10xf32, #tpu.memory_space<vmem>>, %arg8: memref<1x1x14xf32, #tpu.memory_space<vmem>>, %arg9: memref<1x32xf32, #tpu.memory_space<vmem>>, %arg10: memref<1x32xf32, #tpu.memory_space<vmem>>, %arg11: memref<32x96xbf16, #tpu.memory_space<vmem>>, %arg12: memref<1x96xf32, #tpu.memory_space<vmem>>, %arg13: memref<32x32xbf16, #tpu.memory_space<vmem>>, %arg14: memref<1x32xf32, #tpu.memory_space<vmem>>, %arg15: memref<1x32xf32, #tpu.memory_space<vmem>>, %arg16: memref<1x32xf32, #tpu.memory_space<vmem>>, %arg17: memref<32x32xbf16, #tpu.memory_space<vmem>>, %arg18: memref<1x32xf32, #tpu.memory_space<vmem>>, %arg19: memref<32x64xbf16, #tpu.memory_space<vmem>>, %arg20: memref<1x64xf32, #tpu.memory_space<vmem>>, %arg21: memref<32x32xbf16, #tpu.memory_space<vmem>>, %arg22: memref<1x32xf32, #tpu.memory_space<vmem>>, %arg23: memref<1x32xf32, #tpu.memory_space<vmem>>, %arg24: memref<1x32xf32, #tpu.memory_space<vmem>>, %arg25: memref<32x64xbf16, #tpu.memory_space<vmem>>, %arg26: memref<1x64xf32, #tpu.memory_space<vmem>>, %arg27: memref<64x32xbf16, #tpu.memory_space<vmem>>, %arg28: memref<1x32xf32, #tpu.memory_space<vmem>>, %arg29: memref<1x8x32xf32, #tpu.memory_space<vmem>>, %arg30: memref<1x8x32xf32, #tpu.memory_space<vmem>>) attributes {dimension_semantics = [#tpu.dimension_semantics<parallel>], iteration_bounds = array<i64: 2>, scalar_prefetch = 0 : i64, scratch_operands = 0 : i64, tpu.core_type = #tpu.core_type<tc>, window_params = [{transform_indices = @transform_0, window_bounds = array<i64: 1, 8, 32>}, {transform_indices = @transform_1, window_bounds = array<i64: 1, 12, 32>}, {transform_indices = @transform_2, window_bounds = array<i64: 1, 10, 32>}, {transform_indices = @transform_3, window_bounds = array<i64: 1, 14, 32>}, {transform_indices = @transform_4, window_bounds = array<i64: 1, 1, 8>}, {transform_indices = @transform_5, window_bounds = array<i64: 1, 1, 12>}, {transform_indices = @transform_6, window_bounds = array<i64: 1, 1, 10>}, {transform_indices = @transform_7, window_bounds = array<i64: 1, 1, 14>}, {pipeline_mode = #tpu.pipeline_mode<synchronous>, transform_indices = @transform_8, window_bounds = array<i64: 1, 32>}, {pipeline_mode = #tpu.pipeline_mode<synchronous>, transform_indices = @transform_9, window_bounds = array<i64: 1, 32>}, {pipeline_mode = #tpu.pipeline_mode<synchronous>, transform_indices = @transform_10, window_bounds = array<i64: 32, 96>}, {pipeline_mode = #tpu.pipeline_mode<synchronous>, transform_indices = @transform_11, window_bounds = array<i64: 1, 96>}, {pipeline_mode = #tpu.pipeline_mode<synchronous>, transform_indices = @transform_12, window_bounds = array<i64: 32, 32>}, {pipeline_mode = #tpu.pipeline_mode<synchronous>, transform_indices = @transform_13, window_bounds = array<i64: 1, 32>}, {pipeline_mode = #tpu.pipeline_mode<synchronous>, transform_indices = @transform_14, window_bounds = array<i64: 1, 32>}, {pipeline_mode = #tpu.pipeline_mode<synchronous>, transform_indices = @transform_15, window_bounds = array<i64: 1, 32>}, {pipeline_mode = #tpu.pipeline_mode<synchronous>, transform_indices = @transform_16, window_bounds = array<i64: 32, 32>}, {pipeline_mode = #tpu.pipeline_mode<synchronous>, transform_indices = @transform_17, window_bounds = array<i64: 1, 32>}, {pipeline_mode = #tpu.pipeline_mode<synchronous>, transform_indices = @transform_18, window_bounds = array<i64: 32, 64>}, {pipeline_mode = #tpu.pipeline_mode<synchronous>, transform_indices = @transform_19, window_bounds = array<i64: 1, 64>}, {pipeline_mode = #tpu.pipeline_mode<synchronous>, transform_indices = @transform_20, window_bounds = array<i64: 32, 32>}, {pipeline_mode = #tpu.pipeline_mode<synchronous>, transform_indices = @transform_21, window_bounds = array<i64: 1, 32>}, {pipeline_mode = #tpu.pipeline_mode<synchronous>, transform_indices = @transform_22, window_bounds = array<i64: 1, 32>}, {pipeline_mode = #tpu.pipeline_mode<synchronous>, transform_indices = @transform_23, window_bounds = array<i64: 1, 32>}, {pipeline_mode = #tpu.pipeline_mode<synchronous>, transform_indices = @transform_24, window_bounds = array<i64: 32, 64>}, {pipeline_mode = #tpu.pipeline_mode<synchronous>, transform_indices = @transform_25, window_bounds = array<i64: 1, 64>}, {pipeline_mode = #tpu.pipeline_mode<synchronous>, transform_indices = @transform_26, window_bounds = array<i64: 64, 32>}, {pipeline_mode = #tpu.pipeline_mode<synchronous>, transform_indices = @transform_27, window_bounds = array<i64: 1, 32>}, {transform_indices = @transform_28, window_bounds = array<i64: 1, 8, 32>}, {transform_indices = @transform_29, window_bounds = array<i64: 1, 8, 32>}]} {
    %c0 = arith.constant 0 : index
    %c0_0 = arith.constant 0 : index
    %c0_1 = arith.constant 0 : index
    %0 = vector.load %arg1[%c0, %c0_0, %c0_1] : memref<1x8x32xf32, #tpu.memory_space<vmem>>, vector<1x8x32xf32>
    %1 = vector.shape_cast %0 : vector<1x8x32xf32> to vector<8x32xf32>
    %c0_2 = arith.constant 0 : index
    %c0_3 = arith.constant 0 : index
    %2 = vector.load %arg9[%c0_2, %c0_3] : memref<1x32xf32, #tpu.memory_space<vmem>>, vector<1x32xf32>
    %c0_4 = arith.constant 0 : index
    %c0_5 = arith.constant 0 : index
    %3 = vector.load %arg10[%c0_4, %c0_5] : memref<1x32xf32, #tpu.memory_space<vmem>>, vector<1x32xf32>
    %cst = arith.constant dense<0.000000e+00> : vector<8xf32>
    %4 = vector.multi_reduction <add>, %1, %cst [1] : vector<8x32xf32> to vector<8xf32>
    %5 = vector.shape_cast %4 : vector<8xf32> to vector<8x1xf32>
    %cst_6 = arith.constant 3.200000e+01 : f32
    %6 = vector.broadcast %cst_6 : f32 to vector<8x1xf32>
    %7 = arith.divf %5, %6 : vector<8x1xf32>
    %8 = vector.broadcast %7 : vector<8x1xf32> to vector<8x32xf32>
    %9 = arith.subf %1, %8 : vector<8x32xf32>
    %10 = arith.mulf %9, %9 : vector<8x32xf32>
    %cst_7 = arith.constant dense<0.000000e+00> : vector<8xf32>
    %11 = vector.multi_reduction <add>, %10, %cst_7 [1] : vector<8x32xf32> to vector<8xf32>
    %12 = vector.shape_cast %11 : vector<8xf32> to vector<8x1xf32>
    %cst_8 = arith.constant 3.200000e+01 : f32
    %13 = vector.broadcast %cst_8 : f32 to vector<8x1xf32>
    %14 = arith.divf %12, %13 : vector<8x1xf32>
    %15 = vector.broadcast %7 : vector<8x1xf32> to vector<8x32xf32>
    %16 = arith.subf %1, %15 : vector<8x32xf32>
    %cst_9 = arith.constant 9.99999997E-7 : f32
    %17 = vector.broadcast %cst_9 : f32 to vector<8x1xf32>
    %18 = arith.addf %14, %17 : vector<8x1xf32>
    %19 = math.rsqrt %18 : vector<8x1xf32>
    %20 = vector.broadcast %19 : vector<8x1xf32> to vector<8x32xf32>
    %21 = arith.mulf %16, %20 : vector<8x32xf32>
    %22 = vector.broadcast %2 : vector<1x32xf32> to vector<8x32xf32>
    %23 = arith.mulf %21, %22 : vector<8x32xf32>
    %24 = vector.broadcast %3 : vector<1x32xf32> to vector<8x32xf32>
    %25 = arith.addf %23, %24 : vector<8x32xf32>
    %c0_10 = arith.constant 0 : index
    %c0_11 = arith.constant 0 : index
    %c0_12 = arith.constant 0 : index
    %26 = vector.load %arg30[%c0_10, %c0_11, %c0_12] : memref<1x8x32xf32, #tpu.memory_space<vmem>>, vector<1x8x32xf32>
    %27 = vector.shape_cast %26 : vector<1x8x32xf32> to vector<8x32xf32>
    %28 = vector.shape_cast %25 : vector<8x32xf32> to vector<1x8x32xf32>
    tpu.vector_store %arg30[%c0_10, %c0_11, %c0_12], %28 {strides = array<i32>} : memref<1x8x32xf32, #tpu.memory_space<vmem>>, vector<1x8x32xf32>,
    %29 = arith.truncf %25 : vector<8x32xf32> to vector<8x32xbf16>
    %c0_13 = arith.constant 0 : index
    %c0_14 = arith.constant 0 : index
    %30 = vector.load %arg11[%c0_13, %c0_14] : memref<32x96xbf16, #tpu.memory_space<vmem>>, vector<32x96xbf16>
    %cst_15 = arith.constant dense<0.000000e+00> : vector<8x96xf32>
    %31 = tpu.matmul %29, %30, %cst_15 {dimension_numbers = #tpu.dot_dimension_numbers<[1], [0], [0], [1], [0, 0, 1, 1], [], []>} : vector<8x32xbf16>, vector<32x96xbf16>, vector<8x96xf32> -> vector<8x96xf32>
    %c0_16 = arith.constant 0 : index
    %c0_17 = arith.constant 0 : index
    %32 = vector.load %arg12[%c0_16, %c0_17] : memref<1x96xf32, #tpu.memory_space<vmem>>, vector<1x96xf32>
    %33 = vector.broadcast %32 : vector<1x96xf32> to vector<8x96xf32>
    %34 = arith.addf %31, %33 : vector<8x96xf32>
    %35 = vector.extract_strided_slice %34 {offsets = [0, 0], sizes = [8, 32], strides = [1, 1]} : vector<8x96xf32> to vector<8x32xf32>
    %36 = vector.extract_strided_slice %34 {offsets = [0, 32], sizes = [8, 32], strides = [1, 1]} : vector<8x96xf32> to vector<8x32xf32>
    %37 = arith.truncf %36 : vector<8x32xf32> to vector<8x32xbf16>
    %38 = vector.shape_cast %37 : vector<8x32xbf16> to vector<8x4x8xbf16>
    %39 = tpu.transpose %38, [1, 0, 2] : vector<8x4x8xbf16> -> vector<4x8x8xbf16>
    %40 = vector.extract_strided_slice %34 {offsets = [0, 64], sizes = [8, 32], strides = [1, 1]} : vector<8x96xf32> to vector<8x32xf32>
    %41 = arith.truncf %40 : vector<8x32xf32> to vector<8x32xbf16>
    %42 = vector.shape_cast %41 : vector<8x32xbf16> to vector<8x4x8xbf16>
    %43 = tpu.transpose %42, [1, 0, 2] : vector<8x4x8xbf16> -> vector<4x8x8xbf16>
    %44 = tpu.iota {dimensions = array<i32: 0>} : vector<8x8xi32>
    %45 = tpu.iota {dimensions = array<i32: 1>} : vector<8x8xi32>
    %46 = arith.cmpi sgt, %45, %44 : vector<8x8xi32>
    %c0_18 = arith.constant 0 : index
    %c0_19 = arith.constant 0 : index
    %c0_20 = arith.constant 0 : index
    %47 = vector.load %arg5[%c0_18, %c0_19, %c0_20] : memref<1x1x8xf32, #tpu.memory_space<vmem>>, vector<1x1x8xf32>
    %48 = vector.shape_cast %47 : vector<1x1x8xf32> to vector<1x8xf32>
    %cst_21 = arith.constant 0.000000e+00 : f32
    %49 = vector.broadcast %cst_21 : f32 to vector<1x8xf32>
    %50 = arith.cmpf ogt, %48, %49 : vector<1x8xf32>
    %51 = vector.broadcast %50 : vector<1x8xi1> to vector<8x8xi1>
    %52 = arith.ori %46, %51 : vector<8x8xi1>
    %cst_22 = arith.constant -9.99999984E+17 : f32
    %cst_23 = arith.constant 0.000000e+00 : f32
    %53 = vector.broadcast %cst_22 : f32 to vector<8x8xf32>
    %54 = vector.broadcast %cst_23 : f32 to vector<8x8xf32>
    %55 = arith.select %52, %53, %54 : vector<8x8xi1>, vector<8x8xf32>
    %c0_24 = arith.constant 0 : index
    %c0_25 = arith.constant 0 : index
    %56 = vector.load %arg13[%c0_24, %c0_25] : memref<32x32xbf16, #tpu.memory_space<vmem>>, vector<32x32xbf16>
    %c0_26 = arith.constant 0 : index
    %c0_27 = arith.constant 0 : index
    %57 = vector.load %arg14[%c0_26, %c0_27] : memref<1x32xf32, #tpu.memory_space<vmem>>, vector<1x32xf32>
    %cst_28 = arith.constant 0.353553385 : f32
    %58 = vector.broadcast %cst_28 : f32 to vector<8x32xf32>
    %59 = arith.mulf %35, %58 : vector<8x32xf32>
    %60 = arith.truncf %59 : vector<8x32xf32> to vector<8x32xbf16>
    %61 = vector.shape_cast %60 : vector<8x32xbf16> to vector<8x4x8xbf16>
    %62 = tpu.transpose %61, [1, 0, 2] : vector<8x4x8xbf16> -> vector<4x8x8xbf16>
    "tpu.trace_start"() <{level = 10 : i32, message = "htd,hsd->hts"}> : () -> ()
    %cst_29 = arith.constant dense<0.000000e+00> : vector<4x8x8xf32>
    %63 = tpu.matmul %62, %39, %cst_29 {dimension_numbers = #tpu.dot_dimension_numbers<[2], [2], [1], [1], [0, 0, 0, 1, 1, 1], [0], [0]>} : vector<4x8x8xbf16>, vector<4x8x8xbf16>, vector<4x8x8xf32> -> vector<4x8x8xf32>
    "tpu.trace_stop"() : () -> ()
    %64 = vector.shape_cast %55 : vector<8x8xf32> to vector<1x8x8xf32>
    %65 = vector.broadcast %64 : vector<1x8x8xf32> to vector<4x8x8xf32>
    %66 = arith.addf %63, %65 : vector<4x8x8xf32>
    %cst_30 = arith.constant dense<0xFF800000> : vector<4x8xf32>
    %67 = vector.multi_reduction <maximumf>, %66, %cst_30 [2] : vector<4x8x8xf32> to vector<4x8xf32>
    %68 = vector.shape_cast %67 : vector<4x8xf32> to vector<4x8x1xf32>
    %69 = vector.broadcast %68 : vector<4x8x1xf32> to vector<4x8x8xf32>
    %70 = arith.subf %66, %69 : vector<4x8x8xf32>
    %71 = math.exp %70 : vector<4x8x8xf32>
    %cst_31 = arith.constant dense<0.000000e+00> : vector<4x8xf32>
    %72 = vector.multi_reduction <add>, %71, %cst_31 [2] : vector<4x8x8xf32> to vector<4x8xf32>
    %73 = vector.shape_cast %72 : vector<4x8xf32> to vector<4x8x1xf32>
    %74 = tpu.reciprocal %73 {approx = true} : vector<4x8x1xf32> -> vector<4x8x1xf32>
    %75 = vector.broadcast %74 : vector<4x8x1xf32> to vector<4x8x8xf32>
    %76 = arith.mulf %71, %75 : vector<4x8x8xf32>
    %77 = arith.truncf %76 : vector<4x8x8xf32> to vector<4x8x8xbf16>
    "tpu.trace_start"() <{level = 10 : i32, message = "hts,hsd->htd"}> : () -> ()
    %cst_32 = arith.constant dense<0.000000e+00> : vector<4x8x8xf32>
    %78 = tpu.matmul %77, %43, %cst_32 {dimension_numbers = #tpu.dot_dimension_numbers<[2], [1], [1], [2], [0, 0, 0, 1, 1, 2], [0], [0]>} : vector<4x8x8xbf16>, vector<4x8x8xbf16>, vector<4x8x8xf32> -> vector<4x8x8xf32>
    "tpu.trace_stop"() : () -> ()
    %79 = arith.truncf %78 : vector<4x8x8xf32> to vector<4x8x8xbf16>
    %80 = tpu.transpose %79, [1, 0, 2] : vector<4x8x8xbf16> -> vector<8x4x8xbf16>
    %81 = vector.shape_cast %80 : vector<8x4x8xbf16> to vector<8x32xbf16>
    %cst_33 = arith.constant dense<0.000000e+00> : vector<8x32xf32>
    %82 = tpu.matmul %81, %56, %cst_33 {dimension_numbers = #tpu.dot_dimension_numbers<[1], [0], [0], [1], [0, 0, 1, 1], [], []>} : vector<8x32xbf16>, vector<32x32xbf16>, vector<8x32xf32> -> vector<8x32xf32>
    %83 = vector.broadcast %57 : vector<1x32xf32> to vector<8x32xf32>
    %84 = arith.addf %82, %83 : vector<8x32xf32>
    %85 = arith.addf %84, %1 : vector<8x32xf32>
    %c0_34 = arith.constant 0 : index
    %c0_35 = arith.constant 0 : index
    %86 = vector.load %arg15[%c0_34, %c0_35] : memref<1x32xf32, #tpu.memory_space<vmem>>, vector<1x32xf32>
    %c0_36 = arith.constant 0 : index
    %c0_37 = arith.constant 0 : index
    %87 = vector.load %arg16[%c0_36, %c0_37] : memref<1x32xf32, #tpu.memory_space<vmem>>, vector<1x32xf32>
    %cst_38 = arith.constant dense<0.000000e+00> : vector<8xf32>
    %88 = vector.multi_reduction <add>, %85, %cst_38 [1] : vector<8x32xf32> to vector<8xf32>
    %89 = vector.shape_cast %88 : vector<8xf32> to vector<8x1xf32>
    %cst_39 = arith.constant 3.200000e+01 : f32
    %90 = vector.broadcast %cst_39 : f32 to vector<8x1xf32>
    %91 = arith.divf %89, %90 : vector<8x1xf32>
    %92 = vector.broadcast %91 : vector<8x1xf32> to vector<8x32xf32>
    %93 = arith.subf %85, %92 : vector<8x32xf32>
    %94 = arith.mulf %93, %93 : vector<8x32xf32>
    %cst_40 = arith.constant dense<0.000000e+00> : vector<8xf32>
    %95 = vector.multi_reduction <add>, %94, %cst_40 [1] : vector<8x32xf32> to vector<8xf32>
    %96 = vector.shape_cast %95 : vector<8xf32> to vector<8x1xf32>
    %cst_41 = arith.constant 3.200000e+01 : f32
    %97 = vector.broadcast %cst_41 : f32 to vector<8x1xf32>
    %98 = arith.divf %96, %97 : vector<8x1xf32>
    %99 = vector.broadcast %91 : vector<8x1xf32> to vector<8x32xf32>
    %100 = arith.subf %85, %99 : vector<8x32xf32>
    %cst_42 = arith.constant 9.99999997E-7 : f32
    %101 = vector.broadcast %cst_42 : f32 to vector<8x1xf32>
    %102 = arith.addf %98, %101 : vector<8x1xf32>
    %103 = math.rsqrt %102 : vector<8x1xf32>
    %104 = vector.broadcast %103 : vector<8x1xf32> to vector<8x32xf32>
    %105 = arith.mulf %100, %104 : vector<8x32xf32>
    %106 = vector.broadcast %86 : vector<1x32xf32> to vector<8x32xf32>
    %107 = arith.mulf %105, %106 : vector<8x32xf32>
    %108 = vector.broadcast %87 : vector<1x32xf32> to vector<8x32xf32>
    %109 = arith.addf %107, %108 : vector<8x32xf32>
    %c0_43 = arith.constant 0 : index
    %c0_44 = arith.constant 0 : index
    %110 = vector.load %arg17[%c0_43, %c0_44] : memref<32x32xbf16, #tpu.memory_space<vmem>>, vector<32x32xbf16>
    %c0_45 = arith.constant 0 : index
    %c0_46 = arith.constant 0 : index
    %111 = vector.load %arg18[%c0_45, %c0_46] : memref<1x32xf32, #tpu.memory_space<vmem>>, vector<1x32xf32>
    %c0_47 = arith.constant 0 : index
    %c0_48 = arith.constant 0 : index
    %112 = vector.load %arg19[%c0_47, %c0_48] : memref<32x64xbf16, #tpu.memory_space<vmem>>, vector<32x64xbf16>
    %c0_49 = arith.constant 0 : index
    %c0_50 = arith.constant 0 : index
    %113 = vector.load %arg20[%c0_49, %c0_50] : memref<1x64xf32, #tpu.memory_space<vmem>>, vector<1x64xf32>
    %c0_51 = arith.constant 0 : index
    %c0_52 = arith.constant 0 : index
    %114 = vector.load %arg21[%c0_51, %c0_52] : memref<32x32xbf16, #tpu.memory_space<vmem>>, vector<32x32xbf16>
    %c0_53 = arith.constant 0 : index
    %c0_54 = arith.constant 0 : index
    %115 = vector.load %arg22[%c0_53, %c0_54] : memref<1x32xf32, #tpu.memory_space<vmem>>, vector<1x32xf32>
    %116 = arith.truncf %109 : vector<8x32xf32> to vector<8x32xbf16>
    %cst_55 = arith.constant dense<0.000000e+00> : vector<8x32xf32>
    %117 = tpu.matmul %116, %110, %cst_55 {dimension_numbers = #tpu.dot_dimension_numbers<[1], [0], [0], [1], [0, 0, 1, 1], [], []>} : vector<8x32xbf16>, vector<32x32xbf16>, vector<8x32xf32> -> vector<8x32xf32>
    %118 = vector.broadcast %111 : vector<1x32xf32> to vector<8x32xf32>
    %119 = arith.addf %117, %118 : vector<8x32xf32>
    %c0_56 = arith.constant 0 : index
    %c0_57 = arith.constant 0 : index
    %c0_58 = arith.constant 0 : index
    %120 = vector.load %arg2[%c0_56, %c0_57, %c0_58] : memref<1x12x32xf32, #tpu.memory_space<vmem>>, vector<1x12x32xf32>
    %121 = vector.shape_cast %120 : vector<1x12x32xf32> to vector<12x32xf32>
    %122 = arith.truncf %121 : vector<12x32xf32> to vector<12x32xbf16>
    %cst_59 = arith.constant dense<0.000000e+00> : vector<12x64xf32>
    %123 = tpu.matmul %122, %112, %cst_59 {dimension_numbers = #tpu.dot_dimension_numbers<[1], [0], [0], [1], [0, 0, 1, 1], [], []>} : vector<12x32xbf16>, vector<32x64xbf16>, vector<12x64xf32> -> vector<12x64xf32>
    %124 = vector.broadcast %113 : vector<1x64xf32> to vector<12x64xf32>
    %125 = arith.addf %123, %124 : vector<12x64xf32>
    %126 = arith.truncf %125 : vector<12x64xf32> to vector<12x64xbf16>
    %127 = vector.extract_strided_slice %126 {offsets = [0, 0], sizes = [12, 32], strides = [1, 1]} : vector<12x64xbf16> to vector<12x32xbf16>
    %128 = vector.shape_cast %127 : vector<12x32xbf16> to vector<12x4x8xbf16>
    %129 = tpu.transpose %128, [1, 0, 2] : vector<12x4x8xbf16> -> vector<4x12x8xbf16>
    %130 = vector.extract_strided_slice %126 {offsets = [0, 32], sizes = [12, 32], strides = [1, 1]} : vector<12x64xbf16> to vector<12x32xbf16>
    %131 = vector.shape_cast %130 : vector<12x32xbf16> to vector<12x4x8xbf16>
    %132 = tpu.transpose %131, [1, 0, 2] : vector<12x4x8xbf16> -> vector<4x12x8xbf16>
    %c0_60 = arith.constant 0 : index
    %c0_61 = arith.constant 0 : index
    %c0_62 = arith.constant 0 : index
    %133 = vector.load %arg3[%c0_60, %c0_61, %c0_62] : memref<1x10x32xf32, #tpu.memory_space<vmem>>, vector<1x10x32xf32>
    %134 = vector.shape_cast %133 : vector<1x10x32xf32> to vector<10x32xf32>
    %135 = arith.truncf %134 : vector<10x32xf32> to vector<10x32xbf16>
    %cst_63 = arith.constant dense<0.000000e+00> : vector<10x64xf32>
    %136 = tpu.matmul %135, %112, %cst_63 {dimension_numbers = #tpu.dot_dimension_numbers<[1], [0], [0], [1], [0, 0, 1, 1], [], []>} : vector<10x32xbf16>, vector<32x64xbf16>, vector<10x64xf32> -> vector<10x64xf32>
    %137 = vector.broadcast %113 : vector<1x64xf32> to vector<10x64xf32>
    %138 = arith.addf %136, %137 : vector<10x64xf32>
    %139 = arith.truncf %138 : vector<10x64xf32> to vector<10x64xbf16>
    %140 = vector.extract_strided_slice %139 {offsets = [0, 0], sizes = [10, 32], strides = [1, 1]} : vector<10x64xbf16> to vector<10x32xbf16>
    %141 = vector.shape_cast %140 : vector<10x32xbf16> to vector<10x4x8xbf16>
    %142 = tpu.transpose %141, [1, 0, 2] : vector<10x4x8xbf16> -> vector<4x10x8xbf16>
    %143 = vector.extract_strided_slice %139 {offsets = [0, 32], sizes = [10, 32], strides = [1, 1]} : vector<10x64xbf16> to vector<10x32xbf16>
    %144 = vector.shape_cast %143 : vector<10x32xbf16> to vector<10x4x8xbf16>
    %145 = tpu.transpose %144, [1, 0, 2] : vector<10x4x8xbf16> -> vector<4x10x8xbf16>
    %c0_64 = arith.constant 0 : index
    %c0_65 = arith.constant 0 : index
    %c0_66 = arith.constant 0 : index
    %146 = vector.load %arg4[%c0_64, %c0_65, %c0_66] : memref<1x14x32xf32, #tpu.memory_space<vmem>>, vector<1x14x32xf32>
    %147 = vector.shape_cast %146 : vector<1x14x32xf32> to vector<14x32xf32>
    %148 = arith.truncf %147 : vector<14x32xf32> to vector<14x32xbf16>
    %cst_67 = arith.constant dense<0.000000e+00> : vector<14x64xf32>
    %149 = tpu.matmul %148, %112, %cst_67 {dimension_numbers = #tpu.dot_dimension_numbers<[1], [0], [0], [1], [0, 0, 1, 1], [], []>} : vector<14x32xbf16>, vector<32x64xbf16>, vector<14x64xf32> -> vector<14x64xf32>
    %150 = vector.broadcast %113 : vector<1x64xf32> to vector<14x64xf32>
    %151 = arith.addf %149, %150 : vector<14x64xf32>
    %152 = arith.truncf %151 : vector<14x64xf32> to vector<14x64xbf16>
    %153 = vector.extract_strided_slice %152 {offsets = [0, 0], sizes = [14, 32], strides = [1, 1]} : vector<14x64xbf16> to vector<14x32xbf16>
    %154 = vector.shape_cast %153 : vector<14x32xbf16> to vector<14x4x8xbf16>
    %155 = tpu.transpose %154, [1, 0, 2] : vector<14x4x8xbf16> -> vector<4x14x8xbf16>
    %156 = vector.extract_strided_slice %152 {offsets = [0, 32], sizes = [14, 32], strides = [1, 1]} : vector<14x64xbf16> to vector<14x32xbf16>
    %157 = vector.shape_cast %156 : vector<14x32xbf16> to vector<14x4x8xbf16>
    %158 = tpu.transpose %157, [1, 0, 2] : vector<14x4x8xbf16> -> vector<4x14x8xbf16>
    %c0_68 = arith.constant 0 : index
    %c0_69 = arith.constant 0 : index
    %c0_70 = arith.constant 0 : index
    %159 = vector.load %arg6[%c0_68, %c0_69, %c0_70] : memref<1x1x12xf32, #tpu.memory_space<vmem>>, vector<1x1x12xf32>
    %160 = vector.shape_cast %159 : vector<1x1x12xf32> to vector<1x12xf32>
    %cst_71 = arith.constant 0.000000e+00 : f32
    %161 = vector.broadcast %cst_71 : f32 to vector<1x12xf32>
    %162 = arith.cmpf ogt, %160, %161 : vector<1x12xf32>
    %cst_72 = arith.constant -9.99999984E+17 : f32
    %cst_73 = arith.constant 0.000000e+00 : f32
    %163 = vector.broadcast %cst_72 : f32 to vector<1x12xf32>
    %164 = vector.broadcast %cst_73 : f32 to vector<1x12xf32>
    %165 = arith.select %162, %163, %164 : vector<1x12xi1>, vector<1x12xf32>
    %c0_74 = arith.constant 0 : index
    %c0_75 = arith.constant 0 : index
    %c0_76 = arith.constant 0 : index
    %166 = vector.load %arg7[%c0_74, %c0_75, %c0_76] : memref<1x1x10xf32, #tpu.memory_space<vmem>>, vector<1x1x10xf32>
    %167 = vector.shape_cast %166 : vector<1x1x10xf32> to vector<1x10xf32>
    %cst_77 = arith.constant 0.000000e+00 : f32
    %168 = vector.broadcast %cst_77 : f32 to vector<1x10xf32>
    %169 = arith.cmpf ogt, %167, %168 : vector<1x10xf32>
    %cst_78 = arith.constant -9.99999984E+17 : f32
    %cst_79 = arith.constant 0.000000e+00 : f32
    %170 = vector.broadcast %cst_78 : f32 to vector<1x10xf32>
    %171 = vector.broadcast %cst_79 : f32 to vector<1x10xf32>
    %172 = arith.select %169, %170, %171 : vector<1x10xi1>, vector<1x10xf32>
    %c0_80 = arith.constant 0 : index
    %c0_81 = arith.constant 0 : index
    %c0_82 = arith.constant 0 : index
    %173 = vector.load %arg8[%c0_80, %c0_81, %c0_82] : memref<1x1x14xf32, #tpu.memory_space<vmem>>, vector<1x1x14xf32>
    %174 = vector.shape_cast %173 : vector<1x1x14xf32> to vector<1x14xf32>
    %cst_83 = arith.constant 0.000000e+00 : f32
    %175 = vector.broadcast %cst_83 : f32 to vector<1x14xf32>
    %176 = arith.cmpf ogt, %174, %175 : vector<1x14xf32>
    %cst_84 = arith.constant -9.99999984E+17 : f32
    %cst_85 = arith.constant 0.000000e+00 : f32
    %177 = vector.broadcast %cst_84 : f32 to vector<1x14xf32>
    %178 = vector.broadcast %cst_85 : f32 to vector<1x14xf32>
    %179 = arith.select %176, %177, %178 : vector<1x14xi1>, vector<1x14xf32>
    %cst_86 = arith.constant 0.353553385 : f32
    %180 = vector.broadcast %cst_86 : f32 to vector<8x32xf32>
    %181 = arith.mulf %119, %180 : vector<8x32xf32>
    %182 = arith.truncf %181 : vector<8x32xf32> to vector<8x32xbf16>
    %183 = vector.shape_cast %182 : vector<8x32xbf16> to vector<8x4x8xbf16>
    %184 = tpu.transpose %183, [1, 0, 2] : vector<8x4x8xbf16> -> vector<4x8x8xbf16>
    "tpu.trace_start"() <{level = 10 : i32, message = "htd,hsd->hts"}> : () -> ()
    %cst_87 = arith.constant dense<0.000000e+00> : vector<4x8x12xf32>
    %185 = tpu.matmul %184, %129, %cst_87 {dimension_numbers = #tpu.dot_dimension_numbers<[2], [2], [1], [1], [0, 0, 0, 1, 1, 1], [0], [0]>} : vector<4x8x8xbf16>, vector<4x12x8xbf16>, vector<4x8x12xf32> -> vector<4x8x12xf32>
    "tpu.trace_stop"() : () -> ()
    %186 = vector.shape_cast %165 : vector<1x12xf32> to vector<1x1x12xf32>
    %187 = vector.broadcast %186 : vector<1x1x12xf32> to vector<4x8x12xf32>
    %188 = arith.addf %185, %187 : vector<4x8x12xf32>
    %cst_88 = arith.constant dense<0xFF800000> : vector<4x8xf32>
    %189 = vector.multi_reduction <maximumf>, %188, %cst_88 [2] : vector<4x8x12xf32> to vector<4x8xf32>
    %190 = vector.shape_cast %189 : vector<4x8xf32> to vector<4x8x1xf32>
    %191 = vector.broadcast %190 : vector<4x8x1xf32> to vector<4x8x12xf32>
    %192 = arith.subf %188, %191 : vector<4x8x12xf32>
    %193 = math.exp %192 : vector<4x8x12xf32>
    %cst_89 = arith.constant dense<0.000000e+00> : vector<4x8xf32>
    %194 = vector.multi_reduction <add>, %193, %cst_89 [2] : vector<4x8x12xf32> to vector<4x8xf32>
    %195 = vector.shape_cast %194 : vector<4x8xf32> to vector<4x8x1xf32>
    %196 = tpu.reciprocal %195 {approx = true} : vector<4x8x1xf32> -> vector<4x8x1xf32>
    %197 = vector.broadcast %196 : vector<4x8x1xf32> to vector<4x8x12xf32>
    %198 = arith.mulf %193, %197 : vector<4x8x12xf32>
    %199 = arith.truncf %198 : vector<4x8x12xf32> to vector<4x8x12xbf16>
    "tpu.trace_start"() <{level = 10 : i32, message = "hts,hsd->htd"}> : () -> ()
    %cst_90 = arith.constant dense<0.000000e+00> : vector<4x8x8xf32>
    %200 = tpu.matmul %199, %132, %cst_90 {dimension_numbers = #tpu.dot_dimension_numbers<[2], [1], [1], [2], [0, 0, 0, 1, 1, 2], [0], [0]>} : vector<4x8x12xbf16>, vector<4x12x8xbf16>, vector<4x8x8xf32> -> vector<4x8x8xf32>
    "tpu.trace_stop"() : () -> ()
    %201 = arith.truncf %200 : vector<4x8x8xf32> to vector<4x8x8xbf16>
    %202 = tpu.transpose %201, [1, 0, 2] : vector<4x8x8xbf16> -> vector<8x4x8xbf16>
    %203 = vector.shape_cast %202 : vector<8x4x8xbf16> to vector<8x32xbf16>
    %cst_91 = arith.constant dense<0.000000e+00> : vector<8x32xf32>
    %204 = tpu.matmul %203, %114, %cst_91 {dimension_numbers = #tpu.dot_dimension_numbers<[1], [0], [0], [1], [0, 0, 1, 1], [], []>} : vector<8x32xbf16>, vector<32x32xbf16>, vector<8x32xf32> -> vector<8x32xf32>
    %205 = vector.broadcast %115 : vector<1x32xf32> to vector<8x32xf32>
    %206 = arith.addf %204, %205 : vector<8x32xf32>
    %207 = arith.addf %85, %206 : vector<8x32xf32>
    %cst_92 = arith.constant 0.353553385 : f32
    %208 = vector.broadcast %cst_92 : f32 to vector<8x32xf32>
    %209 = arith.mulf %119, %208 : vector<8x32xf32>
    %210 = arith.truncf %209 : vector<8x32xf32> to vector<8x32xbf16>
    %211 = vector.shape_cast %210 : vector<8x32xbf16> to vector<8x4x8xbf16>
    %212 = tpu.transpose %211, [1, 0, 2] : vector<8x4x8xbf16> -> vector<4x8x8xbf16>
    "tpu.trace_start"() <{level = 10 : i32, message = "htd,hsd->hts"}> : () -> ()
    %cst_93 = arith.constant dense<0.000000e+00> : vector<4x8x10xf32>
    %213 = tpu.matmul %212, %142, %cst_93 {dimension_numbers = #tpu.dot_dimension_numbers<[2], [2], [1], [1], [0, 0, 0, 1, 1, 1], [0], [0]>} : vector<4x8x8xbf16>, vector<4x10x8xbf16>, vector<4x8x10xf32> -> vector<4x8x10xf32>
    "tpu.trace_stop"() : () -> ()
    %214 = vector.shape_cast %172 : vector<1x10xf32> to vector<1x1x10xf32>
    %215 = vector.broadcast %214 : vector<1x1x10xf32> to vector<4x8x10xf32>
    %216 = arith.addf %213, %215 : vector<4x8x10xf32>
    %cst_94 = arith.constant dense<0xFF800000> : vector<4x8xf32>
    %217 = vector.multi_reduction <maximumf>, %216, %cst_94 [2] : vector<4x8x10xf32> to vector<4x8xf32>
    %218 = vector.shape_cast %217 : vector<4x8xf32> to vector<4x8x1xf32>
    %219 = vector.broadcast %218 : vector<4x8x1xf32> to vector<4x8x10xf32>
    %220 = arith.subf %216, %219 : vector<4x8x10xf32>
    %221 = math.exp %220 : vector<4x8x10xf32>
    %cst_95 = arith.constant dense<0.000000e+00> : vector<4x8xf32>
    %222 = vector.multi_reduction <add>, %221, %cst_95 [2] : vector<4x8x10xf32> to vector<4x8xf32>
    %223 = vector.shape_cast %222 : vector<4x8xf32> to vector<4x8x1xf32>
    %224 = tpu.reciprocal %223 {approx = true} : vector<4x8x1xf32> -> vector<4x8x1xf32>
    %225 = vector.broadcast %224 : vector<4x8x1xf32> to vector<4x8x10xf32>
    %226 = arith.mulf %221, %225 : vector<4x8x10xf32>
    %227 = arith.truncf %226 : vector<4x8x10xf32> to vector<4x8x10xbf16>
    "tpu.trace_start"() <{level = 10 : i32, message = "hts,hsd->htd"}> : () -> ()
    %cst_96 = arith.constant dense<0.000000e+00> : vector<4x8x8xf32>
    %228 = tpu.matmul %227, %145, %cst_96 {dimension_numbers = #tpu.dot_dimension_numbers<[2], [1], [1], [2], [0, 0, 0, 1, 1, 2], [0], [0]>} : vector<4x8x10xbf16>, vector<4x10x8xbf16>, vector<4x8x8xf32> -> vector<4x8x8xf32>
    "tpu.trace_stop"() : () -> ()
    %229 = arith.truncf %228 : vector<4x8x8xf32> to vector<4x8x8xbf16>
    %230 = tpu.transpose %229, [1, 0, 2] : vector<4x8x8xbf16> -> vector<8x4x8xbf16>
    %231 = vector.shape_cast %230 : vector<8x4x8xbf16> to vector<8x32xbf16>
    %cst_97 = arith.constant dense<0.000000e+00> : vector<8x32xf32>
    %232 = tpu.matmul %231, %114, %cst_97 {dimension_numbers = #tpu.dot_dimension_numbers<[1], [0], [0], [1], [0, 0, 1, 1], [], []>} : vector<8x32xbf16>, vector<32x32xbf16>, vector<8x32xf32> -> vector<8x32xf32>
    %233 = vector.broadcast %115 : vector<1x32xf32> to vector<8x32xf32>
    %234 = arith.addf %232, %233 : vector<8x32xf32>
    %235 = arith.addf %207, %234 : vector<8x32xf32>
    %cst_98 = arith.constant 0.353553385 : f32
    %236 = vector.broadcast %cst_98 : f32 to vector<8x32xf32>
    %237 = arith.mulf %119, %236 : vector<8x32xf32>
    %238 = arith.truncf %237 : vector<8x32xf32> to vector<8x32xbf16>
    %239 = vector.shape_cast %238 : vector<8x32xbf16> to vector<8x4x8xbf16>
    %240 = tpu.transpose %239, [1, 0, 2] : vector<8x4x8xbf16> -> vector<4x8x8xbf16>
    "tpu.trace_start"() <{level = 10 : i32, message = "htd,hsd->hts"}> : () -> ()
    %cst_99 = arith.constant dense<0.000000e+00> : vector<4x8x14xf32>
    %241 = tpu.matmul %240, %155, %cst_99 {dimension_numbers = #tpu.dot_dimension_numbers<[2], [2], [1], [1], [0, 0, 0, 1, 1, 1], [0], [0]>} : vector<4x8x8xbf16>, vector<4x14x8xbf16>, vector<4x8x14xf32> -> vector<4x8x14xf32>
    "tpu.trace_stop"() : () -> ()
    %242 = vector.shape_cast %179 : vector<1x14xf32> to vector<1x1x14xf32>
    %243 = vector.broadcast %242 : vector<1x1x14xf32> to vector<4x8x14xf32>
    %244 = arith.addf %241, %243 : vector<4x8x14xf32>
    %cst_100 = arith.constant dense<0xFF800000> : vector<4x8xf32>
    %245 = vector.multi_reduction <maximumf>, %244, %cst_100 [2] : vector<4x8x14xf32> to vector<4x8xf32>
    %246 = vector.shape_cast %245 : vector<4x8xf32> to vector<4x8x1xf32>
    %247 = vector.broadcast %246 : vector<4x8x1xf32> to vector<4x8x14xf32>
    %248 = arith.subf %244, %247 : vector<4x8x14xf32>
    %249 = math.exp %248 : vector<4x8x14xf32>
    %cst_101 = arith.constant dense<0.000000e+00> : vector<4x8xf32>
    %250 = vector.multi_reduction <add>, %249, %cst_101 [2] : vector<4x8x14xf32> to vector<4x8xf32>
    %251 = vector.shape_cast %250 : vector<4x8xf32> to vector<4x8x1xf32>
    %252 = tpu.reciprocal %251 {approx = true} : vector<4x8x1xf32> -> vector<4x8x1xf32>
    %253 = vector.broadcast %252 : vector<4x8x1xf32> to vector<4x8x14xf32>
    %254 = arith.mulf %249, %253 : vector<4x8x14xf32>
    %255 = arith.truncf %254 : vector<4x8x14xf32> to vector<4x8x14xbf16>
    "tpu.trace_start"() <{level = 10 : i32, message = "hts,hsd->htd"}> : () -> ()
    %cst_102 = arith.constant dense<0.000000e+00> : vector<4x8x8xf32>
    %256 = tpu.matmul %255, %158, %cst_102 {dimension_numbers = #tpu.dot_dimension_numbers<[2], [1], [1], [2], [0, 0, 0, 1, 1, 2], [0], [0]>} : vector<4x8x14xbf16>, vector<4x14x8xbf16>, vector<4x8x8xf32> -> vector<4x8x8xf32>
    "tpu.trace_stop"() : () -> ()
    %257 = arith.truncf %256 : vector<4x8x8xf32> to vector<4x8x8xbf16>
    %258 = tpu.transpose %257, [1, 0, 2] : vector<4x8x8xbf16> -> vector<8x4x8xbf16>
    %259 = vector.shape_cast %258 : vector<8x4x8xbf16> to vector<8x32xbf16>
    %cst_103 = arith.constant dense<0.000000e+00> : vector<8x32xf32>
    %260 = tpu.matmul %259, %114, %cst_103 {dimension_numbers = #tpu.dot_dimension_numbers<[1], [0], [0], [1], [0, 0, 1, 1], [], []>} : vector<8x32xbf16>, vector<32x32xbf16>, vector<8x32xf32> -> vector<8x32xf32>
    %261 = vector.broadcast %115 : vector<1x32xf32> to vector<8x32xf32>
    %262 = arith.addf %260, %261 : vector<8x32xf32>
    %263 = arith.addf %235, %262 : vector<8x32xf32>
    %264 = arith.truncf %206 : vector<8x32xf32> to vector<8x32xbf16>
    %cst_104 = arith.constant dense<0.000000e+00> : vector<8x32xf32>
    %265 = tpu.matmul %264, %110, %cst_104 {dimension_numbers = #tpu.dot_dimension_numbers<[1], [0], [0], [1], [0, 0, 1, 1], [], []>} : vector<8x32xbf16>, vector<32x32xbf16>, vector<8x32xf32> -> vector<8x32xf32>
    %266 = vector.broadcast %111 : vector<1x32xf32> to vector<8x32xf32>
    %267 = arith.addf %265, %266 : vector<8x32xf32>
    %cst_105 = arith.constant 0.353553385 : f32
    %268 = vector.broadcast %cst_105 : f32 to vector<8x32xf32>
    %269 = arith.mulf %267, %268 : vector<8x32xf32>
    %270 = arith.truncf %269 : vector<8x32xf32> to vector<8x32xbf16>
    %271 = vector.shape_cast %270 : vector<8x32xbf16> to vector<8x4x8xbf16>
    %272 = tpu.transpose %271, [1, 0, 2] : vector<8x4x8xbf16> -> vector<4x8x8xbf16>
    "tpu.trace_start"() <{level = 10 : i32, message = "htd,hsd->hts"}> : () -> ()
    %cst_106 = arith.constant dense<0.000000e+00> : vector<4x8x10xf32>
    %273 = tpu.matmul %272, %142, %cst_106 {dimension_numbers = #tpu.dot_dimension_numbers<[2], [2], [1], [1], [0, 0, 0, 1, 1, 1], [0], [0]>} : vector<4x8x8xbf16>, vector<4x10x8xbf16>, vector<4x8x10xf32> -> vector<4x8x10xf32>
    "tpu.trace_stop"() : () -> ()
    %274 = vector.shape_cast %172 : vector<1x10xf32> to vector<1x1x10xf32>
    %275 = vector.broadcast %274 : vector<1x1x10xf32> to vector<4x8x10xf32>
    %276 = arith.addf %273, %275 : vector<4x8x10xf32>
    %cst_107 = arith.constant dense<0xFF800000> : vector<4x8xf32>
    %277 = vector.multi_reduction <maximumf>, %276, %cst_107 [2] : vector<4x8x10xf32> to vector<4x8xf32>
    %278 = vector.shape_cast %277 : vector<4x8xf32> to vector<4x8x1xf32>
    %279 = vector.broadcast %278 : vector<4x8x1xf32> to vector<4x8x10xf32>
    %280 = arith.subf %276, %279 : vector<4x8x10xf32>
    %281 = math.exp %280 : vector<4x8x10xf32>
    %cst_108 = arith.constant dense<0.000000e+00> : vector<4x8xf32>
    %282 = vector.multi_reduction <add>, %281, %cst_108 [2] : vector<4x8x10xf32> to vector<4x8xf32>
    %283 = vector.shape_cast %282 : vector<4x8xf32> to vector<4x8x1xf32>
    %284 = tpu.reciprocal %283 {approx = true} : vector<4x8x1xf32> -> vector<4x8x1xf32>
    %285 = vector.broadcast %284 : vector<4x8x1xf32> to vector<4x8x10xf32>
    %286 = arith.mulf %281, %285 : vector<4x8x10xf32>
    %287 = arith.truncf %286 : vector<4x8x10xf32> to vector<4x8x10xbf16>
    "tpu.trace_start"() <{level = 10 : i32, message = "hts,hsd->htd"}> : () -> ()
    %cst_109 = arith.constant dense<0.000000e+00> : vector<4x8x8xf32>
    %288 = tpu.matmul %287, %145, %cst_109 {dimension_numbers = #tpu.dot_dimension_numbers<[2], [1], [1], [2], [0, 0, 0, 1, 1, 2], [0], [0]>} : vector<4x8x10xbf16>, vector<4x10x8xbf16>, vector<4x8x8xf32> -> vector<4x8x8xf32>
    "tpu.trace_stop"() : () -> ()
    %289 = arith.truncf %288 : vector<4x8x8xf32> to vector<4x8x8xbf16>
    %290 = tpu.transpose %289, [1, 0, 2] : vector<4x8x8xbf16> -> vector<8x4x8xbf16>
    %291 = vector.shape_cast %290 : vector<8x4x8xbf16> to vector<8x32xbf16>
    %cst_110 = arith.constant dense<0.000000e+00> : vector<8x32xf32>
    %292 = tpu.matmul %291, %114, %cst_110 {dimension_numbers = #tpu.dot_dimension_numbers<[1], [0], [0], [1], [0, 0, 1, 1], [], []>} : vector<8x32xbf16>, vector<32x32xbf16>, vector<8x32xf32> -> vector<8x32xf32>
    %293 = vector.broadcast %115 : vector<1x32xf32> to vector<8x32xf32>
    %294 = arith.addf %292, %293 : vector<8x32xf32>
    %295 = arith.addf %263, %294 : vector<8x32xf32>
    %cst_111 = arith.constant 0.353553385 : f32
    %296 = vector.broadcast %cst_111 : f32 to vector<8x32xf32>
    %297 = arith.mulf %267, %296 : vector<8x32xf32>
    %298 = arith.truncf %297 : vector<8x32xf32> to vector<8x32xbf16>
    %299 = vector.shape_cast %298 : vector<8x32xbf16> to vector<8x4x8xbf16>
    %300 = tpu.transpose %299, [1, 0, 2] : vector<8x4x8xbf16> -> vector<4x8x8xbf16>
    "tpu.trace_start"() <{level = 10 : i32, message = "htd,hsd->hts"}> : () -> ()
    %cst_112 = arith.constant dense<0.000000e+00> : vector<4x8x14xf32>
    %301 = tpu.matmul %300, %155, %cst_112 {dimension_numbers = #tpu.dot_dimension_numbers<[2], [2], [1], [1], [0, 0, 0, 1, 1, 1], [0], [0]>} : vector<4x8x8xbf16>, vector<4x14x8xbf16>, vector<4x8x14xf32> -> vector<4x8x14xf32>
    "tpu.trace_stop"() : () -> ()
    %302 = vector.shape_cast %179 : vector<1x14xf32> to vector<1x1x14xf32>
    %303 = vector.broadcast %302 : vector<1x1x14xf32> to vector<4x8x14xf32>
    %304 = arith.addf %301, %303 : vector<4x8x14xf32>
    %cst_113 = arith.constant dense<0xFF800000> : vector<4x8xf32>
    %305 = vector.multi_reduction <maximumf>, %304, %cst_113 [2] : vector<4x8x14xf32> to vector<4x8xf32>
    %306 = vector.shape_cast %305 : vector<4x8xf32> to vector<4x8x1xf32>
    %307 = vector.broadcast %306 : vector<4x8x1xf32> to vector<4x8x14xf32>
    %308 = arith.subf %304, %307 : vector<4x8x14xf32>
    %309 = math.exp %308 : vector<4x8x14xf32>
    %cst_114 = arith.constant dense<0.000000e+00> : vector<4x8xf32>
    %310 = vector.multi_reduction <add>, %309, %cst_114 [2] : vector<4x8x14xf32> to vector<4x8xf32>
    %311 = vector.shape_cast %310 : vector<4x8xf32> to vector<4x8x1xf32>
    %312 = tpu.reciprocal %311 {approx = true} : vector<4x8x1xf32> -> vector<4x8x1xf32>
    %313 = vector.broadcast %312 : vector<4x8x1xf32> to vector<4x8x14xf32>
    %314 = arith.mulf %309, %313 : vector<4x8x14xf32>
    %315 = arith.truncf %314 : vector<4x8x14xf32> to vector<4x8x14xbf16>
    "tpu.trace_start"() <{level = 10 : i32, message = "hts,hsd->htd"}> : () -> ()
    %cst_115 = arith.constant dense<0.000000e+00> : vector<4x8x8xf32>
    %316 = tpu.matmul %315, %158, %cst_115 {dimension_numbers = #tpu.dot_dimension_numbers<[2], [1], [1], [2], [0, 0, 0, 1, 1, 2], [0], [0]>} : vector<4x8x14xbf16>, vector<4x14x8xbf16>, vector<4x8x8xf32> -> vector<4x8x8xf32>
    "tpu.trace_stop"() : () -> ()
    %317 = arith.truncf %316 : vector<4x8x8xf32> to vector<4x8x8xbf16>
    %318 = tpu.transpose %317, [1, 0, 2] : vector<4x8x8xbf16> -> vector<8x4x8xbf16>
    %319 = vector.shape_cast %318 : vector<8x4x8xbf16> to vector<8x32xbf16>
    %cst_116 = arith.constant dense<0.000000e+00> : vector<8x32xf32>
    %320 = tpu.matmul %319, %114, %cst_116 {dimension_numbers = #tpu.dot_dimension_numbers<[1], [0], [0], [1], [0, 0, 1, 1], [], []>} : vector<8x32xbf16>, vector<32x32xbf16>, vector<8x32xf32> -> vector<8x32xf32>
    %321 = vector.broadcast %115 : vector<1x32xf32> to vector<8x32xf32>
    %322 = arith.addf %320, %321 : vector<8x32xf32>
    %323 = arith.addf %295, %322 : vector<8x32xf32>
    %c0_117 = arith.constant 0 : index
    %c0_118 = arith.constant 0 : index
    %324 = vector.load %arg23[%c0_117, %c0_118] : memref<1x32xf32, #tpu.memory_space<vmem>>, vector<1x32xf32>
    %c0_119 = arith.constant 0 : index
    %c0_120 = arith.constant 0 : index
    %325 = vector.load %arg24[%c0_119, %c0_120] : memref<1x32xf32, #tpu.memory_space<vmem>>, vector<1x32xf32>
    %cst_121 = arith.constant dense<0.000000e+00> : vector<8xf32>
    %326 = vector.multi_reduction <add>, %323, %cst_121 [1] : vector<8x32xf32> to vector<8xf32>
    %327 = vector.shape_cast %326 : vector<8xf32> to vector<8x1xf32>
    %cst_122 = arith.constant 3.200000e+01 : f32
    %328 = vector.broadcast %cst_122 : f32 to vector<8x1xf32>
    %329 = arith.divf %327, %328 : vector<8x1xf32>
    %330 = vector.broadcast %329 : vector<8x1xf32> to vector<8x32xf32>
    %331 = arith.subf %323, %330 : vector<8x32xf32>
    %332 = arith.mulf %331, %331 : vector<8x32xf32>
    %cst_123 = arith.constant dense<0.000000e+00> : vector<8xf32>
    %333 = vector.multi_reduction <add>, %332, %cst_123 [1] : vector<8x32xf32> to vector<8xf32>
    %334 = vector.shape_cast %333 : vector<8xf32> to vector<8x1xf32>
    %cst_124 = arith.constant 3.200000e+01 : f32
    %335 = vector.broadcast %cst_124 : f32 to vector<8x1xf32>
    %336 = arith.divf %334, %335 : vector<8x1xf32>
    %337 = vector.broadcast %329 : vector<8x1xf32> to vector<8x32xf32>
    %338 = arith.subf %323, %337 : vector<8x32xf32>
    %cst_125 = arith.constant 9.99999997E-7 : f32
    %339 = vector.broadcast %cst_125 : f32 to vector<8x1xf32>
    %340 = arith.addf %336, %339 : vector<8x1xf32>
    %341 = math.rsqrt %340 : vector<8x1xf32>
    %342 = vector.broadcast %341 : vector<8x1xf32> to vector<8x32xf32>
    %343 = arith.mulf %338, %342 : vector<8x32xf32>
    %344 = vector.broadcast %324 : vector<1x32xf32> to vector<8x32xf32>
    %345 = arith.mulf %343, %344 : vector<8x32xf32>
    %346 = vector.broadcast %325 : vector<1x32xf32> to vector<8x32xf32>
    %347 = arith.addf %345, %346 : vector<8x32xf32>
    %348 = arith.truncf %347 : vector<8x32xf32> to vector<8x32xbf16>
    %c0_126 = arith.constant 0 : index
    %c0_127 = arith.constant 0 : index
    %349 = vector.load %arg25[%c0_126, %c0_127] : memref<32x64xbf16, #tpu.memory_space<vmem>>, vector<32x64xbf16>
    %cst_128 = arith.constant dense<0.000000e+00> : vector<8x64xf32>
    %350 = tpu.matmul %348, %349, %cst_128 {dimension_numbers = #tpu.dot_dimension_numbers<[1], [0], [0], [1], [0, 0, 1, 1], [], []>} : vector<8x32xbf16>, vector<32x64xbf16>, vector<8x64xf32> -> vector<8x64xf32>
    %c0_129 = arith.constant 0 : index
    %c0_130 = arith.constant 0 : index
    %351 = vector.load %arg26[%c0_129, %c0_130] : memref<1x64xf32, #tpu.memory_space<vmem>>, vector<1x64xf32>
    %352 = vector.broadcast %351 : vector<1x64xf32> to vector<8x64xf32>
    %353 = arith.addf %350, %352 : vector<8x64xf32>
    %cst_131 = arith.constant 5.000000e-01 : f32
    %354 = vector.broadcast %cst_131 : f32 to vector<8x64xf32>
    %355 = arith.mulf %354, %353 : vector<8x64xf32>
    %cst_132 = arith.constant 4.471500e-02 : f32
    %356 = vector.broadcast %cst_132 : f32 to vector<8x64xf32>
    %357 = arith.mulf %356, %353 : vector<8x64xf32>
    %358 = arith.mulf %357, %353 : vector<8x64xf32>
    %359 = arith.mulf %358, %353 : vector<8x64xf32>
    %360 = arith.addf %353, %359 : vector<8x64xf32>
    %cst_133 = arith.constant 0.797884583 : f32
    %361 = vector.broadcast %cst_133 : f32 to vector<8x64xf32>
    %362 = arith.mulf %361, %360 : vector<8x64xf32>
    %363 = math.tanh %362 : vector<8x64xf32>
    %cst_134 = arith.constant 1.000000e+00 : f32
    %364 = vector.broadcast %cst_134 : f32 to vector<8x64xf32>
    %365 = arith.addf %364, %363 : vector<8x64xf32>
    %366 = arith.mulf %355, %365 : vector<8x64xf32>
    %367 = arith.truncf %366 : vector<8x64xf32> to vector<8x64xbf16>
    %c0_135 = arith.constant 0 : index
    %c0_136 = arith.constant 0 : index
    %368 = vector.load %arg27[%c0_135, %c0_136] : memref<64x32xbf16, #tpu.memory_space<vmem>>, vector<64x32xbf16>
    %cst_137 = arith.constant dense<0.000000e+00> : vector<8x32xf32>
    %369 = tpu.matmul %367, %368, %cst_137 {dimension_numbers = #tpu.dot_dimension_numbers<[1], [0], [0], [1], [0, 0, 1, 1], [], []>} : vector<8x64xbf16>, vector<64x32xbf16>, vector<8x32xf32> -> vector<8x32xf32>
    %c0_138 = arith.constant 0 : index
    %c0_139 = arith.constant 0 : index
    %370 = vector.load %arg28[%c0_138, %c0_139] : memref<1x32xf32, #tpu.memory_space<vmem>>, vector<1x32xf32>
    %371 = vector.broadcast %370 : vector<1x32xf32> to vector<8x32xf32>
    %372 = arith.addf %369, %371 : vector<8x32xf32>
    %373 = arith.addf %372, %323 : vector<8x32xf32>
    %c0_140 = arith.constant 0 : index
    %c0_141 = arith.constant 0 : index
    %c0_142 = arith.constant 0 : index
    %374 = vector.load %arg29[%c0_140, %c0_141, %c0_142] : memref<1x8x32xf32, #tpu.memory_space<vmem>>, vector<1x8x32xf32>
    %375 = vector.shape_cast %374 : vector<1x8x32xf32> to vector<8x32xf32>
    %376 = vector.shape_cast %373 : vector<8x32xf32> to vector<1x8x32xf32>
    tpu.vector_store %arg29[%c0_140, %c0_141, %c0_142], %376 {strides = array<i32>} : memref<1x8x32xf32, #tpu.memory_space<vmem>>, vector<1x8x32xf32>,
    return
  }
  func.func @transform_0(%arg0: i32) -> (i32, i32, i32) {
    %c0_i32 = arith.constant 0 : i32
    %c0_i32_0 = arith.constant 0 : i32
    %c0_i32_1 = arith.constant 0 : i32
    return %arg0, %c0_i32, %c0_i32_0 : i32, i32, i32
  }
  func.func @transform_1(%arg0: i32) -> (i32, i32, i32) {
    %c0_i32 = arith.constant 0 : i32
    %c0_i32_0 = arith.constant 0 : i32
    %c0_i32_1 = arith.constant 0 : i32
    return %arg0, %c0_i32, %c0_i32_0 : i32, i32, i32
  }
  func.func @transform_2(%arg0: i32) -> (i32, i32, i32) {
    %c0_i32 = arith.constant 0 : i32
    %c0_i32_0 = arith.constant 0 : i32
    %c0_i32_1 = arith.constant 0 : i32
    return %arg0, %c0_i32, %c0_i32_0 : i32, i32, i32
  }
  func.func @transform_3(%arg0: i32) -> (i32, i32, i32) {
    %c0_i32 = arith.constant 0 : i32
    %c0_i32_0 = arith.constant 0 : i32
    %c0_i32_1 = arith.constant 0 : i32
    return %arg0, %c0_i32, %c0_i32_0 : i32, i32, i32
  }
  func.func @transform_4(%arg0: i32) -> (i32, i32, i32) {
    %c0_i32 = arith.constant 0 : i32
    %c0_i32_0 = arith.constant 0 : i32
    %c0_i32_1 = arith.constant 0 : i32
    return %arg0, %c0_i32, %c0_i32_0 : i32, i32, i32
  }
  func.func @transform_5(%arg0: i32) -> (i32, i32, i32) {
    %c0_i32 = arith.constant 0 : i32
    %c0_i32_0 = arith.constant 0 : i32
    %c0_i32_1 = arith.constant 0 : i32
    return %arg0, %c0_i32, %c0_i32_0 : i32, i32, i32
  }
  func.func @transform_6(%arg0: i32) -> (i32, i32, i32) {
    %c0_i32 = arith.constant 0 : i32
    %c0_i32_0 = arith.constant 0 : i32
    %c0_i32_1 = arith.constant 0 : i32
    return %arg0, %c0_i32, %c0_i32_0 : i32, i32, i32
  }
  func.func @transform_7(%arg0: i32) -> (i32, i32, i32) {
    %c0_i32 = arith.constant 0 : i32
    %c0_i32_0 = arith.constant 0 : i32
    %c0_i32_1 = arith.constant 0 : i32
    return %arg0, %c0_i32, %c0_i32_0 : i32, i32, i32
  }
  func.func @transform_8(%arg0: i32) -> (i32, i32) {
    %c0_i32 = arith.constant 0 : i32
    %c0_i32_0 = arith.constant 0 : i32
    %c0_i32_1 = arith.constant 0 : i32
    return %c0_i32, %c0_i32_0 : i32, i32
  }
  func.func @transform_9(%arg0: i32) -> (i32, i32) {
    %c0_i32 = arith.constant 0 : i32
    %c0_i32_0 = arith.constant 0 : i32
    %c0_i32_1 = arith.constant 0 : i32
    return %c0_i32, %c0_i32_0 : i32, i32
  }
  func.func @transform_10(%arg0: i32) -> (i32, i32) {
    %c0_i32 = arith.constant 0 : i32
    %c0_i32_0 = arith.constant 0 : i32
    %c0_i32_1 = arith.constant 0 : i32
    return %c0_i32, %c0_i32_0 : i32, i32
  }
  func.func @transform_11(%arg0: i32) -> (i32, i32) {
    %c0_i32 = arith.constant 0 : i32
    %c0_i32_0 = arith.constant 0 : i32
    %c0_i32_1 = arith.constant 0 : i32
    return %c0_i32, %c0_i32_0 : i32, i32
  }
  func.func @transform_12(%arg0: i32) -> (i32, i32) {
    %c0_i32 = arith.constant 0 : i32
    %c0_i32_0 = arith.constant 0 : i32
    %c0_i32_1 = arith.constant 0 : i32
    return %c0_i32, %c0_i32_0 : i32, i32
  }
  func.func @transform_13(%arg0: i32) -> (i32, i32) {
    %c0_i32 = arith.constant 0 : i32
    %c0_i32_0 = arith.constant 0 : i32
    %c0_i32_1 = arith.constant 0 : i32
    return %c0_i32, %c0_i32_0 : i32, i32
  }
  func.func @transform_14(%arg0: i32) -> (i32, i32) {
    %c0_i32 = arith.constant 0 : i32
    %c0_i32_0 = arith.constant 0 : i32
    %c0_i32_1 = arith.constant 0 : i32
    return %c0_i32, %c0_i32_0 : i32, i32
  }
  func.func @transform_15(%arg0: i32) -> (i32, i32) {
    %c0_i32 = arith.constant 0 : i32
    %c0_i32_0 = arith.constant 0 : i32
    %c0_i32_1 = arith.constant 0 : i32
    return %c0_i32, %c0_i32_0 : i32, i32
  }
  func.func @transform_16(%arg0: i32) -> (i32, i32) {
    %c0_i32 = arith.constant 0 : i32
    %c0_i32_0 = arith.constant 0 : i32
    %c0_i32_1 = arith.constant 0 : i32
    return %c0_i32, %c0_i32_0 : i32, i32
  }
  func.func @transform_17(%arg0: i32) -> (i32, i32) {
    %c0_i32 = arith.constant 0 : i32
    %c0_i32_0 = arith.constant 0 : i32
    %c0_i32_1 = arith.constant 0 : i32
    return %c0_i32, %c0_i32_0 : i32, i32
  }
  func.func @transform_18(%arg0: i32) -> (i32, i32) {
    %c0_i32 = arith.constant 0 : i32
    %c0_i32_0 = arith.constant 0 : i32
    %c0_i32_1 = arith.constant 0 : i32
    return %c0_i32, %c0_i32_0 : i32, i32
  }
  func.func @transform_19(%arg0: i32) -> (i32, i32) {
    %c0_i32 = arith.constant 0 : i32
    %c0_i32_0 = arith.constant 0 : i32
    %c0_i32_1 = arith.constant 0 : i32
    return %c0_i32, %c0_i32_0 : i32, i32
  }
  func.func @transform_20(%arg0: i32) -> (i32, i32) {
    %c0_i32 = arith.constant 0 : i32
    %c0_i32_0 = arith.constant 0 : i32
    %c0_i32_1 = arith.constant 0 : i32
    return %c0_i32, %c0_i32_0 : i32, i32
  }
  func.func @transform_21(%arg0: i32) -> (i32, i32) {
    %c0_i32 = arith.constant 0 : i32
    %c0_i32_0 = arith.constant 0 : i32
    %c0_i32_1 = arith.constant 0 : i32
    return %c0_i32, %c0_i32_0 : i32, i32
  }
  func.func @transform_22(%arg0: i32) -> (i32, i32) {
    %c0_i32 = arith.constant 0 : i32
    %c0_i32_0 = arith.constant 0 : i32
    %c0_i32_1 = arith.constant 0 : i32
    return %c0_i32, %c0_i32_0 : i32, i32
  }
  func.func @transform_23(%arg0: i32) -> (i32, i32) {
    %c0_i32 = arith.constant 0 : i32
    %c0_i32_0 = arith.constant 0 : i32
    %c0_i32_1 = arith.constant 0 : i32
    return %c0_i32, %c0_i32_0 : i32, i32
  }
  func.func @transform_24(%arg0: i32) -> (i32, i32) {
    %c0_i32 = arith.constant 0 : i32
    %c0_i32_0 = arith.constant 0 : i32
    %c0_i32_1 = arith.constant 0 : i32
    return %c0_i32, %c0_i32_0 : i32, i32
  }
  func.func @transform_25(%arg0: i32) -> (i32, i32) {
    %c0_i32 = arith.constant 0 : i32
    %c0_i32_0 = arith.constant 0 : i32
    %c0_i32_1 = arith.constant 0 : i32
    return %c0_i32, %c0_i32_0 : i32, i32
  }
  func.func @transform_26(%arg0: i32) -> (i32, i32) {
    %c0_i32 = arith.constant 0 : i32
    %c0_i32_0 = arith.constant 0 : i32
    %c0_i32_1 = arith.constant 0 : i32
    return %c0_i32, %c0_i32_0 : i32, i32
  }
  func.func @transform_27(%arg0: i32) -> (i32, i32) {
    %c0_i32 = arith.constant 0 : i32
    %c0_i32_0 = arith.constant 0 : i32
    %c0_i32_1 = arith.constant 0 : i32
    return %c0_i32, %c0_i32_0 : i32, i32
  }
  func.func @transform_28(%arg0: i32) -> (i32, i32, i32) {
    %c0_i32 = arith.constant 0 : i32
    %c0_i32_0 = arith.constant 0 : i32
    %c0_i32_1 = arith.constant 0 : i32
    return %arg0, %c0_i32, %c0_i32_0 : i32, i32, i32
  }
  func.func @transform_29(%arg0: i32) -> (i32, i32, i32) {
    %c0_i32 = arith.constant 0 : i32
    %c0_i32_0 = arith.constant 0 : i32
    %c0_i32_1 = arith.constant 0 : i32
    return %arg0, %c0_i32, %c0_i32_0 : i32, i32, i32
  }
}

</mosaic_0001>

<llo_original>
// kernel: decoder_forward.5
$region0: #{decoder_forward.5}
  #allocation0 [shape = 'u32[]', space=smem, size = 0x4, offset = 0x4, fixed_abs, tag = 'smem constant byte address 0x4 - core index']
  #allocation1 [shape = 'u32[144,128]{1,0:T(1,128)}', space=vmem, size = 0x12000, scoped, tag = 'internal scratch']
  %s0 = inlined_call_operand.vmem [shape: f32[2,8,32], index: 0, kind: input, shape index: {}]
  %s1 = inlined_call_operand.vmem [shape: f32[1,32], index: 1, kind: input, shape index: {}]
  %s2 = inlined_call_operand.vmem [shape: f32[1,32], index: 2, kind: input, shape index: {}]
  %s3 = inlined_call_operand.hbm [shape: f32[2,8,32], index: 3, kind: output, shape index: {}]
  %s4 = sld [smem:[#allocation0]]
  $region45: #{decoder_forward.5} parent=0
    _
  %s6 = ssub.s32 1, %s4
  %s7 = scalar_select 0, %s6, %s4
  $region1: #{decoder_forward.5} parent=0
    #allocation2 [shape = 'u8[8192]{0}', space=vmem, size = 0x2000, scoped, tag = 'output window, operand 0']
    #allocation3 [shape = 's32[2]{0}', space=sflag, size = 0x8, scoped, tag = 'scoped memory for decoder_forward.5']
    %8 = vsyncpa [#allocation3], 0
    %s9 = scalar_lea.sflag [#allocation3], 1
    %10 = vsyncpa %s9, 0
    loop: start=0, step=1, limit=4
    $region2: #{decoder_forward.5} parent=1 // loop_pre_header
      _
    $region3: #{decoder_forward.5} parent=1 // loop_header
      %s12 = sphi 0, %s16
      %p13 = scmp.ge.s32.totalorder %s12, 4
      %s22 = sphi 0, %s24
      %s25 = sphi 0, %s22
      %s26 = sphi 0, %s25
      %s42 = sphi 0, %s26
      %s46 = sphi 0, %s46
      %s48 = sphi 0, %s46
      %s49 = sphi 0, %s48
      %s63 = sphi 0, %s49
      %s67 = sphi 0, %s67
      %s69 = sphi 0, %s67
      %s70 = sphi 0, %s69
      %s84 = sphi 0, %s70
      %s90 = sphi 0, %s92
      %s93 = sphi 0, %s90
      %s94 = sphi 0, %s93
      %s110 = sphi 0, %s94
    $region4: #{decoder_forward.5} parent=1 // loop_header_branch
      %15 = sbr.rel (%p13) target = $region8
    $region5: #{decoder_forward.5} parent=1 // loop_body
      %s17 = ssub.s32 %s12, 1
      %s18 = ssub.s32 %s12, 2
      %s19 = sadd.s32 %s12, 1
      %s20 = ssub.s32 %s12, %s19
      %p21 = scmp.eq.s32.totalorder %s20, 0
      %s23 = sadd.s32 %s22, 1
      %s24 = scalar_select %p21, %s22, %s23
      %p27 = pneg %p21
      %p28 = scmp.eq.s32.totalorder %s12, 1
      %p29 = por %p27, %p28
      %p30 = scmp.ne.s32.totalorder %s22, %s25
      %p31 = scmp.eq.s32.totalorder %s12, 0
      %p32 = por %p30, %p31
      %p33 = scmp.ne.s32.totalorder %s22, %s25
      %p34 = scmp.eq.s32.totalorder %s17, 1
      %p35 = por %p33, %p34
      %p36 = scmp.ne.s32.totalorder %s25, %s26
      %p37 = scmp.eq.s32.totalorder %s17, 0
      %p38 = por %p36, %p37
      %p39 = scmp.ne.s32.totalorder %s25, %s26
      %p40 = scmp.eq.s32.totalorder %s18, 1
      %p41 = por %p39, %p40
      %p43 = scmp.ne.s32.totalorder %s26, %s42
      %p44 = scmp.eq.s32.totalorder %s18, 0
      %p45 = por %p43, %p44
      %s47 = sadd.s32 %s46, 1
      %p50 = scmp.eq.s32.totalorder %s12, 1
      %p51 = scmp.ne.s32.totalorder %s46, %s48
      %p52 = scmp.eq.s32.totalorder %s12, 0
      %p53 = por %p51, %p52
      %p54 = scmp.ne.s32.totalorder %s46, %s48
      %p55 = scmp.eq.s32.totalorder %s17, 1
      %p56 = por %p54, %p55
      %p57 = scmp.ne.s32.totalorder %s48, %s49
      %p58 = scmp.eq.s32.totalorder %s17, 0
      %p59 = por %p57, %p58
      %p60 = scmp.ne.s32.totalorder %s48, %s49
      %p61 = scmp.eq.s32.totalorder %s18, 1
      %p62 = por %p60, %p61
      %p64 = scmp.ne.s32.totalorder %s49, %s63
      %p65 = scmp.eq.s32.totalorder %s18, 0
      %p66 = por %p64, %p65
      %s68 = sadd.s32 %s67, 1
      %p71 = scmp.eq.s32.totalorder %s12, 1
      %p72 = scmp.ne.s32.totalorder %s67, %s69
      %p73 = scmp.eq.s32.totalorder %s12, 0
      %p74 = por %p72, %p73
      %p75 = scmp.ne.s32.totalorder %s67, %s69
      %p76 = scmp.eq.s32.totalorder %s17, 1
      %p77 = por %p75, %p76
      %p78 = scmp.ne.s32.totalorder %s69, %s70
      %p79 = scmp.eq.s32.totalorder %s17, 0
      %p80 = por %p78, %p79
      %p81 = scmp.ne.s32.totalorder %s69, %s70
      %p82 = scmp.eq.s32.totalorder %s18, 1
      %p83 = por %p81, %p82
      %p85 = scmp.ne.s32.totalorder %s70, %s84
      %p86 = scmp.eq.s32.totalorder %s18, 0
      %p87 = por %p85, %p86
      %s88 = ssub.s32 %s12, %s19
      %p89 = scmp.eq.s32.totalorder %s88, 0
      %s91 = sadd.s32 %s90, 1
      %s92 = scalar_select %p89, %s90, %s91
      %p95 = pneg %p89
      %p96 = scmp.eq.s32.totalorder %s12, 1
      %p97 = por %p95, %p96
      %p98 = scmp.ne.s32.totalorder %s90, %s93
      %p99 = scmp.eq.s32.totalorder %s12, 0
      %p100 = por %p98, %p99
      %p101 = scmp.ne.s32.totalorder %s90, %s93
      %p102 = scmp.eq.s32.totalorder %s17, 1
      %p103 = por %p101, %p102
      %p104 = scmp.ne.s32.totalorder %s93, %s94
      %p105 = scmp.eq.s32.totalorder %s17, 0
      %p106 = por %p104, %p105
      %p107 = scmp.ne.s32.totalorder %s93, %s94
      %p108 = scmp.eq.s32.totalorder %s18, 1
      %p109 = por %p107, %p108
      %p111 = scmp.ne.s32.totalorder %s94, %s110
      %p112 = scmp.eq.s32.totalorder %s18, 0
      %p113 = por %p111, %p112
      %p114 = scmp.le.s32.totalorder 1, %s12
      %p115 = scmp.lt.s32.totalorder %s12, 3
      %p116 = pnand %p114, %p115
      %p117 = pneg %p116
      // Predicated region
      $region9: #{decoder_forward.5} parent=5 // pred_check
        _
      $region10: #{decoder_forward.5} parent=5 // pred_check_branch
        %119 = sbr.rel (%p116) target = $region12
      $region11: #{decoder_forward.5} parent=5 // pred_region
        %s120 = ssub.s32 %s12, 1
        // Predicated region
        $region13: #{decoder_forward.5} parent=11 // pred_check
          %p121 = pneg %p59
        $region14: #{decoder_forward.5} parent=11 // pred_check_branch
          %123 = sbr.rel (%p121) target = $region16
        $region15: #{decoder_forward.5} parent=11 // pred_region
          _
        $region16: #{decoder_forward.5} parent=11 // pred_fallthru
          _
        // Predicated region
        $region17: #{decoder_forward.5} parent=11 // pred_check
          %p124 = pneg %p80
        $region18: #{decoder_forward.5} parent=11 // pred_check_branch
          %126 = sbr.rel (%p124) target = $region20
        $region19: #{decoder_forward.5} parent=11 // pred_region
          _
        $region20: #{decoder_forward.5} parent=11 // pred_fallthru
          _
      $region12: #{decoder_forward.5} parent=5 // pred_fallthru
        _
      %p127 = scmp.lt.s32.totalorder %s12, 2
      // Predicated region
      $region21: #{decoder_forward.5} parent=5 // pred_check
        %p128 = pneg %p127
      $region22: #{decoder_forward.5} parent=5 // pred_check_branch
        %130 = sbr.rel (%p128) target = $region24
      $region23: #{decoder_forward.5} parent=5 // pred_region
        // Predicated region
        $region25: #{decoder_forward.5} parent=23 // pred_check
          %p131 = pneg %p32
        $region26: #{decoder_forward.5} parent=23 // pred_check_branch
          %133 = sbr.rel (%p131) target = $region28
        $region27: #{decoder_forward.5} parent=23 // pred_region
          %p134 = scmp.lt.s32.totalorder %s12, 1
          %s135 = scalar_select %p134, %s12, 1
          %s136 = smul.addr %s135, 8
          %s137 = scalar_lea.vmem %s0, %s136
        $region28: #{decoder_forward.5} parent=23 // pred_fallthru
          _
      $region24: #{decoder_forward.5} parent=5 // pred_fallthru
        _
      %p138 = scmp.le.s32.totalorder 1, %s12
      %p139 = scmp.lt.s32.totalorder %s12, 3
      %p140 = pnand %p138, %p139
      %p141 = pneg %p140
      // Predicated region
      $region29: #{decoder_forward.5} parent=5 // pred_check
        _
      $region30: #{decoder_forward.5} parent=5 // pred_check_branch
        %143 = sbr.rel (%p140) target = $region32
      $region31: #{decoder_forward.5} parent=5 // pred_region
        %s144 = ssub.s32 %s12, 1
        %p145 = scmp.lt.s32.totalorder %s17, 1
        %s146 = scalar_select %p145, %s17, 1
        %s147 = smul.addr %s146, 8
        %s148 = scalar_lea.vmem %s0, %s147
        %p149 = pneg %p38
        %p150 = pneg %p35
        %p151 = pneg %p59
        %p152 = pneg %p56
        %p153 = pneg %p80
        %p154 = pneg %p77
        %p155 = pneg %p106
        %p156 = pneg %p103
        %s157 = sand.u32 %s93, 1
        %s158 = scalar_lea.sflag [#allocation3], %s157
        %s159 = sand.u32 %s93, 1
        %s160 = smul.addr %s159, 8
        %s161 = scalar_lea.vmem [#allocation2], %s160
        %p162 = scmp.lt.s32.totalorder %s17, 1
        %s163 = scalar_select %p162, %s17, 1
        %s164 = smul.addr %s163, 8
        %s165 = scalar_lea.vmem %s0, %s164
        %v166 = vld [vmem:[%s165] sm:$0xff]
        %v167 = vld [vmem:[%s1] sm:$0x1]
        %v168 = vld [vmem:[%s2] sm:$0x1]
        %vm169 = vcmask 261120
        %v170 = vsel %vm169, %v166, 0.0
        %171 = vadd.xlane.f32.xlu0 %v170
        %v172 = vpop.xlane.xlu0 %171
        %v173 = vrcp.pop 32.0
        %v174 = vmul.f32 %v172, %v173
        %v175 = vsub.f32 %v166, %v174
        %v176 = vmul.f32 %v175, %v175
        %v177 = vsel %vm169, %v176, 0.0
        %178 = vadd.xlane.f32.xlu0 %v177
        %v179 = vpop.xlane.xlu0 %178
        %v180 = vmul.f32 %v179, %v173
        %v181 = vadd.f32 %v180, 1e-06
        %v182 = vrsqrt.pop %v181
        %v183 = vmul.f32 %v175, %v182
        %v185 = vlaneseq
        %v186 = vshrl.u32 %v185, 7
        %v187 = vsub.s32 0, %v186
        %v188 = vrot.slane %v167, %v187
        %v190 = vmul.f32 %v183, %v188
        %v192 = vlaneseq
        %v193 = vshrl.u32 %v192, 7
        %v194 = vsub.s32 0, %v193
        %v195 = vrot.slane %v168, %v194
        %v197 = vadd.f32 %v190, %v195
        %198 = vst.msk [vmem:[%s161] sm:$0xff] %vm169, %v197
        %s199 = sand.u32 %s93, 1
        %s200 = scalar_lea.sflag [#allocation3], %s199
        %s201 = sand.u32 %s93, 1
        %s202 = smul.addr %s201, 8
        %s203 = scalar_lea.vmem [#allocation2], %s202
        // Predicated region
        $region33: #{decoder_forward.5} parent=31 // pred_check
          %p204 = pneg %p103
        $region34: #{decoder_forward.5} parent=31 // pred_check_branch
          %206 = sbr.rel (%p204) target = $region36
        $region35: #{decoder_forward.5} parent=31 // pred_region
          %s208 = ssub.s32 128, 128
          %209 = vsyncadd %s200, %s208
          %s210 = smul.addr %s17, 128
          %s211 = scalar_lea.hbm %s3, %s210
          %s213 = sshll.u32 %s203, 4
          %s214 = int_to_ptr.vmem [resolvable:$true] %s213
          %216 = dma.vmem_to_hbm [thread:$0]  %s214, 128, %s211, %s200
        $region36: #{decoder_forward.5} parent=31 // pred_fallthru
          _
      $region32: #{decoder_forward.5} parent=5 // pred_fallthru
        _
      %p217 = scmp.le.s32.totalorder 2, %s12
      // Predicated region
      $region37: #{decoder_forward.5} parent=5 // pred_check
        %p218 = pneg %p217
      $region38: #{decoder_forward.5} parent=5 // pred_check_branch
        %220 = sbr.rel (%p218) target = $region40
      $region39: #{decoder_forward.5} parent=5 // pred_region
        %s221 = ssub.s32 %s12, 2
        // Predicated region
        $region41: #{decoder_forward.5} parent=39 // pred_check
          %p222 = pneg %p109
        $region42: #{decoder_forward.5} parent=39 // pred_check_branch
          %224 = sbr.rel (%p222) target = $region44
        $region43: #{decoder_forward.5} parent=39 // pred_region
          %s225 = sand.u32 %s94, 1
          %s226 = scalar_lea.sflag [#allocation3], %s225
          %s227 = sand.u32 %s94, 1
          %s228 = smul.addr %s227, 8
          %s229 = scalar_lea.vmem [#allocation2], %s228
          %230 = dma.done %s226, 128
        $region44: #{decoder_forward.5} parent=39 // pred_fallthru
          _
      $region40: #{decoder_forward.5} parent=5 // pred_fallthru
        _
    $region6: #{decoder_forward.5} parent=1 // loop_footer
      %s16 = sadd.s32 1, %s12
    $region7: #{decoder_forward.5} parent=1 // loop_footer_branch
      %11 = sbr.rel target = $region3
    $region8: #{decoder_forward.5} parent=1 // loop_exit
      _
    %231 = vsyncpa [#allocation3], 1
    %s232 = scalar_lea.sflag [#allocation3], 1
    %233 = vsyncpa %s232, 1

// kernel: decoder_forward.3
$region0: #{decoder_forward.3}
  #allocation0 [shape = 'u32[]', space=smem, size = 0x4, offset = 0x4, fixed_abs, tag = 'smem constant byte address 0x4 - core index']
  #allocation1 [shape = 'u32[144,128]{1,0:T(1,128)}', space=vmem, size = 0x12000, scoped, tag = 'internal scratch']
  %s0 = inlined_call_operand.smem [shape: u32[30], index: -1, kind: input, shape index: {}]
  %s1 = sld [smem:[%s0]]
  %s2 = scalar_lea.smem %s0, 1
  %s3 = sld [smem:[%s2]]
  %s4 = scalar_lea.smem %s0, 2
  %s5 = sld [smem:[%s4]]
  %s6 = scalar_lea.smem %s0, 3
  %s7 = sld [smem:[%s6]]
  %s8 = scalar_lea.smem %s0, 4
  %s9 = sld [smem:[%s8]]
  %s10 = scalar_lea.smem %s0, 5
  %s11 = sld [smem:[%s10]]
  %s12 = scalar_lea.smem %s0, 6
  %s13 = sld [smem:[%s12]]
  %s14 = scalar_lea.smem %s0, 7
  %s15 = sld [smem:[%s14]]
  %s16 = scalar_lea.smem %s0, 8
  %s17 = sld [smem:[%s16]]
  %s18 = scalar_lea.smem %s0, 9
  %s19 = sld [smem:[%s18]]
  %s20 = scalar_lea.smem %s0, 10
  %s21 = sld [smem:[%s20]]
  %s22 = scalar_lea.smem %s0, 11
  %s23 = sld [smem:[%s22]]
  %s24 = scalar_lea.smem %s0, 12
  %s25 = sld [smem:[%s24]]
  %s26 = scalar_lea.smem %s0, 13
  %s27 = sld [smem:[%s26]]
  %s28 = scalar_lea.smem %s0, 14
  %s29 = sld [smem:[%s28]]
  %s30 = scalar_lea.smem %s0, 15
  %s31 = sld [smem:[%s30]]
  %s32 = scalar_lea.smem %s0, 16
  %s33 = sld [smem:[%s32]]
  %s34 = scalar_lea.smem %s0, 17
  %s35 = sld [smem:[%s34]]
  %s36 = scalar_lea.smem %s0, 18
  %s37 = sld [smem:[%s36]]
  %s38 = scalar_lea.smem %s0, 19
  %s39 = sld [smem:[%s38]]
  %s40 = scalar_lea.smem %s0, 20
  %s41 = sld [smem:[%s40]]
  %s42 = scalar_lea.smem %s0, 21
  %s43 = sld [smem:[%s42]]
  %s44 = scalar_lea.smem %s0, 22
  %s45 = sld [smem:[%s44]]
  %s46 = scalar_lea.smem %s0, 23
  %s47 = sld [smem:[%s46]]
  %s48 = scalar_lea.smem %s0, 24
  %s49 = sld [smem:[%s48]]
  %s50 = scalar_lea.smem %s0, 25
  %s51 = sld [smem:[%s50]]
  %s52 = scalar_lea.smem %s0, 26
  %s53 = sld [smem:[%s52]]
  %s54 = scalar_lea.smem %s0, 27
  %s55 = sld [smem:[%s54]]
  %s56 = scalar_lea.smem %s0, 28
  %s57 = sld [smem:[%s56]]
  %s58 = scalar_lea.smem %s0, 29
  %s59 = sld [smem:[%s58]]
  %60 = xla_tuple %s57, %s59
  %s61 = sld [smem:[#allocation0]]
  $region153: #{decoder_forward.3} parent=0
    _
  %s63 = ssub.s32 1, %s61
  %s64 = scalar_select 0, %s63, %s61
  loop: start=0, step=1, limit=4
  $region2: #{decoder_forward.3} parent=0 // loop_pre_header
    _
  $region3: #{decoder_forward.3} parent=0 // loop_header
    %s66 = sphi 0, %s70
    %p67 = scmp.ge.s32.totalorder %s66, 4
    %s76 = sphi 0, %s78
    %s79 = sphi 0, %s76
    %s80 = sphi 0, %s79
    %s96 = sphi 0, %s80
    %s102 = sphi 0, %s104
    %s105 = sphi 0, %s102
    %s106 = sphi 0, %s105
    %s122 = sphi 0, %s106
    %s128 = sphi 0, %s130
    %s131 = sphi 0, %s128
    %s132 = sphi 0, %s131
    %s148 = sphi 0, %s132
    %s154 = sphi 0, %s156
    %s157 = sphi 0, %s154
    %s158 = sphi 0, %s157
    %s174 = sphi 0, %s158
    %s180 = sphi 0, %s182
    %s183 = sphi 0, %s180
    %s184 = sphi 0, %s183
    %s200 = sphi 0, %s184
    %s206 = sphi 0, %s208
    %s209 = sphi 0, %s206
    %s210 = sphi 0, %s209
    %s226 = sphi 0, %s210
    %s232 = sphi 0, %s234
    %s235 = sphi 0, %s232
    %s236 = sphi 0, %s235
    %s252 = sphi 0, %s236
    %s258 = sphi 0, %s260
    %s261 = sphi 0, %s258
    %s262 = sphi 0, %s261
    %s278 = sphi 0, %s262
    %s282 = sphi 0, %s282
    %s284 = sphi 0, %s282
    %s285 = sphi 0, %s284
    %s299 = sphi 0, %s285
    %s303 = sphi 0, %s303
    %s305 = sphi 0, %s303
    %s306 = sphi 0, %s305
    %s320 = sphi 0, %s306
    %s324 = sphi 0, %s324
    %s326 = sphi 0, %s324
    %s327 = sphi 0, %s326
    %s341 = sphi 0, %s327
    %s345 = sphi 0, %s345
    %s347 = sphi 0, %s345
    %s348 = sphi 0, %s347
    %s362 = sphi 0, %s348
    %s366 = sphi 0, %s366
    %s368 = sphi 0, %s366
    %s369 = sphi 0, %s368
    %s383 = sphi 0, %s369
    %s387 = sphi 0, %s387
    %s389 = sphi 0, %s387
    %s390 = sphi 0, %s389
    %s404 = sphi 0, %s390
    %s408 = sphi 0, %s408
    %s410 = sphi 0, %s408
    %s411 = sphi 0, %s410
    %s425 = sphi 0, %s411
    %s429 = sphi 0, %s429
    %s431 = sphi 0, %s429
    %s432 = sphi 0, %s431
    %s446 = sphi 0, %s432
    %s450 = sphi 0, %s450
    %s452 = sphi 0, %s450
    %s453 = sphi 0, %s452
    %s467 = sphi 0, %s453
    %s471 = sphi 0, %s471
    %s473 = sphi 0, %s471
    %s474 = sphi 0, %s473
    %s488 = sphi 0, %s474
    %s492 = sphi 0, %s492
    %s494 = sphi 0, %s492
    %s495 = sphi 0, %s494
    %s509 = sphi 0, %s495
    %s513 = sphi 0, %s513
    %s515 = sphi 0, %s513
    %s516 = sphi 0, %s515
    %s530 = sphi 0, %s516
    %s534 = sphi 0, %s534
    %s536 = sphi 0, %s534
    %s537 = sphi 0, %s536
    %s551 = sphi 0, %s537
    %s555 = sphi 0, %s555
    %s557 = sphi 0, %s555
    %s558 = sphi 0, %s557
    %s572 = sphi 0, %s558
    %s576 = sphi 0, %s576
    %s578 = sphi 0, %s576
    %s579 = sphi 0, %s578
    %s593 = sphi 0, %s579
    %s597 = sphi 0, %s597
    %s599 = sphi 0, %s597
    %s600 = sphi 0, %s599
    %s614 = sphi 0, %s600
    %s618 = sphi 0, %s618
    %s620 = sphi 0, %s618
    %s621 = sphi 0, %s620
    %s635 = sphi 0, %s621
    %s639 = sphi 0, %s639
    %s641 = sphi 0, %s639
    %s642 = sphi 0, %s641
    %s656 = sphi 0, %s642
    %s660 = sphi 0, %s660
    %s662 = sphi 0, %s660
    %s663 = sphi 0, %s662
    %s677 = sphi 0, %s663
    %s681 = sphi 0, %s681
    %s683 = sphi 0, %s681
    %s684 = sphi 0, %s683
    %s698 = sphi 0, %s684
    %s704 = sphi 0, %s706
    %s707 = sphi 0, %s704
    %s708 = sphi 0, %s707
    %s724 = sphi 0, %s708
    %s730 = sphi 0, %s732
    %s733 = sphi 0, %s730
    %s734 = sphi 0, %s733
    %s750 = sphi 0, %s734
  $region4: #{decoder_forward.3} parent=0 // loop_header_branch
    %69 = sbr.rel (%p67) target = $region8
  $region5: #{decoder_forward.3} parent=0 // loop_body
    %s71 = ssub.s32 %s66, 1
    %s72 = ssub.s32 %s66, 2
    %s73 = sadd.s32 %s66, 1
    %s74 = ssub.s32 %s66, %s73
    %p75 = scmp.eq.s32.totalorder %s74, 0
    %s77 = sadd.s32 %s76, 1
    %s78 = scalar_select %p75, %s76, %s77
    %p81 = pneg %p75
    %p82 = scmp.eq.s32.totalorder %s66, 1
    %p83 = por %p81, %p82
    %p84 = scmp.ne.s32.totalorder %s76, %s79
    %p85 = scmp.eq.s32.totalorder %s66, 0
    %p86 = por %p84, %p85
    %p87 = scmp.ne.s32.totalorder %s76, %s79
    %p88 = scmp.eq.s32.totalorder %s71, 1
    %p89 = por %p87, %p88
    %p90 = scmp.ne.s32.totalorder %s79, %s80
    %p91 = scmp.eq.s32.totalorder %s71, 0
    %p92 = por %p90, %p91
    %p93 = scmp.ne.s32.totalorder %s79, %s80
    %p94 = scmp.eq.s32.totalorder %s72, 1
    %p95 = por %p93, %p94
    %p97 = scmp.ne.s32.totalorder %s80, %s96
    %p98 = scmp.eq.s32.totalorder %s72, 0
    %p99 = por %p97, %p98
    %s100 = ssub.s32 %s66, %s73
    %p101 = scmp.eq.s32.totalorder %s100, 0
    %s103 = sadd.s32 %s102, 1
    %s104 = scalar_select %p101, %s102, %s103
    %p107 = pneg %p101
    %p108 = scmp.eq.s32.totalorder %s66, 1
    %p109 = por %p107, %p108
    %p110 = scmp.ne.s32.totalorder %s102, %s105
    %p111 = scmp.eq.s32.totalorder %s66, 0
    %p112 = por %p110, %p111
    %p113 = scmp.ne.s32.totalorder %s102, %s105
    %p114 = scmp.eq.s32.totalorder %s71, 1
    %p115 = por %p113, %p114
    %p116 = scmp.ne.s32.totalorder %s105, %s106
    %p117 = scmp.eq.s32.totalorder %s71, 0
    %p118 = por %p116, %p117
    %p119 = scmp.ne.s32.totalorder %s105, %s106
    %p120 = scmp.eq.s32.totalorder %s72, 1
    %p121 = por %p119, %p120
    %p123 = scmp.ne.s32.totalorder %s106, %s122
    %p124 = scmp.eq.s32.totalorder %s72, 0
    %p125 = por %p123, %p124
    %s126 = ssub.s32 %s66, %s73
    %p127 = scmp.eq.s32.totalorder %s126, 0
    %s129 = sadd.s32 %s128, 1
    %s130 = scalar_select %p127, %s128, %s129
    %p133 = pneg %p127
    %p134 = scmp.eq.s32.totalorder %s66, 1
    %p135 = por %p133, %p134
    %p136 = scmp.ne.s32.totalorder %s128, %s131
    %p137 = scmp.eq.s32.totalorder %s66, 0
    %p138 = por %p136, %p137
    %p139 = scmp.ne.s32.totalorder %s128, %s131
    %p140 = scmp.eq.s32.totalorder %s71, 1
    %p141 = por %p139, %p140
    %p142 = scmp.ne.s32.totalorder %s131, %s132
    %p143 = scmp.eq.s32.totalorder %s71, 0
    %p144 = por %p142, %p143
    %p145 = scmp.ne.s32.totalorder %s131, %s132
    %p146 = scmp.eq.s32.totalorder %s72, 1
    %p147 = por %p145, %p146
    %p149 = scmp.ne.s32.totalorder %s132, %s148
    %p150 = scmp.eq.s32.totalorder %s72, 0
    %p151 = por %p149, %p150
    %s152 = ssub.s32 %s66, %s73
    %p153 = scmp.eq.s32.totalorder %s152, 0
    %s155 = sadd.s32 %s154, 1
    %s156 = scalar_select %p153, %s154, %s155
    %p159 = pneg %p153
    %p160 = scmp.eq.s32.totalorder %s66, 1
    %p161 = por %p159, %p160
    %p162 = scmp.ne.s32.totalorder %s154, %s157
    %p163 = scmp.eq.s32.totalorder %s66, 0
    %p164 = por %p162, %p163
    %p165 = scmp.ne.s32.totalorder %s154, %s157
    %p166 = scmp.eq.s32.totalorder %s71, 1
    %p167 = por %p165, %p166
    %p168 = scmp.ne.s32.totalorder %s157, %s158
    %p169 = scmp.eq.s32.totalorder %s71, 0
    %p170 = por %p168, %p169
    %p171 = scmp.ne.s32.totalorder %s157, %s158
    %p172 = scmp.eq.s32.totalorder %s72, 1
    %p173 = por %p171, %p172
    %p175 = scmp.ne.s32.totalorder %s158, %s174
    %p176 = scmp.eq.s32.totalorder %s72, 0
    %p177 = por %p175, %p176
    %s178 = ssub.s32 %s66, %s73
    %p179 = scmp.eq.s32.totalorder %s178, 0
    %s181 = sadd.s32 %s180, 1
    %s182 = scalar_select %p179, %s180, %s181
    %p185 = pneg %p179
    %p186 = scmp.eq.s32.totalorder %s66, 1
    %p187 = por %p185, %p186
    %p188 = scmp.ne.s32.totalorder %s180, %s183
    %p189 = scmp.eq.s32.totalorder %s66, 0
    %p190 = por %p188, %p189
    %p191 = scmp.ne.s32.totalorder %s180, %s183
    %p192 = scmp.eq.s32.totalorder %s71, 1
    %p193 = por %p191, %p192
    %p194 = scmp.ne.s32.totalorder %s183, %s184
    %p195 = scmp.eq.s32.totalorder %s71, 0
    %p196 = por %p194, %p195
    %p197 = scmp.ne.s32.totalorder %s183, %s184
    %p198 = scmp.eq.s32.totalorder %s72, 1
    %p199 = por %p197, %p198
    %p201 = scmp.ne.s32.totalorder %s184, %s200
    %p202 = scmp.eq.s32.totalorder %s72, 0
    %p203 = por %p201, %p202
    %s204 = ssub.s32 %s66, %s73
    %p205 = scmp.eq.s32.totalorder %s204, 0
    %s207 = sadd.s32 %s206, 1
    %s208 = scalar_select %p205, %s206, %s207
    %p211 = pneg %p205
    %p212 = scmp.eq.s32.totalorder %s66, 1
    %p213 = por %p211, %p212
    %p214 = scmp.ne.s32.totalorder %s206, %s209
    %p215 = scmp.eq.s32.totalorder %s66, 0
    %p216 = por %p214, %p215
    %p217 = scmp.ne.s32.totalorder %s206, %s209
    %p218 = scmp.eq.s32.totalorder %s71, 1
    %p219 = por %p217, %p218
    %p220 = scmp.ne.s32.totalorder %s209, %s210
    %p221 = scmp.eq.s32.totalorder %s71, 0
    %p222 = por %p220, %p221
    %p223 = scmp.ne.s32.totalorder %s209, %s210
    %p224 = scmp.eq.s32.totalorder %s72, 1
    %p225 = por %p223, %p224
    %p227 = scmp.ne.s32.totalorder %s210, %s226
    %p228 = scmp.eq.s32.totalorder %s72, 0
    %p229 = por %p227, %p228
    %s230 = ssub.s32 %s66, %s73
    %p231 = scmp.eq.s32.totalorder %s230, 0
    %s233 = sadd.s32 %s232, 1
    %s234 = scalar_select %p231, %s232, %s233
    %p237 = pneg %p231
    %p238 = scmp.eq.s32.totalorder %s66, 1
    %p239 = por %p237, %p238
    %p240 = scmp.ne.s32.totalorder %s232, %s235
    %p241 = scmp.eq.s32.totalorder %s66, 0
    %p242 = por %p240, %p241
    %p243 = scmp.ne.s32.totalorder %s232, %s235
    %p244 = scmp.eq.s32.totalorder %s71, 1
    %p245 = por %p243, %p244
    %p246 = scmp.ne.s32.totalorder %s235, %s236
    %p247 = scmp.eq.s32.totalorder %s71, 0
    %p248 = por %p246, %p247
    %p249 = scmp.ne.s32.totalorder %s235, %s236
    %p250 = scmp.eq.s32.totalorder %s72, 1
    %p251 = por %p249, %p250
    %p253 = scmp.ne.s32.totalorder %s236, %s252
    %p254 = scmp.eq.s32.totalorder %s72, 0
    %p255 = por %p253, %p254
    %s256 = ssub.s32 %s66, %s73
    %p257 = scmp.eq.s32.totalorder %s256, 0
    %s259 = sadd.s32 %s258, 1
    %s260 = scalar_select %p257, %s258, %s259
    %p263 = pneg %p257
    %p264 = scmp.eq.s32.totalorder %s66, 1
    %p265 = por %p263, %p264
    %p266 = scmp.ne.s32.totalorder %s258, %s261
    %p267 = scmp.eq.s32.totalorder %s66, 0
    %p268 = por %p266, %p267
    %p269 = scmp.ne.s32.totalorder %s258, %s261
    %p270 = scmp.eq.s32.totalorder %s71, 1
    %p271 = por %p269, %p270
    %p272 = scmp.ne.s32.totalorder %s261, %s262
    %p273 = scmp.eq.s32.totalorder %s71, 0
    %p274 = por %p272, %p273
    %p275 = scmp.ne.s32.totalorder %s261, %s262
    %p276 = scmp.eq.s32.totalorder %s72, 1
    %p277 = por %p275, %p276
    %p279 = scmp.ne.s32.totalorder %s262, %s278
    %p280 = scmp.eq.s32.totalorder %s72, 0
    %p281 = por %p279, %p280
    %s283 = sadd.s32 %s282, 1
    %p286 = scmp.eq.s32.totalorder %s66, 1
    %p287 = scmp.ne.s32.totalorder %s282, %s284
    %p288 = scmp.eq.s32.totalorder %s66, 0
    %p289 = por %p287, %p288
    %p290 = scmp.ne.s32.totalorder %s282, %s284
    %p291 = scmp.eq.s32.totalorder %s71, 1
    %p292 = por %p290, %p291
    %p293 = scmp.ne.s32.totalorder %s284, %s285
    %p294 = scmp.eq.s32.totalorder %s71, 0
    %p295 = por %p293, %p294
    %p296 = scmp.ne.s32.totalorder %s284, %s285
    %p297 = scmp.eq.s32.totalorder %s72, 1
    %p298 = por %p296, %p297
    %p300 = scmp.ne.s32.totalorder %s285, %s299
    %p301 = scmp.eq.s32.totalorder %s72, 0
    %p302 = por %p300, %p301
    %s304 = sadd.s32 %s303, 1
    %p307 = scmp.eq.s32.totalorder %s66, 1
    %p308 = scmp.ne.s32.totalorder %s303, %s305
    %p309 = scmp.eq.s32.totalorder %s66, 0
    %p310 = por %p308, %p309
    %p311 = scmp.ne.s32.totalorder %s303, %s305
    %p312 = scmp.eq.s32.totalorder %s71, 1
    %p313 = por %p311, %p312
    %p314 = scmp.ne.s32.totalorder %s305, %s306
    %p315 = scmp.eq.s32.totalorder %s71, 0
    %p316 = por %p314, %p315
    %p317 = scmp.ne.s32.totalorder %s305, %s306
    %p318 = scmp.eq.s32.totalorder %s72, 1
    %p319 = por %p317, %p318
    %p321 = scmp.ne.s32.totalorder %s306, %s320
    %p322 = scmp.eq.s32.totalorder %s72, 0
    %p323 = por %p321, %p322
    %s325 = sadd.s32 %s324, 1
    %p328 = scmp.eq.s32.totalorder %s66, 1
    %p329 = scmp.ne.s32.totalorder %s324, %s326
    %p330 = scmp.eq.s32.totalorder %s66, 0
    %p331 = por %p329, %p330
    %p332 = scmp.ne.s32.totalorder %s324, %s326
    %p333 = scmp.eq.s32.totalorder %s71, 1
    %p334 = por %p332, %p333
    %p335 = scmp.ne.s32.totalorder %s326, %s327
    %p336 = scmp.eq.s32.totalorder %s71, 0
    %p337 = por %p335, %p336
    %p338 = scmp.ne.s32.totalorder %s326, %s327
    %p339 = scmp.eq.s32.totalorder %s72, 1
    %p340 = por %p338, %p339
    %p342 = scmp.ne.s32.totalorder %s327, %s341
    %p343 = scmp.eq.s32.totalorder %s72, 0
    %p344 = por %p342, %p343
    %s346 = sadd.s32 %s345, 1
    %p349 = scmp.eq.s32.totalorder %s66, 1
    %p350 = scmp.ne.s32.totalorder %s345, %s347
    %p351 = scmp.eq.s32.totalorder %s66, 0
    %p352 = por %p350, %p351
    %p353 = scmp.ne.s32.totalorder %s345, %s347
    %p354 = scmp.eq.s32.totalorder %s71, 1
    %p355 = por %p353, %p354
    %p356 = scmp.ne.s32.totalorder %s347, %s348
    %p357 = scmp.eq.s32.totalorder %s71, 0
    %p358 = por %p356, %p357
    %p359 = scmp.ne.s32.totalorder %s347, %s348
    %p360 = scmp.eq.s32.totalorder %s72, 1
    %p361 = por %p359, %p360
    %p363 = scmp.ne.s32.totalorder %s348, %s362
    %p364 = scmp.eq.s32.totalorder %s72, 0
    %p365 = por %p363, %p364
    %s367 = sadd.s32 %s366, 1
    %p370 = scmp.eq.s32.totalorder %s66, 1
    %p371 = scmp.ne.s32.totalorder %s366, %s368
    %p372 = scmp.eq.s32.totalorder %s66, 0
    %p373 = por %p371, %p372
    %p374 = scmp.ne.s32.totalorder %s366, %s368
    %p375 = scmp.eq.s32.totalorder %s71, 1
    %p376 = por %p374, %p375
    %p377 = scmp.ne.s32.totalorder %s368, %s369
    %p378 = scmp.eq.s32.totalorder %s71, 0
    %p379 = por %p377, %p378
    %p380 = scmp.ne.s32.totalorder %s368, %s369
    %p381 = scmp.eq.s32.totalorder %s72, 1
    %p382 = por %p380, %p381
    %p384 = scmp.ne.s32.totalorder %s369, %s383
    %p385 = scmp.eq.s32.totalorder %s72, 0
    %p386 = por %p384, %p385
    %s388 = sadd.s32 %s387, 1
    %p391 = scmp.eq.s32.totalorder %s66, 1
    %p392 = scmp.ne.s32.totalorder %s387, %s389
    %p393 = scmp.eq.s32.totalorder %s66, 0
    %p394 = por %p392, %p393
    %p395 = scmp.ne.s32.totalorder %s387, %s389
    %p396 = scmp.eq.s32.totalorder %s71, 1
    %p397 = por %p395, %p396
    %p398 = scmp.ne.s32.totalorder %s389, %s390
    %p399 = scmp.eq.s32.totalorder %s71, 0
    %p400 = por %p398, %p399
    %p401 = scmp.ne.s32.totalorder %s389, %s390
    %p402 = scmp.eq.s32.totalorder %s72, 1
    %p403 = por %p401, %p402
    %p405 = scmp.ne.s32.totalorder %s390, %s404
    %p406 = scmp.eq.s32.totalorder %s72, 0
    %p407 = por %p405, %p406
    %s409 = sadd.s32 %s408, 1
    %p412 = scmp.eq.s32.totalorder %s66, 1
    %p413 = scmp.ne.s32.totalorder %s408, %s410
    %p414 = scmp.eq.s32.totalorder %s66, 0
    %p415 = por %p413, %p414
    %p416 = scmp.ne.s32.totalorder %s408, %s410
    %p417 = scmp.eq.s32.totalorder %s71, 1
    %p418 = por %p416, %p417
    %p419 = scmp.ne.s32.totalorder %s410, %s411
    %p420 = scmp.eq.s32.totalorder %s71, 0
    %p421 = por %p419, %p420
    %p422 = scmp.ne.s32.totalorder %s410, %s411
    %p423 = scmp.eq.s32.totalorder %s72, 1
    %p424 = por %p422, %p423
    %p426 = scmp.ne.s32.totalorder %s411, %s425
    %p427 = scmp.eq.s32.totalorder %s72, 0
    %p428 = por %p426, %p427
    %s430 = sadd.s32 %s429, 1
    %p433 = scmp.eq.s32.totalorder %s66, 1
    %p434 = scmp.ne.s32.totalorder %s429, %s431
    %p435 = scmp.eq.s32.totalorder %s66, 0
    %p436 = por %p434, %p435
    %p437 = scmp.ne.s32.totalorder %s429, %s431
    %p438 = scmp.eq.s32.totalorder %s71, 1
    %p439 = por %p437, %p438
    %p440 = scmp.ne.s32.totalorder %s431, %s432
    %p441 = scmp.eq.s32.totalorder %s71, 0
    %p442 = por %p440, %p441
    %p443 = scmp.ne.s32.totalorder %s431, %s432
    %p444 = scmp.eq.s32.totalorder %s72, 1
    %p445 = por %p443, %p444
    %p447 = scmp.ne.s32.totalorder %s432, %s446
    %p448 = scmp.eq.s32.totalorder %s72, 0
    %p449 = por %p447, %p448
    %s451 = sadd.s32 %s450, 1
    %p454 = scmp.eq.s32.totalorder %s66, 1
    %p455 = scmp.ne.s32.totalorder %s450, %s452
    %p456 = scmp.eq.s32.totalorder %s66, 0
    %p457 = por %p455, %p456
    %p458 = scmp.ne.s32.totalorder %s450, %s452
    %p459 = scmp.eq.s32.totalorder %s71, 1
    %p460 = por %p458, %p459
    %p461 = scmp.ne.s32.totalorder %s452, %s453
    %p462 = scmp.eq.s32.totalorder %s71, 0
    %p463 = por %p461, %p462
    %p464 = scmp.ne.s32.totalorder %s452, %s453
    %p465 = scmp.eq.s32.totalorder %s72, 1
    %p466 = por %p464, %p465
    %p468 = scmp.ne.s32.totalorder %s453, %s467
    %p469 = scmp.eq.s32.totalorder %s72, 0
    %p470 = por %p468, %p469
    %s472 = sadd.s32 %s471, 1
    %p475 = scmp.eq.s32.totalorder %s66, 1
    %p476 = scmp.ne.s32.totalorder %s471, %s473
    %p477 = scmp.eq.s32.totalorder %s66, 0
    %p478 = por %p476, %p477
    %p479 = scmp.ne.s32.totalorder %s471, %s473
    %p480 = scmp.eq.s32.totalorder %s71, 1
    %p481 = por %p479, %p480
    %p482 = scmp.ne.s32.totalorder %s473, %s474
    %p483 = scmp.eq.s32.totalorder %s71, 0
    %p484 = por %p482, %p483
    %p485 = scmp.ne.s32.totalorder %s473, %s474
    %p486 = scmp.eq.s32.totalorder %s72, 1
    %p487 = por %p485, %p486
    %p489 = scmp.ne.s32.totalorder %s474, %s488
    %p490 = scmp.eq.s32.totalorder %s72, 0
    %p491 = por %p489, %p490
    %s493 = sadd.s32 %s492, 1
    %p496 = scmp.eq.s32.totalorder %s66, 1
    %p497 = scmp.ne.s32.totalorder %s492, %s494
    %p498 = scmp.eq.s32.totalorder %s66, 0
    %p499 = por %p497, %p498
    %p500 = scmp.ne.s32.totalorder %s492, %s494
    %p501 = scmp.eq.s32.totalorder %s71, 1
    %p502 = por %p500, %p501
    %p503 = scmp.ne.s32.totalorder %s494, %s495
    %p504 = scmp.eq.s32.totalorder %s71, 0
    %p505 = por %p503, %p504
    %p506 = scmp.ne.s32.totalorder %s494, %s495
    %p507 = scmp.eq.s32.totalorder %s72, 1
    %p508 = por %p506, %p507
    %p510 = scmp.ne.s32.totalorder %s495, %s509
    %p511 = scmp.eq.s32.totalorder %s72, 0
    %p512 = por %p510, %p511
    %s514 = sadd.s32 %s513, 1
    %p517 = scmp.eq.s32.totalorder %s66, 1
    %p518 = scmp.ne.s32.totalorder %s513, %s515
    %p519 = scmp.eq.s32.totalorder %s66, 0
    %p520 = por %p518, %p519
    %p521 = scmp.ne.s32.totalorder %s513, %s515
    %p522 = scmp.eq.s32.totalorder %s71, 1
    %p523 = por %p521, %p522
    %p524 = scmp.ne.s32.totalorder %s515, %s516
    %p525 = scmp.eq.s32.totalorder %s71, 0
    %p526 = por %p524, %p525
    %p527 = scmp.ne.s32.totalorder %s515, %s516
    %p528 = scmp.eq.s32.totalorder %s72, 1
    %p529 = por %p527, %p528
    %p531 = scmp.ne.s32.totalorder %s516, %s530
    %p532 = scmp.eq.s32.totalorder %s72, 0
    %p533 = por %p531, %p532
    %s535 = sadd.s32 %s534, 1
    %p538 = scmp.eq.s32.totalorder %s66, 1
    %p539 = scmp.ne.s32.totalorder %s534, %s536
    %p540 = scmp.eq.s32.totalorder %s66, 0
    %p541 = por %p539, %p540
    %p542 = scmp.ne.s32.totalorder %s534, %s536
    %p543 = scmp.eq.s32.totalorder %s71, 1
    %p544 = por %p542, %p543
    %p545 = scmp.ne.s32.totalorder %s536, %s537
    %p546 = scmp.eq.s32.totalorder %s71, 0
    %p547 = por %p545, %p546
    %p548 = scmp.ne.s32.totalorder %s536, %s537
    %p549 = scmp.eq.s32.totalorder %s72, 1
    %p550 = por %p548, %p549
    %p552 = scmp.ne.s32.totalorder %s537, %s551
    %p553 = scmp.eq.s32.totalorder %s72, 0
    %p554 = por %p552, %p553
    %s556 = sadd.s32 %s555, 1
    %p559 = scmp.eq.s32.totalorder %s66, 1
    %p560 = scmp.ne.s32.totalorder %s555, %s557
    %p561 = scmp.eq.s32.totalorder %s66, 0
    %p562 = por %p560, %p561
    %p563 = scmp.ne.s32.totalorder %s555, %s557
    %p564 = scmp.eq.s32.totalorder %s71, 1
    %p565 = por %p563, %p564
    %p566 = scmp.ne.s32.totalorder %s557, %s558
    %p567 = scmp.eq.s32.totalorder %s71, 0
    %p568 = por %p566, %p567
    %p569 = scmp.ne.s32.totalorder %s557, %s558
    %p570 = scmp.eq.s32.totalorder %s72, 1
    %p571 = por %p569, %p570
    %p573 = scmp.ne.s32.totalorder %s558, %s572
    %p574 = scmp.eq.s32.totalorder %s72, 0
    %p575 = por %p573, %p574
    %s577 = sadd.s32 %s576, 1
    %p580 = scmp.eq.s32.totalorder %s66, 1
    %p581 = scmp.ne.s32.totalorder %s576, %s578
    %p582 = scmp.eq.s32.totalorder %s66, 0
    %p583 = por %p581, %p582
    %p584 = scmp.ne.s32.totalorder %s576, %s578
    %p585 = scmp.eq.s32.totalorder %s71, 1
    %p586 = por %p584, %p585
    %p587 = scmp.ne.s32.totalorder %s578, %s579
    %p588 = scmp.eq.s32.totalorder %s71, 0
    %p589 = por %p587, %p588
    %p590 = scmp.ne.s32.totalorder %s578, %s579
    %p591 = scmp.eq.s32.totalorder %s72, 1
    %p592 = por %p590, %p591
    %p594 = scmp.ne.s32.totalorder %s579, %s593
    %p595 = scmp.eq.s32.totalorder %s72, 0
    %p596 = por %p594, %p595
    %s598 = sadd.s32 %s597, 1
    %p601 = scmp.eq.s32.totalorder %s66, 1
    %p602 = scmp.ne.s32.totalorder %s597, %s599
    %p603 = scmp.eq.s32.totalorder %s66, 0
    %p604 = por %p602, %p603
    %p605 = scmp.ne.s32.totalorder %s597, %s599
    %p606 = scmp.eq.s32.totalorder %s71, 1
    %p607 = por %p605, %p606
    %p608 = scmp.ne.s32.totalorder %s599, %s600
    %p609 = scmp.eq.s32.totalorder %s71, 0
    %p610 = por %p608, %p609
    %p611 = scmp.ne.s32.totalorder %s599, %s600
    %p612 = scmp.eq.s32.totalorder %s72, 1
    %p613 = por %p611, %p612
    %p615 = scmp.ne.s32.totalorder %s600, %s614
    %p616 = scmp.eq.s32.totalorder %s72, 0
    %p617 = por %p615, %p616
    %s619 = sadd.s32 %s618, 1
    %p622 = scmp.eq.s32.totalorder %s66, 1
    %p623 = scmp.ne.s32.totalorder %s618, %s620
    %p624 = scmp.eq.s32.totalorder %s66, 0
    %p625 = por %p623, %p624
    %p626 = scmp.ne.s32.totalorder %s618, %s620
    %p627 = scmp.eq.s32.totalorder %s71, 1
    %p628 = por %p626, %p627
    %p629 = scmp.ne.s32.totalorder %s620, %s621
    %p630 = scmp.eq.s32.totalorder %s71, 0
    %p631 = por %p629, %p630
    %p632 = scmp.ne.s32.totalorder %s620, %s621
    %p633 = scmp.eq.s32.totalorder %s72, 1
    %p634 = por %p632, %p633
    %p636 = scmp.ne.s32.totalorder %s621, %s635
    %p637 = scmp.eq.s32.totalorder %s72, 0
    %p638 = por %p636, %p637
    %s640 = sadd.s32 %s639, 1
    %p643 = scmp.eq.s32.totalorder %s66, 1
    %p644 = scmp.ne.s32.totalorder %s639, %s641
    %p645 = scmp.eq.s32.totalorder %s66, 0
    %p646 = por %p644, %p645
    %p647 = scmp.ne.s32.totalorder %s639, %s641
    %p648 = scmp.eq.s32.totalorder %s71, 1
    %p649 = por %p647, %p648
    %p650 = scmp.ne.s32.totalorder %s641, %s642
    %p651 = scmp.eq.s32.totalorder %s71, 0
    %p652 = por %p650, %p651
    %p653 = scmp.ne.s32.totalorder %s641, %s642
    %p654 = scmp.eq.s32.totalorder %s72, 1
    %p655 = por %p653, %p654
    %p657 = scmp.ne.s32.totalorder %s642, %s656
    %p658 = scmp.eq.s32.totalorder %s72, 0
    %p659 = por %p657, %p658
    %s661 = sadd.s32 %s660, 1
    %p664 = scmp.eq.s32.totalorder %s66, 1
    %p665 = scmp.ne.s32.totalorder %s660, %s662
    %p666 = scmp.eq.s32.totalorder %s66, 0
    %p667 = por %p665, %p666
    %p668 = scmp.ne.s32.totalorder %s660, %s662
    %p669 = scmp.eq.s32.totalorder %s71, 1
    %p670 = por %p668, %p669
    %p671 = scmp.ne.s32.totalorder %s662, %s663
    %p672 = scmp.eq.s32.totalorder %s71, 0
    %p673 = por %p671, %p672
    %p674 = scmp.ne.s32.totalorder %s662, %s663
    %p675 = scmp.eq.s32.totalorder %s72, 1
    %p676 = por %p674, %p675
    %p678 = scmp.ne.s32.totalorder %s663, %s677
    %p679 = scmp.eq.s32.totalorder %s72, 0
    %p680 = por %p678, %p679
    %s682 = sadd.s32 %s681, 1
    %p685 = scmp.eq.s32.totalorder %s66, 1
    %p686 = scmp.ne.s32.totalorder %s681, %s683
    %p687 = scmp.eq.s32.totalorder %s66, 0
    %p688 = por %p686, %p687
    %p689 = scmp.ne.s32.totalorder %s681, %s683
    %p690 = scmp.eq.s32.totalorder %s71, 1
    %p691 = por %p689, %p690
    %p692 = scmp.ne.s32.totalorder %s683, %s684
    %p693 = scmp.eq.s32.totalorder %s71, 0
    %p694 = por %p692, %p693
    %p695 = scmp.ne.s32.totalorder %s683, %s684
    %p696 = scmp.eq.s32.totalorder %s72, 1
    %p697 = por %p695, %p696
    %p699 = scmp.ne.s32.totalorder %s684, %s698
    %p700 = scmp.eq.s32.totalorder %s72, 0
    %p701 = por %p699, %p700
    %s702 = ssub.s32 %s66, %s73
    %p703 = scmp.eq.s32.totalorder %s702, 0
    %s705 = sadd.s32 %s704, 1
    %s706 = scalar_select %p703, %s704, %s705
    %p709 = pneg %p703
    %p710 = scmp.eq.s32.totalorder %s66, 1
    %p711 = por %p709, %p710
    %p712 = scmp.ne.s32.totalorder %s704, %s707
    %p713 = scmp.eq.s32.totalorder %s66, 0
    %p714 = por %p712, %p713
    %p715 = scmp.ne.s32.totalorder %s704, %s707
    %p716 = scmp.eq.s32.totalorder %s71, 1
    %p717 = por %p715, %p716
    %p718 = scmp.ne.s32.totalorder %s707, %s708
    %p719 = scmp.eq.s32.totalorder %s71, 0
    %p720 = por %p718, %p719
    %p721 = scmp.ne.s32.totalorder %s707, %s708
    %p722 = scmp.eq.s32.totalorder %s72, 1
    %p723 = por %p721, %p722
    %p725 = scmp.ne.s32.totalorder %s708, %s724
    %p726 = scmp.eq.s32.totalorder %s72, 0
    %p727 = por %p725, %p726
    %s728 = ssub.s32 %s66, %s73
    %p729 = scmp.eq.s32.totalorder %s728, 0
    %s731 = sadd.s32 %s730, 1
    %s732 = scalar_select %p729, %s730, %s731
    %p735 = pneg %p729
    %p736 = scmp.eq.s32.totalorder %s66, 1
    %p737 = por %p735, %p736
    %p738 = scmp.ne.s32.totalorder %s730, %s733
    %p739 = scmp.eq.s32.totalorder %s66, 0
    %p740 = por %p738, %p739
    %p741 = scmp.ne.s32.totalorder %s730, %s733
    %p742 = scmp.eq.s32.totalorder %s71, 1
    %p743 = por %p741, %p742
    %p744 = scmp.ne.s32.totalorder %s733, %s734
    %p745 = scmp.eq.s32.totalorder %s71, 0
    %p746 = por %p744, %p745
    %p747 = scmp.ne.s32.totalorder %s733, %s734
    %p748 = scmp.eq.s32.totalorder %s72, 1
    %p749 = por %p747, %p748
    %p751 = scmp.ne.s32.totalorder %s734, %s750
    %p752 = scmp.eq.s32.totalorder %s72, 0
    %p753 = por %p751, %p752
    %p754 = scmp.le.s32.totalorder 1, %s66
    %p755 = scmp.lt.s32.totalorder %s66, 3
    %p756 = pnand %p754, %p755
    %p757 = pneg %p756
    // Predicated region
    $region9: #{decoder_forward.3} parent=5 // pred_check
      _
    $region10: #{decoder_forward.3} parent=5 // pred_check_branch
      %759 = sbr.rel (%p756) target = $region12
    $region11: #{decoder_forward.3} parent=5 // pred_region
      %s760 = ssub.s32 %s66, 1
      // Predicated region
      $region13: #{decoder_forward.3} parent=11 // pred_check
        %p761 = pneg %p295
      $region14: #{decoder_forward.3} parent=11 // pred_check_branch
        %763 = sbr.rel (%p761) target = $region16
      $region15: #{decoder_forward.3} parent=11 // pred_region
        _
      $region16: #{decoder_forward.3} parent=11 // pred_fallthru
        _
      // Predicated region
      $region17: #{decoder_forward.3} parent=11 // pred_check
        %p764 = pneg %p316
      $region18: #{decoder_forward.3} parent=11 // pred_check_branch
        %766 = sbr.rel (%p764) target = $region20
      $region19: #{decoder_forward.3} parent=11 // pred_region
        _
      $region20: #{decoder_forward.3} parent=11 // pred_fallthru
        _
      // Predicated region
      $region21: #{decoder_forward.3} parent=11 // pred_check
        %p767 = pneg %p337
      $region22: #{decoder_forward.3} parent=11 // pred_check_branch
        %769 = sbr.rel (%p767) target = $region24
      $region23: #{decoder_forward.3} parent=11 // pred_region
        _
      $region24: #{decoder_forward.3} parent=11 // pred_fallthru
        _
      // Predicated region
      $region25: #{decoder_forward.3} parent=11 // pred_check
        %p770 = pneg %p358
      $region26: #{decoder_forward.3} parent=11 // pred_check_branch
        %772 = sbr.rel (%p770) target = $region28
      $region27: #{decoder_forward.3} parent=11 // pred_region
        _
      $region28: #{decoder_forward.3} parent=11 // pred_fallthru
        _
      // Predicated region
      $region29: #{decoder_forward.3} parent=11 // pred_check
        %p773 = pneg %p379
      $region30: #{decoder_forward.3} parent=11 // pred_check_branch
        %775 = sbr.rel (%p773) target = $region32
      $region31: #{decoder_forward.3} parent=11 // pred_region
        _
      $region32: #{decoder_forward.3} parent=11 // pred_fallthru
        _
      // Predicated region
      $region33: #{decoder_forward.3} parent=11 // pred_check
        %p776 = pneg %p400
      $region34: #{decoder_forward.3} parent=11 // pred_check_branch
        %778 = sbr.rel (%p776) target = $region36
      $region35: #{decoder_forward.3} parent=11 // pred_region
        _
      $region36: #{decoder_forward.3} parent=11 // pred_fallthru
        _
      // Predicated region
      $region37: #{decoder_forward.3} parent=11 // pred_check
        %p779 = pneg %p421
      $region38: #{decoder_forward.3} parent=11 // pred_check_branch
        %781 = sbr.rel (%p779) target = $region40
      $region39: #{decoder_forward.3} parent=11 // pred_region
        _
      $region40: #{decoder_forward.3} parent=11 // pred_fallthru
        _
      // Predicated region
      $region41: #{decoder_forward.3} parent=11 // pred_check
        %p782 = pneg %p442
      $region42: #{decoder_forward.3} parent=11 // pred_check_branch
        %784 = sbr.rel (%p782) target = $region44
      $region43: #{decoder_forward.3} parent=11 // pred_region
        _
      $region44: #{decoder_forward.3} parent=11 // pred_fallthru
        _
      // Predicated region
      $region45: #{decoder_forward.3} parent=11 // pred_check
        %p785 = pneg %p463
      $region46: #{decoder_forward.3} parent=11 // pred_check_branch
        %787 = sbr.rel (%p785) target = $region48
      $region47: #{decoder_forward.3} parent=11 // pred_region
        _
      $region48: #{decoder_forward.3} parent=11 // pred_fallthru
        _
      // Predicated region
      $region49: #{decoder_forward.3} parent=11 // pred_check
        %p788 = pneg %p484
      $region50: #{decoder_forward.3} parent=11 // pred_check_branch
        %790 = sbr.rel (%p788) target = $region52
      $region51: #{decoder_forward.3} parent=11 // pred_region
        _
      $region52: #{decoder_forward.3} parent=11 // pred_fallthru
        _
      // Predicated region
      $region53: #{decoder_forward.3} parent=11 // pred_check
        %p791 = pneg %p505
      $region54: #{decoder_forward.3} parent=11 // pred_check_branch
        %793 = sbr.rel (%p791) target = $region56
      $region55: #{decoder_forward.3} parent=11 // pred_region
        _
      $region56: #{decoder_forward.3} parent=11 // pred_fallthru
        _
      // Predicated region
      $region57: #{decoder_forward.3} parent=11 // pred_check
        %p794 = pneg %p526
      $region58: #{decoder_forward.3} parent=11 // pred_check_branch
        %796 = sbr.rel (%p794) target = $region60
      $region59: #{decoder_forward.3} parent=11 // pred_region
        _
      $region60: #{decoder_forward.3} parent=11 // pred_fallthru
        _
      // Predicated region
      $region61: #{decoder_forward.3} parent=11 // pred_check
        %p797 = pneg %p547
      $region62: #{decoder_forward.3} parent=11 // pred_check_branch
        %799 = sbr.rel (%p797) target = $region64
      $region63: #{decoder_forward.3} parent=11 // pred_region
        _
      $region64: #{decoder_forward.3} parent=11 // pred_fallthru
        _
      // Predicated region
      $region65: #{decoder_forward.3} parent=11 // pred_check
        %p800 = pneg %p568
      $region66: #{decoder_forward.3} parent=11 // pred_check_branch
        %802 = sbr.rel (%p800) target = $region68
      $region67: #{decoder_forward.3} parent=11 // pred_region
        _
      $region68: #{decoder_forward.3} parent=11 // pred_fallthru
        _
      // Predicated region
      $region69: #{decoder_forward.3} parent=11 // pred_check
        %p803 = pneg %p589
      $region70: #{decoder_forward.3} parent=11 // pred_check_branch
        %805 = sbr.rel (%p803) target = $region72
      $region71: #{decoder_forward.3} parent=11 // pred_region
        _
      $region72: #{decoder_forward.3} parent=11 // pred_fallthru
        _
      // Predicated region
      $region73: #{decoder_forward.3} parent=11 // pred_check
        %p806 = pneg %p610
      $region74: #{decoder_forward.3} parent=11 // pred_check_branch
        %808 = sbr.rel (%p806) target = $region76
      $region75: #{decoder_forward.3} parent=11 // pred_region
        _
      $region76: #{decoder_forward.3} parent=11 // pred_fallthru
        _
      // Predicated region
      $region77: #{decoder_forward.3} parent=11 // pred_check
        %p809 = pneg %p631
      $region78: #{decoder_forward.3} parent=11 // pred_check_branch
        %811 = sbr.rel (%p809) target = $region80
      $region79: #{decoder_forward.3} parent=11 // pred_region
        _
      $region80: #{decoder_forward.3} parent=11 // pred_fallthru
        _
      // Predicated region
      $region81: #{decoder_forward.3} parent=11 // pred_check
        %p812 = pneg %p652
      $region82: #{decoder_forward.3} parent=11 // pred_check_branch
        %814 = sbr.rel (%p812) target = $region84
      $region83: #{decoder_forward.3} parent=11 // pred_region
        _
      $region84: #{decoder_forward.3} parent=11 // pred_fallthru
        _
      // Predicated region
      $region85: #{decoder_forward.3} parent=11 // pred_check
        %p815 = pneg %p673
      $region86: #{decoder_forward.3} parent=11 // pred_check_branch
        %817 = sbr.rel (%p815) target = $region88
      $region87: #{decoder_forward.3} parent=11 // pred_region
        _
      $region88: #{decoder_forward.3} parent=11 // pred_fallthru
        _
      // Predicated region
      $region89: #{decoder_forward.3} parent=11 // pred_check
        %p818 = pneg %p694
      $region90: #{decoder_forward.3} parent=11 // pred_check_branch
        %820 = sbr.rel (%p818) target = $region92
      $region91: #{decoder_forward.3} parent=11 // pred_region
        _
      $region92: #{decoder_forward.3} parent=11 // pred_fallthru
        _
    $region12: #{decoder_forward.3} parent=5 // pred_fallthru
      _
    %p821 = scmp.lt.s32.totalorder %s66, 2
    // Predicated region
    $region93: #{decoder_forward.3} parent=5 // pred_check
      %p822 = pneg %p821
    $region94: #{decoder_forward.3} parent=5 // pred_check_branch
      %824 = sbr.rel (%p822) target = $region96
    $region95: #{decoder_forward.3} parent=5 // pred_region
      // Predicated region
      $region97: #{decoder_forward.3} parent=95 // pred_check
        %p825 = pneg %p86
      $region98: #{decoder_forward.3} parent=95 // pred_check_branch
        %827 = sbr.rel (%p825) target = $region100
      $region99: #{decoder_forward.3} parent=95 // pred_region
        %p828 = scmp.lt.s32.totalorder %s66, 1
        %s829 = scalar_select %p828, %s66, 1
        %s830 = smul.addr %s829, 8
        %s831 = scalar_lea.vmem %s1, %s830
      $region100: #{decoder_forward.3} parent=95 // pred_fallthru
        _
      // Predicated region
      $region101: #{decoder_forward.3} parent=95 // pred_check
        %p832 = pneg %p112
      $region102: #{decoder_forward.3} parent=95 // pred_check_branch
        %834 = sbr.rel (%p832) target = $region104
      $region103: #{decoder_forward.3} parent=95 // pred_region
        %p835 = scmp.lt.s32.totalorder %s66, 1
        %s836 = scalar_select %p835, %s66, 1
        %s837 = smul.addr %s836, 2
        %s838 = smul.addr %s837, 8
        %s839 = scalar_lea.vmem %s3, %s838
      $region104: #{decoder_forward.3} parent=95 // pred_fallthru
        _
      // Predicated region
      $region105: #{decoder_forward.3} parent=95 // pred_check
        %p840 = pneg %p138
      $region106: #{decoder_forward.3} parent=95 // pred_check_branch
        %842 = sbr.rel (%p840) target = $region108
      $region107: #{decoder_forward.3} parent=95 // pred_region
        %p843 = scmp.lt.s32.totalorder %s66, 1
        %s844 = scalar_select %p843, %s66, 1
        %s845 = smul.addr %s844, 2
        %s846 = smul.addr %s845, 8
        %s847 = scalar_lea.vmem %s5, %s846
      $region108: #{decoder_forward.3} parent=95 // pred_fallthru
        _
      // Predicated region
      $region109: #{decoder_forward.3} parent=95 // pred_check
        %p848 = pneg %p164
      $region110: #{decoder_forward.3} parent=95 // pred_check_branch
        %850 = sbr.rel (%p848) target = $region112
      $region111: #{decoder_forward.3} parent=95 // pred_region
        %p851 = scmp.lt.s32.totalorder %s66, 1
        %s852 = scalar_select %p851, %s66, 1
        %s853 = smul.addr %s852, 2
        %s854 = smul.addr %s853, 8
        %s855 = scalar_lea.vmem %s7, %s854
      $region112: #{decoder_forward.3} parent=95 // pred_fallthru
        _
      // Predicated region
      $region113: #{decoder_forward.3} parent=95 // pred_check
        %p856 = pneg %p190
      $region114: #{decoder_forward.3} parent=95 // pred_check_branch
        %858 = sbr.rel (%p856) target = $region116
      $region115: #{decoder_forward.3} parent=95 // pred_region
        %p859 = scmp.lt.s32.totalorder %s66, 1
        %s860 = scalar_select %p859, %s66, 1
        %s861 = scalar_lea.vmem %s9, %s860
      $region116: #{decoder_forward.3} parent=95 // pred_fallthru
        _
      // Predicated region
      $region117: #{decoder_forward.3} parent=95 // pred_check
        %p862 = pneg %p216
      $region118: #{decoder_forward.3} parent=95 // pred_check_branch
        %864 = sbr.rel (%p862) target = $region120
      $region119: #{decoder_forward.3} parent=95 // pred_region
        %p865 = scmp.lt.s32.totalorder %s66, 1
        %s866 = scalar_select %p865, %s66, 1
        %s867 = scalar_lea.vmem %s11, %s866
      $region120: #{decoder_forward.3} parent=95 // pred_fallthru
        _
      // Predicated region
      $region121: #{decoder_forward.3} parent=95 // pred_check
        %p868 = pneg %p242
      $region122: #{decoder_forward.3} parent=95 // pred_check_branch
        %870 = sbr.rel (%p868) target = $region124
      $region123: #{decoder_forward.3} parent=95 // pred_region
        %p871 = scmp.lt.s32.totalorder %s66, 1
        %s872 = scalar_select %p871, %s66, 1
        %s873 = scalar_lea.vmem %s13, %s872
      $region124: #{decoder_forward.3} parent=95 // pred_fallthru
        _
      // Predicated region
      $region125: #{decoder_forward.3} parent=95 // pred_check
        %p874 = pneg %p268
      $region126: #{decoder_forward.3} parent=95 // pred_check_branch
        %876 = sbr.rel (%p874) target = $region128
      $region127: #{decoder_forward.3} parent=95 // pred_region
        %p877 = scmp.lt.s32.totalorder %s66, 1
        %s878 = scalar_select %p877, %s66, 1
        %s879 = scalar_lea.vmem %s15, %s878
      $region128: #{decoder_forward.3} parent=95 // pred_fallthru
        _
    $region96: #{decoder_forward.3} parent=5 // pred_fallthru
      _
    %p880 = scmp.le.s32.totalorder 1, %s66
    %p881 = scmp.lt.s32.totalorder %s66, 3
    %p882 = pnand %p880, %p881
    %p883 = pneg %p882
    // Predicated region
    $region129: #{decoder_forward.3} parent=5 // pred_check
      _
    $region130: #{decoder_forward.3} parent=5 // pred_check_branch
      %885 = sbr.rel (%p882) target = $region132
    $region131: #{decoder_forward.3} parent=5 // pred_region
      %s886 = ssub.s32 %s66, 1
      %p887 = scmp.lt.s32.totalorder %s71, 1
      %s888 = scalar_select %p887, %s71, 1
      %s889 = smul.addr %s888, 8
      %s890 = scalar_lea.vmem %s1, %s889
      %p891 = pneg %p92
      %p892 = pneg %p89
      %p893 = scmp.lt.s32.totalorder %s71, 1
      %s894 = scalar_select %p893, %s71, 1
      %s895 = smul.addr %s894, 2
      %s896 = smul.addr %s895, 8
      %s897 = scalar_lea.vmem %s3, %s896
      %p898 = pneg %p118
      %p899 = pneg %p115
      %p900 = scmp.lt.s32.totalorder %s71, 1
      %s901 = scalar_select %p900, %s71, 1
      %s902 = smul.addr %s901, 2
      %s903 = smul.addr %s902, 8
      %s904 = scalar_lea.vmem %s5, %s903
      %p905 = pneg %p144
      %p906 = pneg %p141
      %p907 = scmp.lt.s32.totalorder %s71, 1
      %s908 = scalar_select %p907, %s71, 1
      %s909 = smul.addr %s908, 2
      %s910 = smul.addr %s909, 8
      %s911 = scalar_lea.vmem %s7, %s910
      %p912 = pneg %p170
      %p913 = pneg %p167
      %p914 = scmp.lt.s32.totalorder %s71, 1
      %s915 = scalar_select %p914, %s71, 1
      %s916 = scalar_lea.vmem %s9, %s915
      %p917 = pneg %p196
      %p918 = pneg %p193
      %p919 = scmp.lt.s32.totalorder %s71, 1
      %s920 = scalar_select %p919, %s71, 1
      %s921 = scalar_lea.vmem %s11, %s920
      %p922 = pneg %p222
      %p923 = pneg %p219
      %p924 = scmp.lt.s32.totalorder %s71, 1
      %s925 = scalar_select %p924, %s71, 1
      %s926 = scalar_lea.vmem %s13, %s925
      %p927 = pneg %p248
      %p928 = pneg %p245
      %p929 = scmp.lt.s32.totalorder %s71, 1
      %s930 = scalar_select %p929, %s71, 1
      %s931 = scalar_lea.vmem %s15, %s930
      %p932 = pneg %p274
      %p933 = pneg %p271
      %p934 = pneg %p295
      %p935 = pneg %p292
      %p936 = pneg %p316
      %p937 = pneg %p313
      %p938 = pneg %p337
      %p939 = pneg %p334
      %p940 = pneg %p358
      %p941 = pneg %p355
      %p942 = pneg %p379
      %p943 = pneg %p376
      %p944 = pneg %p400
      %p945 = pneg %p397
      %p946 = pneg %p421
      %p947 = pneg %p418
      %p948 = pneg %p442
      %p949 = pneg %p439
      %p950 = pneg %p463
      %p951 = pneg %p460
      %p952 = pneg %p484
      %p953 = pneg %p481
      %p954 = pneg %p505
      %p955 = pneg %p502
      %p956 = pneg %p526
      %p957 = pneg %p523
      %p958 = pneg %p547
      %p959 = pneg %p544
      %p960 = pneg %p568
      %p961 = pneg %p565
      %p962 = pneg %p589
      %p963 = pneg %p586
      %p964 = pneg %p610
      %p965 = pneg %p607
      %p966 = pneg %p631
      %p967 = pneg %p628
      %p968 = pneg %p652
      %p969 = pneg %p649
      %p970 = pneg %p673
      %p971 = pneg %p670
      %p972 = pneg %p694
      %p973 = pneg %p691
      %p974 = pneg %p720
      %p975 = pneg %p717
      %p976 = scmp.lt.s32.totalorder %s71, 1
      %s977 = scalar_select %p976, %s71, 1
      %s978 = smul.addr %s977, 8
      %s979 = scalar_lea.vmem %s57, %s978
      %p980 = pneg %p746
      %p981 = pneg %p743
      %p982 = scmp.lt.s32.totalorder %s71, 1
      %s983 = scalar_select %p982, %s71, 1
      %s984 = smul.addr %s983, 8
      %s985 = scalar_lea.vmem %s59, %s984
      %p986 = scmp.lt.s32.totalorder %s71, 1
      %s987 = scalar_select %p986, %s71, 1
      %s988 = smul.addr %s987, 8
      %s989 = scalar_lea.vmem %s1, %s988
      %p990 = scmp.lt.s32.totalorder %s71, 1
      %s991 = scalar_select %p990, %s71, 1
      %s992 = smul.addr %s991, 2
      %s993 = smul.addr %s992, 8
      %s994 = scalar_lea.vmem %s3, %s993
      %p995 = scmp.lt.s32.totalorder %s71, 1
      %s996 = scalar_select %p995, %s71, 1
      %s997 = smul.addr %s996, 2
      %s998 = smul.addr %s997, 8
      %s999 = scalar_lea.vmem %s5, %s998
      %p1000 = scmp.lt.s32.totalorder %s71, 1
      %s1001 = scalar_select %p1000, %s71, 1
      %s1002 = smul.addr %s1001, 2
      %s1003 = smul.addr %s1002, 8
      %s1004 = scalar_lea.vmem %s7, %s1003
      %p1005 = scmp.lt.s32.totalorder %s71, 1
      %s1006 = scalar_select %p1005, %s71, 1
      %s1007 = scalar_lea.vmem %s9, %s1006
      %p1008 = scmp.lt.s32.totalorder %s71, 1
      %s1009 = scalar_select %p1008, %s71, 1
      %s1010 = scalar_lea.vmem %s11, %s1009
      %p1011 = scmp.lt.s32.totalorder %s71, 1
      %s1012 = scalar_select %p1011, %s71, 1
      %s1013 = scalar_lea.vmem %s13, %s1012
      %p1014 = scmp.lt.s32.totalorder %s71, 1
      %s1015 = scalar_select %p1014, %s71, 1
      %s1016 = scalar_lea.vmem %s15, %s1015
      %p1017 = scmp.lt.s32.totalorder %s71, 1
      %s1018 = scalar_select %p1017, %s71, 1
      %s1019 = smul.addr %s1018, 8
      %s1020 = scalar_lea.vmem %s57, %s1019
      %p1021 = scmp.lt.s32.totalorder %s71, 1
      %s1022 = scalar_select %p1021, %s71, 1
      %s1023 = smul.addr %s1022, 8
      %s1024 = scalar_lea.vmem %s59, %s1023
      %v1026 = vld [vmem:[%s989] sm:$0xff]
      %v1027 = vld [vmem:[%s17] sm:$0x1]
      %v1028 = vld [vmem:[%s19] sm:$0x1]
      %vm1029 = vcmask 261120
      %v1030 = vsel %vm1029, %v1026, 0.0
      %1031 = vadd.xlane.f32.xlu0 %v1030
      %v1032 = vpop.xlane.xlu0 %1031
      %v1033 = vrcp.pop 32.0
      %v1034 = vmul.f32 %v1032, %v1033
      %v1035 = vsub.f32 %v1026, %v1034
      %v1036 = vmul.f32 %v1035, %v1035
      %v1037 = vsel %vm1029, %v1036, 0.0
      %1038 = vadd.xlane.f32.xlu0 %v1037
      %v1039 = vpop.xlane.xlu0 %1038
      %v1040 = vmul.f32 %v1039, %v1033
      %v1041 = vadd.f32 %v1040, 1e-06
      %v1042 = vrsqrt.pop %v1041
      %v1043 = vmul.f32 %v1035, %v1042
      %v1045 = vlaneseq
      %v1046 = vshrl.u32 %v1045, 7
      %v1047 = vsub.s32 0, %v1046
      %v1048 = vrot.slane %v1027, %v1047
      %v1050 = vmul.f32 %v1043, %v1048
      %v1052 = vlaneseq
      %v1053 = vshrl.u32 %v1052, 7
      %v1054 = vsub.s32 0, %v1053
      %v1055 = vrot.slane %v1028, %v1054
      %v1057 = vadd.f32 %v1050, %v1055
      %1058 = vst.msk [vmem:[%s1024] sm:$0xff] %vm1029, %v1057
      %v1059 = vpack.c.bf16 %v1057, %v1057
      %v1060 = vld [vmem:[%s21] sm:$0xf]
      %v1061 = vld [vmem:[%s21 + $0x4] sm:$0xf]
      %v1062 = vld [vmem:[%s21 + $0x8] sm:$0xf]
      %v1063 = vld [vmem:[%s21 + $0xc] sm:$0xf]
      %v1064 = vld [vmem:[%s23] sm:$0x1]
      %v1066 = vlaneseq
      %v1067 = vshrl.u32 %v1066, 7
      %v1068 = vsub.s32 0, %v1067
      %v1069 = vrot.slane %v1064, %v1068
      %v1075 = vunpack.c.l.b16 %v1060
      %v1076 = vunpack.c.l.b16 %v1061
      %v1077 = vunpack.c.l.b16 %v1062
      %v1078 = vunpack.c.l.b16 %v1063
      %v1079 = vpack.c.b16 %v1076, %v1075
      %v1080 = vpack.c.b16 %v1078, %v1077
      %v1084 = vsel %vm1029, %v1059, 0
      %1086 = vmatprep.subr.bf16.mxu0 0
      %1087 = vmatpush1.bf16.msra.mxu0 %v1079
      %1088 = vmatprep.subr.bf16.mxu0 0
      %1089 = vmatpush1.bf16.msra.mxu0 %v1080
      %1090 = vmatprep.subr.bf16.mxu0 0
      %1091 = vmatpush1.bf16.msra.mxu0 0
      %1092 = vmatprep.subr.bf16.mxu0 0
      %1093 = vmatpush1.bf16.msra.mxu0 0
      %1094 = vmatprep.subr.bf16.mxu0 0
      %1095 = vmatpush1.bf16.msra.mxu0 0
      %1096 = vmatprep.subr.bf16.mxu0 0
      %1097 = vmatpush1.bf16.msra.mxu0 0
      %1098 = vmatprep.subr.bf16.mxu0 0
      %1099 = vmatpush1.bf16.msra.mxu0 0
      %1100 = vmatprep.subr.bf16.mxu0 0
      %1101 = vmatpush1.bf16.msra.mxu0 0
      %1102 = vmatprep.subr.bf16.mxu0 0
      %1103 = vmatpush1.bf16.msra.mxu0 0
      %1104 = vmatprep.subr.bf16.mxu0 0
      %1105 = vmatpush1.bf16.msra.mxu0 0
      %1106 = vmatprep.subr.bf16.mxu0 0
      %1107 = vmatpush1.bf16.msra.mxu0 0
      %1108 = vmatprep.subr.bf16.mxu0 0
      %1109 = vmatpush1.bf16.msra.mxu0 0
      %1110 = vmatprep.subr.bf16.mxu0 0
      %1111 = vmatpush1.bf16.msra.mxu0 0
      %1112 = vmatprep.subr.bf16.mxu0 0
      %1113 = vmatpush1.bf16.msra.mxu0 0
      %1114 = vmatprep.subr.bf16.mxu0 0
      %1115 = vmatpush1.bf16.msra.mxu0 0
      %1116 = vmatprep.subr.bf16.mxu0 0
      %1117 = vmatpush1.bf16.msra.mxu0 0
      %1118 = vmatprep.mubr.bf16.mxu0 0
      %1119 = vmatmul.mubr.bf16.gmra.mrb[0].mxu0 %v1084
      %v1120 = vpop.f32.mrb[0].mxu0
      %v1121 = vadd.f32 %v1069, %v1120
      %v1122 = vpop.f32.mrb[0].mxu0
      %v1123 = vpop.f32.mrb[0].mxu0
      %v1124 = vpop.f32.mrb[0].mxu0
      %1125 = vdwg.mxu0
      %v1126 = vpack.c.bf16 %v1121, %v1121
      %1128 = vrot.lane.b32.xlu0 %v1126, 120
      %v1129 = vpop.permute.xlu0 %1128
      %1130 = vrot.lane.b32.xlu0 %v1126, 112
      %v1131 = vpop.permute.xlu0 %1130
      %1132 = vrot.lane.b32.xlu0 %v1126, 104
      %v1133 = vpop.permute.xlu0 %1132
      %1134 = vrot.lane.b32.xlu0 %v1126, 96
      %v1135 = vpop.permute.xlu0 %1134
      %1136 = vrot.lane.b32.xlu0 %v1129, 96
      %v1137 = vpop.permute.xlu0 %1136
      %1138 = vrot.lane.b32.xlu0 %v1131, 96
      %v1139 = vpop.permute.xlu0 %1138
      %1140 = vrot.lane.b32.xlu0 %v1133, 96
      %v1141 = vpop.permute.xlu0 %1140
      %v1144 = vunpack.c.l.s4 1983009808
      %v1145 = vunpack.c.0.s8 %v1144
      %v1146 = vlaneseq
      %v1147 = vshrl.u32 %v1146, 7
      %v1148 = vsub.s32 %v1145, %v1147
      %v1149 = vrot.slane %v1135, %v1148
      %v1152 = vunpack.c.l.s4 1983009808
      %v1153 = vunpack.c.0.s8 %v1152
      %v1154 = vlaneseq
      %v1155 = vshrl.u32 %v1154, 7
      %v1156 = vsub.s32 %v1153, %v1155
      %v1157 = vrot.slane %v1139, %v1156
      %v1158 = vcombine.low %v1149, %v1157
      %v1159 = vcombine.high %v1149, %v1157
      %v1161 = vunpack.c.l.s4 1934713408
      %v1162 = vunpack.c.0.s8 %v1161
      %v1163 = vlaneseq
      %v1164 = vshrl.u32 %v1163, 7
      %v1165 = vsub.s32 %v1162, %v1164
      %v1166 = vrot.slane %v1158, %v1165
      %v1168 = vunpack.c.l.s4 1934713408
      %v1169 = vunpack.c.0.s8 %v1168
      %v1170 = vlaneseq
      %v1171 = vshrl.u32 %v1170, 7
      %v1172 = vsub.s32 %v1169, %v1171
      %v1173 = vrot.slane %v1159, %v1172
      %v1174 = vcombine.high %v1166, 0
      %v1175 = vcombine.high %v1173, 0
      %v1178 = vunpack.c.l.s4 1983009808
      %v1179 = vunpack.c.0.s8 %v1178
      %v1180 = vlaneseq
      %v1181 = vshrl.u32 %v1180, 7
      %v1182 = vsub.s32 %v1179, %v1181
      %v1183 = vrot.slane %v1137, %v1182
      %v1186 = vunpack.c.l.s4 1983009808
      %v1187 = vunpack.c.0.s8 %v1186
      %v1188 = vlaneseq
      %v1189 = vshrl.u32 %v1188, 7
      %v1190 = vsub.s32 %v1187, %v1189
      %v1191 = vrot.slane %v1141, %v1190
      %v1192 = vcombine.low %v1183, %v1191
      %v1193 = vcombine.high %v1183, %v1191
      %v1195 = vunpack.c.l.s4 1934713408
      %v1196 = vunpack.c.0.s8 %v1195
      %v1197 = vlaneseq
      %v1198 = vshrl.u32 %v1197, 7
      %v1199 = vsub.s32 %v1196, %v1198
      %v1200 = vrot.slane %v1192, %v1199
      %v1202 = vunpack.c.l.s4 1934713408
      %v1203 = vunpack.c.0.s8 %v1202
      %v1204 = vlaneseq
      %v1205 = vshrl.u32 %v1204, 7
      %v1206 = vsub.s32 %v1203, %v1205
      %v1207 = vrot.slane %v1193, %v1206
      %v1208 = vcombine.high %v1200, 0
      %v1209 = vcombine.high %v1207, 0
      %v1212 = vpack.i.b16 %v1200, %v1166
      %v1214 = vshrl.u32 %v1166, 16
      %v1215 = vshrl.u32 %v1200, 16
      %v1216 = vpack.i.b16 %v1215, %v1214
      %v1220 = vpack.i.b16 %v1208, %v1174
      %v1222 = vshrl.u32 %v1174, 16
      %v1223 = vshrl.u32 %v1208, 16
      %v1224 = vpack.i.b16 %v1223, %v1222
      %v1228 = vpack.i.b16 %v1207, %v1173
      %v1230 = vshrl.u32 %v1173, 16
      %v1231 = vshrl.u32 %v1207, 16
      %v1232 = vpack.i.b16 %v1231, %v1230
      %v1236 = vpack.i.b16 %v1209, %v1175
      %v1238 = vshrl.u32 %v1175, 16
      %v1239 = vshrl.u32 %v1209, 16
      %v1240 = vpack.i.b16 %v1239, %v1238
      %v1242 = vcombine.low %v1212, %v1228
      %v1244 = vunpack.c.l.s4 1983009808
      %v1245 = vunpack.c.0.s8 %v1244
      %v1246 = vlaneseq
      %v1247 = vshrl.u32 %v1246, 7
      %v1248 = vsub.s32 %v1245, %v1247
      %v1249 = vrot.slane %v1242, %v1248
      %v1250 = vcombine.low %v1220, %v1236
      %v1252 = vunpack.c.l.s4 1983009808
      %v1253 = vunpack.c.0.s8 %v1252
      %v1254 = vlaneseq
      %v1255 = vshrl.u32 %v1254, 7
      %v1256 = vsub.s32 %v1253, %v1255
      %v1257 = vrot.slane %v1250, %v1256
      %v1258 = vcombine.low %v1249, %v1257
      %v1260 = vunpack.c.l.s4 1934713408
      %v1261 = vunpack.c.0.s8 %v1260
      %v1262 = vlaneseq
      %v1263 = vshrl.u32 %v1262, 7
      %v1264 = vsub.s32 %v1261, %v1263
      %v1265 = vrot.slane %v1258, %v1264
      %v1266 = vcombine.high %v1265, 0
      %v1267 = vcombine.low %v1216, %v1232
      %v1269 = vunpack.c.l.s4 1983009808
      %v1270 = vunpack.c.0.s8 %v1269
      %v1271 = vlaneseq
      %v1272 = vshrl.u32 %v1271, 7
      %v1273 = vsub.s32 %v1270, %v1272
      %v1274 = vrot.slane %v1267, %v1273
      %v1275 = vcombine.low %v1224, %v1240
      %v1277 = vunpack.c.l.s4 1983009808
      %v1278 = vunpack.c.0.s8 %v1277
      %v1279 = vlaneseq
      %v1280 = vshrl.u32 %v1279, 7
      %v1281 = vsub.s32 %v1278, %v1280
      %v1282 = vrot.slane %v1275, %v1281
      %v1283 = vcombine.low %v1274, %v1282
      %v1285 = vunpack.c.l.s4 1934713408
      %v1286 = vunpack.c.0.s8 %v1285
      %v1287 = vlaneseq
      %v1288 = vshrl.u32 %v1287, 7
      %v1289 = vsub.s32 %v1286, %v1288
      %v1290 = vrot.slane %v1283, %v1289
      %v1291 = vcombine.high %v1290, 0
      %v1294 = vpack.i.b16 %v1290, %v1265
      %v1295 = vshrl.u32 %v1265, 16
      %v1296 = vshrl.u32 %v1290, 16
      %v1297 = vpack.i.b16 %v1296, %v1295
      %v1300 = vpack.i.b16 %v1291, %v1266
      %v1301 = vshrl.u32 %v1266, 16
      %v1302 = vshrl.u32 %v1291, 16
      %v1303 = vpack.i.b16 %v1302, %v1301
      %1304 = vrot.lane.b32.xlu0 %v1126, 64
      %v1305 = vpop.permute.xlu0 %1304
      %1306 = vrot.lane.b32.xlu0 %v1129, 64
      %v1307 = vpop.permute.xlu0 %1306
      %1308 = vrot.lane.b32.xlu0 %v1131, 64
      %v1309 = vpop.permute.xlu0 %1308
      %1310 = vrot.lane.b32.xlu0 %v1133, 64
      %v1311 = vpop.permute.xlu0 %1310
      %v1314 = vunpack.c.l.s4 1983009808
      %v1315 = vunpack.c.0.s8 %v1314
      %v1316 = vlaneseq
      %v1317 = vshrl.u32 %v1316, 7
      %v1318 = vsub.s32 %v1315, %v1317
      %v1319 = vrot.slane %v1305, %v1318
      %v1322 = vunpack.c.l.s4 1983009808
      %v1323 = vunpack.c.0.s8 %v1322
      %v1324 = vlaneseq
      %v1325 = vshrl.u32 %v1324, 7
      %v1326 = vsub.s32 %v1323, %v1325
      %v1327 = vrot.slane %v1309, %v1326
      %v1328 = vcombine.low %v1319, %v1327
      %v1329 = vcombine.high %v1319, %v1327
      %v1331 = vunpack.c.l.s4 1934713408
      %v1332 = vunpack.c.0.s8 %v1331
      %v1333 = vlaneseq
      %v1334 = vshrl.u32 %v1333, 7
      %v1335 = vsub.s32 %v1332, %v1334
      %v1336 = vrot.slane %v1328, %v1335
      %v1338 = vunpack.c.l.s4 1934713408
      %v1339 = vunpack.c.0.s8 %v1338
      %v1340 = vlaneseq
      %v1341 = vshrl.u32 %v1340, 7
      %v1342 = vsub.s32 %v1339, %v1341
      %v1343 = vrot.slane %v1329, %v1342
      %v1344 = vcombine.high %v1336, 0
      %v1345 = vcombine.high %v1343, 0
      %v1348 = vunpack.c.l.s4 1983009808
      %v1349 = vunpack.c.0.s8 %v1348
      %v1350 = vlaneseq
      %v1351 = vshrl.u32 %v1350, 7
      %v1352 = vsub.s32 %v1349, %v1351
      %v1353 = vrot.slane %v1307, %v1352
      %v1356 = vunpack.c.l.s4 1983009808
      %v1357 = vunpack.c.0.s8 %v1356
      %v1358 = vlaneseq
      %v1359 = vshrl.u32 %v1358, 7
      %v1360 = vsub.s32 %v1357, %v1359
      %v1361 = vrot.slane %v1311, %v1360
      %v1362 = vcombine.low %v1353, %v1361
      %v1363 = vcombine.high %v1353, %v1361
      %v1365 = vunpack.c.l.s4 1934713408
      %v1366 = vunpack.c.0.s8 %v1365
      %v1367 = vlaneseq
      %v1368 = vshrl.u32 %v1367, 7
      %v1369 = vsub.s32 %v1366, %v1368
      %v1370 = vrot.slane %v1362, %v1369
      %v1372 = vunpack.c.l.s4 1934713408
      %v1373 = vunpack.c.0.s8 %v1372
      %v1374 = vlaneseq
      %v1375 = vshrl.u32 %v1374, 7
      %v1376 = vsub.s32 %v1373, %v1375
      %v1377 = vrot.slane %v1363, %v1376
      %v1378 = vcombine.high %v1370, 0
      %v1379 = vcombine.high %v1377, 0
      %v1382 = vpack.i.b16 %v1370, %v1336
      %v1384 = vshrl.u32 %v1336, 16
      %v1385 = vshrl.u32 %v1370, 16
      %v1386 = vpack.i.b16 %v1385, %v1384
      %v1390 = vpack.i.b16 %v1378, %v1344
      %v1392 = vshrl.u32 %v1344, 16
      %v1393 = vshrl.u32 %v1378, 16
      %v1394 = vpack.i.b16 %v1393, %v1392
      %v1398 = vpack.i.b16 %v1377, %v1343
      %v1400 = vshrl.u32 %v1343, 16
      %v1401 = vshrl.u32 %v1377, 16
      %v1402 = vpack.i.b16 %v1401, %v1400
      %v1406 = vpack.i.b16 %v1379, %v1345
      %v1408 = vshrl.u32 %v1345, 16
      %v1409 = vshrl.u32 %v1379, 16
      %v1410 = vpack.i.b16 %v1409, %v1408
      %v1412 = vcombine.low %v1382, %v1398
      %v1414 = vunpack.c.l.s4 1983009808
      %v1415 = vunpack.c.0.s8 %v1414
      %v1416 = vlaneseq
      %v1417 = vshrl.u32 %v1416, 7
      %v1418 = vsub.s32 %v1415, %v1417
      %v1419 = vrot.slane %v1412, %v1418
      %v1420 = vcombine.low %v1390, %v1406
      %v1422 = vunpack.c.l.s4 1983009808
      %v1423 = vunpack.c.0.s8 %v1422
      %v1424 = vlaneseq
      %v1425 = vshrl.u32 %v1424, 7
      %v1426 = vsub.s32 %v1423, %v1425
      %v1427 = vrot.slane %v1420, %v1426
      %v1428 = vcombine.low %v1419, %v1427
      %v1430 = vunpack.c.l.s4 1934713408
      %v1431 = vunpack.c.0.s8 %v1430
      %v1432 = vlaneseq
      %v1433 = vshrl.u32 %v1432, 7
      %v1434 = vsub.s32 %v1431, %v1433
      %v1435 = vrot.slane %v1428, %v1434
      %v1436 = vcombine.high %v1435, 0
      %v1437 = vcombine.low %v1386, %v1402
      %v1439 = vunpack.c.l.s4 1983009808
      %v1440 = vunpack.c.0.s8 %v1439
      %v1441 = vlaneseq
      %v1442 = vshrl.u32 %v1441, 7
      %v1443 = vsub.s32 %v1440, %v1442
      %v1444 = vrot.slane %v1437, %v1443
      %v1445 = vcombine.low %v1394, %v1410
      %v1447 = vunpack.c.l.s4 1983009808
      %v1448 = vunpack.c.0.s8 %v1447
      %v1449 = vlaneseq
      %v1450 = vshrl.u32 %v1449, 7
      %v1451 = vsub.s32 %v1448, %v1450
      %v1452 = vrot.slane %v1445, %v1451
      %v1453 = vcombine.low %v1444, %v1452
      %v1455 = vunpack.c.l.s4 1934713408
      %v1456 = vunpack.c.0.s8 %v1455
      %v1457 = vlaneseq
      %v1458 = vshrl.u32 %v1457, 7
      %v1459 = vsub.s32 %v1456, %v1458
      %v1460 = vrot.slane %v1453, %v1459
      %v1461 = vcombine.high %v1460, 0
      %v1464 = vpack.i.b16 %v1460, %v1435
      %v1465 = vshrl.u32 %v1435, 16
      %v1466 = vshrl.u32 %v1460, 16
      %v1467 = vpack.i.b16 %v1466, %v1465
      %v1470 = vpack.i.b16 %v1461, %v1436
      %v1471 = vshrl.u32 %v1436, 16
      %v1472 = vshrl.u32 %v1461, 16
      %v1473 = vpack.i.b16 %v1472, %v1471
      %v1474 = vlaneseq
      %v1475 = vshrl.u32 %v1474, 7
      %v1476 = vlaneseq
      %v1477 = vand.u32 %v1476, 127
      %vm1478 = vcmp.gt.s32.totalorder %v1477, %v1475
      %v1479 = vld [vmem:[%s1007] sm:$0x1]
      %vm1480 = vcmp.gt.f32.partialorder %v1479, 0.0
      %v1481 = vsel %vm1480, 1, 0
      %v1482 = vlaneseq
      %v1483 = vshrl.u32 %v1482, 7
      %v1484 = vsub.s32 0, %v1483
      %v1485 = vrot.slane %v1481, %v1484
      %vm1486 = vcmp.eq.s32.totalorder %v1485, 1
      %vm1487 = vmor %vm1478, %vm1486
      %v1488 = vsel %vm1487, -1e+18, 0.0
      %v1489 = vld [vmem:[%s25] sm:$0xf]
      %v1490 = vld [vmem:[%s25 + $0x4] sm:$0xf]
      %v1491 = vld [vmem:[%s25 + $0x8] sm:$0xf]
      %v1492 = vld [vmem:[%s25 + $0xc] sm:$0xf]
      %v1493 = vld [vmem:[%s27] sm:$0x1]
      %v1494 = vmul.f32 %v1121, 0.35355338
      %v1495 = vpack.c.bf16 %v1494, %v1494
      %1497 = vrot.lane.b32.xlu0 %v1495, 120
      %v1498 = vpop.permute.xlu0 %1497
      %1499 = vrot.lane.b32.xlu0 %v1495, 112
      %v1500 = vpop.permute.xlu0 %1499
      %1501 = vrot.lane.b32.xlu0 %v1495, 104
      %v1502 = vpop.permute.xlu0 %1501
      %v1504 = vunpack.c.l.s4 1983009808
      %v1505 = vunpack.c.0.s8 %v1504
      %v1506 = vlaneseq
      %v1507 = vshrl.u32 %v1506, 7
      %v1508 = vsub.s32 %v1505, %v1507
      %v1509 = vrot.slane %v1495, %v1508
      %v1512 = vunpack.c.l.s4 1983009808
      %v1513 = vunpack.c.0.s8 %v1512
      %v1514 = vlaneseq
      %v1515 = vshrl.u32 %v1514, 7
      %v1516 = vsub.s32 %v1513, %v1515
      %v1517 = vrot.slane %v1500, %v1516
      %v1518 = vcombine.low %v1509, %v1517
      %v1519 = vcombine.high %v1509, %v1517
      %v1521 = vunpack.c.l.s4 1934713408
      %v1522 = vunpack.c.0.s8 %v1521
      %v1523 = vlaneseq
      %v1524 = vshrl.u32 %v1523, 7
      %v1525 = vsub.s32 %v1522, %v1524
      %v1526 = vrot.slane %v1518, %v1525
      %v1528 = vunpack.c.l.s4 1934713408
      %v1529 = vunpack.c.0.s8 %v1528
      %v1530 = vlaneseq
      %v1531 = vshrl.u32 %v1530, 7
      %v1532 = vsub.s32 %v1529, %v1531
      %v1533 = vrot.slane %v1519, %v1532
      %v1534 = vcombine.high %v1526, 0
      %v1535 = vcombine.high %v1533, 0
      %v1538 = vunpack.c.l.s4 1983009808
      %v1539 = vunpack.c.0.s8 %v1538
      %v1540 = vlaneseq
      %v1541 = vshrl.u32 %v1540, 7
      %v1542 = vsub.s32 %v1539, %v1541
      %v1543 = vrot.slane %v1498, %v1542
      %v1546 = vunpack.c.l.s4 1983009808
      %v1547 = vunpack.c.0.s8 %v1546
      %v1548 = vlaneseq
      %v1549 = vshrl.u32 %v1548, 7
      %v1550 = vsub.s32 %v1547, %v1549
      %v1551 = vrot.slane %v1502, %v1550
      %v1552 = vcombine.low %v1543, %v1551
      %v1553 = vcombine.high %v1543, %v1551
      %v1555 = vunpack.c.l.s4 1934713408
      %v1556 = vunpack.c.0.s8 %v1555
      %v1557 = vlaneseq
      %v1558 = vshrl.u32 %v1557, 7
      %v1559 = vsub.s32 %v1556, %v1558
      %v1560 = vrot.slane %v1552, %v1559
      %v1562 = vunpack.c.l.s4 1934713408
      %v1563 = vunpack.c.0.s8 %v1562
      %v1564 = vlaneseq
      %v1565 = vshrl.u32 %v1564, 7
      %v1566 = vsub.s32 %v1563, %v1565
      %v1567 = vrot.slane %v1553, %v1566
      %v1568 = vcombine.high %v1560, 0
      %v1569 = vcombine.high %v1567, 0
      %v1572 = vpack.i.b16 %v1560, %v1526
      %v1574 = vshrl.u32 %v1526, 16
      %v1575 = vshrl.u32 %v1560, 16
      %v1576 = vpack.i.b16 %v1575, %v1574
      %v1580 = vpack.i.b16 %v1568, %v1534
      %v1582 = vshrl.u32 %v1534, 16
      %v1583 = vshrl.u32 %v1568, 16
      %v1584 = vpack.i.b16 %v1583, %v1582
      %v1588 = vpack.i.b16 %v1567, %v1533
      %v1590 = vshrl.u32 %v1533, 16
      %v1591 = vshrl.u32 %v1567, 16
      %v1592 = vpack.i.b16 %v1591, %v1590
      %v1596 = vpack.i.b16 %v1569, %v1535
      %v1598 = vshrl.u32 %v1535, 16
      %v1599 = vshrl.u32 %v1569, 16
      %v1600 = vpack.i.b16 %v1599, %v1598
      %v1602 = vcombine.low %v1572, %v1588
      %v1604 = vunpack.c.l.s4 1983009808
      %v1605 = vunpack.c.0.s8 %v1604
      %v1606 = vlaneseq
      %v1607 = vshrl.u32 %v1606, 7
      %v1608 = vsub.s32 %v1605, %v1607
      %v1609 = vrot.slane %v1602, %v1608
      %v1610 = vcombine.low %v1580, %v1596
      %v1612 = vunpack.c.l.s4 1983009808
      %v1613 = vunpack.c.0.s8 %v1612
      %v1614 = vlaneseq
      %v1615 = vshrl.u32 %v1614, 7
      %v1616 = vsub.s32 %v1613, %v1615
      %v1617 = vrot.slane %v1610, %v1616
      %v1618 = vcombine.low %v1609, %v1617
      %v1620 = vunpack.c.l.s4 1934713408
      %v1621 = vunpack.c.0.s8 %v1620
      %v1622 = vlaneseq
      %v1623 = vshrl.u32 %v1622, 7
      %v1624 = vsub.s32 %v1621, %v1623
      %v1625 = vrot.slane %v1618, %v1624
      %v1626 = vcombine.high %v1625, 0
      %v1627 = vcombine.low %v1576, %v1592
      %v1629 = vunpack.c.l.s4 1983009808
      %v1630 = vunpack.c.0.s8 %v1629
      %v1631 = vlaneseq
      %v1632 = vshrl.u32 %v1631, 7
      %v1633 = vsub.s32 %v1630, %v1632
      %v1634 = vrot.slane %v1627, %v1633
      %v1635 = vcombine.low %v1584, %v1600
      %v1637 = vunpack.c.l.s4 1983009808
      %v1638 = vunpack.c.0.s8 %v1637
      %v1639 = vlaneseq
      %v1640 = vshrl.u32 %v1639, 7
      %v1641 = vsub.s32 %v1638, %v1640
      %v1642 = vrot.slane %v1635, %v1641
      %v1643 = vcombine.low %v1634, %v1642
      %v1645 = vunpack.c.l.s4 1934713408
      %v1646 = vunpack.c.0.s8 %v1645
      %v1647 = vlaneseq
      %v1648 = vshrl.u32 %v1647, 7
      %v1649 = vsub.s32 %v1646, %v1648
      %v1650 = vrot.slane %v1643, %v1649
      %v1651 = vcombine.high %v1650, 0
      %v1654 = vpack.i.b16 %v1650, %v1625
      %v1655 = vshrl.u32 %v1625, 16
      %v1656 = vshrl.u32 %v1650, 16
      %v1657 = vpack.i.b16 %v1656, %v1655
      %v1660 = vpack.i.b16 %v1651, %v1626
      %v1661 = vshrl.u32 %v1626, 16
      %v1662 = vshrl.u32 %v1651, 16
      %v1663 = vpack.i.b16 %v1662, %v1661
      %vm1664 = vcmask 64512
      %v1666 = vsel %vm1664, %v1654, 0
      %v1669 = vsel %vm1664, %v1294, 0
      %1671 = vmatprep.subr.bf16.mxu0 0
      %1672 = vmatpush1.bf16.xpose.msra.mxu0 %v1669
      %1673 = vmatprep.subr.bf16.mxu0 0
      %1674 = vmatpush1.bf16.xpose.msra.mxu0 0
      %1675 = vmatprep.subr.bf16.mxu0 0
      %1676 = vmatpush1.bf16.xpose.msra.mxu0 0
      %1677 = vmatprep.subr.bf16.mxu0 0
      %1678 = vmatpush1.bf16.xpose.msra.mxu0 0
      %1679 = vmatprep.subr.bf16.mxu0 0
      %1680 = vmatpush1.bf16.xpose.msra.mxu0 0
      %1681 = vmatprep.subr.bf16.mxu0 0
      %1682 = vmatpush1.bf16.xpose.msra.mxu0 0
      %1683 = vmatprep.subr.bf16.mxu0 0
      %1684 = vmatpush1.bf16.xpose.msra.mxu0 0
      %1685 = vmatprep.subr.bf16.mxu0 0
      %1686 = vmatpush1.bf16.xpose.msra.mxu0 0
      %1687 = vmatprep.subr.bf16.mxu0 0
      %1688 = vmatpush1.bf16.xpose.msra.mxu0 0
      %1689 = vmatprep.subr.bf16.mxu0 0
      %1690 = vmatpush1.bf16.xpose.msra.mxu0 0
      %1691 = vmatprep.subr.bf16.mxu0 0
      %1692 = vmatpush1.bf16.xpose.msra.mxu0 0
      %1693 = vmatprep.subr.bf16.mxu0 0
      %1694 = vmatpush1.bf16.xpose.msra.mxu0 0
      %1695 = vmatprep.subr.bf16.mxu0 0
      %1696 = vmatpush1.bf16.xpose.msra.mxu0 0
      %1697 = vmatprep.subr.bf16.mxu0 0
      %1698 = vmatpush1.bf16.xpose.msra.mxu0 0
      %1699 = vmatprep.subr.bf16.mxu0 0
      %1700 = vmatpush1.bf16.xpose.msra.mxu0 0
      %1701 = vmatprep.subr.bf16.mxu0 0
      %1702 = vmatpush1.bf16.xpose.msra.mxu0 0
      %1703 = vmatprep.mubr.bf16.mxu0 0
      %1704 = vmatmul.mubr.bf16.gmra.mrb[0].mxu0 %v1666
      %v1705 = vpop.f32.mrb[0].mxu0
      %v1706 = vadd.f32 %v1488, %v1705
      %v1707 = vpop.f32.mrb[0].mxu0
      %v1708 = vpop.f32.mrb[0].mxu0
      %v1709 = vpop.f32.mrb[0].mxu0
      %1710 = vdwg.mxu0
      %v1712 = vsel %vm1664, %v1657, 0
      %v1715 = vsel %vm1664, %v1297, 0
      %1717 = vmatprep.subr.bf16.mxu0 0
      %1718 = vmatpush1.bf16.xpose.msra.mxu0 %v1715
      %1719 = vmatprep.subr.bf16.mxu0 0
      %1720 = vmatpush1.bf16.xpose.msra.mxu0 0
      %1721 = vmatprep.subr.bf16.mxu0 0
      %1722 = vmatpush1.bf16.xpose.msra.mxu0 0
      %1723 = vmatprep.subr.bf16.mxu0 0
      %1724 = vmatpush1.bf16.xpose.msra.mxu0 0
      %1725 = vmatprep.subr.bf16.mxu0 0
      %1726 = vmatpush1.bf16.xpose.msra.mxu0 0
      %1727 = vmatprep.subr.bf16.mxu0 0
      %1728 = vmatpush1.bf16.xpose.msra.mxu0 0
      %1729 = vmatprep.subr.bf16.mxu0 0
      %1730 = vmatpush1.bf16.xpose.msra.mxu0 0
      %1731 = vmatprep.subr.bf16.mxu0 0
      %1732 = vmatpush1.bf16.xpose.msra.mxu0 0
      %1733 = vmatprep.subr.bf16.mxu0 0
      %1734 = vmatpush1.bf16.xpose.msra.mxu0 0
      %1735 = vmatprep.subr.bf16.mxu0 0
      %1736 = vmatpush1.bf16.xpose.msra.mxu0 0
      %1737 = vmatprep.subr.bf16.mxu0 0
      %1738 = vmatpush1.bf16.xpose.msra.mxu0 0
      %1739 = vmatprep.subr.bf16.mxu0 0
      %1740 = vmatpush1.bf16.xpose.msra.mxu0 0
      %1741 = vmatprep.subr.bf16.mxu0 0
      %1742 = vmatpush1.bf16.xpose.msra.mxu0 0
      %1743 = vmatprep.subr.bf16.mxu0 0
      %1744 = vmatpush1.bf16.xpose.msra.mxu0 0
      %1745 = vmatprep.subr.bf16.mxu0 0
      %1746 = vmatpush1.bf16.xpose.msra.mxu0 0
      %1747 = vmatprep.subr.bf16.mxu0 0
      %1748 = vmatpush1.bf16.xpose.msra.mxu0 0
      %1749 = vmatprep.mubr.bf16.mxu0 0
      %1750 = vmatmul.mubr.bf16.gmra.mrb[0].mxu0 %v1712
      %v1751 = vpop.f32.mrb[0].mxu0
      %v1752 = vadd.f32 %v1488, %v1751
      %v1753 = vpop.f32.mrb[0].mxu0
      %v1754 = vpop.f32.mrb[0].mxu0
      %v1755 = vpop.f32.mrb[0].mxu0
      %1756 = vdwg.mxu0
      %v1758 = vsel %vm1664, %v1660, 0
      %v1761 = vsel %vm1664, %v1300, 0
      %1763 = vmatprep.subr.bf16.mxu0 0
      %1764 = vmatpush1.bf16.xpose.msra.mxu0 %v1761
      %1765 = vmatprep.subr.bf16.mxu0 0
      %1766 = vmatpush1.bf16.xpose.msra.mxu0 0
      %1767 = vmatprep.subr.bf16.mxu0 0
      %1768 = vmatpush1.bf16.xpose.msra.mxu0 0
      %1769 = vmatprep.subr.bf16.mxu0 0
      %1770 = vmatpush1.bf16.xpose.msra.mxu0 0
      %1771 = vmatprep.subr.bf16.mxu0 0
      %1772 = vmatpush1.bf16.xpose.msra.mxu0 0
      %1773 = vmatprep.subr.bf16.mxu0 0
      %1774 = vmatpush1.bf16.xpose.msra.mxu0 0
      %1775 = vmatprep.subr.bf16.mxu0 0
      %1776 = vmatpush1.bf16.xpose.msra.mxu0 0
      %1777 = vmatprep.subr.bf16.mxu0 0
      %1778 = vmatpush1.bf16.xpose.msra.mxu0 0
      %1779 = vmatprep.subr.bf16.mxu0 0
      %1780 = vmatpush1.bf16.xpose.msra.mxu0 0
      %1781 = vmatprep.subr.bf16.mxu0 0
      %1782 = vmatpush1.bf16.xpose.msra.mxu0 0
      %1783 = vmatprep.subr.bf16.mxu0 0
      %1784 = vmatpush1.bf16.xpose.msra.mxu0 0
      %1785 = vmatprep.subr.bf16.mxu0 0
      %1786 = vmatpush1.bf16.xpose.msra.mxu0 0
      %1787 = vmatprep.subr.bf16.mxu0 0
      %1788 = vmatpush1.bf16.xpose.msra.mxu0 0
      %1789 = vmatprep.subr.bf16.mxu0 0
      %1790 = vmatpush1.bf16.xpose.msra.mxu0 0
      %1791 = vmatprep.subr.bf16.mxu0 0
      %1792 = vmatpush1.bf16.xpose.msra.mxu0 0
      %1793 = vmatprep.subr.bf16.mxu0 0
      %1794 = vmatpush1.bf16.xpose.msra.mxu0 0
      %1795 = vmatprep.mubr.bf16.mxu0 0
      %1796 = vmatmul.mubr.bf16.gmra.mrb[0].mxu0 %v1758
      %v1797 = vpop.f32.mrb[0].mxu0
      %v1798 = vadd.f32 %v1488, %v1797
      %v1799 = vpop.f32.mrb[0].mxu0
      %v1800 = vpop.f32.mrb[0].mxu0
      %v1801 = vpop.f32.mrb[0].mxu0
      %1802 = vdwg.mxu0
      %v1804 = vsel %vm1664, %v1663, 0
      %v1807 = vsel %vm1664, %v1303, 0
      %1809 = vmatprep.subr.bf16.mxu0 0
      %1810 = vmatpush1.bf16.xpose.msra.mxu0 %v1807
      %1811 = vmatprep.subr.bf16.mxu0 0
      %1812 = vmatpush1.bf16.xpose.msra.mxu0 0
      %1813 = vmatprep.subr.bf16.mxu0 0
      %1814 = vmatpush1.bf16.xpose.msra.mxu0 0
      %1815 = vmatprep.subr.bf16.mxu0 0
      %1816 = vmatpush1.bf16.xpose.msra.mxu0 0
      %1817 = vmatprep.subr.bf16.mxu0 0
      %1818 = vmatpush1.bf16.xpose.msra.mxu0 0
      %1819 = vmatprep.subr.bf16.mxu0 0
      %1820 = vmatpush1.bf16.xpose.msra.mxu0 0
      %1821 = vmatprep.subr.bf16.mxu0 0
      %1822 = vmatpush1.bf16.xpose.msra.mxu0 0
      %1823 = vmatprep.subr.bf16.mxu0 0
      %1824 = vmatpush1.bf16.xpose.msra.mxu0 0
      %1825 = vmatprep.subr.bf16.mxu0 0
      %1826 = vmatpush1.bf16.xpose.msra.mxu0 0
      %1827 = vmatprep.subr.bf16.mxu0 0
      %1828 = vmatpush1.bf16.xpose.msra.mxu0 0
      %1829 = vmatprep.subr.bf16.mxu0 0
      %1830 = vmatpush1.bf16.xpose.msra.mxu0 0
      %1831 = vmatprep.subr.bf16.mxu0 0
      %1832 = vmatpush1.bf16.xpose.msra.mxu0 0
      %1833 = vmatprep.subr.bf16.mxu0 0
      %1834 = vmatpush1.bf16.xpose.msra.mxu0 0
      %1835 = vmatprep.subr.bf16.mxu0 0
      %1836 = vmatpush1.bf16.xpose.msra.mxu0 0
      %1837 = vmatprep.subr.bf16.mxu0 0
      %1838 = vmatpush1.bf16.xpose.msra.mxu0 0
      %1839 = vmatprep.subr.bf16.mxu0 0
      %1840 = vmatpush1.bf16.xpose.msra.mxu0 0
      %1841 = vmatprep.mubr.bf16.mxu0 0
      %1842 = vmatmul.mubr.bf16.gmra.mrb[0].mxu0 %v1804
      %v1843 = vpop.f32.mrb[0].mxu0
      %v1844 = vadd.f32 %v1488, %v1843
      %v1845 = vpop.f32.mrb[0].mxu0
      %v1846 = vpop.f32.mrb[0].mxu0
      %v1847 = vpop.f32.mrb[0].mxu0
      %1848 = vdwg.mxu0
      %v1849 = vsel %vm1664, %v1706, -inf
      %1850 = vmax.xlane.f32.xlu0 %v1849
      %v1851 = vpop.xlane.xlu0 %1850
      %v1852 = vsel %vm1664, %v1752, -inf
      %1853 = vmax.xlane.f32.xlu0 %v1852
      %v1854 = vpop.xlane.xlu0 %1853
      %v1855 = vsel %vm1664, %v1798, -inf
      %1856 = vmax.xlane.f32.xlu0 %v1855
      %v1857 = vpop.xlane.xlu0 %1856
      %v1858 = vsel %vm1664, %v1844, -inf
      %1859 = vmax.xlane.f32.xlu0 %v1858
      %v1860 = vpop.xlane.xlu0 %1859
      %v1861 = vsub.f32 %v1706, %v1851
      %v1862 = vsub.f32 %v1752, %v1854
      %v1863 = vsub.f32 %v1798, %v1857
      %v1864 = vsub.f32 %v1844, %v1860
      %v1865 = vmul.f32 %v1861, 1.442695
      %v1866 = vpow.pop %v1865
      %v1867 = vmul.f32 %v1862, 1.442695
      %v1868 = vpow.pop %v1867
      %v1869 = vmul.f32 %v1863, 1.442695
      %v1870 = vpow.pop %v1869
      %v1871 = vmul.f32 %v1864, 1.442695
      %v1872 = vpow.pop %v1871
      %v1873 = vsel %vm1664, %v1866, 0.0
      %1874 = vadd.xlane.f32.xlu0 %v1873
      %v1875 = vpop.xlane.xlu0 %1874
      %v1876 = vsel %vm1664, %v1868, 0.0
      %1877 = vadd.xlane.f32.xlu0 %v1876
      %v1878 = vpop.xlane.xlu0 %1877
      %v1879 = vsel %vm1664, %v1870, 0.0
      %1880 = vadd.xlane.f32.xlu0 %v1879
      %v1881 = vpop.xlane.xlu0 %1880
      %v1882 = vsel %vm1664, %v1872, 0.0
      %1883 = vadd.xlane.f32.xlu0 %v1882
      %v1884 = vpop.xlane.xlu0 %1883
      %v1885 = vrcp.pop %v1875
      %v1886 = vrcp.pop %v1878
      %v1887 = vrcp.pop %v1881
      %v1888 = vrcp.pop %v1884
      %v1889 = vmul.f32 %v1866, %v1885
      %v1890 = vmul.f32 %v1868, %v1886
      %v1891 = vmul.f32 %v1870, %v1887
      %v1892 = vmul.f32 %v1872, %v1888
      %v1893 = vpack.c.bf16 %v1889, %v1889
      %v1894 = vpack.c.bf16 %v1890, %v1890
      %v1895 = vpack.c.bf16 %v1891, %v1891
      %v1896 = vpack.c.bf16 %v1892, %v1892
      %v1898 = vsel %vm1664, %v1893, 0
      %vm1900 = vcmask 1043456
      %v1902 = vsel %vm1900, %v1464, 0
      %1904 = vmatprep.subr.bf16.mxu0 0
      %1905 = vmatpush1.bf16.msra.mxu0 %v1902
      %1906 = vmatprep.subr.bf16.mxu0 0
      %1907 = vmatpush1.bf16.msra.mxu0 0
      %1908 = vmatprep.subr.bf16.mxu0 0
      %1909 = vmatpush1.bf16.msra.mxu0 0
      %1910 = vmatprep.subr.bf16.mxu0 0
      %1911 = vmatpush1.bf16.msra.mxu0 0
      %1912 = vmatprep.subr.bf16.mxu0 0
      %1913 = vmatpush1.bf16.msra.mxu0 0
      %1914 = vmatprep.subr.bf16.mxu0 0
      %1915 = vmatpush1.bf16.msra.mxu0 0
      %1916 = vmatprep.subr.bf16.mxu0 0
      %1917 = vmatpush1.bf16.msra.mxu0 0
      %1918 = vmatprep.subr.bf16.mxu0 0
      %1919 = vmatpush1.bf16.msra.mxu0 0
      %1920 = vmatprep.subr.bf16.mxu0 0
      %1921 = vmatpush1.bf16.msra.mxu0 0
      %1922 = vmatprep.subr.bf16.mxu0 0
      %1923 = vmatpush1.bf16.msra.mxu0 0
      %1924 = vmatprep.subr.bf16.mxu0 0
      %1925 = vmatpush1.bf16.msra.mxu0 0
      %1926 = vmatprep.subr.bf16.mxu0 0
      %1927 = vmatpush1.bf16.msra.mxu0 0
      %1928 = vmatprep.subr.bf16.mxu0 0
      %1929 = vmatpush1.bf16.msra.mxu0 0
      %1930 = vmatprep.subr.bf16.mxu0 0
      %1931 = vmatpush1.bf16.msra.mxu0 0
      %1932 = vmatprep.subr.bf16.mxu0 0
      %1933 = vmatpush1.bf16.msra.mxu0 0
      %1934 = vmatprep.subr.bf16.mxu0 0
      %1935 = vmatpush1.bf16.msra.mxu0 0
      %1936 = vmatprep.mubr.bf16.mxu0 0
      %1937 = vmatmul.mubr.bf16.gmra.mrb[0].mxu0 %v1898
      %v1938 = vpop.f32.mrb[0].mxu0
      %v1939 = vadd.f32 0.0, %v1938
      %v1940 = vpop.f32.mrb[0].mxu0
      %v1941 = vpop.f32.mrb[0].mxu0
      %v1942 = vpop.f32.mrb[0].mxu0
      %1943 = vdwg.mxu0
      %v1945 = vsel %vm1664, %v1894, 0
      %v1948 = vsel %vm1900, %v1467, 0
      %1950 = vmatprep.subr.bf16.mxu0 0
      %1951 = vmatpush1.bf16.msra.mxu0 %v1948
      %1952 = vmatprep.subr.bf16.mxu0 0
      %1953 = vmatpush1.bf16.msra.mxu0 0
      %1954 = vmatprep.subr.bf16.mxu0 0
      %1955 = vmatpush1.bf16.msra.mxu0 0
      %1956 = vmatprep.subr.bf16.mxu0 0
      %1957 = vmatpush1.bf16.msra.mxu0 0
      %1958 = vmatprep.subr.bf16.mxu0 0
      %1959 = vmatpush1.bf16.msra.mxu0 0
      %1960 = vmatprep.subr.bf16.mxu0 0
      %1961 = vmatpush1.bf16.msra.mxu0 0
      %1962 = vmatprep.subr.bf16.mxu0 0
      %1963 = vmatpush1.bf16.msra.mxu0 0
      %1964 = vmatprep.subr.bf16.mxu0 0
      %1965 = vmatpush1.bf16.msra.mxu0 0
      %1966 = vmatprep.subr.bf16.mxu0 0
      %1967 = vmatpush1.bf16.msra.mxu0 0
      %1968 = vmatprep.subr.bf16.mxu0 0
      %1969 = vmatpush1.bf16.msra.mxu0 0
      %1970 = vmatprep.subr.bf16.mxu0 0
      %1971 = vmatpush1.bf16.msra.mxu0 0
      %1972 = vmatprep.subr.bf16.mxu0 0
      %1973 = vmatpush1.bf16.msra.mxu0 0
      %1974 = vmatprep.subr.bf16.mxu0 0
      %1975 = vmatpush1.bf16.msra.mxu0 0
      %1976 = vmatprep.subr.bf16.mxu0 0
      %1977 = vmatpush1.bf16.msra.mxu0 0
      %1978 = vmatprep.subr.bf16.mxu0 0
      %1979 = vmatpush1.bf16.msra.mxu0 0
      %1980 = vmatprep.subr.bf16.mxu0 0
      %1981 = vmatpush1.bf16.msra.mxu0 0
      %1982 = vmatprep.mubr.bf16.mxu0 0
      %1983 = vmatmul.mubr.bf16.gmra.mrb[0].mxu0 %v1945
      %v1984 = vpop.f32.mrb[0].mxu0
      %v1985 = vadd.f32 0.0, %v1984
      %v1986 = vpop.f32.mrb[0].mxu0
      %v1987 = vpop.f32.mrb[0].mxu0
      %v1988 = vpop.f32.mrb[0].mxu0
      %1989 = vdwg.mxu0
      %v1991 = vsel %vm1664, %v1895, 0
      %v1994 = vsel %vm1900, %v1470, 0
      %1996 = vmatprep.subr.bf16.mxu0 0
      %1997 = vmatpush1.bf16.msra.mxu0 %v1994
      %1998 = vmatprep.subr.bf16.mxu0 0
      %1999 = vmatpush1.bf16.msra.mxu0 0
      %2000 = vmatprep.subr.bf16.mxu0 0
      %2001 = vmatpush1.bf16.msra.mxu0 0
      %2002 = vmatprep.subr.bf16.mxu0 0
      %2003 = vmatpush1.bf16.msra.mxu0 0
      %2004 = vmatprep.subr.bf16.mxu0 0
      %2005 = vmatpush1.bf16.msra.mxu0 0
      %2006 = vmatprep.subr.bf16.mxu0 0
      %2007 = vmatpush1.bf16.msra.mxu0 0
      %2008 = vmatprep.subr.bf16.mxu0 0
      %2009 = vmatpush1.bf16.msra.mxu0 0
      %2010 = vmatprep.subr.bf16.mxu0 0
      %2011 = vmatpush1.bf16.msra.mxu0 0
      %2012 = vmatprep.subr.bf16.mxu0 0
      %2013 = vmatpush1.bf16.msra.mxu0 0
      %2014 = vmatprep.subr.bf16.mxu0 0
      %2015 = vmatpush1.bf16.msra.mxu0 0
      %2016 = vmatprep.subr.bf16.mxu0 0
      %2017 = vmatpush1.bf16.msra.mxu0 0
      %2018 = vmatprep.subr.bf16.mxu0 0
      %2019 = vmatpush1.bf16.msra.mxu0 0
      %2020 = vmatprep.subr.bf16.mxu0 0
      %2021 = vmatpush1.bf16.msra.mxu0 0
      %2022 = vmatprep.subr.bf16.mxu0 0
      %2023 = vmatpush1.bf16.msra.mxu0 0
      %2024 = vmatprep.subr.bf16.mxu0 0
      %2025 = vmatpush1.bf16.msra.mxu0 0
      %2026 = vmatprep.subr.bf16.mxu0 0
      %2027 = vmatpush1.bf16.msra.mxu0 0
      %2028 = vmatprep.mubr.bf16.mxu0 0
      %2029 = vmatmul.mubr.bf16.gmra.mrb[0].mxu0 %v1991
      %v2030 = vpop.f32.mrb[0].mxu0
      %v2031 = vadd.f32 0.0, %v2030
      %v2032 = vpop.f32.mrb[0].mxu0
      %v2033 = vpop.f32.mrb[0].mxu0
      %v2034 = vpop.f32.mrb[0].mxu0
      %2035 = vdwg.mxu0
      %v2037 = vsel %vm1664, %v1896, 0
      %v2040 = vsel %vm1900, %v1473, 0
      %2042 = vmatprep.subr.bf16.mxu0 0
      %2043 = vmatpush1.bf16.msra.mxu0 %v2040
      %2044 = vmatprep.subr.bf16.mxu0 0
      %2045 = vmatpush1.bf16.msra.mxu0 0
      %2046 = vmatprep.subr.bf16.mxu0 0
      %2047 = vmatpush1.bf16.msra.mxu0 0
      %2048 = vmatprep.subr.bf16.mxu0 0
      %2049 = vmatpush1.bf16.msra.mxu0 0
      %2050 = vmatprep.subr.bf16.mxu0 0
      %2051 = vmatpush1.bf16.msra.mxu0 0
      %2052 = vmatprep.subr.bf16.mxu0 0
      %2053 = vmatpush1.bf16.msra.mxu0 0
      %2054 = vmatprep.subr.bf16.mxu0 0
      %2055 = vmatpush1.bf16.msra.mxu0 0
      %2056 = vmatprep.subr.bf16.mxu0 0
      %2057 = vmatpush1.bf16.msra.mxu0 0
      %2058 = vmatprep.subr.bf16.mxu0 0
      %2059 = vmatpush1.bf16.msra.mxu0 0
      %2060 = vmatprep.subr.bf16.mxu0 0
      %2061 = vmatpush1.bf16.msra.mxu0 0
      %2062 = vmatprep.subr.bf16.mxu0 0
      %2063 = vmatpush1.bf16.msra.mxu0 0
      %2064 = vmatprep.subr.bf16.mxu0 0
      %2065 = vmatpush1.bf16.msra.mxu0 0
      %2066 = vmatprep.subr.bf16.mxu0 0
      %2067 = vmatpush1.bf16.msra.mxu0 0
      %2068 = vmatprep.subr.bf16.mxu0 0
      %2069 = vmatpush1.bf16.msra.mxu0 0
      %2070 = vmatprep.subr.bf16.mxu0 0
      %2071 = vmatpush1.bf16.msra.mxu0 0
      %2072 = vmatprep.subr.bf16.mxu0 0
      %2073 = vmatpush1.bf16.msra.mxu0 0
      %2074 = vmatprep.mubr.bf16.mxu0 0
      %2075 = vmatmul.mubr.bf16.gmra.mrb[0].mxu0 %v2037
      %v2076 = vpop.f32.mrb[0].mxu0
      %v2077 = vadd.f32 0.0, %v2076
      %v2078 = vpop.f32.mrb[0].mxu0
      %v2079 = vpop.f32.mrb[0].mxu0
      %v2080 = vpop.f32.mrb[0].mxu0
      %2081 = vdwg.mxu0
      %v2082 = vpack.c.bf16 %v1939, %v1939
      %v2084 = vunpack.c.l.s4 1983009808
      %v2085 = vunpack.c.0.s8 %v2084
      %v2086 = vlaneseq
      %v2087 = vshrl.u32 %v2086, 7
      %v2088 = vsub.s32 %v2085, %v2087
      %v2089 = vrot.slane %v2082, %v2088
      %v2090 = vpack.c.bf16 %v2031, %v2031
      %v2092 = vunpack.c.l.s4 1983009808
      %v2093 = vunpack.c.0.s8 %v2092
      %v2094 = vlaneseq
      %v2095 = vshrl.u32 %v2094, 7
      %v2096 = vsub.s32 %v2093, %v2095
      %v2097 = vrot.slane %v2090, %v2096
      %v2098 = vcombine.low %v2089, %v2097
      %v2099 = vcombine.high %v2089, %v2097
      %v2101 = vunpack.c.l.s4 1934713408
      %v2102 = vunpack.c.0.s8 %v2101
      %v2103 = vlaneseq
      %v2104 = vshrl.u32 %v2103, 7
      %v2105 = vsub.s32 %v2102, %v2104
      %v2106 = vrot.slane %v2098, %v2105
      %v2108 = vunpack.c.l.s4 1934713408
      %v2109 = vunpack.c.0.s8 %v2108
      %v2110 = vlaneseq
      %v2111 = vshrl.u32 %v2110, 7
      %v2112 = vsub.s32 %v2109, %v2111
      %v2113 = vrot.slane %v2099, %v2112
      %v2114 = vcombine.high %v2106, 0
      %v2115 = vcombine.high %v2113, 0
      %v2116 = vpack.c.bf16 %v1985, %v1985
      %v2118 = vunpack.c.l.s4 1983009808
      %v2119 = vunpack.c.0.s8 %v2118
      %v2120 = vlaneseq
      %v2121 = vshrl.u32 %v2120, 7
      %v2122 = vsub.s32 %v2119, %v2121
      %v2123 = vrot.slane %v2116, %v2122
      %v2124 = vpack.c.bf16 %v2077, %v2077
      %v2126 = vunpack.c.l.s4 1983009808
      %v2127 = vunpack.c.0.s8 %v2126
      %v2128 = vlaneseq
      %v2129 = vshrl.u32 %v2128, 7
      %v2130 = vsub.s32 %v2127, %v2129
      %v2131 = vrot.slane %v2124, %v2130
      %v2132 = vcombine.low %v2123, %v2131
      %v2133 = vcombine.high %v2123, %v2131
      %v2135 = vunpack.c.l.s4 1934713408
      %v2136 = vunpack.c.0.s8 %v2135
      %v2137 = vlaneseq
      %v2138 = vshrl.u32 %v2137, 7
      %v2139 = vsub.s32 %v2136, %v2138
      %v2140 = vrot.slane %v2132, %v2139
      %v2142 = vunpack.c.l.s4 1934713408
      %v2143 = vunpack.c.0.s8 %v2142
      %v2144 = vlaneseq
      %v2145 = vshrl.u32 %v2144, 7
      %v2146 = vsub.s32 %v2143, %v2145
      %v2147 = vrot.slane %v2133, %v2146
      %v2148 = vcombine.high %v2140, 0
      %v2149 = vcombine.high %v2147, 0
      %v2152 = vpack.i.b16 %v2140, %v2106
      %v2154 = vshrl.u32 %v2106, 16
      %v2155 = vshrl.u32 %v2140, 16
      %v2156 = vpack.i.b16 %v2155, %v2154
      %v2160 = vpack.i.b16 %v2148, %v2114
      %v2162 = vshrl.u32 %v2114, 16
      %v2163 = vshrl.u32 %v2148, 16
      %v2164 = vpack.i.b16 %v2163, %v2162
      %v2168 = vpack.i.b16 %v2147, %v2113
      %v2170 = vshrl.u32 %v2113, 16
      %v2171 = vshrl.u32 %v2147, 16
      %v2172 = vpack.i.b16 %v2171, %v2170
      %v2176 = vpack.i.b16 %v2149, %v2115
      %v2178 = vshrl.u32 %v2115, 16
      %v2179 = vshrl.u32 %v2149, 16
      %v2180 = vpack.i.b16 %v2179, %v2178
      %v2182 = vcombine.low %v2152, %v2168
      %v2184 = vunpack.c.l.s4 1983009808
      %v2185 = vunpack.c.0.s8 %v2184
      %v2186 = vlaneseq
      %v2187 = vshrl.u32 %v2186, 7
      %v2188 = vsub.s32 %v2185, %v2187
      %v2189 = vrot.slane %v2182, %v2188
      %v2190 = vcombine.low %v2160, %v2176
      %v2192 = vunpack.c.l.s4 1983009808
      %v2193 = vunpack.c.0.s8 %v2192
      %v2194 = vlaneseq
      %v2195 = vshrl.u32 %v2194, 7
      %v2196 = vsub.s32 %v2193, %v2195
      %v2197 = vrot.slane %v2190, %v2196
      %v2198 = vcombine.low %v2189, %v2197
      %v2200 = vunpack.c.l.s4 1934713408
      %v2201 = vunpack.c.0.s8 %v2200
      %v2202 = vlaneseq
      %v2203 = vshrl.u32 %v2202, 7
      %v2204 = vsub.s32 %v2201, %v2203
      %v2205 = vrot.slane %v2198, %v2204
      %v2206 = vcombine.high %v2205, 0
      %v2207 = vcombine.low %v2156, %v2172
      %v2209 = vunpack.c.l.s4 1983009808
      %v2210 = vunpack.c.0.s8 %v2209
      %v2211 = vlaneseq
      %v2212 = vshrl.u32 %v2211, 7
      %v2213 = vsub.s32 %v2210, %v2212
      %v2214 = vrot.slane %v2207, %v2213
      %v2215 = vcombine.low %v2164, %v2180
      %v2217 = vunpack.c.l.s4 1983009808
      %v2218 = vunpack.c.0.s8 %v2217
      %v2219 = vlaneseq
      %v2220 = vshrl.u32 %v2219, 7
      %v2221 = vsub.s32 %v2218, %v2220
      %v2222 = vrot.slane %v2215, %v2221
      %v2223 = vcombine.low %v2214, %v2222
      %v2225 = vunpack.c.l.s4 1934713408
      %v2226 = vunpack.c.0.s8 %v2225
      %v2227 = vlaneseq
      %v2228 = vshrl.u32 %v2227, 7
      %v2229 = vsub.s32 %v2226, %v2228
      %v2230 = vrot.slane %v2223, %v2229
      %v2231 = vcombine.high %v2230, 0
      %v2234 = vpack.i.b16 %v2230, %v2205
      %v2235 = vshrl.u32 %v2205, 16
      %v2236 = vshrl.u32 %v2230, 16
      %v2237 = vpack.i.b16 %v2236, %v2235
      %v2240 = vpack.i.b16 %v2231, %v2206
      %v2241 = vshrl.u32 %v2206, 16
      %v2242 = vshrl.u32 %v2231, 16
      %v2243 = vpack.i.b16 %v2242, %v2241
      %2244 = vrot.lane.b32.xlu0 %v2237, 8
      %v2245 = vpop.permute.xlu0 %2244
      %2246 = vrot.lane.b32.xlu0 %v2240, 16
      %v2247 = vpop.permute.xlu0 %2246
      %2248 = vrot.lane.b32.xlu0 %v2243, 24
      %v2249 = vpop.permute.xlu0 %2248
      %v2252 = vsel %vm1664, %v2234, %v2245
      %vm2253 = vcmask 130048
      %v2255 = vsel %vm2253, %v2252, %v2247
      %vm2256 = vcmask 195584
      %v2258 = vsel %vm2256, %v2255, %v2249
      %v2260 = vlaneseq
      %v2261 = vshrl.u32 %v2260, 7
      %v2262 = vsub.s32 0, %v2261
      %v2263 = vrot.slane %v1493, %v2262
      %v2269 = vunpack.c.l.b16 %v1489
      %v2270 = vunpack.c.l.b16 %v1490
      %v2271 = vunpack.c.l.b16 %v1491
      %v2272 = vunpack.c.l.b16 %v1492
      %v2273 = vpack.c.b16 %v2270, %v2269
      %v2274 = vpack.c.b16 %v2272, %v2271
      %v2277 = vsel %vm1029, %v2258, 0
      %2279 = vmatprep.subr.bf16.mxu0 0
      %2280 = vmatpush1.bf16.msra.mxu0 %v2273
      %2281 = vmatprep.subr.bf16.mxu0 0
      %2282 = vmatpush1.bf16.msra.mxu0 %v2274
      %2283 = vmatprep.subr.bf16.mxu0 0
      %2284 = vmatpush1.bf16.msra.mxu0 0
      %2285 = vmatprep.subr.bf16.mxu0 0
      %2286 = vmatpush1.bf16.msra.mxu0 0
      %2287 = vmatprep.subr.bf16.mxu0 0
      %2288 = vmatpush1.bf16.msra.mxu0 0
      %2289 = vmatprep.subr.bf16.mxu0 0
      %2290 = vmatpush1.bf16.msra.mxu0 0
      %2291 = vmatprep.subr.bf16.mxu0 0
      %2292 = vmatpush1.bf16.msra.mxu0 0
      %2293 = vmatprep.subr.bf16.mxu0 0
      %2294 = vmatpush1.bf16.msra.mxu0 0
      %2295 = vmatprep.subr.bf16.mxu0 0
      %2296 = vmatpush1.bf16.msra.mxu0 0
      %2297 = vmatprep.subr.bf16.mxu0 0
      %2298 = vmatpush1.bf16.msra.mxu0 0
      %2299 = vmatprep.subr.bf16.mxu0 0
      %2300 = vmatpush1.bf16.msra.mxu0 0
      %2301 = vmatprep.subr.bf16.mxu0 0
      %2302 = vmatpush1.bf16.msra.mxu0 0
      %2303 = vmatprep.subr.bf16.mxu0 0
      %2304 = vmatpush1.bf16.msra.mxu0 0
      %2305 = vmatprep.subr.bf16.mxu0 0
      %2306 = vmatpush1.bf16.msra.mxu0 0
      %2307 = vmatprep.subr.bf16.mxu0 0
      %2308 = vmatpush1.bf16.msra.mxu0 0
      %2309 = vmatprep.subr.bf16.mxu0 0
      %2310 = vmatpush1.bf16.msra.mxu0 0
      %2311 = vmatprep.mubr.bf16.mxu0 0
      %2312 = vmatmul.mubr.bf16.gmra.mrb[0].mxu0 %v2277
      %v2313 = vpop.f32.mrb[0].mxu0
      %v2314 = vadd.f32 %v2263, %v2313
      %v2315 = vpop.f32.mrb[0].mxu0
      %v2316 = vpop.f32.mrb[0].mxu0
      %v2317 = vpop.f32.mrb[0].mxu0
      %2318 = vdwg.mxu0
      %v2319 = vadd.f32 %v2314, %v1026
      %v2320 = vld [vmem:[%s29] sm:$0x1]
      %v2321 = vld [vmem:[%s31] sm:$0x1]
      %v2322 = vsel %vm1029, %v2319, 0.0
      %2323 = vadd.xlane.f32.xlu0 %v2322
      %v2324 = vpop.xlane.xlu0 %2323
      %v2325 = vmul.f32 %v2324, %v1033
      %v2326 = vsub.f32 %v2319, %v2325
      %v2327 = vmul.f32 %v2326, %v2326
      %v2328 = vsel %vm1029, %v2327, 0.0
      %2329 = vadd.xlane.f32.xlu0 %v2328
      %v2330 = vpop.xlane.xlu0 %2329
      %v2331 = vmul.f32 %v2330, %v1033
      %v2332 = vadd.f32 %v2331, 1e-06
      %v2333 = vrsqrt.pop %v2332
      %v2334 = vmul.f32 %v2326, %v2333
      %v2336 = vlaneseq
      %v2337 = vshrl.u32 %v2336, 7
      %v2338 = vsub.s32 0, %v2337
      %v2339 = vrot.slane %v2320, %v2338
      %v2341 = vmul.f32 %v2334, %v2339
      %v2343 = vlaneseq
      %v2344 = vshrl.u32 %v2343, 7
      %v2345 = vsub.s32 0, %v2344
      %v2346 = vrot.slane %v2321, %v2345
      %v2348 = vadd.f32 %v2341, %v2346
      %v2349 = vld [vmem:[%s33] sm:$0xf]
      %v2350 = vld [vmem:[%s33 + $0x4] sm:$0xf]
      %v2351 = vld [vmem:[%s33 + $0x8] sm:$0xf]
      %v2352 = vld [vmem:[%s33 + $0xc] sm:$0xf]
      %v2353 = vld [vmem:[%s35] sm:$0x1]
      %v2354 = vld [vmem:[%s37] sm:$0xf]
      %v2355 = vld [vmem:[%s37 + $0x4] sm:$0xf]
      %v2356 = vld [vmem:[%s37 + $0x8] sm:$0xf]
      %v2357 = vld [vmem:[%s37 + $0xc] sm:$0xf]
      %v2358 = vld [vmem:[%s39] sm:$0x1]
      %v2359 = vld [vmem:[%s41] sm:$0xf]
      %v2360 = vld [vmem:[%s41 + $0x4] sm:$0xf]
      %v2361 = vld [vmem:[%s41 + $0x8] sm:$0xf]
      %v2362 = vld [vmem:[%s41 + $0xc] sm:$0xf]
      %v2363 = vld [vmem:[%s43] sm:$0x1]
      %v2364 = vpack.c.bf16 %v2348, %v2348
      %v2366 = vlaneseq
      %v2367 = vshrl.u32 %v2366, 7
      %v2368 = vsub.s32 0, %v2367
      %v2369 = vrot.slane %v2353, %v2368
      %v2375 = vunpack.c.l.b16 %v2349
      %v2376 = vunpack.c.l.b16 %v2350
      %v2377 = vunpack.c.l.b16 %v2351
      %v2378 = vunpack.c.l.b16 %v2352
      %v2379 = vpack.c.b16 %v2376, %v2375
      %v2380 = vpack.c.b16 %v2378, %v2377
      %v2384 = vsel %vm1029, %v2364, 0
      %2386 = vmatprep.subr.bf16.mxu0 0
      %2387 = vmatpush1.bf16.msra.mxu0 %v2379
      %2388 = vmatprep.subr.bf16.mxu0 0
      %2389 = vmatpush1.bf16.msra.mxu0 %v2380
      %2390 = vmatprep.subr.bf16.mxu0 0
      %2391 = vmatpush1.bf16.msra.mxu0 0
      %2392 = vmatprep.subr.bf16.mxu0 0
      %2393 = vmatpush1.bf16.msra.mxu0 0
      %2394 = vmatprep.subr.bf16.mxu0 0
      %2395 = vmatpush1.bf16.msra.mxu0 0
      %2396 = vmatprep.subr.bf16.mxu0 0
      %2397 = vmatpush1.bf16.msra.mxu0 0
      %2398 = vmatprep.subr.bf16.mxu0 0
      %2399 = vmatpush1.bf16.msra.mxu0 0
      %2400 = vmatprep.subr.bf16.mxu0 0
      %2401 = vmatpush1.bf16.msra.mxu0 0
      %2402 = vmatprep.subr.bf16.mxu0 0
      %2403 = vmatpush1.bf16.msra.mxu0 0
      %2404 = vmatprep.subr.bf16.mxu0 0
      %2405 = vmatpush1.bf16.msra.mxu0 0
      %2406 = vmatprep.subr.bf16.mxu0 0
      %2407 = vmatpush1.bf16.msra.mxu0 0
      %2408 = vmatprep.subr.bf16.mxu0 0
      %2409 = vmatpush1.bf16.msra.mxu0 0
      %2410 = vmatprep.subr.bf16.mxu0 0
      %2411 = vmatpush1.bf16.msra.mxu0 0
      %2412 = vmatprep.subr.bf16.mxu0 0
      %2413 = vmatpush1.bf16.msra.mxu0 0
      %2414 = vmatprep.subr.bf16.mxu0 0
      %2415 = vmatpush1.bf16.msra.mxu0 0
      %2416 = vmatprep.subr.bf16.mxu0 0
      %2417 = vmatpush1.bf16.msra.mxu0 0
      %2418 = vmatprep.mubr.bf16.mxu0 0
      %2419 = vmatmul.mubr.bf16.gmra.mrb[0].mxu0 %v2384
      %v2420 = vpop.f32.mrb[0].mxu0
      %v2421 = vadd.f32 %v2369, %v2420
      %v2422 = vpop.f32.mrb[0].mxu0
      %v2423 = vpop.f32.mrb[0].mxu0
      %v2424 = vpop.f32.mrb[0].mxu0
      %2425 = vdwg.mxu0
      %v2426 = vld [vmem:[%s994] sm:$0xff]
      %v2427 = vld [vmem:[%s994 + $0x8] sm:$0xf]
      %v2428 = vpack.c.bf16 %v2427, %v2426
      %v2430 = vlaneseq
      %v2431 = vshrl.u32 %v2430, 7
      %v2432 = vsub.s32 0, %v2431
      %v2433 = vrot.slane %v2358, %v2432
      %v2439 = vunpack.c.l.b16 %v2354
      %v2440 = vunpack.c.l.b16 %v2355
      %v2441 = vunpack.c.l.b16 %v2356
      %v2442 = vunpack.c.l.b16 %v2357
      %v2443 = vpack.c.b16 %v2440, %v2439
      %v2444 = vpack.c.b16 %v2442, %v2441
      %v2448 = vsel %vm1029, %v2428, 0
      %2450 = vmatprep.subr.bf16.mxu0 0
      %2451 = vmatpush1.bf16.msra.mxu0 %v2443
      %2452 = vmatprep.subr.bf16.mxu0 0
      %2453 = vmatpush1.bf16.msra.mxu0 %v2444
      %2454 = vmatprep.subr.bf16.mxu0 0
      %2455 = vmatpush1.bf16.msra.mxu0 0
      %2456 = vmatprep.subr.bf16.mxu0 0
      %2457 = vmatpush1.bf16.msra.mxu0 0
      %2458 = vmatprep.subr.bf16.mxu0 0
      %2459 = vmatpush1.bf16.msra.mxu0 0
      %2460 = vmatprep.subr.bf16.mxu0 0
      %2461 = vmatpush1.bf16.msra.mxu0 0
      %2462 = vmatprep.subr.bf16.mxu0 0
      %2463 = vmatpush1.bf16.msra.mxu0 0
      %2464 = vmatprep.subr.bf16.mxu0 0
      %2465 = vmatpush1.bf16.msra.mxu0 0
      %2466 = vmatprep.subr.bf16.mxu0 0
      %2467 = vmatpush1.bf16.msra.mxu0 0
      %2468 = vmatprep.subr.bf16.mxu0 0
      %2469 = vmatpush1.bf16.msra.mxu0 0
      %2470 = vmatprep.subr.bf16.mxu0 0
      %2471 = vmatpush1.bf16.msra.mxu0 0
      %2472 = vmatprep.subr.bf16.mxu0 0
      %2473 = vmatpush1.bf16.msra.mxu0 0
      %2474 = vmatprep.subr.bf16.mxu0 0
      %2475 = vmatpush1.bf16.msra.mxu0 0
      %2476 = vmatprep.subr.bf16.mxu0 0
      %2477 = vmatpush1.bf16.msra.mxu0 0
      %2478 = vmatprep.subr.bf16.mxu0 0
      %2479 = vmatpush1.bf16.msra.mxu0 0
      %2480 = vmatprep.subr.bf16.mxu0 0
      %2481 = vmatpush1.bf16.msra.mxu0 0
      %2482 = vmatprep.mubr.bf16.mxu0 0
      %2483 = vmatmul.mubr.bf16.gmra.mrb[0].mxu0 %v2448
      %v2484 = vpop.f32.mrb[0].mxu0
      %v2485 = vadd.f32 %v2433, %v2484
      %v2486 = vpop.f32.mrb[0].mxu0
      %v2487 = vpop.f32.mrb[0].mxu0
      %v2488 = vadd.f32 %v2433, %v2487
      %v2489 = vpop.f32.mrb[0].mxu0
      %2490 = vdwg.mxu0
      %v2491 = vpack.c.bf16 %v2488, %v2485
      %2493 = vrot.lane.b32.xlu0 %v2491, 120
      %v2494 = vpop.permute.xlu0 %2493
      %2496 = vrot.lane.b32.xlu0 %v2491, 112
      %v2497 = vpop.permute.xlu0 %2496
      %2499 = vrot.lane.b32.xlu0 %v2491, 104
      %v2500 = vpop.permute.xlu0 %2499
      %v2503 = vunpack.c.l.s4 1983009808
      %v2504 = vunpack.c.0.s8 %v2503
      %v2505 = vlaneseq
      %v2506 = vshrl.u32 %v2505, 7
      %v2507 = vsub.s32 %v2504, %v2506
      %v2508 = vrot.slane %v2491, %v2507
      %v2509 = vcombine.high %v2491, 0
      %v2511 = vunpack.c.l.s4 1983009808
      %v2512 = vunpack.c.0.s8 %v2511
      %v2513 = vlaneseq
      %v2514 = vshrl.u32 %v2513, 7
      %v2515 = vsub.s32 %v2512, %v2514
      %v2516 = vrot.slane %v2497, %v2515
      %v2517 = vcombine.high %v2497, 0
      %v2518 = vcombine.low %v2508, %v2516
      %v2519 = vcombine.high %v2508, %v2516
      %v2521 = vunpack.c.l.s4 1934713408
      %v2522 = vunpack.c.0.s8 %v2521
      %v2523 = vlaneseq
      %v2524 = vshrl.u32 %v2523, 7
      %v2525 = vsub.s32 %v2522, %v2524
      %v2526 = vrot.slane %v2518, %v2525
      %v2528 = vunpack.c.l.s4 1934713408
      %v2529 = vunpack.c.0.s8 %v2528
      %v2530 = vlaneseq
      %v2531 = vshrl.u32 %v2530, 7
      %v2532 = vsub.s32 %v2529, %v2531
      %v2533 = vrot.slane %v2519, %v2532
      %v2534 = vcombine.low %v2509, %v2517
      %v2536 = vunpack.c.l.s4 1934713408
      %v2537 = vunpack.c.0.s8 %v2536
      %v2538 = vlaneseq
      %v2539 = vshrl.u32 %v2538, 7
      %v2540 = vsub.s32 %v2537, %v2539
      %v2541 = vrot.slane %v2534, %v2540
      %v2542 = vcombine.high %v2526, 0
      %v2543 = vcombine.high %v2533, 0
      %v2544 = vcombine.high %v2541, 0
      %v2546 = vunpack.c.l.s4 1983009808
      %v2547 = vunpack.c.0.s8 %v2546
      %v2548 = vlaneseq
      %v2549 = vshrl.u32 %v2548, 7
      %v2550 = vsub.s32 %v2547, %v2549
      %v2551 = vrot.slane %v2494, %v2550
      %v2552 = vcombine.high %v2494, 0
      %v2554 = vunpack.c.l.s4 1983009808
      %v2555 = vunpack.c.0.s8 %v2554
      %v2556 = vlaneseq
      %v2557 = vshrl.u32 %v2556, 7
      %v2558 = vsub.s32 %v2555, %v2557
      %v2559 = vrot.slane %v2500, %v2558
      %v2560 = vcombine.high %v2500, 0
      %v2561 = vcombine.low %v2551, %v2559
      %v2562 = vcombine.high %v2551, %v2559
      %v2564 = vunpack.c.l.s4 1934713408
      %v2565 = vunpack.c.0.s8 %v2564
      %v2566 = vlaneseq
      %v2567 = vshrl.u32 %v2566, 7
      %v2568 = vsub.s32 %v2565, %v2567
      %v2569 = vrot.slane %v2561, %v2568
      %v2571 = vunpack.c.l.s4 1934713408
      %v2572 = vunpack.c.0.s8 %v2571
      %v2573 = vlaneseq
      %v2574 = vshrl.u32 %v2573, 7
      %v2575 = vsub.s32 %v2572, %v2574
      %v2576 = vrot.slane %v2562, %v2575
      %v2577 = vcombine.low %v2552, %v2560
      %v2579 = vunpack.c.l.s4 1934713408
      %v2580 = vunpack.c.0.s8 %v2579
      %v2581 = vlaneseq
      %v2582 = vshrl.u32 %v2581, 7
      %v2583 = vsub.s32 %v2580, %v2582
      %v2584 = vrot.slane %v2577, %v2583
      %v2585 = vcombine.high %v2569, 0
      %v2586 = vcombine.high %v2576, 0
      %v2587 = vcombine.high %v2584, 0
      %v2590 = vpack.i.b16 %v2569, %v2526
      %v2592 = vshrl.u32 %v2526, 16
      %v2593 = vshrl.u32 %v2569, 16
      %v2594 = vpack.i.b16 %v2593, %v2592
      %v2598 = vpack.i.b16 %v2585, %v2542
      %v2600 = vshrl.u32 %v2542, 16
      %v2601 = vshrl.u32 %v2585, 16
      %v2602 = vpack.i.b16 %v2601, %v2600
      %v2606 = vpack.i.b16 %v2576, %v2533
      %v2608 = vshrl.u32 %v2533, 16
      %v2609 = vshrl.u32 %v2576, 16
      %v2610 = vpack.i.b16 %v2609, %v2608
      %v2614 = vpack.i.b16 %v2586, %v2543
      %v2616 = vshrl.u32 %v2543, 16
      %v2617 = vshrl.u32 %v2586, 16
      %v2618 = vpack.i.b16 %v2617, %v2616
      %v2622 = vpack.i.b16 %v2584, %v2541
      %v2623 = vshrl.u32 %v2541, 16
      %v2624 = vshrl.u32 %v2584, 16
      %v2625 = vpack.i.b16 %v2624, %v2623
      %v2628 = vpack.i.b16 %v2587, %v2544
      %v2629 = vshrl.u32 %v2544, 16
      %v2630 = vshrl.u32 %v2587, 16
      %v2631 = vpack.i.b16 %v2630, %v2629
      %v2632 = vcombine.low %v2590, %v2606
      %v2634 = vunpack.c.l.s4 1983009808
      %v2635 = vunpack.c.0.s8 %v2634
      %v2636 = vlaneseq
      %v2637 = vshrl.u32 %v2636, 7
      %v2638 = vsub.s32 %v2635, %v2637
      %v2639 = vrot.slane %v2632, %v2638
      %v2640 = vcombine.low %v2598, %v2614
      %v2642 = vunpack.c.l.s4 1983009808
      %v2643 = vunpack.c.0.s8 %v2642
      %v2644 = vlaneseq
      %v2645 = vshrl.u32 %v2644, 7
      %v2646 = vsub.s32 %v2643, %v2645
      %v2647 = vrot.slane %v2640, %v2646
      %v2650 = vcombine.low %v2639, %v2647
      %v2652 = vunpack.c.l.s4 1934713408
      %v2653 = vunpack.c.0.s8 %v2652
      %v2654 = vlaneseq
      %v2655 = vshrl.u32 %v2654, 7
      %v2656 = vsub.s32 %v2653, %v2655
      %v2657 = vrot.slane %v2650, %v2656
      %v2658 = vcombine.low %v2622, %v2628
      %v2660 = vunpack.c.l.s4 1934713408
      %v2661 = vunpack.c.0.s8 %v2660
      %v2662 = vlaneseq
      %v2663 = vshrl.u32 %v2662, 7
      %v2664 = vsub.s32 %v2661, %v2663
      %v2665 = vrot.slane %v2658, %v2664
      %v2666 = vcombine.low %v2657, %v2665
      %v2667 = vcombine.high %v2657, %v2665
      %v2668 = vcombine.low %v2594, %v2610
      %v2670 = vunpack.c.l.s4 1983009808
      %v2671 = vunpack.c.0.s8 %v2670
      %v2672 = vlaneseq
      %v2673 = vshrl.u32 %v2672, 7
      %v2674 = vsub.s32 %v2671, %v2673
      %v2675 = vrot.slane %v2668, %v2674
      %v2676 = vcombine.low %v2602, %v2618
      %v2678 = vunpack.c.l.s4 1983009808
      %v2679 = vunpack.c.0.s8 %v2678
      %v2680 = vlaneseq
      %v2681 = vshrl.u32 %v2680, 7
      %v2682 = vsub.s32 %v2679, %v2681
      %v2683 = vrot.slane %v2676, %v2682
      %v2686 = vcombine.low %v2675, %v2683
      %v2688 = vunpack.c.l.s4 1934713408
      %v2689 = vunpack.c.0.s8 %v2688
      %v2690 = vlaneseq
      %v2691 = vshrl.u32 %v2690, 7
      %v2692 = vsub.s32 %v2689, %v2691
      %v2693 = vrot.slane %v2686, %v2692
      %v2694 = vcombine.low %v2625, %v2631
      %v2696 = vunpack.c.l.s4 1934713408
      %v2697 = vunpack.c.0.s8 %v2696
      %v2698 = vlaneseq
      %v2699 = vshrl.u32 %v2698, 7
      %v2700 = vsub.s32 %v2697, %v2699
      %v2701 = vrot.slane %v2694, %v2700
      %v2702 = vcombine.low %v2693, %v2701
      %v2703 = vcombine.high %v2693, %v2701
      %v2706 = vpack.i.b16 %v2702, %v2666
      %v2707 = vshrl.u32 %v2666, 16
      %v2708 = vshrl.u32 %v2702, 16
      %v2709 = vpack.i.b16 %v2708, %v2707
      %v2712 = vpack.i.b16 %v2703, %v2667
      %v2713 = vshrl.u32 %v2667, 16
      %v2714 = vshrl.u32 %v2703, 16
      %v2715 = vpack.i.b16 %v2714, %v2713
      %2716 = vrot.lane.b32.xlu0 %v2491, 96
      %v2717 = vpop.permute.xlu0 %2716
      %2718 = vrot.lane.b32.xlu0 %v2494, 96
      %v2719 = vpop.permute.xlu0 %2718
      %2720 = vrot.lane.b32.xlu0 %v2497, 96
      %v2721 = vpop.permute.xlu0 %2720
      %2722 = vrot.lane.b32.xlu0 %v2500, 96
      %v2723 = vpop.permute.xlu0 %2722
      %v2729 = vunpack.c.l.s4 1983009808
      %v2730 = vunpack.c.0.s8 %v2729
      %v2731 = vlaneseq
      %v2732 = vshrl.u32 %v2731, 7
      %v2733 = vsub.s32 %v2730, %v2732
      %v2734 = vrot.slane %v2717, %v2733
      %v2735 = vcombine.high %v2717, 0
      %v2737 = vunpack.c.l.s4 1983009808
      %v2738 = vunpack.c.0.s8 %v2737
      %v2739 = vlaneseq
      %v2740 = vshrl.u32 %v2739, 7
      %v2741 = vsub.s32 %v2738, %v2740
      %v2742 = vrot.slane %v2721, %v2741
      %v2743 = vcombine.high %v2721, 0
      %v2744 = vcombine.low %v2734, %v2742
      %v2745 = vcombine.high %v2734, %v2742
      %v2747 = vunpack.c.l.s4 1934713408
      %v2748 = vunpack.c.0.s8 %v2747
      %v2749 = vlaneseq
      %v2750 = vshrl.u32 %v2749, 7
      %v2751 = vsub.s32 %v2748, %v2750
      %v2752 = vrot.slane %v2744, %v2751
      %v2754 = vunpack.c.l.s4 1934713408
      %v2755 = vunpack.c.0.s8 %v2754
      %v2756 = vlaneseq
      %v2757 = vshrl.u32 %v2756, 7
      %v2758 = vsub.s32 %v2755, %v2757
      %v2759 = vrot.slane %v2745, %v2758
      %v2760 = vcombine.low %v2735, %v2743
      %v2762 = vunpack.c.l.s4 1934713408
      %v2763 = vunpack.c.0.s8 %v2762
      %v2764 = vlaneseq
      %v2765 = vshrl.u32 %v2764, 7
      %v2766 = vsub.s32 %v2763, %v2765
      %v2767 = vrot.slane %v2760, %v2766
      %v2768 = vcombine.high %v2752, 0
      %v2769 = vcombine.high %v2759, 0
      %v2770 = vcombine.high %v2767, 0
      %v2772 = vunpack.c.l.s4 1983009808
      %v2773 = vunpack.c.0.s8 %v2772
      %v2774 = vlaneseq
      %v2775 = vshrl.u32 %v2774, 7
      %v2776 = vsub.s32 %v2773, %v2775
      %v2777 = vrot.slane %v2719, %v2776
      %v2778 = vcombine.high %v2719, 0
      %v2780 = vunpack.c.l.s4 1983009808
      %v2781 = vunpack.c.0.s8 %v2780
      %v2782 = vlaneseq
      %v2783 = vshrl.u32 %v2782, 7
      %v2784 = vsub.s32 %v2781, %v2783
      %v2785 = vrot.slane %v2723, %v2784
      %v2786 = vcombine.high %v2723, 0
      %v2787 = vcombine.low %v2777, %v2785
      %v2788 = vcombine.high %v2777, %v2785
      %v2790 = vunpack.c.l.s4 1934713408
      %v2791 = vunpack.c.0.s8 %v2790
      %v2792 = vlaneseq
      %v2793 = vshrl.u32 %v2792, 7
      %v2794 = vsub.s32 %v2791, %v2793
      %v2795 = vrot.slane %v2787, %v2794
      %v2797 = vunpack.c.l.s4 1934713408
      %v2798 = vunpack.c.0.s8 %v2797
      %v2799 = vlaneseq
      %v2800 = vshrl.u32 %v2799, 7
      %v2801 = vsub.s32 %v2798, %v2800
      %v2802 = vrot.slane %v2788, %v2801
      %v2803 = vcombine.low %v2778, %v2786
      %v2805 = vunpack.c.l.s4 1934713408
      %v2806 = vunpack.c.0.s8 %v2805
      %v2807 = vlaneseq
      %v2808 = vshrl.u32 %v2807, 7
      %v2809 = vsub.s32 %v2806, %v2808
      %v2810 = vrot.slane %v2803, %v2809
      %v2811 = vcombine.high %v2795, 0
      %v2812 = vcombine.high %v2802, 0
      %v2813 = vcombine.high %v2810, 0
      %v2816 = vpack.i.b16 %v2795, %v2752
      %v2818 = vshrl.u32 %v2752, 16
      %v2819 = vshrl.u32 %v2795, 16
      %v2820 = vpack.i.b16 %v2819, %v2818
      %v2824 = vpack.i.b16 %v2811, %v2768
      %v2826 = vshrl.u32 %v2768, 16
      %v2827 = vshrl.u32 %v2811, 16
      %v2828 = vpack.i.b16 %v2827, %v2826
      %v2832 = vpack.i.b16 %v2802, %v2759
      %v2834 = vshrl.u32 %v2759, 16
      %v2835 = vshrl.u32 %v2802, 16
      %v2836 = vpack.i.b16 %v2835, %v2834
      %v2840 = vpack.i.b16 %v2812, %v2769
      %v2842 = vshrl.u32 %v2769, 16
      %v2843 = vshrl.u32 %v2812, 16
      %v2844 = vpack.i.b16 %v2843, %v2842
      %v2848 = vpack.i.b16 %v2810, %v2767
      %v2849 = vshrl.u32 %v2767, 16
      %v2850 = vshrl.u32 %v2810, 16
      %v2851 = vpack.i.b16 %v2850, %v2849
      %v2854 = vpack.i.b16 %v2813, %v2770
      %v2855 = vshrl.u32 %v2770, 16
      %v2856 = vshrl.u32 %v2813, 16
      %v2857 = vpack.i.b16 %v2856, %v2855
      %v2858 = vcombine.low %v2816, %v2832
      %v2860 = vunpack.c.l.s4 1983009808
      %v2861 = vunpack.c.0.s8 %v2860
      %v2862 = vlaneseq
      %v2863 = vshrl.u32 %v2862, 7
      %v2864 = vsub.s32 %v2861, %v2863
      %v2865 = vrot.slane %v2858, %v2864
      %v2866 = vcombine.low %v2824, %v2840
      %v2868 = vunpack.c.l.s4 1983009808
      %v2869 = vunpack.c.0.s8 %v2868
      %v2870 = vlaneseq
      %v2871 = vshrl.u32 %v2870, 7
      %v2872 = vsub.s32 %v2869, %v2871
      %v2873 = vrot.slane %v2866, %v2872
      %v2876 = vcombine.low %v2865, %v2873
      %v2878 = vunpack.c.l.s4 1934713408
      %v2879 = vunpack.c.0.s8 %v2878
      %v2880 = vlaneseq
      %v2881 = vshrl.u32 %v2880, 7
      %v2882 = vsub.s32 %v2879, %v2881
      %v2883 = vrot.slane %v2876, %v2882
      %v2884 = vcombine.low %v2848, %v2854
      %v2886 = vunpack.c.l.s4 1934713408
      %v2887 = vunpack.c.0.s8 %v2886
      %v2888 = vlaneseq
      %v2889 = vshrl.u32 %v2888, 7
      %v2890 = vsub.s32 %v2887, %v2889
      %v2891 = vrot.slane %v2884, %v2890
      %v2892 = vcombine.low %v2883, %v2891
      %v2893 = vcombine.high %v2883, %v2891
      %v2894 = vcombine.low %v2820, %v2836
      %v2896 = vunpack.c.l.s4 1983009808
      %v2897 = vunpack.c.0.s8 %v2896
      %v2898 = vlaneseq
      %v2899 = vshrl.u32 %v2898, 7
      %v2900 = vsub.s32 %v2897, %v2899
      %v2901 = vrot.slane %v2894, %v2900
      %v2902 = vcombine.low %v2828, %v2844
      %v2904 = vunpack.c.l.s4 1983009808
      %v2905 = vunpack.c.0.s8 %v2904
      %v2906 = vlaneseq
      %v2907 = vshrl.u32 %v2906, 7
      %v2908 = vsub.s32 %v2905, %v2907
      %v2909 = vrot.slane %v2902, %v2908
      %v2912 = vcombine.low %v2901, %v2909
      %v2914 = vunpack.c.l.s4 1934713408
      %v2915 = vunpack.c.0.s8 %v2914
      %v2916 = vlaneseq
      %v2917 = vshrl.u32 %v2916, 7
      %v2918 = vsub.s32 %v2915, %v2917
      %v2919 = vrot.slane %v2912, %v2918
      %v2920 = vcombine.low %v2851, %v2857
      %v2922 = vunpack.c.l.s4 1934713408
      %v2923 = vunpack.c.0.s8 %v2922
      %v2924 = vlaneseq
      %v2925 = vshrl.u32 %v2924, 7
      %v2926 = vsub.s32 %v2923, %v2925
      %v2927 = vrot.slane %v2920, %v2926
      %v2928 = vcombine.low %v2919, %v2927
      %v2929 = vcombine.high %v2919, %v2927
      %v2932 = vpack.i.b16 %v2928, %v2892
      %v2933 = vshrl.u32 %v2892, 16
      %v2934 = vshrl.u32 %v2928, 16
      %v2935 = vpack.i.b16 %v2934, %v2933
      %v2938 = vpack.i.b16 %v2929, %v2893
      %v2939 = vshrl.u32 %v2893, 16
      %v2940 = vshrl.u32 %v2929, 16
      %v2941 = vpack.i.b16 %v2940, %v2939
      %v2942 = vld [vmem:[%s999] sm:$0xff]
      %v2943 = vld [vmem:[%s999 + $0x8] sm:$0x3]
      %v2944 = vpack.c.bf16 %v2943, %v2942
      %v2946 = vsel %vm1029, %v2944, 0
      %2948 = vmatprep.subr.bf16.mxu0 0
      %2949 = vmatpush1.bf16.msra.mxu0 %v2443
      %2950 = vmatprep.subr.bf16.mxu0 0
      %2951 = vmatpush1.bf16.msra.mxu0 %v2444
      %2952 = vmatprep.subr.bf16.mxu0 0
      %2953 = vmatpush1.bf16.msra.mxu0 0
      %2954 = vmatprep.subr.bf16.mxu0 0
      %2955 = vmatpush1.bf16.msra.mxu0 0
      %2956 = vmatprep.subr.bf16.mxu0 0
      %2957 = vmatpush1.bf16.msra.mxu0 0
      %2958 = vmatprep.subr.bf16.mxu0 0
      %2959 = vmatpush1.bf16.msra.mxu0 0
      %2960 = vmatprep.subr.bf16.mxu0 0
      %2961 = vmatpush1.bf16.msra.mxu0 0
      %2962 = vmatprep.subr.bf16.mxu0 0
      %2963 = vmatpush1.bf16.msra.mxu0 0
      %2964 = vmatprep.subr.bf16.mxu0 0
      %2965 = vmatpush1.bf16.msra.mxu0 0
      %2966 = vmatprep.subr.bf16.mxu0 0
      %2967 = vmatpush1.bf16.msra.mxu0 0
      %2968 = vmatprep.subr.bf16.mxu0 0
      %2969 = vmatpush1.bf16.msra.mxu0 0
      %2970 = vmatprep.subr.bf16.mxu0 0
      %2971 = vmatpush1.bf16.msra.mxu0 0
      %2972 = vmatprep.subr.bf16.mxu0 0
      %2973 = vmatpush1.bf16.msra.mxu0 0
      %2974 = vmatprep.subr.bf16.mxu0 0
      %2975 = vmatpush1.bf16.msra.mxu0 0
      %2976 = vmatprep.subr.bf16.mxu0 0
      %2977 = vmatpush1.bf16.msra.mxu0 0
      %2978 = vmatprep.subr.bf16.mxu0 0
      %2979 = vmatpush1.bf16.msra.mxu0 0
      %2980 = vmatprep.mubr.bf16.mxu0 0
      %2981 = vmatmul.mubr.bf16.gmra.mrb[0].mxu0 %v2946
      %v2982 = vpop.f32.mrb[0].mxu0
      %v2983 = vadd.f32 %v2433, %v2982
      %v2984 = vpop.f32.mrb[0].mxu0
      %v2985 = vpop.f32.mrb[0].mxu0
      %v2986 = vadd.f32 %v2433, %v2985
      %v2987 = vpop.f32.mrb[0].mxu0
      %2988 = vdwg.mxu0
      %v2989 = vpack.c.bf16 %v2986, %v2983
      %2991 = vrot.lane.b32.xlu0 %v2989, 120
      %v2992 = vpop.permute.xlu0 %2991
      %2994 = vrot.lane.b32.xlu0 %v2989, 112
      %v2995 = vpop.permute.xlu0 %2994
      %2997 = vrot.lane.b32.xlu0 %v2989, 104
      %v2998 = vpop.permute.xlu0 %2997
      %v3001 = vunpack.c.l.s4 1983009808
      %v3002 = vunpack.c.0.s8 %v3001
      %v3003 = vlaneseq
      %v3004 = vshrl.u32 %v3003, 7
      %v3005 = vsub.s32 %v3002, %v3004
      %v3006 = vrot.slane %v2989, %v3005
      %v3007 = vcombine.high %v2989, 0
      %v3009 = vunpack.c.l.s4 1983009808
      %v3010 = vunpack.c.0.s8 %v3009
      %v3011 = vlaneseq
      %v3012 = vshrl.u32 %v3011, 7
      %v3013 = vsub.s32 %v3010, %v3012
      %v3014 = vrot.slane %v2995, %v3013
      %v3015 = vcombine.high %v2995, 0
      %v3016 = vcombine.low %v3006, %v3014
      %v3017 = vcombine.high %v3006, %v3014
      %v3019 = vunpack.c.l.s4 1934713408
      %v3020 = vunpack.c.0.s8 %v3019
      %v3021 = vlaneseq
      %v3022 = vshrl.u32 %v3021, 7
      %v3023 = vsub.s32 %v3020, %v3022
      %v3024 = vrot.slane %v3016, %v3023
      %v3026 = vunpack.c.l.s4 1934713408
      %v3027 = vunpack.c.0.s8 %v3026
      %v3028 = vlaneseq
      %v3029 = vshrl.u32 %v3028, 7
      %v3030 = vsub.s32 %v3027, %v3029
      %v3031 = vrot.slane %v3017, %v3030
      %v3032 = vcombine.low %v3007, %v3015
      %v3033 = vcombine.high %v3024, 0
      %v3034 = vcombine.high %v3031, 0
      %v3036 = vunpack.c.l.s4 1934713408
      %v3037 = vunpack.c.0.s8 %v3036
      %v3038 = vlaneseq
      %v3039 = vshrl.u32 %v3038, 7
      %v3040 = vsub.s32 %v3037, %v3039
      %v3041 = vrot.slane %v3032, %v3040
      %v3043 = vunpack.c.l.s4 1983009808
      %v3044 = vunpack.c.0.s8 %v3043
      %v3045 = vlaneseq
      %v3046 = vshrl.u32 %v3045, 7
      %v3047 = vsub.s32 %v3044, %v3046
      %v3048 = vrot.slane %v2992, %v3047
      %v3049 = vcombine.high %v2992, 0
      %v3051 = vunpack.c.l.s4 1983009808
      %v3052 = vunpack.c.0.s8 %v3051
      %v3053 = vlaneseq
      %v3054 = vshrl.u32 %v3053, 7
      %v3055 = vsub.s32 %v3052, %v3054
      %v3056 = vrot.slane %v2998, %v3055
      %v3057 = vcombine.high %v2998, 0
      %v3058 = vcombine.low %v3048, %v3056
      %v3059 = vcombine.high %v3048, %v3056
      %v3061 = vunpack.c.l.s4 1934713408
      %v3062 = vunpack.c.0.s8 %v3061
      %v3063 = vlaneseq
      %v3064 = vshrl.u32 %v3063, 7
      %v3065 = vsub.s32 %v3062, %v3064
      %v3066 = vrot.slane %v3058, %v3065
      %v3068 = vunpack.c.l.s4 1934713408
      %v3069 = vunpack.c.0.s8 %v3068
      %v3070 = vlaneseq
      %v3071 = vshrl.u32 %v3070, 7
      %v3072 = vsub.s32 %v3069, %v3071
      %v3073 = vrot.slane %v3059, %v3072
      %v3074 = vcombine.low %v3049, %v3057
      %v3075 = vcombine.high %v3066, 0
      %v3076 = vcombine.high %v3073, 0
      %v3078 = vunpack.c.l.s4 1934713408
      %v3079 = vunpack.c.0.s8 %v3078
      %v3080 = vlaneseq
      %v3081 = vshrl.u32 %v3080, 7
      %v3082 = vsub.s32 %v3079, %v3081
      %v3083 = vrot.slane %v3074, %v3082
      %v3086 = vpack.i.b16 %v3066, %v3024
      %v3088 = vshrl.u32 %v3024, 16
      %v3089 = vshrl.u32 %v3066, 16
      %v3090 = vpack.i.b16 %v3089, %v3088
      %v3094 = vpack.i.b16 %v3075, %v3033
      %v3096 = vshrl.u32 %v3033, 16
      %v3097 = vshrl.u32 %v3075, 16
      %v3098 = vpack.i.b16 %v3097, %v3096
      %v3102 = vpack.i.b16 %v3073, %v3031
      %v3104 = vshrl.u32 %v3031, 16
      %v3105 = vshrl.u32 %v3073, 16
      %v3106 = vpack.i.b16 %v3105, %v3104
      %v3110 = vpack.i.b16 %v3076, %v3034
      %v3112 = vshrl.u32 %v3034, 16
      %v3113 = vshrl.u32 %v3076, 16
      %v3114 = vpack.i.b16 %v3113, %v3112
      %v3118 = vpack.i.b16 %v3083, %v3041
      %v3119 = vshrl.u32 %v3041, 16
      %v3120 = vshrl.u32 %v3083, 16
      %v3121 = vpack.i.b16 %v3120, %v3119
      %v3122 = vcombine.low %v3086, %v3102
      %v3124 = vunpack.c.l.s4 1983009808
      %v3125 = vunpack.c.0.s8 %v3124
      %v3126 = vlaneseq
      %v3127 = vshrl.u32 %v3126, 7
      %v3128 = vsub.s32 %v3125, %v3127
      %v3129 = vrot.slane %v3122, %v3128
      %v3130 = vcombine.low %v3094, %v3110
      %v3132 = vunpack.c.l.s4 1983009808
      %v3133 = vunpack.c.0.s8 %v3132
      %v3134 = vlaneseq
      %v3135 = vshrl.u32 %v3134, 7
      %v3136 = vsub.s32 %v3133, %v3135
      %v3137 = vrot.slane %v3130, %v3136
      %v3138 = vcombine.low %v3129, %v3137
      %v3140 = vunpack.c.l.s4 1934713408
      %v3141 = vunpack.c.0.s8 %v3140
      %v3142 = vlaneseq
      %v3143 = vshrl.u32 %v3142, 7
      %v3144 = vsub.s32 %v3141, %v3143
      %v3145 = vrot.slane %v3138, %v3144
      %v3148 = vunpack.c.l.s4 1934713408
      %v3149 = vunpack.c.0.s8 %v3148
      %v3150 = vlaneseq
      %v3151 = vshrl.u32 %v3150, 7
      %v3152 = vsub.s32 %v3149, %v3151
      %v3153 = vrot.slane %v3118, %v3152
      %v3154 = vcombine.low %v3145, %v3153
      %v3155 = vcombine.high %v3145, %v3153
      %v3156 = vcombine.low %v3090, %v3106
      %v3158 = vunpack.c.l.s4 1983009808
      %v3159 = vunpack.c.0.s8 %v3158
      %v3160 = vlaneseq
      %v3161 = vshrl.u32 %v3160, 7
      %v3162 = vsub.s32 %v3159, %v3161
      %v3163 = vrot.slane %v3156, %v3162
      %v3164 = vcombine.low %v3098, %v3114
      %v3166 = vunpack.c.l.s4 1983009808
      %v3167 = vunpack.c.0.s8 %v3166
      %v3168 = vlaneseq
      %v3169 = vshrl.u32 %v3168, 7
      %v3170 = vsub.s32 %v3167, %v3169
      %v3171 = vrot.slane %v3164, %v3170
      %v3172 = vcombine.low %v3163, %v3171
      %v3174 = vunpack.c.l.s4 1934713408
      %v3175 = vunpack.c.0.s8 %v3174
      %v3176 = vlaneseq
      %v3177 = vshrl.u32 %v3176, 7
      %v3178 = vsub.s32 %v3175, %v3177
      %v3179 = vrot.slane %v3172, %v3178
      %v3182 = vunpack.c.l.s4 1934713408
      %v3183 = vunpack.c.0.s8 %v3182
      %v3184 = vlaneseq
      %v3185 = vshrl.u32 %v3184, 7
      %v3186 = vsub.s32 %v3183, %v3185
      %v3187 = vrot.slane %v3121, %v3186
      %v3188 = vcombine.low %v3179, %v3187
      %v3189 = vcombine.high %v3179, %v3187
      %v3192 = vpack.i.b16 %v3188, %v3154
      %v3193 = vshrl.u32 %v3154, 16
      %v3194 = vshrl.u32 %v3188, 16
      %v3195 = vpack.i.b16 %v3194, %v3193
      %v3198 = vpack.i.b16 %v3189, %v3155
      %v3199 = vshrl.u32 %v3155, 16
      %v3200 = vshrl.u32 %v3189, 16
      %v3201 = vpack.i.b16 %v3200, %v3199
      %3202 = vrot.lane.b32.xlu0 %v2989, 96
      %v3203 = vpop.permute.xlu0 %3202
      %3204 = vrot.lane.b32.xlu0 %v2992, 96
      %v3205 = vpop.permute.xlu0 %3204
      %3206 = vrot.lane.b32.xlu0 %v2995, 96
      %v3207 = vpop.permute.xlu0 %3206
      %3208 = vrot.lane.b32.xlu0 %v2998, 96
      %v3209 = vpop.permute.xlu0 %3208
      %v3215 = vunpack.c.l.s4 1983009808
      %v3216 = vunpack.c.0.s8 %v3215
      %v3217 = vlaneseq
      %v3218 = vshrl.u32 %v3217, 7
      %v3219 = vsub.s32 %v3216, %v3218
      %v3220 = vrot.slane %v3203, %v3219
      %v3221 = vcombine.high %v3203, 0
      %v3223 = vunpack.c.l.s4 1983009808
      %v3224 = vunpack.c.0.s8 %v3223
      %v3225 = vlaneseq
      %v3226 = vshrl.u32 %v3225, 7
      %v3227 = vsub.s32 %v3224, %v3226
      %v3228 = vrot.slane %v3207, %v3227
      %v3229 = vcombine.high %v3207, 0
      %v3230 = vcombine.low %v3220, %v3228
      %v3231 = vcombine.high %v3220, %v3228
      %v3233 = vunpack.c.l.s4 1934713408
      %v3234 = vunpack.c.0.s8 %v3233
      %v3235 = vlaneseq
      %v3236 = vshrl.u32 %v3235, 7
      %v3237 = vsub.s32 %v3234, %v3236
      %v3238 = vrot.slane %v3230, %v3237
      %v3240 = vunpack.c.l.s4 1934713408
      %v3241 = vunpack.c.0.s8 %v3240
      %v3242 = vlaneseq
      %v3243 = vshrl.u32 %v3242, 7
      %v3244 = vsub.s32 %v3241, %v3243
      %v3245 = vrot.slane %v3231, %v3244
      %v3246 = vcombine.low %v3221, %v3229
      %v3247 = vcombine.high %v3238, 0
      %v3248 = vcombine.high %v3245, 0
      %v3250 = vunpack.c.l.s4 1934713408
      %v3251 = vunpack.c.0.s8 %v3250
      %v3252 = vlaneseq
      %v3253 = vshrl.u32 %v3252, 7
      %v3254 = vsub.s32 %v3251, %v3253
      %v3255 = vrot.slane %v3246, %v3254
      %v3257 = vunpack.c.l.s4 1983009808
      %v3258 = vunpack.c.0.s8 %v3257
      %v3259 = vlaneseq
      %v3260 = vshrl.u32 %v3259, 7
      %v3261 = vsub.s32 %v3258, %v3260
      %v3262 = vrot.slane %v3205, %v3261
      %v3263 = vcombine.high %v3205, 0
      %v3265 = vunpack.c.l.s4 1983009808
      %v3266 = vunpack.c.0.s8 %v3265
      %v3267 = vlaneseq
      %v3268 = vshrl.u32 %v3267, 7
      %v3269 = vsub.s32 %v3266, %v3268
      %v3270 = vrot.slane %v3209, %v3269
      %v3271 = vcombine.high %v3209, 0
      %v3272 = vcombine.low %v3262, %v3270
      %v3273 = vcombine.high %v3262, %v3270
      %v3275 = vunpack.c.l.s4 1934713408
      %v3276 = vunpack.c.0.s8 %v3275
      %v3277 = vlaneseq
      %v3278 = vshrl.u32 %v3277, 7
      %v3279 = vsub.s32 %v3276, %v3278
      %v3280 = vrot.slane %v3272, %v3279
      %v3282 = vunpack.c.l.s4 1934713408
      %v3283 = vunpack.c.0.s8 %v3282
      %v3284 = vlaneseq
      %v3285 = vshrl.u32 %v3284, 7
      %v3286 = vsub.s32 %v3283, %v3285
      %v3287 = vrot.slane %v3273, %v3286
      %v3288 = vcombine.low %v3263, %v3271
      %v3289 = vcombine.high %v3280, 0
      %v3290 = vcombine.high %v3287, 0
      %v3292 = vunpack.c.l.s4 1934713408
      %v3293 = vunpack.c.0.s8 %v3292
      %v3294 = vlaneseq
      %v3295 = vshrl.u32 %v3294, 7
      %v3296 = vsub.s32 %v3293, %v3295
      %v3297 = vrot.slane %v3288, %v3296
      %v3300 = vpack.i.b16 %v3280, %v3238
      %v3302 = vshrl.u32 %v3238, 16
      %v3303 = vshrl.u32 %v3280, 16
      %v3304 = vpack.i.b16 %v3303, %v3302
      %v3308 = vpack.i.b16 %v3289, %v3247
      %v3310 = vshrl.u32 %v3247, 16
      %v3311 = vshrl.u32 %v3289, 16
      %v3312 = vpack.i.b16 %v3311, %v3310
      %v3316 = vpack.i.b16 %v3287, %v3245
      %v3318 = vshrl.u32 %v3245, 16
      %v3319 = vshrl.u32 %v3287, 16
      %v3320 = vpack.i.b16 %v3319, %v3318
      %v3324 = vpack.i.b16 %v3290, %v3248
      %v3326 = vshrl.u32 %v3248, 16
      %v3327 = vshrl.u32 %v3290, 16
      %v3328 = vpack.i.b16 %v3327, %v3326
      %v3332 = vpack.i.b16 %v3297, %v3255
      %v3333 = vshrl.u32 %v3255, 16
      %v3334 = vshrl.u32 %v3297, 16
      %v3335 = vpack.i.b16 %v3334, %v3333
      %v3336 = vcombine.low %v3300, %v3316
      %v3338 = vunpack.c.l.s4 1983009808
      %v3339 = vunpack.c.0.s8 %v3338
      %v3340 = vlaneseq
      %v3341 = vshrl.u32 %v3340, 7
      %v3342 = vsub.s32 %v3339, %v3341
      %v3343 = vrot.slane %v3336, %v3342
      %v3344 = vcombine.low %v3308, %v3324
      %v3346 = vunpack.c.l.s4 1983009808
      %v3347 = vunpack.c.0.s8 %v3346
      %v3348 = vlaneseq
      %v3349 = vshrl.u32 %v3348, 7
      %v3350 = vsub.s32 %v3347, %v3349
      %v3351 = vrot.slane %v3344, %v3350
      %v3352 = vcombine.low %v3343, %v3351
      %v3354 = vunpack.c.l.s4 1934713408
      %v3355 = vunpack.c.0.s8 %v3354
      %v3356 = vlaneseq
      %v3357 = vshrl.u32 %v3356, 7
      %v3358 = vsub.s32 %v3355, %v3357
      %v3359 = vrot.slane %v3352, %v3358
      %v3362 = vunpack.c.l.s4 1934713408
      %v3363 = vunpack.c.0.s8 %v3362
      %v3364 = vlaneseq
      %v3365 = vshrl.u32 %v3364, 7
      %v3366 = vsub.s32 %v3363, %v3365
      %v3367 = vrot.slane %v3332, %v3366
      %v3368 = vcombine.low %v3359, %v3367
      %v3369 = vcombine.high %v3359, %v3367
      %v3370 = vcombine.low %v3304, %v3320
      %v3372 = vunpack.c.l.s4 1983009808
      %v3373 = vunpack.c.0.s8 %v3372
      %v3374 = vlaneseq
      %v3375 = vshrl.u32 %v3374, 7
      %v3376 = vsub.s32 %v3373, %v3375
      %v3377 = vrot.slane %v3370, %v3376
      %v3378 = vcombine.low %v3312, %v3328
      %v3380 = vunpack.c.l.s4 1983009808
      %v3381 = vunpack.c.0.s8 %v3380
      %v3382 = vlaneseq
      %v3383 = vshrl.u32 %v3382, 7
      %v3384 = vsub.s32 %v3381, %v3383
      %v3385 = vrot.slane %v3378, %v3384
      %v3386 = vcombine.low %v3377, %v3385
      %v3388 = vunpack.c.l.s4 1934713408
      %v3389 = vunpack.c.0.s8 %v3388
      %v3390 = vlaneseq
      %v3391 = vshrl.u32 %v3390, 7
      %v3392 = vsub.s32 %v3389, %v3391
      %v3393 = vrot.slane %v3386, %v3392
      %v3396 = vunpack.c.l.s4 1934713408
      %v3397 = vunpack.c.0.s8 %v3396
      %v3398 = vlaneseq
      %v3399 = vshrl.u32 %v3398, 7
      %v3400 = vsub.s32 %v3397, %v3399
      %v3401 = vrot.slane %v3335, %v3400
      %v3402 = vcombine.low %v3393, %v3401
      %v3403 = vcombine.high %v3393, %v3401
      %v3406 = vpack.i.b16 %v3402, %v3368
      %v3407 = vshrl.u32 %v3368, 16
      %v3408 = vshrl.u32 %v3402, 16
      %v3409 = vpack.i.b16 %v3408, %v3407
      %v3412 = vpack.i.b16 %v3403, %v3369
      %v3413 = vshrl.u32 %v3369, 16
      %v3414 = vshrl.u32 %v3403, 16
      %v3415 = vpack.i.b16 %v3414, %v3413
      %v3416 = vld [vmem:[%s1004] sm:$0xff]
      %v3417 = vld [vmem:[%s1004 + $0x8] sm:$0x3f]
      %v3418 = vpack.c.bf16 %v3417, %v3416
      %v3420 = vsel %vm1029, %v3418, 0
      %3422 = vmatprep.subr.bf16.mxu0 0
      %3423 = vmatpush1.bf16.msra.mxu0 %v2443
      %3424 = vmatprep.subr.bf16.mxu0 0
      %3425 = vmatpush1.bf16.msra.mxu0 %v2444
      %3426 = vmatprep.subr.bf16.mxu0 0
      %3427 = vmatpush1.bf16.msra.mxu0 0
      %3428 = vmatprep.subr.bf16.mxu0 0
      %3429 = vmatpush1.bf16.msra.mxu0 0
      %3430 = vmatprep.subr.bf16.mxu0 0
      %3431 = vmatpush1.bf16.msra.mxu0 0
      %3432 = vmatprep.subr.bf16.mxu0 0
      %3433 = vmatpush1.bf16.msra.mxu0 0
      %3434 = vmatprep.subr.bf16.mxu0 0
      %3435 = vmatpush1.bf16.msra.mxu0 0
      %3436 = vmatprep.subr.bf16.mxu0 0
      %3437 = vmatpush1.bf16.msra.mxu0 0
      %3438 = vmatprep.subr.bf16.mxu0 0
      %3439 = vmatpush1.bf16.msra.mxu0 0
      %3440 = vmatprep.subr.bf16.mxu0 0
      %3441 = vmatpush1.bf16.msra.mxu0 0
      %3442 = vmatprep.subr.bf16.mxu0 0
      %3443 = vmatpush1.bf16.msra.mxu0 0
      %3444 = vmatprep.subr.bf16.mxu0 0
      %3445 = vmatpush1.bf16.msra.mxu0 0
      %3446 = vmatprep.subr.bf16.mxu0 0
      %3447 = vmatpush1.bf16.msra.mxu0 0
      %3448 = vmatprep.subr.bf16.mxu0 0
      %3449 = vmatpush1.bf16.msra.mxu0 0
      %3450 = vmatprep.subr.bf16.mxu0 0
      %3451 = vmatpush1.bf16.msra.mxu0 0
      %3452 = vmatprep.subr.bf16.mxu0 0
      %3453 = vmatpush1.bf16.msra.mxu0 0
      %3454 = vmatprep.mubr.bf16.mxu0 0
      %3455 = vmatmul.mubr.bf16.gmra.mrb[0].mxu0 %v3420
      %v3456 = vpop.f32.mrb[0].mxu0
      %v3457 = vadd.f32 %v2433, %v3456
      %v3458 = vpop.f32.mrb[0].mxu0
      %v3459 = vpop.f32.mrb[0].mxu0
      %v3460 = vadd.f32 %v2433, %v3459
      %v3461 = vpop.f32.mrb[0].mxu0
      %3462 = vdwg.mxu0
      %v3463 = vpack.c.bf16 %v3460, %v3457
      %3465 = vrot.lane.b32.xlu0 %v3463, 120
      %v3466 = vpop.permute.xlu0 %3465
      %3468 = vrot.lane.b32.xlu0 %v3463, 112
      %v3469 = vpop.permute.xlu0 %3468
      %3471 = vrot.lane.b32.xlu0 %v3463, 104
      %v3472 = vpop.permute.xlu0 %3471
      %v3474 = vcombine.high %v3463, 0
      %v3476 = vunpack.c.l.s4 1983009808
      %v3477 = vunpack.c.0.s8 %v3476
      %v3478 = vlaneseq
      %v3479 = vshrl.u32 %v3478, 7
      %v3480 = vsub.s32 %v3477, %v3479
      %v3481 = vrot.slane %v3463, %v3480
      %v3483 = vunpack.c.l.s4 1983009808
      %v3484 = vunpack.c.0.s8 %v3483
      %v3485 = vlaneseq
      %v3486 = vshrl.u32 %v3485, 7
      %v3487 = vsub.s32 %v3484, %v3486
      %v3488 = vrot.slane %v3474, %v3487
      %v3489 = vcombine.high %v3469, 0
      %v3491 = vunpack.c.l.s4 1983009808
      %v3492 = vunpack.c.0.s8 %v3491
      %v3493 = vlaneseq
      %v3494 = vshrl.u32 %v3493, 7
      %v3495 = vsub.s32 %v3492, %v3494
      %v3496 = vrot.slane %v3469, %v3495
      %v3498 = vunpack.c.l.s4 1983009808
      %v3499 = vunpack.c.0.s8 %v3498
      %v3500 = vlaneseq
      %v3501 = vshrl.u32 %v3500, 7
      %v3502 = vsub.s32 %v3499, %v3501
      %v3503 = vrot.slane %v3489, %v3502
      %v3504 = vcombine.low %v3481, %v3496
      %v3505 = vcombine.high %v3481, %v3496
      %v3507 = vunpack.c.l.s4 1934713408
      %v3508 = vunpack.c.0.s8 %v3507
      %v3509 = vlaneseq
      %v3510 = vshrl.u32 %v3509, 7
      %v3511 = vsub.s32 %v3508, %v3510
      %v3512 = vrot.slane %v3504, %v3511
      %v3514 = vunpack.c.l.s4 1934713408
      %v3515 = vunpack.c.0.s8 %v3514
      %v3516 = vlaneseq
      %v3517 = vshrl.u32 %v3516, 7
      %v3518 = vsub.s32 %v3515, %v3517
      %v3519 = vrot.slane %v3505, %v3518
      %v3520 = vcombine.low %v3488, %v3503
      %v3521 = vcombine.high %v3488, %v3503
      %v3523 = vunpack.c.l.s4 1934713408
      %v3524 = vunpack.c.0.s8 %v3523
      %v3525 = vlaneseq
      %v3526 = vshrl.u32 %v3525, 7
      %v3527 = vsub.s32 %v3524, %v3526
      %v3528 = vrot.slane %v3520, %v3527
      %v3529 = vcombine.high %v3512, 0
      %v3530 = vcombine.high %v3519, 0
      %v3531 = vcombine.high %v3528, 0
      %v3533 = vunpack.c.l.s4 1934713408
      %v3534 = vunpack.c.0.s8 %v3533
      %v3535 = vlaneseq
      %v3536 = vshrl.u32 %v3535, 7
      %v3537 = vsub.s32 %v3534, %v3536
      %v3538 = vrot.slane %v3521, %v3537
      %v3539 = vcombine.high %v3466, 0
      %v3541 = vunpack.c.l.s4 1983009808
      %v3542 = vunpack.c.0.s8 %v3541
      %v3543 = vlaneseq
      %v3544 = vshrl.u32 %v3543, 7
      %v3545 = vsub.s32 %v3542, %v3544
      %v3546 = vrot.slane %v3466, %v3545
      %v3548 = vunpack.c.l.s4 1983009808
      %v3549 = vunpack.c.0.s8 %v3548
      %v3550 = vlaneseq
      %v3551 = vshrl.u32 %v3550, 7
      %v3552 = vsub.s32 %v3549, %v3551
      %v3553 = vrot.slane %v3539, %v3552
      %v3554 = vcombine.high %v3472, 0
      %v3556 = vunpack.c.l.s4 1983009808
      %v3557 = vunpack.c.0.s8 %v3556
      %v3558 = vlaneseq
      %v3559 = vshrl.u32 %v3558, 7
      %v3560 = vsub.s32 %v3557, %v3559
      %v3561 = vrot.slane %v3472, %v3560
      %v3563 = vunpack.c.l.s4 1983009808
      %v3564 = vunpack.c.0.s8 %v3563
      %v3565 = vlaneseq
      %v3566 = vshrl.u32 %v3565, 7
      %v3567 = vsub.s32 %v3564, %v3566
      %v3568 = vrot.slane %v3554, %v3567
      %v3569 = vcombine.low %v3546, %v3561
      %v3570 = vcombine.high %v3546, %v3561
      %v3572 = vunpack.c.l.s4 1934713408
      %v3573 = vunpack.c.0.s8 %v3572
      %v3574 = vlaneseq
      %v3575 = vshrl.u32 %v3574, 7
      %v3576 = vsub.s32 %v3573, %v3575
      %v3577 = vrot.slane %v3569, %v3576
      %v3579 = vunpack.c.l.s4 1934713408
      %v3580 = vunpack.c.0.s8 %v3579
      %v3581 = vlaneseq
      %v3582 = vshrl.u32 %v3581, 7
      %v3583 = vsub.s32 %v3580, %v3582
      %v3584 = vrot.slane %v3570, %v3583
      %v3585 = vcombine.low %v3553, %v3568
      %v3586 = vcombine.high %v3553, %v3568
      %v3588 = vunpack.c.l.s4 1934713408
      %v3589 = vunpack.c.0.s8 %v3588
      %v3590 = vlaneseq
      %v3591 = vshrl.u32 %v3590, 7
      %v3592 = vsub.s32 %v3589, %v3591
      %v3593 = vrot.slane %v3585, %v3592
      %v3594 = vcombine.high %v3577, 0
      %v3595 = vcombine.high %v3584, 0
      %v3596 = vcombine.high %v3593, 0
      %v3598 = vunpack.c.l.s4 1934713408
      %v3599 = vunpack.c.0.s8 %v3598
      %v3600 = vlaneseq
      %v3601 = vshrl.u32 %v3600, 7
      %v3602 = vsub.s32 %v3599, %v3601
      %v3603 = vrot.slane %v3586, %v3602
      %v3606 = vpack.i.b16 %v3577, %v3512
      %v3608 = vshrl.u32 %v3512, 16
      %v3609 = vshrl.u32 %v3577, 16
      %v3610 = vpack.i.b16 %v3609, %v3608
      %v3614 = vpack.i.b16 %v3594, %v3529
      %v3616 = vshrl.u32 %v3529, 16
      %v3617 = vshrl.u32 %v3594, 16
      %v3618 = vpack.i.b16 %v3617, %v3616
      %v3622 = vpack.i.b16 %v3584, %v3519
      %v3624 = vshrl.u32 %v3519, 16
      %v3625 = vshrl.u32 %v3584, 16
      %v3626 = vpack.i.b16 %v3625, %v3624
      %v3630 = vpack.i.b16 %v3595, %v3530
      %v3632 = vshrl.u32 %v3530, 16
      %v3633 = vshrl.u32 %v3595, 16
      %v3634 = vpack.i.b16 %v3633, %v3632
      %v3638 = vpack.i.b16 %v3593, %v3528
      %v3640 = vshrl.u32 %v3528, 16
      %v3641 = vshrl.u32 %v3593, 16
      %v3642 = vpack.i.b16 %v3641, %v3640
      %v3646 = vpack.i.b16 %v3596, %v3531
      %v3647 = vshrl.u32 %v3531, 16
      %v3648 = vshrl.u32 %v3596, 16
      %v3649 = vpack.i.b16 %v3648, %v3647
      %v3652 = vpack.i.b16 %v3603, %v3538
      %v3654 = vshrl.u32 %v3538, 16
      %v3655 = vshrl.u32 %v3603, 16
      %v3656 = vpack.i.b16 %v3655, %v3654
      %v3658 = vcombine.low %v3606, %v3622
      %v3660 = vunpack.c.l.s4 1983009808
      %v3661 = vunpack.c.0.s8 %v3660
      %v3662 = vlaneseq
      %v3663 = vshrl.u32 %v3662, 7
      %v3664 = vsub.s32 %v3661, %v3663
      %v3665 = vrot.slane %v3658, %v3664
      %v3666 = vcombine.low %v3614, %v3630
      %v3668 = vunpack.c.l.s4 1983009808
      %v3669 = vunpack.c.0.s8 %v3668
      %v3670 = vlaneseq
      %v3671 = vshrl.u32 %v3670, 7
      %v3672 = vsub.s32 %v3669, %v3671
      %v3673 = vrot.slane %v3666, %v3672
      %v3674 = vcombine.low %v3638, %v3652
      %v3676 = vunpack.c.l.s4 1983009808
      %v3677 = vunpack.c.0.s8 %v3676
      %v3678 = vlaneseq
      %v3679 = vshrl.u32 %v3678, 7
      %v3680 = vsub.s32 %v3677, %v3679
      %v3681 = vrot.slane %v3674, %v3680
      %v3683 = vcombine.low %v3665, %v3673
      %v3685 = vunpack.c.l.s4 1934713408
      %v3686 = vunpack.c.0.s8 %v3685
      %v3687 = vlaneseq
      %v3688 = vshrl.u32 %v3687, 7
      %v3689 = vsub.s32 %v3686, %v3688
      %v3690 = vrot.slane %v3683, %v3689
      %v3691 = vcombine.low %v3681, %v3646
      %v3693 = vunpack.c.l.s4 1934713408
      %v3694 = vunpack.c.0.s8 %v3693
      %v3695 = vlaneseq
      %v3696 = vshrl.u32 %v3695, 7
      %v3697 = vsub.s32 %v3694, %v3696
      %v3698 = vrot.slane %v3691, %v3697
      %v3699 = vcombine.low %v3690, %v3698
      %v3700 = vcombine.high %v3690, %v3698
      %v3701 = vcombine.low %v3610, %v3626
      %v3703 = vunpack.c.l.s4 1983009808
      %v3704 = vunpack.c.0.s8 %v3703
      %v3705 = vlaneseq
      %v3706 = vshrl.u32 %v3705, 7
      %v3707 = vsub.s32 %v3704, %v3706
      %v3708 = vrot.slane %v3701, %v3707
      %v3709 = vcombine.low %v3618, %v3634
      %v3711 = vunpack.c.l.s4 1983009808
      %v3712 = vunpack.c.0.s8 %v3711
      %v3713 = vlaneseq
      %v3714 = vshrl.u32 %v3713, 7
      %v3715 = vsub.s32 %v3712, %v3714
      %v3716 = vrot.slane %v3709, %v3715
      %v3717 = vcombine.low %v3642, %v3656
      %v3719 = vunpack.c.l.s4 1983009808
      %v3720 = vunpack.c.0.s8 %v3719
      %v3721 = vlaneseq
      %v3722 = vshrl.u32 %v3721, 7
      %v3723 = vsub.s32 %v3720, %v3722
      %v3724 = vrot.slane %v3717, %v3723
      %v3726 = vcombine.low %v3708, %v3716
      %v3728 = vunpack.c.l.s4 1934713408
      %v3729 = vunpack.c.0.s8 %v3728
      %v3730 = vlaneseq
      %v3731 = vshrl.u32 %v3730, 7
      %v3732 = vsub.s32 %v3729, %v3731
      %v3733 = vrot.slane %v3726, %v3732
      %v3734 = vcombine.low %v3724, %v3649
      %v3736 = vunpack.c.l.s4 1934713408
      %v3737 = vunpack.c.0.s8 %v3736
      %v3738 = vlaneseq
      %v3739 = vshrl.u32 %v3738, 7
      %v3740 = vsub.s32 %v3737, %v3739
      %v3741 = vrot.slane %v3734, %v3740
      %v3742 = vcombine.low %v3733, %v3741
      %v3743 = vcombine.high %v3733, %v3741
      %v3746 = vpack.i.b16 %v3742, %v3699
      %v3747 = vshrl.u32 %v3699, 16
      %v3748 = vshrl.u32 %v3742, 16
      %v3749 = vpack.i.b16 %v3748, %v3747
      %v3752 = vpack.i.b16 %v3743, %v3700
      %v3753 = vshrl.u32 %v3700, 16
      %v3754 = vshrl.u32 %v3743, 16
      %v3755 = vpack.i.b16 %v3754, %v3753
      %3756 = vrot.lane.b32.xlu0 %v3463, 96
      %v3757 = vpop.permute.xlu0 %3756
      %3758 = vrot.lane.b32.xlu0 %v3466, 96
      %v3759 = vpop.permute.xlu0 %3758
      %3760 = vrot.lane.b32.xlu0 %v3469, 96
      %v3761 = vpop.permute.xlu0 %3760
      %3762 = vrot.lane.b32.xlu0 %v3472, 96
      %v3763 = vpop.permute.xlu0 %3762
      %v3768 = vcombine.high %v3757, 0
      %v3770 = vunpack.c.l.s4 1983009808
      %v3771 = vunpack.c.0.s8 %v3770
      %v3772 = vlaneseq
      %v3773 = vshrl.u32 %v3772, 7
      %v3774 = vsub.s32 %v3771, %v3773
      %v3775 = vrot.slane %v3757, %v3774
      %v3777 = vunpack.c.l.s4 1983009808
      %v3778 = vunpack.c.0.s8 %v3777
      %v3779 = vlaneseq
      %v3780 = vshrl.u32 %v3779, 7
      %v3781 = vsub.s32 %v3778, %v3780
      %v3782 = vrot.slane %v3768, %v3781
      %v3783 = vcombine.high %v3761, 0
      %v3785 = vunpack.c.l.s4 1983009808
      %v3786 = vunpack.c.0.s8 %v3785
      %v3787 = vlaneseq
      %v3788 = vshrl.u32 %v3787, 7
      %v3789 = vsub.s32 %v3786, %v3788
      %v3790 = vrot.slane %v3761, %v3789
      %v3792 = vunpack.c.l.s4 1983009808
      %v3793 = vunpack.c.0.s8 %v3792
      %v3794 = vlaneseq
      %v3795 = vshrl.u32 %v3794, 7
      %v3796 = vsub.s32 %v3793, %v3795
      %v3797 = vrot.slane %v3783, %v3796
      %v3798 = vcombine.low %v3775, %v3790
      %v3799 = vcombine.high %v3775, %v3790
      %v3801 = vunpack.c.l.s4 1934713408
      %v3802 = vunpack.c.0.s8 %v3801
      %v3803 = vlaneseq
      %v3804 = vshrl.u32 %v3803, 7
      %v3805 = vsub.s32 %v3802, %v3804
      %v3806 = vrot.slane %v3798, %v3805
      %v3808 = vunpack.c.l.s4 1934713408
      %v3809 = vunpack.c.0.s8 %v3808
      %v3810 = vlaneseq
      %v3811 = vshrl.u32 %v3810, 7
      %v3812 = vsub.s32 %v3809, %v3811
      %v3813 = vrot.slane %v3799, %v3812
      %v3814 = vcombine.low %v3782, %v3797
      %v3815 = vcombine.high %v3782, %v3797
      %v3817 = vunpack.c.l.s4 1934713408
      %v3818 = vunpack.c.0.s8 %v3817
      %v3819 = vlaneseq
      %v3820 = vshrl.u32 %v3819, 7
      %v3821 = vsub.s32 %v3818, %v3820
      %v3822 = vrot.slane %v3814, %v3821
      %v3823 = vcombine.high %v3806, 0
      %v3824 = vcombine.high %v3813, 0
      %v3825 = vcombine.high %v3822, 0
      %v3827 = vunpack.c.l.s4 1934713408
      %v3828 = vunpack.c.0.s8 %v3827
      %v3829 = vlaneseq
      %v3830 = vshrl.u32 %v3829, 7
      %v3831 = vsub.s32 %v3828, %v3830
      %v3832 = vrot.slane %v3815, %v3831
      %v3833 = vcombine.high %v3759, 0
      %v3835 = vunpack.c.l.s4 1983009808
      %v3836 = vunpack.c.0.s8 %v3835
      %v3837 = vlaneseq
      %v3838 = vshrl.u32 %v3837, 7
      %v3839 = vsub.s32 %v3836, %v3838
      %v3840 = vrot.slane %v3759, %v3839
      %v3842 = vunpack.c.l.s4 1983009808
      %v3843 = vunpack.c.0.s8 %v3842
      %v3844 = vlaneseq
      %v3845 = vshrl.u32 %v3844, 7
      %v3846 = vsub.s32 %v3843, %v3845
      %v3847 = vrot.slane %v3833, %v3846
      %v3848 = vcombine.high %v3763, 0
      %v3850 = vunpack.c.l.s4 1983009808
      %v3851 = vunpack.c.0.s8 %v3850
      %v3852 = vlaneseq
      %v3853 = vshrl.u32 %v3852, 7
      %v3854 = vsub.s32 %v3851, %v3853
      %v3855 = vrot.slane %v3763, %v3854
      %v3857 = vunpack.c.l.s4 1983009808
      %v3858 = vunpack.c.0.s8 %v3857
      %v3859 = vlaneseq
      %v3860 = vshrl.u32 %v3859, 7
      %v3861 = vsub.s32 %v3858, %v3860
      %v3862 = vrot.slane %v3848, %v3861
      %v3863 = vcombine.low %v3840, %v3855
      %v3864 = vcombine.high %v3840, %v3855
      %v3866 = vunpack.c.l.s4 1934713408
      %v3867 = vunpack.c.0.s8 %v3866
      %v3868 = vlaneseq
      %v3869 = vshrl.u32 %v3868, 7
      %v3870 = vsub.s32 %v3867, %v3869
      %v3871 = vrot.slane %v3863, %v3870
      %v3873 = vunpack.c.l.s4 1934713408
      %v3874 = vunpack.c.0.s8 %v3873
      %v3875 = vlaneseq
      %v3876 = vshrl.u32 %v3875, 7
      %v3877 = vsub.s32 %v3874, %v3876
      %v3878 = vrot.slane %v3864, %v3877
      %v3879 = vcombine.low %v3847, %v3862
      %v3880 = vcombine.high %v3847, %v3862
      %v3882 = vunpack.c.l.s4 1934713408
      %v3883 = vunpack.c.0.s8 %v3882
      %v3884 = vlaneseq
      %v3885 = vshrl.u32 %v3884, 7
      %v3886 = vsub.s32 %v3883, %v3885
      %v3887 = vrot.slane %v3879, %v3886
      %v3888 = vcombine.high %v3871, 0
      %v3889 = vcombine.high %v3878, 0
      %v3890 = vcombine.high %v3887, 0
      %v3892 = vunpack.c.l.s4 1934713408
      %v3893 = vunpack.c.0.s8 %v3892
      %v3894 = vlaneseq
      %v3895 = vshrl.u32 %v3894, 7
      %v3896 = vsub.s32 %v3893, %v3895
      %v3897 = vrot.slane %v3880, %v3896
      %v3900 = vpack.i.b16 %v3871, %v3806
      %v3902 = vshrl.u32 %v3806, 16
      %v3903 = vshrl.u32 %v3871, 16
      %v3904 = vpack.i.b16 %v3903, %v3902
      %v3908 = vpack.i.b16 %v3888, %v3823
      %v3910 = vshrl.u32 %v3823, 16
      %v3911 = vshrl.u32 %v3888, 16
      %v3912 = vpack.i.b16 %v3911, %v3910
      %v3916 = vpack.i.b16 %v3878, %v3813
      %v3918 = vshrl.u32 %v3813, 16
      %v3919 = vshrl.u32 %v3878, 16
      %v3920 = vpack.i.b16 %v3919, %v3918
      %v3924 = vpack.i.b16 %v3889, %v3824
      %v3926 = vshrl.u32 %v3824, 16
      %v3927 = vshrl.u32 %v3889, 16
      %v3928 = vpack.i.b16 %v3927, %v3926
      %v3932 = vpack.i.b16 %v3887, %v3822
      %v3934 = vshrl.u32 %v3822, 16
      %v3935 = vshrl.u32 %v3887, 16
      %v3936 = vpack.i.b16 %v3935, %v3934
      %v3940 = vpack.i.b16 %v3890, %v3825
      %v3941 = vshrl.u32 %v3825, 16
      %v3942 = vshrl.u32 %v3890, 16
      %v3943 = vpack.i.b16 %v3942, %v3941
      %v3946 = vpack.i.b16 %v3897, %v3832
      %v3948 = vshrl.u32 %v3832, 16
      %v3949 = vshrl.u32 %v3897, 16
      %v3950 = vpack.i.b16 %v3949, %v3948
      %v3952 = vcombine.low %v3900, %v3916
      %v3954 = vunpack.c.l.s4 1983009808
      %v3955 = vunpack.c.0.s8 %v3954
      %v3956 = vlaneseq
      %v3957 = vshrl.u32 %v3956, 7
      %v3958 = vsub.s32 %v3955, %v3957
      %v3959 = vrot.slane %v3952, %v3958
      %v3960 = vcombine.low %v3908, %v3924
      %v3962 = vunpack.c.l.s4 1983009808
      %v3963 = vunpack.c.0.s8 %v3962
      %v3964 = vlaneseq
      %v3965 = vshrl.u32 %v3964, 7
      %v3966 = vsub.s32 %v3963, %v3965
      %v3967 = vrot.slane %v3960, %v3966
      %v3968 = vcombine.low %v3932, %v3946
      %v3970 = vunpack.c.l.s4 1983009808
      %v3971 = vunpack.c.0.s8 %v3970
      %v3972 = vlaneseq
      %v3973 = vshrl.u32 %v3972, 7
      %v3974 = vsub.s32 %v3971, %v3973
      %v3975 = vrot.slane %v3968, %v3974
      %v3977 = vcombine.low %v3959, %v3967
      %v3979 = vunpack.c.l.s4 1934713408
      %v3980 = vunpack.c.0.s8 %v3979
      %v3981 = vlaneseq
      %v3982 = vshrl.u32 %v3981, 7
      %v3983 = vsub.s32 %v3980, %v3982
      %v3984 = vrot.slane %v3977, %v3983
      %v3985 = vcombine.low %v3975, %v3940
      %v3987 = vunpack.c.l.s4 1934713408
      %v3988 = vunpack.c.0.s8 %v3987
      %v3989 = vlaneseq
      %v3990 = vshrl.u32 %v3989, 7
      %v3991 = vsub.s32 %v3988, %v3990
      %v3992 = vrot.slane %v3985, %v3991
      %v3993 = vcombine.low %v3984, %v3992
      %v3994 = vcombine.high %v3984, %v3992
      %v3995 = vcombine.low %v3904, %v3920
      %v3997 = vunpack.c.l.s4 1983009808
      %v3998 = vunpack.c.0.s8 %v3997
      %v3999 = vlaneseq
      %v4000 = vshrl.u32 %v3999, 7
      %v4001 = vsub.s32 %v3998, %v4000
      %v4002 = vrot.slane %v3995, %v4001
      %v4003 = vcombine.low %v3912, %v3928
      %v4005 = vunpack.c.l.s4 1983009808
      %v4006 = vunpack.c.0.s8 %v4005
      %v4007 = vlaneseq
      %v4008 = vshrl.u32 %v4007, 7
      %v4009 = vsub.s32 %v4006, %v4008
      %v4010 = vrot.slane %v4003, %v4009
      %v4011 = vcombine.low %v3936, %v3950
      %v4013 = vunpack.c.l.s4 1983009808
      %v4014 = vunpack.c.0.s8 %v4013
      %v4015 = vlaneseq
      %v4016 = vshrl.u32 %v4015, 7
      %v4017 = vsub.s32 %v4014, %v4016
      %v4018 = vrot.slane %v4011, %v4017
      %v4020 = vcombine.low %v4002, %v4010
      %v4022 = vunpack.c.l.s4 1934713408
      %v4023 = vunpack.c.0.s8 %v4022
      %v4024 = vlaneseq
      %v4025 = vshrl.u32 %v4024, 7
      %v4026 = vsub.s32 %v4023, %v4025
      %v4027 = vrot.slane %v4020, %v4026
      %v4028 = vcombine.low %v4018, %v3943
      %v4030 = vunpack.c.l.s4 1934713408
      %v4031 = vunpack.c.0.s8 %v4030
      %v4032 = vlaneseq
      %v4033 = vshrl.u32 %v4032, 7
      %v4034 = vsub.s32 %v4031, %v4033
      %v4035 = vrot.slane %v4028, %v4034
      %v4036 = vcombine.low %v4027, %v4035
      %v4037 = vcombine.high %v4027, %v4035
      %v4040 = vpack.i.b16 %v4036, %v3993
      %v4041 = vshrl.u32 %v3993, 16
      %v4042 = vshrl.u32 %v4036, 16
      %v4043 = vpack.i.b16 %v4042, %v4041
      %v4046 = vpack.i.b16 %v4037, %v3994
      %v4047 = vshrl.u32 %v3994, 16
      %v4048 = vshrl.u32 %v4037, 16
      %v4049 = vpack.i.b16 %v4048, %v4047
      %v4050 = vld [vmem:[%s1010] sm:$0x1]
      %vm4051 = vcmp.gt.f32.partialorder %v4050, 0.0
      %v4052 = vsel %vm4051, -1e+18, 0.0
      %v4053 = vld [vmem:[%s1013] sm:$0x1]
      %vm4054 = vcmp.gt.f32.partialorder %v4053, 0.0
      %v4055 = vsel %vm4054, -1e+18, 0.0
      %v4056 = vld [vmem:[%s1016] sm:$0x1]
      %vm4057 = vcmp.gt.f32.partialorder %v4056, 0.0
      %v4058 = vsel %vm4057, -1e+18, 0.0
      %v4059 = vmul.f32 %v2421, 0.35355338
      %v4060 = vpack.c.bf16 %v4059, %v4059
      %4062 = vrot.lane.b32.xlu0 %v4060, 120
      %v4063 = vpop.permute.xlu0 %4062
      %4064 = vrot.lane.b32.xlu0 %v4060, 112
      %v4065 = vpop.permute.xlu0 %4064
      %4066 = vrot.lane.b32.xlu0 %v4060, 104
      %v4067 = vpop.permute.xlu0 %4066
      %v4069 = vunpack.c.l.s4 1983009808
      %v4070 = vunpack.c.0.s8 %v4069
      %v4071 = vlaneseq
      %v4072 = vshrl.u32 %v4071, 7
      %v4073 = vsub.s32 %v4070, %v4072
      %v4074 = vrot.slane %v4060, %v4073
      %v4077 = vunpack.c.l.s4 1983009808
      %v4078 = vunpack.c.0.s8 %v4077
      %v4079 = vlaneseq
      %v4080 = vshrl.u32 %v4079, 7
      %v4081 = vsub.s32 %v4078, %v4080
      %v4082 = vrot.slane %v4065, %v4081
      %v4083 = vcombine.low %v4074, %v4082
      %v4084 = vcombine.high %v4074, %v4082
      %v4086 = vunpack.c.l.s4 1934713408
      %v4087 = vunpack.c.0.s8 %v4086
      %v4088 = vlaneseq
      %v4089 = vshrl.u32 %v4088, 7
      %v4090 = vsub.s32 %v4087, %v4089
      %v4091 = vrot.slane %v4083, %v4090
      %v4093 = vunpack.c.l.s4 1934713408
      %v4094 = vunpack.c.0.s8 %v4093
      %v4095 = vlaneseq
      %v4096 = vshrl.u32 %v4095, 7
      %v4097 = vsub.s32 %v4094, %v4096
      %v4098 = vrot.slane %v4084, %v4097
      %v4099 = vcombine.high %v4091, 0
      %v4100 = vcombine.high %v4098, 0
      %v4103 = vunpack.c.l.s4 1983009808
      %v4104 = vunpack.c.0.s8 %v4103
      %v4105 = vlaneseq
      %v4106 = vshrl.u32 %v4105, 7
      %v4107 = vsub.s32 %v4104, %v4106
      %v4108 = vrot.slane %v4063, %v4107
      %v4111 = vunpack.c.l.s4 1983009808
      %v4112 = vunpack.c.0.s8 %v4111
      %v4113 = vlaneseq
      %v4114 = vshrl.u32 %v4113, 7
      %v4115 = vsub.s32 %v4112, %v4114
      %v4116 = vrot.slane %v4067, %v4115
      %v4117 = vcombine.low %v4108, %v4116
      %v4118 = vcombine.high %v4108, %v4116
      %v4120 = vunpack.c.l.s4 1934713408
      %v4121 = vunpack.c.0.s8 %v4120
      %v4122 = vlaneseq
      %v4123 = vshrl.u32 %v4122, 7
      %v4124 = vsub.s32 %v4121, %v4123
      %v4125 = vrot.slane %v4117, %v4124
      %v4127 = vunpack.c.l.s4 1934713408
      %v4128 = vunpack.c.0.s8 %v4127
      %v4129 = vlaneseq
      %v4130 = vshrl.u32 %v4129, 7
      %v4131 = vsub.s32 %v4128, %v4130
      %v4132 = vrot.slane %v4118, %v4131
      %v4133 = vcombine.high %v4125, 0
      %v4134 = vcombine.high %v4132, 0
      %v4137 = vpack.i.b16 %v4125, %v4091
      %v4139 = vshrl.u32 %v4091, 16
      %v4140 = vshrl.u32 %v4125, 16
      %v4141 = vpack.i.b16 %v4140, %v4139
      %v4145 = vpack.i.b16 %v4133, %v4099
      %v4147 = vshrl.u32 %v4099, 16
      %v4148 = vshrl.u32 %v4133, 16
      %v4149 = vpack.i.b16 %v4148, %v4147
      %v4153 = vpack.i.b16 %v4132, %v4098
      %v4155 = vshrl.u32 %v4098, 16
      %v4156 = vshrl.u32 %v4132, 16
      %v4157 = vpack.i.b16 %v4156, %v4155
      %v4161 = vpack.i.b16 %v4134, %v4100
      %v4163 = vshrl.u32 %v4100, 16
      %v4164 = vshrl.u32 %v4134, 16
      %v4165 = vpack.i.b16 %v4164, %v4163
      %v4167 = vcombine.low %v4137, %v4153
      %v4169 = vunpack.c.l.s4 1983009808
      %v4170 = vunpack.c.0.s8 %v4169
      %v4171 = vlaneseq
      %v4172 = vshrl.u32 %v4171, 7
      %v4173 = vsub.s32 %v4170, %v4172
      %v4174 = vrot.slane %v4167, %v4173
      %v4175 = vcombine.low %v4145, %v4161
      %v4177 = vunpack.c.l.s4 1983009808
      %v4178 = vunpack.c.0.s8 %v4177
      %v4179 = vlaneseq
      %v4180 = vshrl.u32 %v4179, 7
      %v4181 = vsub.s32 %v4178, %v4180
      %v4182 = vrot.slane %v4175, %v4181
      %v4183 = vcombine.low %v4174, %v4182
      %v4185 = vunpack.c.l.s4 1934713408
      %v4186 = vunpack.c.0.s8 %v4185
      %v4187 = vlaneseq
      %v4188 = vshrl.u32 %v4187, 7
      %v4189 = vsub.s32 %v4186, %v4188
      %v4190 = vrot.slane %v4183, %v4189
      %v4191 = vcombine.high %v4190, 0
      %v4192 = vcombine.low %v4141, %v4157
      %v4194 = vunpack.c.l.s4 1983009808
      %v4195 = vunpack.c.0.s8 %v4194
      %v4196 = vlaneseq
      %v4197 = vshrl.u32 %v4196, 7
      %v4198 = vsub.s32 %v4195, %v4197
      %v4199 = vrot.slane %v4192, %v4198
      %v4200 = vcombine.low %v4149, %v4165
      %v4202 = vunpack.c.l.s4 1983009808
      %v4203 = vunpack.c.0.s8 %v4202
      %v4204 = vlaneseq
      %v4205 = vshrl.u32 %v4204, 7
      %v4206 = vsub.s32 %v4203, %v4205
      %v4207 = vrot.slane %v4200, %v4206
      %v4208 = vcombine.low %v4199, %v4207
      %v4210 = vunpack.c.l.s4 1934713408
      %v4211 = vunpack.c.0.s8 %v4210
      %v4212 = vlaneseq
      %v4213 = vshrl.u32 %v4212, 7
      %v4214 = vsub.s32 %v4211, %v4213
      %v4215 = vrot.slane %v4208, %v4214
      %v4216 = vcombine.high %v4215, 0
      %v4219 = vpack.i.b16 %v4215, %v4190
      %v4220 = vshrl.u32 %v4190, 16
      %v4221 = vshrl.u32 %v4215, 16
      %v4222 = vpack.i.b16 %v4221, %v4220
      %v4225 = vpack.i.b16 %v4216, %v4191
      %v4226 = vshrl.u32 %v4191, 16
      %v4227 = vshrl.u32 %v4216, 16
      %v4228 = vpack.i.b16 %v4227, %v4226
      %v4230 = vlaneseq
      %v4231 = vshrl.u32 %v4230, 7
      %v4232 = vsub.s32 0, %v4231
      %v4233 = vrot.slane %v4052, %v4232
      %v4236 = vsel %vm1664, %v4219, 0
      %v4239 = vsel %vm1664, %v2706, 0
      %4241 = vmatprep.subr.bf16.mxu0 0
      %4242 = vmatpush1.bf16.xpose.msra.mxu0 %v4239
      %4243 = vmatprep.subr.bf16.mxu0 0
      %4244 = vmatpush1.bf16.xpose.msra.mxu0 0
      %4245 = vmatprep.subr.bf16.mxu0 0
      %4246 = vmatpush1.bf16.xpose.msra.mxu0 0
      %4247 = vmatprep.subr.bf16.mxu0 0
      %4248 = vmatpush1.bf16.xpose.msra.mxu0 0
      %4249 = vmatprep.subr.bf16.mxu0 0
      %4250 = vmatpush1.bf16.xpose.msra.mxu0 0
      %4251 = vmatprep.subr.bf16.mxu0 0
      %4252 = vmatpush1.bf16.xpose.msra.mxu0 0
      %4253 = vmatprep.subr.bf16.mxu0 0
      %4254 = vmatpush1.bf16.xpose.msra.mxu0 0
      %4255 = vmatprep.subr.bf16.mxu0 0
      %4256 = vmatpush1.bf16.xpose.msra.mxu0 0
      %4257 = vmatprep.subr.bf16.mxu0 0
      %4258 = vmatpush1.bf16.xpose.msra.mxu0 0
      %4259 = vmatprep.subr.bf16.mxu0 0
      %4260 = vmatpush1.bf16.xpose.msra.mxu0 0
      %4261 = vmatprep.subr.bf16.mxu0 0
      %4262 = vmatpush1.bf16.xpose.msra.mxu0 0
      %4263 = vmatprep.subr.bf16.mxu0 0
      %4264 = vmatpush1.bf16.xpose.msra.mxu0 0
      %4265 = vmatprep.subr.bf16.mxu0 0
      %4266 = vmatpush1.bf16.xpose.msra.mxu0 0
      %4267 = vmatprep.subr.bf16.mxu0 0
      %4268 = vmatpush1.bf16.xpose.msra.mxu0 0
      %4269 = vmatprep.subr.bf16.mxu0 0
      %4270 = vmatpush1.bf16.xpose.msra.mxu0 0
      %4271 = vmatprep.subr.bf16.mxu0 0
      %4272 = vmatpush1.bf16.xpose.msra.mxu0 0
      %4273 = vmatprep.mubr.bf16.mxu0 0
      %4274 = vmatmul.mubr.bf16.gmra.mrb[0].mxu0 %v4236
      %v4275 = vpop.f32.mrb[0].mxu0
      %v4276 = vadd.f32 %v4233, %v4275
      %v4277 = vpop.f32.mrb[0].mxu0
      %v4278 = vpop.f32.mrb[0].mxu0
      %v4279 = vpop.f32.mrb[0].mxu0
      %4280 = vdwg.mxu0
      %v4282 = vsel %vm1664, %v4222, 0
      %v4285 = vsel %vm1664, %v2709, 0
      %4287 = vmatprep.subr.bf16.mxu0 0
      %4288 = vmatpush1.bf16.xpose.msra.mxu0 %v4285
      %4289 = vmatprep.subr.bf16.mxu0 0
      %4290 = vmatpush1.bf16.xpose.msra.mxu0 0
      %4291 = vmatprep.subr.bf16.mxu0 0
      %4292 = vmatpush1.bf16.xpose.msra.mxu0 0
      %4293 = vmatprep.subr.bf16.mxu0 0
      %4294 = vmatpush1.bf16.xpose.msra.mxu0 0
      %4295 = vmatprep.subr.bf16.mxu0 0
      %4296 = vmatpush1.bf16.xpose.msra.mxu0 0
      %4297 = vmatprep.subr.bf16.mxu0 0
      %4298 = vmatpush1.bf16.xpose.msra.mxu0 0
      %4299 = vmatprep.subr.bf16.mxu0 0
      %4300 = vmatpush1.bf16.xpose.msra.mxu0 0
      %4301 = vmatprep.subr.bf16.mxu0 0
      %4302 = vmatpush1.bf16.xpose.msra.mxu0 0
      %4303 = vmatprep.subr.bf16.mxu0 0
      %4304 = vmatpush1.bf16.xpose.msra.mxu0 0
      %4305 = vmatprep.subr.bf16.mxu0 0
      %4306 = vmatpush1.bf16.xpose.msra.mxu0 0
      %4307 = vmatprep.subr.bf16.mxu0 0
      %4308 = vmatpush1.bf16.xpose.msra.mxu0 0
      %4309 = vmatprep.subr.bf16.mxu0 0
      %4310 = vmatpush1.bf16.xpose.msra.mxu0 0
      %4311 = vmatprep.subr.bf16.mxu0 0
      %4312 = vmatpush1.bf16.xpose.msra.mxu0 0
      %4313 = vmatprep.subr.bf16.mxu0 0
      %4314 = vmatpush1.bf16.xpose.msra.mxu0 0
      %4315 = vmatprep.subr.bf16.mxu0 0
      %4316 = vmatpush1.bf16.xpose.msra.mxu0 0
      %4317 = vmatprep.subr.bf16.mxu0 0
      %4318 = vmatpush1.bf16.xpose.msra.mxu0 0
      %4319 = vmatprep.mubr.bf16.mxu0 0
      %4320 = vmatmul.mubr.bf16.gmra.mrb[0].mxu0 %v4282
      %v4321 = vpop.f32.mrb[0].mxu0
      %v4322 = vadd.f32 %v4233, %v4321
      %v4323 = vpop.f32.mrb[0].mxu0
      %v4324 = vpop.f32.mrb[0].mxu0
      %v4325 = vpop.f32.mrb[0].mxu0
      %4326 = vdwg.mxu0
      %v4328 = vsel %vm1664, %v4225, 0
      %v4331 = vsel %vm1664, %v2712, 0
      %4333 = vmatprep.subr.bf16.mxu0 0
      %4334 = vmatpush1.bf16.xpose.msra.mxu0 %v4331
      %4335 = vmatprep.subr.bf16.mxu0 0
      %4336 = vmatpush1.bf16.xpose.msra.mxu0 0
      %4337 = vmatprep.subr.bf16.mxu0 0
      %4338 = vmatpush1.bf16.xpose.msra.mxu0 0
      %4339 = vmatprep.subr.bf16.mxu0 0
      %4340 = vmatpush1.bf16.xpose.msra.mxu0 0
      %4341 = vmatprep.subr.bf16.mxu0 0
      %4342 = vmatpush1.bf16.xpose.msra.mxu0 0
      %4343 = vmatprep.subr.bf16.mxu0 0
      %4344 = vmatpush1.bf16.xpose.msra.mxu0 0
      %4345 = vmatprep.subr.bf16.mxu0 0
      %4346 = vmatpush1.bf16.xpose.msra.mxu0 0
      %4347 = vmatprep.subr.bf16.mxu0 0
      %4348 = vmatpush1.bf16.xpose.msra.mxu0 0
      %4349 = vmatprep.subr.bf16.mxu0 0
      %4350 = vmatpush1.bf16.xpose.msra.mxu0 0
      %4351 = vmatprep.subr.bf16.mxu0 0
      %4352 = vmatpush1.bf16.xpose.msra.mxu0 0
      %4353 = vmatprep.subr.bf16.mxu0 0
      %4354 = vmatpush1.bf16.xpose.msra.mxu0 0
      %4355 = vmatprep.subr.bf16.mxu0 0
      %4356 = vmatpush1.bf16.xpose.msra.mxu0 0
      %4357 = vmatprep.subr.bf16.mxu0 0
      %4358 = vmatpush1.bf16.xpose.msra.mxu0 0
      %4359 = vmatprep.subr.bf16.mxu0 0
      %4360 = vmatpush1.bf16.xpose.msra.mxu0 0
      %4361 = vmatprep.subr.bf16.mxu0 0
      %4362 = vmatpush1.bf16.xpose.msra.mxu0 0
      %4363 = vmatprep.subr.bf16.mxu0 0
      %4364 = vmatpush1.bf16.xpose.msra.mxu0 0
      %4365 = vmatprep.mubr.bf16.mxu0 0
      %4366 = vmatmul.mubr.bf16.gmra.mrb[0].mxu0 %v4328
      %v4367 = vpop.f32.mrb[0].mxu0
      %v4368 = vadd.f32 %v4233, %v4367
      %v4369 = vpop.f32.mrb[0].mxu0
      %v4370 = vpop.f32.mrb[0].mxu0
      %v4371 = vpop.f32.mrb[0].mxu0
      %4372 = vdwg.mxu0
      %v4374 = vsel %vm1664, %v4228, 0
      %v4377 = vsel %vm1664, %v2715, 0
      %4379 = vmatprep.subr.bf16.mxu0 0
      %4380 = vmatpush1.bf16.xpose.msra.mxu0 %v4377
      %4381 = vmatprep.subr.bf16.mxu0 0
      %4382 = vmatpush1.bf16.xpose.msra.mxu0 0
      %4383 = vmatprep.subr.bf16.mxu0 0
      %4384 = vmatpush1.bf16.xpose.msra.mxu0 0
      %4385 = vmatprep.subr.bf16.mxu0 0
      %4386 = vmatpush1.bf16.xpose.msra.mxu0 0
      %4387 = vmatprep.subr.bf16.mxu0 0
      %4388 = vmatpush1.bf16.xpose.msra.mxu0 0
      %4389 = vmatprep.subr.bf16.mxu0 0
      %4390 = vmatpush1.bf16.xpose.msra.mxu0 0
      %4391 = vmatprep.subr.bf16.mxu0 0
      %4392 = vmatpush1.bf16.xpose.msra.mxu0 0
      %4393 = vmatprep.subr.bf16.mxu0 0
      %4394 = vmatpush1.bf16.xpose.msra.mxu0 0
      %4395 = vmatprep.subr.bf16.mxu0 0
      %4396 = vmatpush1.bf16.xpose.msra.mxu0 0
      %4397 = vmatprep.subr.bf16.mxu0 0
      %4398 = vmatpush1.bf16.xpose.msra.mxu0 0
      %4399 = vmatprep.subr.bf16.mxu0 0
      %4400 = vmatpush1.bf16.xpose.msra.mxu0 0
      %4401 = vmatprep.subr.bf16.mxu0 0
      %4402 = vmatpush1.bf16.xpose.msra.mxu0 0
      %4403 = vmatprep.subr.bf16.mxu0 0
      %4404 = vmatpush1.bf16.xpose.msra.mxu0 0
      %4405 = vmatprep.subr.bf16.mxu0 0
      %4406 = vmatpush1.bf16.xpose.msra.mxu0 0
      %4407 = vmatprep.subr.bf16.mxu0 0
      %4408 = vmatpush1.bf16.xpose.msra.mxu0 0
      %4409 = vmatprep.subr.bf16.mxu0 0
      %4410 = vmatpush1.bf16.xpose.msra.mxu0 0
      %4411 = vmatprep.mubr.bf16.mxu0 0
      %4412 = vmatmul.mubr.bf16.gmra.mrb[0].mxu0 %v4374
      %v4413 = vpop.f32.mrb[0].mxu0
      %v4414 = vadd.f32 %v4233, %v4413
      %v4415 = vpop.f32.mrb[0].mxu0
      %v4416 = vpop.f32.mrb[0].mxu0
      %v4417 = vpop.f32.mrb[0].mxu0
      %4418 = vdwg.mxu0
      %vm4419 = vcmask 97280
      %v4420 = vsel %vm4419, %v4276, -inf
      %4421 = vmax.xlane.f32.xlu0 %v4420
      %v4422 = vpop.xlane.xlu0 %4421
      %v4423 = vsel %vm4419, %v4322, -inf
      %4424 = vmax.xlane.f32.xlu0 %v4423
      %v4425 = vpop.xlane.xlu0 %4424
      %v4426 = vsel %vm4419, %v4368, -inf
      %4427 = vmax.xlane.f32.xlu0 %v4426
      %v4428 = vpop.xlane.xlu0 %4427
      %v4429 = vsel %vm4419, %v4414, -inf
      %4430 = vmax.xlane.f32.xlu0 %v4429
      %v4431 = vpop.xlane.xlu0 %4430
      %v4432 = vsub.f32 %v4276, %v4422
      %v4433 = vsub.f32 %v4322, %v4425
      %v4434 = vsub.f32 %v4368, %v4428
      %v4435 = vsub.f32 %v4414, %v4431
      %v4436 = vmul.f32 %v4432, 1.442695
      %v4437 = vpow.pop %v4436
      %v4438 = vmul.f32 %v4433, 1.442695
      %v4439 = vpow.pop %v4438
      %v4440 = vmul.f32 %v4434, 1.442695
      %v4441 = vpow.pop %v4440
      %v4442 = vmul.f32 %v4435, 1.442695
      %v4443 = vpow.pop %v4442
      %v4444 = vsel %vm4419, %v4437, 0.0
      %4445 = vadd.xlane.f32.xlu0 %v4444
      %v4446 = vpop.xlane.xlu0 %4445
      %v4447 = vsel %vm4419, %v4439, 0.0
      %4448 = vadd.xlane.f32.xlu0 %v4447
      %v4449 = vpop.xlane.xlu0 %4448
      %v4450 = vsel %vm4419, %v4441, 0.0
      %4451 = vadd.xlane.f32.xlu0 %v4450
      %v4452 = vpop.xlane.xlu0 %4451
      %v4453 = vsel %vm4419, %v4443, 0.0
      %4454 = vadd.xlane.f32.xlu0 %v4453
      %v4455 = vpop.xlane.xlu0 %4454
      %v4456 = vrcp.pop %v4446
      %v4457 = vrcp.pop %v4449
      %v4458 = vrcp.pop %v4452
      %v4459 = vrcp.pop %v4455
      %v4460 = vmul.f32 %v4437, %v4456
      %v4461 = vmul.f32 %v4439, %v4457
      %v4462 = vmul.f32 %v4441, %v4458
      %v4463 = vmul.f32 %v4443, %v4459
      %v4464 = vpack.c.bf16 %v4460, %v4460
      %v4465 = vpack.c.bf16 %v4461, %v4461
      %v4466 = vpack.c.bf16 %v4462, %v4462
      %v4467 = vpack.c.bf16 %v4463, %v4463
      %v4469 = vsel %vm4419, %v4464, 0
      %vm4471 = vcmask 1045504
      %v4473 = vsel %vm4471, %v2932, 0
      %4475 = vmatprep.subr.bf16.mxu0 0
      %4476 = vmatpush1.bf16.msra.mxu0 %v4473
      %4477 = vmatprep.subr.bf16.mxu0 0
      %4478 = vmatpush1.bf16.msra.mxu0 0
      %4479 = vmatprep.subr.bf16.mxu0 0
      %4480 = vmatpush1.bf16.msra.mxu0 0
      %4481 = vmatprep.subr.bf16.mxu0 0
      %4482 = vmatpush1.bf16.msra.mxu0 0
      %4483 = vmatprep.subr.bf16.mxu0 0
      %4484 = vmatpush1.bf16.msra.mxu0 0
      %4485 = vmatprep.subr.bf16.mxu0 0
      %4486 = vmatpush1.bf16.msra.mxu0 0
      %4487 = vmatprep.subr.bf16.mxu0 0
      %4488 = vmatpush1.bf16.msra.mxu0 0
      %4489 = vmatprep.subr.bf16.mxu0 0
      %4490 = vmatpush1.bf16.msra.mxu0 0
      %4491 = vmatprep.subr.bf16.mxu0 0
      %4492 = vmatpush1.bf16.msra.mxu0 0
      %4493 = vmatprep.subr.bf16.mxu0 0
      %4494 = vmatpush1.bf16.msra.mxu0 0
      %4495 = vmatprep.subr.bf16.mxu0 0
      %4496 = vmatpush1.bf16.msra.mxu0 0
      %4497 = vmatprep.subr.bf16.mxu0 0
      %4498 = vmatpush1.bf16.msra.mxu0 0
      %4499 = vmatprep.subr.bf16.mxu0 0
      %4500 = vmatpush1.bf16.msra.mxu0 0
      %4501 = vmatprep.subr.bf16.mxu0 0
      %4502 = vmatpush1.bf16.msra.mxu0 0
      %4503 = vmatprep.subr.bf16.mxu0 0
      %4504 = vmatpush1.bf16.msra.mxu0 0
      %4505 = vmatprep.subr.bf16.mxu0 0
      %4506 = vmatpush1.bf16.msra.mxu0 0
      %4507 = vmatprep.mubr.bf16.mxu0 0
      %4508 = vmatmul.mubr.bf16.gmra.mrb[0].mxu0 %v4469
      %v4509 = vpop.f32.mrb[0].mxu0
      %v4510 = vadd.f32 0.0, %v4509
      %v4511 = vpop.f32.mrb[0].mxu0
      %v4512 = vpop.f32.mrb[0].mxu0
      %v4513 = vpop.f32.mrb[0].mxu0
      %4514 = vdwg.mxu0
      %v4516 = vsel %vm4419, %v4465, 0
      %v4519 = vsel %vm4471, %v2935, 0
      %4521 = vmatprep.subr.bf16.mxu0 0
      %4522 = vmatpush1.bf16.msra.mxu0 %v4519
      %4523 = vmatprep.subr.bf16.mxu0 0
      %4524 = vmatpush1.bf16.msra.mxu0 0
      %4525 = vmatprep.subr.bf16.mxu0 0
      %4526 = vmatpush1.bf16.msra.mxu0 0
      %4527 = vmatprep.subr.bf16.mxu0 0
      %4528 = vmatpush1.bf16.msra.mxu0 0
      %4529 = vmatprep.subr.bf16.mxu0 0
      %4530 = vmatpush1.bf16.msra.mxu0 0
      %4531 = vmatprep.subr.bf16.mxu0 0
      %4532 = vmatpush1.bf16.msra.mxu0 0
      %4533 = vmatprep.subr.bf16.mxu0 0
      %4534 = vmatpush1.bf16.msra.mxu0 0
      %4535 = vmatprep.subr.bf16.mxu0 0
      %4536 = vmatpush1.bf16.msra.mxu0 0
      %4537 = vmatprep.subr.bf16.mxu0 0
      %4538 = vmatpush1.bf16.msra.mxu0 0
      %4539 = vmatprep.subr.bf16.mxu0 0
      %4540 = vmatpush1.bf16.msra.mxu0 0
      %4541 = vmatprep.subr.bf16.mxu0 0
      %4542 = vmatpush1.bf16.msra.mxu0 0
      %4543 = vmatprep.subr.bf16.mxu0 0
      %4544 = vmatpush1.bf16.msra.mxu0 0
      %4545 = vmatprep.subr.bf16.mxu0 0
      %4546 = vmatpush1.bf16.msra.mxu0 0
      %4547 = vmatprep.subr.bf16.mxu0 0
      %4548 = vmatpush1.bf16.msra.mxu0 0
      %4549 = vmatprep.subr.bf16.mxu0 0
      %4550 = vmatpush1.bf16.msra.mxu0 0
      %4551 = vmatprep.subr.bf16.mxu0 0
      %4552 = vmatpush1.bf16.msra.mxu0 0
      %4553 = vmatprep.mubr.bf16.mxu0 0
      %4554 = vmatmul.mubr.bf16.gmra.mrb[0].mxu0 %v4516
      %v4555 = vpop.f32.mrb[0].mxu0
      %v4556 = vadd.f32 0.0, %v4555
      %v4557 = vpop.f32.mrb[0].mxu0
      %v4558 = vpop.f32.mrb[0].mxu0
      %v4559 = vpop.f32.mrb[0].mxu0
      %4560 = vdwg.mxu0
      %v4562 = vsel %vm4419, %v4466, 0
      %v4565 = vsel %vm4471, %v2938, 0
      %4567 = vmatprep.subr.bf16.mxu0 0
      %4568 = vmatpush1.bf16.msra.mxu0 %v4565
      %4569 = vmatprep.subr.bf16.mxu0 0
      %4570 = vmatpush1.bf16.msra.mxu0 0
      %4571 = vmatprep.subr.bf16.mxu0 0
      %4572 = vmatpush1.bf16.msra.mxu0 0
      %4573 = vmatprep.subr.bf16.mxu0 0
      %4574 = vmatpush1.bf16.msra.mxu0 0
      %4575 = vmatprep.subr.bf16.mxu0 0
      %4576 = vmatpush1.bf16.msra.mxu0 0
      %4577 = vmatprep.subr.bf16.mxu0 0
      %4578 = vmatpush1.bf16.msra.mxu0 0
      %4579 = vmatprep.subr.bf16.mxu0 0
      %4580 = vmatpush1.bf16.msra.mxu0 0
      %4581 = vmatprep.subr.bf16.mxu0 0
      %4582 = vmatpush1.bf16.msra.mxu0 0
      %4583 = vmatprep.subr.bf16.mxu0 0
      %4584 = vmatpush1.bf16.msra.mxu0 0
      %4585 = vmatprep.subr.bf16.mxu0 0
      %4586 = vmatpush1.bf16.msra.mxu0 0
      %4587 = vmatprep.subr.bf16.mxu0 0
      %4588 = vmatpush1.bf16.msra.mxu0 0
      %4589 = vmatprep.subr.bf16.mxu0 0
      %4590 = vmatpush1.bf16.msra.mxu0 0
      %4591 = vmatprep.subr.bf16.mxu0 0
      %4592 = vmatpush1.bf16.msra.mxu0 0
      %4593 = vmatprep.subr.bf16.mxu0 0
      %4594 = vmatpush1.bf16.msra.mxu0 0
      %4595 = vmatprep.subr.bf16.mxu0 0
      %4596 = vmatpush1.bf16.msra.mxu0 0
      %4597 = vmatprep.subr.bf16.mxu0 0
      %4598 = vmatpush1.bf16.msra.mxu0 0
      %4599 = vmatprep.mubr.bf16.mxu0 0
      %4600 = vmatmul.mubr.bf16.gmra.mrb[0].mxu0 %v4562
      %v4601 = vpop.f32.mrb[0].mxu0
      %v4602 = vadd.f32 0.0, %v4601
      %v4603 = vpop.f32.mrb[0].mxu0
      %v4604 = vpop.f32.mrb[0].mxu0
      %v4605 = vpop.f32.mrb[0].mxu0
      %4606 = vdwg.mxu0
      %v4608 = vsel %vm4419, %v4467, 0
      %v4611 = vsel %vm4471, %v2941, 0
      %4613 = vmatprep.subr.bf16.mxu0 0
      %4614 = vmatpush1.bf16.msra.mxu0 %v4611
      %4615 = vmatprep.subr.bf16.mxu0 0
      %4616 = vmatpush1.bf16.msra.mxu0 0
      %4617 = vmatprep.subr.bf16.mxu0 0
      %4618 = vmatpush1.bf16.msra.mxu0 0
      %4619 = vmatprep.subr.bf16.mxu0 0
      %4620 = vmatpush1.bf16.msra.mxu0 0
      %4621 = vmatprep.subr.bf16.mxu0 0
      %4622 = vmatpush1.bf16.msra.mxu0 0
      %4623 = vmatprep.subr.bf16.mxu0 0
      %4624 = vmatpush1.bf16.msra.mxu0 0
      %4625 = vmatprep.subr.bf16.mxu0 0
      %4626 = vmatpush1.bf16.msra.mxu0 0
      %4627 = vmatprep.subr.bf16.mxu0 0
      %4628 = vmatpush1.bf16.msra.mxu0 0
      %4629 = vmatprep.subr.bf16.mxu0 0
      %4630 = vmatpush1.bf16.msra.mxu0 0
      %4631 = vmatprep.subr.bf16.mxu0 0
      %4632 = vmatpush1.bf16.msra.mxu0 0
      %4633 = vmatprep.subr.bf16.mxu0 0
      %4634 = vmatpush1.bf16.msra.mxu0 0
      %4635 = vmatprep.subr.bf16.mxu0 0
      %4636 = vmatpush1.bf16.msra.mxu0 0
      %4637 = vmatprep.subr.bf16.mxu0 0
      %4638 = vmatpush1.bf16.msra.mxu0 0
      %4639 = vmatprep.subr.bf16.mxu0 0
      %4640 = vmatpush1.bf16.msra.mxu0 0
      %4641 = vmatprep.subr.bf16.mxu0 0
      %4642 = vmatpush1.bf16.msra.mxu0 0
      %4643 = vmatprep.subr.bf16.mxu0 0
      %4644 = vmatpush1.bf16.msra.mxu0 0
      %4645 = vmatprep.mubr.bf16.mxu0 0
      %4646 = vmatmul.mubr.bf16.gmra.mrb[0].mxu0 %v4608
      %v4647 = vpop.f32.mrb[0].mxu0
      %v4648 = vadd.f32 0.0, %v4647
      %v4649 = vpop.f32.mrb[0].mxu0
      %v4650 = vpop.f32.mrb[0].mxu0
      %v4651 = vpop.f32.mrb[0].mxu0
      %4652 = vdwg.mxu0
      %v4653 = vpack.c.bf16 %v4510, %v4510
      %v4655 = vunpack.c.l.s4 1983009808
      %v4656 = vunpack.c.0.s8 %v4655
      %v4657 = vlaneseq
      %v4658 = vshrl.u32 %v4657, 7
      %v4659 = vsub.s32 %v4656, %v4658
      %v4660 = vrot.slane %v4653, %v4659
      %v4661 = vpack.c.bf16 %v4602, %v4602
      %v4663 = vunpack.c.l.s4 1983009808
      %v4664 = vunpack.c.0.s8 %v4663
      %v4665 = vlaneseq
      %v4666 = vshrl.u32 %v4665, 7
      %v4667 = vsub.s32 %v4664, %v4666
      %v4668 = vrot.slane %v4661, %v4667
      %v4669 = vcombine.low %v4660, %v4668
      %v4670 = vcombine.high %v4660, %v4668
      %v4672 = vunpack.c.l.s4 1934713408
      %v4673 = vunpack.c.0.s8 %v4672
      %v4674 = vlaneseq
      %v4675 = vshrl.u32 %v4674, 7
      %v4676 = vsub.s32 %v4673, %v4675
      %v4677 = vrot.slane %v4669, %v4676
      %v4679 = vunpack.c.l.s4 1934713408
      %v4680 = vunpack.c.0.s8 %v4679
      %v4681 = vlaneseq
      %v4682 = vshrl.u32 %v4681, 7
      %v4683 = vsub.s32 %v4680, %v4682
      %v4684 = vrot.slane %v4670, %v4683
      %v4685 = vcombine.high %v4677, 0
      %v4686 = vcombine.high %v4684, 0
      %v4687 = vpack.c.bf16 %v4556, %v4556
      %v4689 = vunpack.c.l.s4 1983009808
      %v4690 = vunpack.c.0.s8 %v4689
      %v4691 = vlaneseq
      %v4692 = vshrl.u32 %v4691, 7
      %v4693 = vsub.s32 %v4690, %v4692
      %v4694 = vrot.slane %v4687, %v4693
      %v4695 = vpack.c.bf16 %v4648, %v4648
      %v4697 = vunpack.c.l.s4 1983009808
      %v4698 = vunpack.c.0.s8 %v4697
      %v4699 = vlaneseq
      %v4700 = vshrl.u32 %v4699, 7
      %v4701 = vsub.s32 %v4698, %v4700
      %v4702 = vrot.slane %v4695, %v4701
      %v4703 = vcombine.low %v4694, %v4702
      %v4704 = vcombine.high %v4694, %v4702
      %v4706 = vunpack.c.l.s4 1934713408
      %v4707 = vunpack.c.0.s8 %v4706
      %v4708 = vlaneseq
      %v4709 = vshrl.u32 %v4708, 7
      %v4710 = vsub.s32 %v4707, %v4709
      %v4711 = vrot.slane %v4703, %v4710
      %v4713 = vunpack.c.l.s4 1934713408
      %v4714 = vunpack.c.0.s8 %v4713
      %v4715 = vlaneseq
      %v4716 = vshrl.u32 %v4715, 7
      %v4717 = vsub.s32 %v4714, %v4716
      %v4718 = vrot.slane %v4704, %v4717
      %v4719 = vcombine.high %v4711, 0
      %v4720 = vcombine.high %v4718, 0
      %v4723 = vpack.i.b16 %v4711, %v4677
      %v4725 = vshrl.u32 %v4677, 16
      %v4726 = vshrl.u32 %v4711, 16
      %v4727 = vpack.i.b16 %v4726, %v4725
      %v4731 = vpack.i.b16 %v4719, %v4685
      %v4733 = vshrl.u32 %v4685, 16
      %v4734 = vshrl.u32 %v4719, 16
      %v4735 = vpack.i.b16 %v4734, %v4733
      %v4739 = vpack.i.b16 %v4718, %v4684
      %v4741 = vshrl.u32 %v4684, 16
      %v4742 = vshrl.u32 %v4718, 16
      %v4743 = vpack.i.b16 %v4742, %v4741
      %v4747 = vpack.i.b16 %v4720, %v4686
      %v4749 = vshrl.u32 %v4686, 16
      %v4750 = vshrl.u32 %v4720, 16
      %v4751 = vpack.i.b16 %v4750, %v4749
      %v4753 = vcombine.low %v4723, %v4739
      %v4755 = vunpack.c.l.s4 1983009808
      %v4756 = vunpack.c.0.s8 %v4755
      %v4757 = vlaneseq
      %v4758 = vshrl.u32 %v4757, 7
      %v4759 = vsub.s32 %v4756, %v4758
      %v4760 = vrot.slane %v4753, %v4759
      %v4761 = vcombine.low %v4731, %v4747
      %v4763 = vunpack.c.l.s4 1983009808
      %v4764 = vunpack.c.0.s8 %v4763
      %v4765 = vlaneseq
      %v4766 = vshrl.u32 %v4765, 7
      %v4767 = vsub.s32 %v4764, %v4766
      %v4768 = vrot.slane %v4761, %v4767
      %v4769 = vcombine.low %v4760, %v4768
      %v4771 = vunpack.c.l.s4 1934713408
      %v4772 = vunpack.c.0.s8 %v4771
      %v4773 = vlaneseq
      %v4774 = vshrl.u32 %v4773, 7
      %v4775 = vsub.s32 %v4772, %v4774
      %v4776 = vrot.slane %v4769, %v4775
      %v4777 = vcombine.high %v4776, 0
      %v4778 = vcombine.low %v4727, %v4743
      %v4780 = vunpack.c.l.s4 1983009808
      %v4781 = vunpack.c.0.s8 %v4780
      %v4782 = vlaneseq
      %v4783 = vshrl.u32 %v4782, 7
      %v4784 = vsub.s32 %v4781, %v4783
      %v4785 = vrot.slane %v4778, %v4784
      %v4786 = vcombine.low %v4735, %v4751
      %v4788 = vunpack.c.l.s4 1983009808
      %v4789 = vunpack.c.0.s8 %v4788
      %v4790 = vlaneseq
      %v4791 = vshrl.u32 %v4790, 7
      %v4792 = vsub.s32 %v4789, %v4791
      %v4793 = vrot.slane %v4786, %v4792
      %v4794 = vcombine.low %v4785, %v4793
      %v4796 = vunpack.c.l.s4 1934713408
      %v4797 = vunpack.c.0.s8 %v4796
      %v4798 = vlaneseq
      %v4799 = vshrl.u32 %v4798, 7
      %v4800 = vsub.s32 %v4797, %v4799
      %v4801 = vrot.slane %v4794, %v4800
      %v4802 = vcombine.high %v4801, 0
      %v4805 = vpack.i.b16 %v4801, %v4776
      %v4806 = vshrl.u32 %v4776, 16
      %v4807 = vshrl.u32 %v4801, 16
      %v4808 = vpack.i.b16 %v4807, %v4806
      %v4811 = vpack.i.b16 %v4802, %v4777
      %v4812 = vshrl.u32 %v4777, 16
      %v4813 = vshrl.u32 %v4802, 16
      %v4814 = vpack.i.b16 %v4813, %v4812
      %4815 = vrot.lane.b32.xlu0 %v4808, 8
      %v4816 = vpop.permute.xlu0 %4815
      %4817 = vrot.lane.b32.xlu0 %v4811, 16
      %v4818 = vpop.permute.xlu0 %4817
      %4819 = vrot.lane.b32.xlu0 %v4814, 24
      %v4820 = vpop.permute.xlu0 %4819
      %v4823 = vsel %vm1664, %v4805, %v4816
      %v4825 = vsel %vm2253, %v4823, %v4818
      %v4827 = vsel %vm2256, %v4825, %v4820
      %v4829 = vlaneseq
      %v4830 = vshrl.u32 %v4829, 7
      %v4831 = vsub.s32 0, %v4830
      %v4832 = vrot.slane %v2363, %v4831
      %v4838 = vunpack.c.l.b16 %v2359
      %v4839 = vunpack.c.l.b16 %v2360
      %v4840 = vunpack.c.l.b16 %v2361
      %v4841 = vunpack.c.l.b16 %v2362
      %v4842 = vpack.c.b16 %v4839, %v4838
      %v4843 = vpack.c.b16 %v4841, %v4840
      %v4846 = vsel %vm1029, %v4827, 0
      %4848 = vmatprep.subr.bf16.mxu0 0
      %4849 = vmatpush1.bf16.msra.mxu0 %v4842
      %4850 = vmatprep.subr.bf16.mxu0 0
      %4851 = vmatpush1.bf16.msra.mxu0 %v4843
      %4852 = vmatprep.subr.bf16.mxu0 0
      %4853 = vmatpush1.bf16.msra.mxu0 0
      %4854 = vmatprep.subr.bf16.mxu0 0
      %4855 = vmatpush1.bf16.msra.mxu0 0
      %4856 = vmatprep.subr.bf16.mxu0 0
      %4857 = vmatpush1.bf16.msra.mxu0 0
      %4858 = vmatprep.subr.bf16.mxu0 0
      %4859 = vmatpush1.bf16.msra.mxu0 0
      %4860 = vmatprep.subr.bf16.mxu0 0
      %4861 = vmatpush1.bf16.msra.mxu0 0
      %4862 = vmatprep.subr.bf16.mxu0 0
      %4863 = vmatpush1.bf16.msra.mxu0 0
      %4864 = vmatprep.subr.bf16.mxu0 0
      %4865 = vmatpush1.bf16.msra.mxu0 0
      %4866 = vmatprep.subr.bf16.mxu0 0
      %4867 = vmatpush1.bf16.msra.mxu0 0
      %4868 = vmatprep.subr.bf16.mxu0 0
      %4869 = vmatpush1.bf16.msra.mxu0 0
      %4870 = vmatprep.subr.bf16.mxu0 0
      %4871 = vmatpush1.bf16.msra.mxu0 0
      %4872 = vmatprep.subr.bf16.mxu0 0
      %4873 = vmatpush1.bf16.msra.mxu0 0
      %4874 = vmatprep.subr.bf16.mxu0 0
      %4875 = vmatpush1.bf16.msra.mxu0 0
      %4876 = vmatprep.subr.bf16.mxu0 0
      %4877 = vmatpush1.bf16.msra.mxu0 0
      %4878 = vmatprep.subr.bf16.mxu0 0
      %4879 = vmatpush1.bf16.msra.mxu0 0
      %4880 = vmatprep.mubr.bf16.mxu0 0
      %4881 = vmatmul.mubr.bf16.gmra.mrb[0].mxu0 %v4846
      %v4882 = vpop.f32.mrb[0].mxu0
      %v4883 = vadd.f32 %v4832, %v4882
      %v4884 = vpop.f32.mrb[0].mxu0
      %v4885 = vpop.f32.mrb[0].mxu0
      %v4886 = vpop.f32.mrb[0].mxu0
      %4887 = vdwg.mxu0
      %v4888 = vadd.f32 %v2319, %v4883
      %v4890 = vlaneseq
      %v4891 = vshrl.u32 %v4890, 7
      %v4892 = vsub.s32 0, %v4891
      %v4893 = vrot.slane %v4055, %v4892
      %v4896 = vsel %vm1664, %v3192, 0
      %4898 = vmatprep.subr.bf16.mxu0 0
      %4899 = vmatpush1.bf16.xpose.msra.mxu0 %v4896
      %4900 = vmatprep.subr.bf16.mxu0 0
      %4901 = vmatpush1.bf16.xpose.msra.mxu0 0
      %4902 = vmatprep.subr.bf16.mxu0 0
      %4903 = vmatpush1.bf16.xpose.msra.mxu0 0
      %4904 = vmatprep.subr.bf16.mxu0 0
      %4905 = vmatpush1.bf16.xpose.msra.mxu0 0
      %4906 = vmatprep.subr.bf16.mxu0 0
      %4907 = vmatpush1.bf16.xpose.msra.mxu0 0
      %4908 = vmatprep.subr.bf16.mxu0 0
      %4909 = vmatpush1.bf16.xpose.msra.mxu0 0
      %4910 = vmatprep.subr.bf16.mxu0 0
      %4911 = vmatpush1.bf16.xpose.msra.mxu0 0
      %4912 = vmatprep.subr.bf16.mxu0 0
      %4913 = vmatpush1.bf16.xpose.msra.mxu0 0
      %4914 = vmatprep.subr.bf16.mxu0 0
      %4915 = vmatpush1.bf16.xpose.msra.mxu0 0
      %4916 = vmatprep.subr.bf16.mxu0 0
      %4917 = vmatpush1.bf16.xpose.msra.mxu0 0
      %4918 = vmatprep.subr.bf16.mxu0 0
      %4919 = vmatpush1.bf16.xpose.msra.mxu0 0
      %4920 = vmatprep.subr.bf16.mxu0 0
      %4921 = vmatpush1.bf16.xpose.msra.mxu0 0
      %4922 = vmatprep.subr.bf16.mxu0 0
      %4923 = vmatpush1.bf16.xpose.msra.mxu0 0
      %4924 = vmatprep.subr.bf16.mxu0 0
      %4925 = vmatpush1.bf16.xpose.msra.mxu0 0
      %4926 = vmatprep.subr.bf16.mxu0 0
      %4927 = vmatpush1.bf16.xpose.msra.mxu0 0
      %4928 = vmatprep.subr.bf16.mxu0 0
      %4929 = vmatpush1.bf16.xpose.msra.mxu0 0
      %4930 = vmatprep.mubr.bf16.mxu0 0
      %4931 = vmatmul.mubr.bf16.gmra.mrb[0].mxu0 %v4236
      %v4932 = vpop.f32.mrb[0].mxu0
      %v4933 = vadd.f32 %v4893, %v4932
      %v4934 = vpop.f32.mrb[0].mxu0
      %v4935 = vpop.f32.mrb[0].mxu0
      %v4936 = vpop.f32.mrb[0].mxu0
      %4937 = vdwg.mxu0
      %v4939 = vsel %vm1664, %v3195, 0
      %4941 = vmatprep.subr.bf16.mxu0 0
      %4942 = vmatpush1.bf16.xpose.msra.mxu0 %v4939
      %4943 = vmatprep.subr.bf16.mxu0 0
      %4944 = vmatpush1.bf16.xpose.msra.mxu0 0
      %4945 = vmatprep.subr.bf16.mxu0 0
      %4946 = vmatpush1.bf16.xpose.msra.mxu0 0
      %4947 = vmatprep.subr.bf16.mxu0 0
      %4948 = vmatpush1.bf16.xpose.msra.mxu0 0
      %4949 = vmatprep.subr.bf16.mxu0 0
      %4950 = vmatpush1.bf16.xpose.msra.mxu0 0
      %4951 = vmatprep.subr.bf16.mxu0 0
      %4952 = vmatpush1.bf16.xpose.msra.mxu0 0
      %4953 = vmatprep.subr.bf16.mxu0 0
      %4954 = vmatpush1.bf16.xpose.msra.mxu0 0
      %4955 = vmatprep.subr.bf16.mxu0 0
      %4956 = vmatpush1.bf16.xpose.msra.mxu0 0
      %4957 = vmatprep.subr.bf16.mxu0 0
      %4958 = vmatpush1.bf16.xpose.msra.mxu0 0
      %4959 = vmatprep.subr.bf16.mxu0 0
      %4960 = vmatpush1.bf16.xpose.msra.mxu0 0
      %4961 = vmatprep.subr.bf16.mxu0 0
      %4962 = vmatpush1.bf16.xpose.msra.mxu0 0
      %4963 = vmatprep.subr.bf16.mxu0 0
      %4964 = vmatpush1.bf16.xpose.msra.mxu0 0
      %4965 = vmatprep.subr.bf16.mxu0 0
      %4966 = vmatpush1.bf16.xpose.msra.mxu0 0
      %4967 = vmatprep.subr.bf16.mxu0 0
      %4968 = vmatpush1.bf16.xpose.msra.mxu0 0
      %4969 = vmatprep.subr.bf16.mxu0 0
      %4970 = vmatpush1.bf16.xpose.msra.mxu0 0
      %4971 = vmatprep.subr.bf16.mxu0 0
      %4972 = vmatpush1.bf16.xpose.msra.mxu0 0
      %4973 = vmatprep.mubr.bf16.mxu0 0
      %4974 = vmatmul.mubr.bf16.gmra.mrb[0].mxu0 %v4282
      %v4975 = vpop.f32.mrb[0].mxu0
      %v4976 = vadd.f32 %v4893, %v4975
      %v4977 = vpop.f32.mrb[0].mxu0
      %v4978 = vpop.f32.mrb[0].mxu0
      %v4979 = vpop.f32.mrb[0].mxu0
      %4980 = vdwg.mxu0
      %v4982 = vsel %vm1664, %v3198, 0
      %4984 = vmatprep.subr.bf16.mxu0 0
      %4985 = vmatpush1.bf16.xpose.msra.mxu0 %v4982
      %4986 = vmatprep.subr.bf16.mxu0 0
      %4987 = vmatpush1.bf16.xpose.msra.mxu0 0
      %4988 = vmatprep.subr.bf16.mxu0 0
      %4989 = vmatpush1.bf16.xpose.msra.mxu0 0
      %4990 = vmatprep.subr.bf16.mxu0 0
      %4991 = vmatpush1.bf16.xpose.msra.mxu0 0
      %4992 = vmatprep.subr.bf16.mxu0 0
      %4993 = vmatpush1.bf16.xpose.msra.mxu0 0
      %4994 = vmatprep.subr.bf16.mxu0 0
      %4995 = vmatpush1.bf16.xpose.msra.mxu0 0
      %4996 = vmatprep.subr.bf16.mxu0 0
      %4997 = vmatpush1.bf16.xpose.msra.mxu0 0
      %4998 = vmatprep.subr.bf16.mxu0 0
      %4999 = vmatpush1.bf16.xpose.msra.mxu0 0
      %5000 = vmatprep.subr.bf16.mxu0 0
      %5001 = vmatpush1.bf16.xpose.msra.mxu0 0
      %5002 = vmatprep.subr.bf16.mxu0 0
      %5003 = vmatpush1.bf16.xpose.msra.mxu0 0
      %5004 = vmatprep.subr.bf16.mxu0 0
      %5005 = vmatpush1.bf16.xpose.msra.mxu0 0
      %5006 = vmatprep.subr.bf16.mxu0 0
      %5007 = vmatpush1.bf16.xpose.msra.mxu0 0
      %5008 = vmatprep.subr.bf16.mxu0 0
      %5009 = vmatpush1.bf16.xpose.msra.mxu0 0
      %5010 = vmatprep.subr.bf16.mxu0 0
      %5011 = vmatpush1.bf16.xpose.msra.mxu0 0
      %5012 = vmatprep.subr.bf16.mxu0 0
      %5013 = vmatpush1.bf16.xpose.msra.mxu0 0
      %5014 = vmatprep.subr.bf16.mxu0 0
      %5015 = vmatpush1.bf16.xpose.msra.mxu0 0
      %5016 = vmatprep.mubr.bf16.mxu0 0
      %5017 = vmatmul.mubr.bf16.gmra.mrb[0].mxu0 %v4328
      %v5018 = vpop.f32.mrb[0].mxu0
      %v5019 = vadd.f32 %v4893, %v5018
      %v5020 = vpop.f32.mrb[0].mxu0
      %v5021 = vpop.f32.mrb[0].mxu0
      %v5022 = vpop.f32.mrb[0].mxu0
      %5023 = vdwg.mxu0
      %v5025 = vsel %vm1664, %v3201, 0
      %5027 = vmatprep.subr.bf16.mxu0 0
      %5028 = vmatpush1.bf16.xpose.msra.mxu0 %v5025
      %5029 = vmatprep.subr.bf16.mxu0 0
      %5030 = vmatpush1.bf16.xpose.msra.mxu0 0
      %5031 = vmatprep.subr.bf16.mxu0 0
      %5032 = vmatpush1.bf16.xpose.msra.mxu0 0
      %5033 = vmatprep.subr.bf16.mxu0 0
      %5034 = vmatpush1.bf16.xpose.msra.mxu0 0
      %5035 = vmatprep.subr.bf16.mxu0 0
      %5036 = vmatpush1.bf16.xpose.msra.mxu0 0
      %5037 = vmatprep.subr.bf16.mxu0 0
      %5038 = vmatpush1.bf16.xpose.msra.mxu0 0
      %5039 = vmatprep.subr.bf16.mxu0 0
      %5040 = vmatpush1.bf16.xpose.msra.mxu0 0
      %5041 = vmatprep.subr.bf16.mxu0 0
      %5042 = vmatpush1.bf16.xpose.msra.mxu0 0
      %5043 = vmatprep.subr.bf16.mxu0 0
      %5044 = vmatpush1.bf16.xpose.msra.mxu0 0
      %5045 = vmatprep.subr.bf16.mxu0 0
      %5046 = vmatpush1.bf16.xpose.msra.mxu0 0
      %5047 = vmatprep.subr.bf16.mxu0 0
      %5048 = vmatpush1.bf16.xpose.msra.mxu0 0
      %5049 = vmatprep.subr.bf16.mxu0 0
      %5050 = vmatpush1.bf16.xpose.msra.mxu0 0
      %5051 = vmatprep.subr.bf16.mxu0 0
      %5052 = vmatpush1.bf16.xpose.msra.mxu0 0
      %5053 = vmatprep.subr.bf16.mxu0 0
      %5054 = vmatpush1.bf16.xpose.msra.mxu0 0
      %5055 = vmatprep.subr.bf16.mxu0 0
      %5056 = vmatpush1.bf16.xpose.msra.mxu0 0
      %5057 = vmatprep.subr.bf16.mxu0 0
      %5058 = vmatpush1.bf16.xpose.msra.mxu0 0
      %5059 = vmatprep.mubr.bf16.mxu0 0
      %5060 = vmatmul.mubr.bf16.gmra.mrb[0].mxu0 %v4374
      %v5061 = vpop.f32.mrb[0].mxu0
      %v5062 = vadd.f32 %v4893, %v5061
      %v5063 = vpop.f32.mrb[0].mxu0
      %v5064 = vpop.f32.mrb[0].mxu0
      %v5065 = vpop.f32.mrb[0].mxu0
      %5066 = vdwg.mxu0
      %vm5067 = vcmask 80896
      %v5068 = vsel %vm5067, %v4933, -inf
      %5069 = vmax.xlane.f32.xlu0 %v5068
      %v5070 = vpop.xlane.xlu0 %5069
      %v5071 = vsel %vm5067, %v4976, -inf
      %5072 = vmax.xlane.f32.xlu0 %v5071
      %v5073 = vpop.xlane.xlu0 %5072
      %v5074 = vsel %vm5067, %v5019, -inf
      %5075 = vmax.xlane.f32.xlu0 %v5074
      %v5076 = vpop.xlane.xlu0 %5075
      %v5077 = vsel %vm5067, %v5062, -inf
      %5078 = vmax.xlane.f32.xlu0 %v5077
      %v5079 = vpop.xlane.xlu0 %5078
      %v5080 = vsub.f32 %v4933, %v5070
      %v5081 = vsub.f32 %v4976, %v5073
      %v5082 = vsub.f32 %v5019, %v5076
      %v5083 = vsub.f32 %v5062, %v5079
      %v5084 = vmul.f32 %v5080, 1.442695
      %v5085 = vpow.pop %v5084
      %v5086 = vmul.f32 %v5081, 1.442695
      %v5087 = vpow.pop %v5086
      %v5088 = vmul.f32 %v5082, 1.442695
      %v5089 = vpow.pop %v5088
      %v5090 = vmul.f32 %v5083, 1.442695
      %v5091 = vpow.pop %v5090
      %v5092 = vsel %vm5067, %v5085, 0.0
      %5093 = vadd.xlane.f32.xlu0 %v5092
      %v5094 = vpop.xlane.xlu0 %5093
      %v5095 = vsel %vm5067, %v5087, 0.0
      %5096 = vadd.xlane.f32.xlu0 %v5095
      %v5097 = vpop.xlane.xlu0 %5096
      %v5098 = vsel %vm5067, %v5089, 0.0
      %5099 = vadd.xlane.f32.xlu0 %v5098
      %v5100 = vpop.xlane.xlu0 %5099
      %v5101 = vsel %vm5067, %v5091, 0.0
      %5102 = vadd.xlane.f32.xlu0 %v5101
      %v5103 = vpop.xlane.xlu0 %5102
      %v5104 = vrcp.pop %v5094
      %v5105 = vrcp.pop %v5097
      %v5106 = vrcp.pop %v5100
      %v5107 = vrcp.pop %v5103
      %v5108 = vmul.f32 %v5085, %v5104
      %v5109 = vmul.f32 %v5087, %v5105
      %v5110 = vmul.f32 %v5089, %v5106
      %v5111 = vmul.f32 %v5091, %v5107
      %v5112 = vpack.c.bf16 %v5108, %v5108
      %v5113 = vpack.c.bf16 %v5109, %v5109
      %v5114 = vpack.c.bf16 %v5110, %v5110
      %v5115 = vpack.c.bf16 %v5111, %v5111
      %v5117 = vsel %vm5067, %v5112, 0
      %vm5119 = vcmask 1044480
      %v5121 = vsel %vm5119, %v3406, 0
      %5123 = vmatprep.subr.bf16.mxu0 0
      %5124 = vmatpush1.bf16.msra.mxu0 %v5121
      %5125 = vmatprep.subr.bf16.mxu0 0
      %5126 = vmatpush1.bf16.msra.mxu0 0
      %5127 = vmatprep.subr.bf16.mxu0 0
      %5128 = vmatpush1.bf16.msra.mxu0 0
      %5129 = vmatprep.subr.bf16.mxu0 0
      %5130 = vmatpush1.bf16.msra.mxu0 0
      %5131 = vmatprep.subr.bf16.mxu0 0
      %5132 = vmatpush1.bf16.msra.mxu0 0
      %5133 = vmatprep.subr.bf16.mxu0 0
      %5134 = vmatpush1.bf16.msra.mxu0 0
      %5135 = vmatprep.subr.bf16.mxu0 0
      %5136 = vmatpush1.bf16.msra.mxu0 0
      %5137 = vmatprep.subr.bf16.mxu0 0
      %5138 = vmatpush1.bf16.msra.mxu0 0
      %5139 = vmatprep.subr.bf16.mxu0 0
      %5140 = vmatpush1.bf16.msra.mxu0 0
      %5141 = vmatprep.subr.bf16.mxu0 0
      %5142 = vmatpush1.bf16.msra.mxu0 0
      %5143 = vmatprep.subr.bf16.mxu0 0
      %5144 = vmatpush1.bf16.msra.mxu0 0
      %5145 = vmatprep.subr.bf16.mxu0 0
      %5146 = vmatpush1.bf16.msra.mxu0 0
      %5147 = vmatprep.subr.bf16.mxu0 0
      %5148 = vmatpush1.bf16.msra.mxu0 0
      %5149 = vmatprep.subr.bf16.mxu0 0
      %5150 = vmatpush1.bf16.msra.mxu0 0
      %5151 = vmatprep.subr.bf16.mxu0 0
      %5152 = vmatpush1.bf16.msra.mxu0 0
      %5153 = vmatprep.subr.bf16.mxu0 0
      %5154 = vmatpush1.bf16.msra.mxu0 0
      %5155 = vmatprep.mubr.bf16.mxu0 0
      %5156 = vmatmul.mubr.bf16.gmra.mrb[0].mxu0 %v5117
      %v5157 = vpop.f32.mrb[0].mxu0
      %v5158 = vadd.f32 0.0, %v5157
      %v5159 = vpop.f32.mrb[0].mxu0
      %v5160 = vpop.f32.mrb[0].mxu0
      %v5161 = vpop.f32.mrb[0].mxu0
      %5162 = vdwg.mxu0
      %v5164 = vsel %vm5067, %v5113, 0
      %v5167 = vsel %vm5119, %v3409, 0
      %5169 = vmatprep.subr.bf16.mxu0 0
      %5170 = vmatpush1.bf16.msra.mxu0 %v5167
      %5171 = vmatprep.subr.bf16.mxu0 0
      %5172 = vmatpush1.bf16.msra.mxu0 0
      %5173 = vmatprep.subr.bf16.mxu0 0
      %5174 = vmatpush1.bf16.msra.mxu0 0
      %5175 = vmatprep.subr.bf16.mxu0 0
      %5176 = vmatpush1.bf16.msra.mxu0 0
      %5177 = vmatprep.subr.bf16.mxu0 0
      %5178 = vmatpush1.bf16.msra.mxu0 0
      %5179 = vmatprep.subr.bf16.mxu0 0
      %5180 = vmatpush1.bf16.msra.mxu0 0
      %5181 = vmatprep.subr.bf16.mxu0 0
      %5182 = vmatpush1.bf16.msra.mxu0 0
      %5183 = vmatprep.subr.bf16.mxu0 0
      %5184 = vmatpush1.bf16.msra.mxu0 0
      %5185 = vmatprep.subr.bf16.mxu0 0
      %5186 = vmatpush1.bf16.msra.mxu0 0
      %5187 = vmatprep.subr.bf16.mxu0 0
      %5188 = vmatpush1.bf16.msra.mxu0 0
      %5189 = vmatprep.subr.bf16.mxu0 0
      %5190 = vmatpush1.bf16.msra.mxu0 0
      %5191 = vmatprep.subr.bf16.mxu0 0
      %5192 = vmatpush1.bf16.msra.mxu0 0
      %5193 = vmatprep.subr.bf16.mxu0 0
      %5194 = vmatpush1.bf16.msra.mxu0 0
      %5195 = vmatprep.subr.bf16.mxu0 0
      %5196 = vmatpush1.bf16.msra.mxu0 0
      %5197 = vmatprep.subr.bf16.mxu0 0
      %5198 = vmatpush1.bf16.msra.mxu0 0
      %5199 = vmatprep.subr.bf16.mxu0 0
      %5200 = vmatpush1.bf16.msra.mxu0 0
      %5201 = vmatprep.mubr.bf16.mxu0 0
      %5202 = vmatmul.mubr.bf16.gmra.mrb[0].mxu0 %v5164
      %v5203 = vpop.f32.mrb[0].mxu0
      %v5204 = vadd.f32 0.0, %v5203
      %v5205 = vpop.f32.mrb[0].mxu0
      %v5206 = vpop.f32.mrb[0].mxu0
      %v5207 = vpop.f32.mrb[0].mxu0
      %5208 = vdwg.mxu0
      %v5210 = vsel %vm5067, %v5114, 0
      %v5213 = vsel %vm5119, %v3412, 0
      %5215 = vmatprep.subr.bf16.mxu0 0
      %5216 = vmatpush1.bf16.msra.mxu0 %v5213
      %5217 = vmatprep.subr.bf16.mxu0 0
      %5218 = vmatpush1.bf16.msra.mxu0 0
      %5219 = vmatprep.subr.bf16.mxu0 0
      %5220 = vmatpush1.bf16.msra.mxu0 0
      %5221 = vmatprep.subr.bf16.mxu0 0
      %5222 = vmatpush1.bf16.msra.mxu0 0
      %5223 = vmatprep.subr.bf16.mxu0 0
      %5224 = vmatpush1.bf16.msra.mxu0 0
      %5225 = vmatprep.subr.bf16.mxu0 0
      %5226 = vmatpush1.bf16.msra.mxu0 0
      %5227 = vmatprep.subr.bf16.mxu0 0
      %5228 = vmatpush1.bf16.msra.mxu0 0
      %5229 = vmatprep.subr.bf16.mxu0 0
      %5230 = vmatpush1.bf16.msra.mxu0 0
      %5231 = vmatprep.subr.bf16.mxu0 0
      %5232 = vmatpush1.bf16.msra.mxu0 0
      %5233 = vmatprep.subr.bf16.mxu0 0
      %5234 = vmatpush1.bf16.msra.mxu0 0
      %5235 = vmatprep.subr.bf16.mxu0 0
      %5236 = vmatpush1.bf16.msra.mxu0 0
      %5237 = vmatprep.subr.bf16.mxu0 0
      %5238 = vmatpush1.bf16.msra.mxu0 0
      %5239 = vmatprep.subr.bf16.mxu0 0
      %5240 = vmatpush1.bf16.msra.mxu0 0
      %5241 = vmatprep.subr.bf16.mxu0 0
      %5242 = vmatpush1.bf16.msra.mxu0 0
      %5243 = vmatprep.subr.bf16.mxu0 0
      %5244 = vmatpush1.bf16.msra.mxu0 0
      %5245 = vmatprep.subr.bf16.mxu0 0
      %5246 = vmatpush1.bf16.msra.mxu0 0
      %5247 = vmatprep.mubr.bf16.mxu0 0
      %5248 = vmatmul.mubr.bf16.gmra.mrb[0].mxu0 %v5210
      %v5249 = vpop.f32.mrb[0].mxu0
      %v5250 = vadd.f32 0.0, %v5249
      %v5251 = vpop.f32.mrb[0].mxu0
      %v5252 = vpop.f32.mrb[0].mxu0
      %v5253 = vpop.f32.mrb[0].mxu0
      %5254 = vdwg.mxu0
      %v5256 = vsel %vm5067, %v5115, 0
      %v5259 = vsel %vm5119, %v3415, 0
      %5261 = vmatprep.subr.bf16.mxu0 0
      %5262 = vmatpush1.bf16.msra.mxu0 %v5259
      %5263 = vmatprep.subr.bf16.mxu0 0
      %5264 = vmatpush1.bf16.msra.mxu0 0
      %5265 = vmatprep.subr.bf16.mxu0 0
      %5266 = vmatpush1.bf16.msra.mxu0 0
      %5267 = vmatprep.subr.bf16.mxu0 0
      %5268 = vmatpush1.bf16.msra.mxu0 0
      %5269 = vmatprep.subr.bf16.mxu0 0
      %5270 = vmatpush1.bf16.msra.mxu0 0
      %5271 = vmatprep.subr.bf16.mxu0 0
      %5272 = vmatpush1.bf16.msra.mxu0 0
      %5273 = vmatprep.subr.bf16.mxu0 0
      %5274 = vmatpush1.bf16.msra.mxu0 0
      %5275 = vmatprep.subr.bf16.mxu0 0
      %5276 = vmatpush1.bf16.msra.mxu0 0
      %5277 = vmatprep.subr.bf16.mxu0 0
      %5278 = vmatpush1.bf16.msra.mxu0 0
      %5279 = vmatprep.subr.bf16.mxu0 0
      %5280 = vmatpush1.bf16.msra.mxu0 0
      %5281 = vmatprep.subr.bf16.mxu0 0
      %5282 = vmatpush1.bf16.msra.mxu0 0
      %5283 = vmatprep.subr.bf16.mxu0 0
      %5284 = vmatpush1.bf16.msra.mxu0 0
      %5285 = vmatprep.subr.bf16.mxu0 0
      %5286 = vmatpush1.bf16.msra.mxu0 0
      %5287 = vmatprep.subr.bf16.mxu0 0
      %5288 = vmatpush1.bf16.msra.mxu0 0
      %5289 = vmatprep.subr.bf16.mxu0 0
      %5290 = vmatpush1.bf16.msra.mxu0 0
      %5291 = vmatprep.subr.bf16.mxu0 0
      %5292 = vmatpush1.bf16.msra.mxu0 0
      %5293 = vmatprep.mubr.bf16.mxu0 0
      %5294 = vmatmul.mubr.bf16.gmra.mrb[0].mxu0 %v5256
      %v5295 = vpop.f32.mrb[0].mxu0
      %v5296 = vadd.f32 0.0, %v5295
      %v5297 = vpop.f32.mrb[0].mxu0
      %v5298 = vpop.f32.mrb[0].mxu0
      %v5299 = vpop.f32.mrb[0].mxu0
      %5300 = vdwg.mxu0
      %v5301 = vpack.c.bf16 %v5158, %v5158
      %v5303 = vunpack.c.l.s4 1983009808
      %v5304 = vunpack.c.0.s8 %v5303
      %v5305 = vlaneseq
      %v5306 = vshrl.u32 %v5305, 7
      %v5307 = vsub.s32 %v5304, %v5306
      %v5308 = vrot.slane %v5301, %v5307
      %v5309 = vpack.c.bf16 %v5250, %v5250
      %v5311 = vunpack.c.l.s4 1983009808
      %v5312 = vunpack.c.0.s8 %v5311
      %v5313 = vlaneseq
      %v5314 = vshrl.u32 %v5313, 7
      %v5315 = vsub.s32 %v5312, %v5314
      %v5316 = vrot.slane %v5309, %v5315
      %v5317 = vcombine.low %v5308, %v5316
      %v5318 = vcombine.high %v5308, %v5316
      %v5320 = vunpack.c.l.s4 1934713408
      %v5321 = vunpack.c.0.s8 %v5320
      %v5322 = vlaneseq
      %v5323 = vshrl.u32 %v5322, 7
      %v5324 = vsub.s32 %v5321, %v5323
      %v5325 = vrot.slane %v5317, %v5324
      %v5327 = vunpack.c.l.s4 1934713408
      %v5328 = vunpack.c.0.s8 %v5327
      %v5329 = vlaneseq
      %v5330 = vshrl.u32 %v5329, 7
      %v5331 = vsub.s32 %v5328, %v5330
      %v5332 = vrot.slane %v5318, %v5331
      %v5333 = vcombine.high %v5325, 0
      %v5334 = vcombine.high %v5332, 0
      %v5335 = vpack.c.bf16 %v5204, %v5204
      %v5337 = vunpack.c.l.s4 1983009808
      %v5338 = vunpack.c.0.s8 %v5337
      %v5339 = vlaneseq
      %v5340 = vshrl.u32 %v5339, 7
      %v5341 = vsub.s32 %v5338, %v5340
      %v5342 = vrot.slane %v5335, %v5341
      %v5343 = vpack.c.bf16 %v5296, %v5296
      %v5345 = vunpack.c.l.s4 1983009808
      %v5346 = vunpack.c.0.s8 %v5345
      %v5347 = vlaneseq
      %v5348 = vshrl.u32 %v5347, 7
      %v5349 = vsub.s32 %v5346, %v5348
      %v5350 = vrot.slane %v5343, %v5349
      %v5351 = vcombine.low %v5342, %v5350
      %v5352 = vcombine.high %v5342, %v5350
      %v5354 = vunpack.c.l.s4 1934713408
      %v5355 = vunpack.c.0.s8 %v5354
      %v5356 = vlaneseq
      %v5357 = vshrl.u32 %v5356, 7
      %v5358 = vsub.s32 %v5355, %v5357
      %v5359 = vrot.slane %v5351, %v5358
      %v5361 = vunpack.c.l.s4 1934713408
      %v5362 = vunpack.c.0.s8 %v5361
      %v5363 = vlaneseq
      %v5364 = vshrl.u32 %v5363, 7
      %v5365 = vsub.s32 %v5362, %v5364
      %v5366 = vrot.slane %v5352, %v5365
      %v5367 = vcombine.high %v5359, 0
      %v5368 = vcombine.high %v5366, 0
      %v5371 = vpack.i.b16 %v5359, %v5325
      %v5373 = vshrl.u32 %v5325, 16
      %v5374 = vshrl.u32 %v5359, 16
      %v5375 = vpack.i.b16 %v5374, %v5373
      %v5379 = vpack.i.b16 %v5367, %v5333
      %v5381 = vshrl.u32 %v5333, 16
      %v5382 = vshrl.u32 %v5367, 16
      %v5383 = vpack.i.b16 %v5382, %v5381
      %v5387 = vpack.i.b16 %v5366, %v5332
      %v5389 = vshrl.u32 %v5332, 16
      %v5390 = vshrl.u32 %v5366, 16
      %v5391 = vpack.i.b16 %v5390, %v5389
      %v5395 = vpack.i.b16 %v5368, %v5334
      %v5397 = vshrl.u32 %v5334, 16
      %v5398 = vshrl.u32 %v5368, 16
      %v5399 = vpack.i.b16 %v5398, %v5397
      %v5401 = vcombine.low %v5371, %v5387
      %v5403 = vunpack.c.l.s4 1983009808
      %v5404 = vunpack.c.0.s8 %v5403
      %v5405 = vlaneseq
      %v5406 = vshrl.u32 %v5405, 7
      %v5407 = vsub.s32 %v5404, %v5406
      %v5408 = vrot.slane %v5401, %v5407
      %v5409 = vcombine.low %v5379, %v5395
      %v5411 = vunpack.c.l.s4 1983009808
      %v5412 = vunpack.c.0.s8 %v5411
      %v5413 = vlaneseq
      %v5414 = vshrl.u32 %v5413, 7
      %v5415 = vsub.s32 %v5412, %v5414
      %v5416 = vrot.slane %v5409, %v5415
      %v5417 = vcombine.low %v5408, %v5416
      %v5419 = vunpack.c.l.s4 1934713408
      %v5420 = vunpack.c.0.s8 %v5419
      %v5421 = vlaneseq
      %v5422 = vshrl.u32 %v5421, 7
      %v5423 = vsub.s32 %v5420, %v5422
      %v5424 = vrot.slane %v5417, %v5423
      %v5425 = vcombine.high %v5424, 0
      %v5426 = vcombine.low %v5375, %v5391
      %v5428 = vunpack.c.l.s4 1983009808
      %v5429 = vunpack.c.0.s8 %v5428
      %v5430 = vlaneseq
      %v5431 = vshrl.u32 %v5430, 7
      %v5432 = vsub.s32 %v5429, %v5431
      %v5433 = vrot.slane %v5426, %v5432
      %v5434 = vcombine.low %v5383, %v5399
      %v5436 = vunpack.c.l.s4 1983009808
      %v5437 = vunpack.c.0.s8 %v5436
      %v5438 = vlaneseq
      %v5439 = vshrl.u32 %v5438, 7
      %v5440 = vsub.s32 %v5437, %v5439
      %v5441 = vrot.slane %v5434, %v5440
      %v5442 = vcombine.low %v5433, %v5441
      %v5444 = vunpack.c.l.s4 1934713408
      %v5445 = vunpack.c.0.s8 %v5444
      %v5446 = vlaneseq
      %v5447 = vshrl.u32 %v5446, 7
      %v5448 = vsub.s32 %v5445, %v5447
      %v5449 = vrot.slane %v5442, %v5448
      %v5450 = vcombine.high %v5449, 0
      %v5453 = vpack.i.b16 %v5449, %v5424
      %v5454 = vshrl.u32 %v5424, 16
      %v5455 = vshrl.u32 %v5449, 16
      %v5456 = vpack.i.b16 %v5455, %v5454
      %v5459 = vpack.i.b16 %v5450, %v5425
      %v5460 = vshrl.u32 %v5425, 16
      %v5461 = vshrl.u32 %v5450, 16
      %v5462 = vpack.i.b16 %v5461, %v5460
      %5463 = vrot.lane.b32.xlu0 %v5456, 8
      %v5464 = vpop.permute.xlu0 %5463
      %5465 = vrot.lane.b32.xlu0 %v5459, 16
      %v5466 = vpop.permute.xlu0 %5465
      %5467 = vrot.lane.b32.xlu0 %v5462, 24
      %v5468 = vpop.permute.xlu0 %5467
      %v5471 = vsel %vm1664, %v5453, %v5464
      %v5473 = vsel %vm2253, %v5471, %v5466
      %v5475 = vsel %vm2256, %v5473, %v5468
      %v5476 = vsel %vm1029, %v5475, 0
      %5478 = vmatprep.subr.bf16.mxu0 0
      %5479 = vmatpush1.bf16.msra.mxu0 %v4842
      %5480 = vmatprep.subr.bf16.mxu0 0
      %5481 = vmatpush1.bf16.msra.mxu0 %v4843
      %5482 = vmatprep.subr.bf16.mxu0 0
      %5483 = vmatpush1.bf16.msra.mxu0 0
      %5484 = vmatprep.subr.bf16.mxu0 0
      %5485 = vmatpush1.bf16.msra.mxu0 0
      %5486 = vmatprep.subr.bf16.mxu0 0
      %5487 = vmatpush1.bf16.msra.mxu0 0
      %5488 = vmatprep.subr.bf16.mxu0 0
      %5489 = vmatpush1.bf16.msra.mxu0 0
      %5490 = vmatprep.subr.bf16.mxu0 0
      %5491 = vmatpush1.bf16.msra.mxu0 0
      %5492 = vmatprep.subr.bf16.mxu0 0
      %5493 = vmatpush1.bf16.msra.mxu0 0
      %5494 = vmatprep.subr.bf16.mxu0 0
      %5495 = vmatpush1.bf16.msra.mxu0 0
      %5496 = vmatprep.subr.bf16.mxu0 0
      %5497 = vmatpush1.bf16.msra.mxu0 0
      %5498 = vmatprep.subr.bf16.mxu0 0
      %5499 = vmatpush1.bf16.msra.mxu0 0
      %5500 = vmatprep.subr.bf16.mxu0 0
      %5501 = vmatpush1.bf16.msra.mxu0 0
      %5502 = vmatprep.subr.bf16.mxu0 0
      %5503 = vmatpush1.bf16.msra.mxu0 0
      %5504 = vmatprep.subr.bf16.mxu0 0
      %5505 = vmatpush1.bf16.msra.mxu0 0
      %5506 = vmatprep.subr.bf16.mxu0 0
      %5507 = vmatpush1.bf16.msra.mxu0 0
      %5508 = vmatprep.subr.bf16.mxu0 0
      %5509 = vmatpush1.bf16.msra.mxu0 0
      %5510 = vmatprep.mubr.bf16.mxu0 0
      %5511 = vmatmul.mubr.bf16.gmra.mrb[0].mxu0 %v5476
      %v5512 = vpop.f32.mrb[0].mxu0
      %v5513 = vadd.f32 %v4832, %v5512
      %v5514 = vpop.f32.mrb[0].mxu0
      %v5515 = vpop.f32.mrb[0].mxu0
      %v5516 = vpop.f32.mrb[0].mxu0
      %5517 = vdwg.mxu0
      %v5518 = vadd.f32 %v4888, %v5513
      %v5520 = vlaneseq
      %v5521 = vshrl.u32 %v5520, 7
      %v5522 = vsub.s32 0, %v5521
      %v5523 = vrot.slane %v4058, %v5522
      %v5526 = vsel %vm1664, %v3746, 0
      %5528 = vmatprep.subr.bf16.mxu0 0
      %5529 = vmatpush1.bf16.xpose.msra.mxu0 %v5526
      %5530 = vmatprep.subr.bf16.mxu0 0
      %5531 = vmatpush1.bf16.xpose.msra.mxu0 0
      %5532 = vmatprep.subr.bf16.mxu0 0
      %5533 = vmatpush1.bf16.xpose.msra.mxu0 0
      %5534 = vmatprep.subr.bf16.mxu0 0
      %5535 = vmatpush1.bf16.xpose.msra.mxu0 0
      %5536 = vmatprep.subr.bf16.mxu0 0
      %5537 = vmatpush1.bf16.xpose.msra.mxu0 0
      %5538 = vmatprep.subr.bf16.mxu0 0
      %5539 = vmatpush1.bf16.xpose.msra.mxu0 0
      %5540 = vmatprep.subr.bf16.mxu0 0
      %5541 = vmatpush1.bf16.xpose.msra.mxu0 0
      %5542 = vmatprep.subr.bf16.mxu0 0
      %5543 = vmatpush1.bf16.xpose.msra.mxu0 0
      %5544 = vmatprep.subr.bf16.mxu0 0
      %5545 = vmatpush1.bf16.xpose.msra.mxu0 0
      %5546 = vmatprep.subr.bf16.mxu0 0
      %5547 = vmatpush1.bf16.xpose.msra.mxu0 0
      %5548 = vmatprep.subr.bf16.mxu0 0
      %5549 = vmatpush1.bf16.xpose.msra.mxu0 0
      %5550 = vmatprep.subr.bf16.mxu0 0
      %5551 = vmatpush1.bf16.xpose.msra.mxu0 0
      %5552 = vmatprep.subr.bf16.mxu0 0
      %5553 = vmatpush1.bf16.xpose.msra.mxu0 0
      %5554 = vmatprep.subr.bf16.mxu0 0
      %5555 = vmatpush1.bf16.xpose.msra.mxu0 0
      %5556 = vmatprep.subr.bf16.mxu0 0
      %5557 = vmatpush1.bf16.xpose.msra.mxu0 0
      %5558 = vmatprep.subr.bf16.mxu0 0
      %5559 = vmatpush1.bf16.xpose.msra.mxu0 0
      %5560 = vmatprep.mubr.bf16.mxu0 0
      %5561 = vmatmul.mubr.bf16.gmra.mrb[0].mxu0 %v4236
      %v5562 = vpop.f32.mrb[0].mxu0
      %v5563 = vadd.f32 %v5523, %v5562
      %v5564 = vpop.f32.mrb[0].mxu0
      %v5565 = vpop.f32.mrb[0].mxu0
      %v5566 = vpop.f32.mrb[0].mxu0
      %5567 = vdwg.mxu0
      %v5569 = vsel %vm1664, %v3749, 0
      %5571 = vmatprep.subr.bf16.mxu0 0
      %5572 = vmatpush1.bf16.xpose.msra.mxu0 %v5569
      %5573 = vmatprep.subr.bf16.mxu0 0
      %5574 = vmatpush1.bf16.xpose.msra.mxu0 0
      %5575 = vmatprep.subr.bf16.mxu0 0
      %5576 = vmatpush1.bf16.xpose.msra.mxu0 0
      %5577 = vmatprep.subr.bf16.mxu0 0
      %5578 = vmatpush1.bf16.xpose.msra.mxu0 0
      %5579 = vmatprep.subr.bf16.mxu0 0
      %5580 = vmatpush1.bf16.xpose.msra.mxu0 0
      %5581 = vmatprep.subr.bf16.mxu0 0
      %5582 = vmatpush1.bf16.xpose.msra.mxu0 0
      %5583 = vmatprep.subr.bf16.mxu0 0
      %5584 = vmatpush1.bf16.xpose.msra.mxu0 0
      %5585 = vmatprep.subr.bf16.mxu0 0
      %5586 = vmatpush1.bf16.xpose.msra.mxu0 0
      %5587 = vmatprep.subr.bf16.mxu0 0
      %5588 = vmatpush1.bf16.xpose.msra.mxu0 0
      %5589 = vmatprep.subr.bf16.mxu0 0
      %5590 = vmatpush1.bf16.xpose.msra.mxu0 0
      %5591 = vmatprep.subr.bf16.mxu0 0
      %5592 = vmatpush1.bf16.xpose.msra.mxu0 0
      %5593 = vmatprep.subr.bf16.mxu0 0
      %5594 = vmatpush1.bf16.xpose.msra.mxu0 0
      %5595 = vmatprep.subr.bf16.mxu0 0
      %5596 = vmatpush1.bf16.xpose.msra.mxu0 0
      %5597 = vmatprep.subr.bf16.mxu0 0
      %5598 = vmatpush1.bf16.xpose.msra.mxu0 0
      %5599 = vmatprep.subr.bf16.mxu0 0
      %5600 = vmatpush1.bf16.xpose.msra.mxu0 0
      %5601 = vmatprep.subr.bf16.mxu0 0
      %5602 = vmatpush1.bf16.xpose.msra.mxu0 0
      %5603 = vmatprep.mubr.bf16.mxu0 0
      %5604 = vmatmul.mubr.bf16.gmra.mrb[0].mxu0 %v4282
      %v5605 = vpop.f32.mrb[0].mxu0
      %v5606 = vadd.f32 %v5523, %v5605
      %v5607 = vpop.f32.mrb[0].mxu0
      %v5608 = vpop.f32.mrb[0].mxu0
      %v5609 = vpop.f32.mrb[0].mxu0
      %5610 = vdwg.mxu0
      %v5612 = vsel %vm1664, %v3752, 0
      %5614 = vmatprep.subr.bf16.mxu0 0
      %5615 = vmatpush1.bf16.xpose.msra.mxu0 %v5612
      %5616 = vmatprep.subr.bf16.mxu0 0
      %5617 = vmatpush1.bf16.xpose.msra.mxu0 0
      %5618 = vmatprep.subr.bf16.mxu0 0
      %5619 = vmatpush1.bf16.xpose.msra.mxu0 0
      %5620 = vmatprep.subr.bf16.mxu0 0
      %5621 = vmatpush1.bf16.xpose.msra.mxu0 0
      %5622 = vmatprep.subr.bf16.mxu0 0
      %5623 = vmatpush1.bf16.xpose.msra.mxu0 0
      %5624 = vmatprep.subr.bf16.mxu0 0
      %5625 = vmatpush1.bf16.xpose.msra.mxu0 0
      %5626 = vmatprep.subr.bf16.mxu0 0
      %5627 = vmatpush1.bf16.xpose.msra.mxu0 0
      %5628 = vmatprep.subr.bf16.mxu0 0
      %5629 = vmatpush1.bf16.xpose.msra.mxu0 0
      %5630 = vmatprep.subr.bf16.mxu0 0
      %5631 = vmatpush1.bf16.xpose.msra.mxu0 0
      %5632 = vmatprep.subr.bf16.mxu0 0
      %5633 = vmatpush1.bf16.xpose.msra.mxu0 0
      %5634 = vmatprep.subr.bf16.mxu0 0
      %5635 = vmatpush1.bf16.xpose.msra.mxu0 0
      %5636 = vmatprep.subr.bf16.mxu0 0
      %5637 = vmatpush1.bf16.xpose.msra.mxu0 0
      %5638 = vmatprep.subr.bf16.mxu0 0
      %5639 = vmatpush1.bf16.xpose.msra.mxu0 0
      %5640 = vmatprep.subr.bf16.mxu0 0
      %5641 = vmatpush1.bf16.xpose.msra.mxu0 0
      %5642 = vmatprep.subr.bf16.mxu0 0
      %5643 = vmatpush1.bf16.xpose.msra.mxu0 0
      %5644 = vmatprep.subr.bf16.mxu0 0
      %5645 = vmatpush1.bf16.xpose.msra.mxu0 0
      %5646 = vmatprep.mubr.bf16.mxu0 0
      %5647 = vmatmul.mubr.bf16.gmra.mrb[0].mxu0 %v4328
      %v5648 = vpop.f32.mrb[0].mxu0
      %v5649 = vadd.f32 %v5523, %v5648
      %v5650 = vpop.f32.mrb[0].mxu0
      %v5651 = vpop.f32.mrb[0].mxu0
      %v5652 = vpop.f32.mrb[0].mxu0
      %5653 = vdwg.mxu0
      %v5655 = vsel %vm1664, %v3755, 0
      %5657 = vmatprep.subr.bf16.mxu0 0
      %5658 = vmatpush1.bf16.xpose.msra.mxu0 %v5655
      %5659 = vmatprep.subr.bf16.mxu0 0
      %5660 = vmatpush1.bf16.xpose.msra.mxu0 0
      %5661 = vmatprep.subr.bf16.mxu0 0
      %5662 = vmatpush1.bf16.xpose.msra.mxu0 0
      %5663 = vmatprep.subr.bf16.mxu0 0
      %5664 = vmatpush1.bf16.xpose.msra.mxu0 0
      %5665 = vmatprep.subr.bf16.mxu0 0
      %5666 = vmatpush1.bf16.xpose.msra.mxu0 0
      %5667 = vmatprep.subr.bf16.mxu0 0
      %5668 = vmatpush1.bf16.xpose.msra.mxu0 0
      %5669 = vmatprep.subr.bf16.mxu0 0
      %5670 = vmatpush1.bf16.xpose.msra.mxu0 0
      %5671 = vmatprep.subr.bf16.mxu0 0
      %5672 = vmatpush1.bf16.xpose.msra.mxu0 0
      %5673 = vmatprep.subr.bf16.mxu0 0
      %5674 = vmatpush1.bf16.xpose.msra.mxu0 0
      %5675 = vmatprep.subr.bf16.mxu0 0
      %5676 = vmatpush1.bf16.xpose.msra.mxu0 0
      %5677 = vmatprep.subr.bf16.mxu0 0
      %5678 = vmatpush1.bf16.xpose.msra.mxu0 0
      %5679 = vmatprep.subr.bf16.mxu0 0
      %5680 = vmatpush1.bf16.xpose.msra.mxu0 0
      %5681 = vmatprep.subr.bf16.mxu0 0
      %5682 = vmatpush1.bf16.xpose.msra.mxu0 0
      %5683 = vmatprep.subr.bf16.mxu0 0
      %5684 = vmatpush1.bf16.xpose.msra.mxu0 0
      %5685 = vmatprep.subr.bf16.mxu0 0
      %5686 = vmatpush1.bf16.xpose.msra.mxu0 0
      %5687 = vmatprep.subr.bf16.mxu0 0
      %5688 = vmatpush1.bf16.xpose.msra.mxu0 0
      %5689 = vmatprep.mubr.bf16.mxu0 0
      %5690 = vmatmul.mubr.bf16.gmra.mrb[0].mxu0 %v4374
      %v5691 = vpop.f32.mrb[0].mxu0
      %v5692 = vadd.f32 %v5523, %v5691
      %v5693 = vpop.f32.mrb[0].mxu0
      %v5694 = vpop.f32.mrb[0].mxu0
      %v5695 = vpop.f32.mrb[0].mxu0
      %5696 = vdwg.mxu0
      %vm5697 = vcmask 113664
      %v5698 = vsel %vm5697, %v5563, -inf
      %5699 = vmax.xlane.f32.xlu0 %v5698
      %v5700 = vpop.xlane.xlu0 %5699
      %v5701 = vsel %vm5697, %v5606, -inf
      %5702 = vmax.xlane.f32.xlu0 %v5701
      %v5703 = vpop.xlane.xlu0 %5702
      %v5704 = vsel %vm5697, %v5649, -inf
      %5705 = vmax.xlane.f32.xlu0 %v5704
      %v5706 = vpop.xlane.xlu0 %5705
      %v5707 = vsel %vm5697, %v5692, -inf
      %5708 = vmax.xlane.f32.xlu0 %v5707
      %v5709 = vpop.xlane.xlu0 %5708
      %v5710 = vsub.f32 %v5563, %v5700
      %v5711 = vsub.f32 %v5606, %v5703
      %v5712 = vsub.f32 %v5649, %v5706
      %v5713 = vsub.f32 %v5692, %v5709
      %v5714 = vmul.f32 %v5710, 1.442695
      %v5715 = vpow.pop %v5714
      %v5716 = vmul.f32 %v5711, 1.442695
      %v5717 = vpow.pop %v5716
      %v5718 = vmul.f32 %v5712, 1.442695
      %v5719 = vpow.pop %v5718
      %v5720 = vmul.f32 %v5713, 1.442695
      %v5721 = vpow.pop %v5720
      %v5722 = vsel %vm5697, %v5715, 0.0
      %5723 = vadd.xlane.f32.xlu0 %v5722
      %v5724 = vpop.xlane.xlu0 %5723
      %v5725 = vsel %vm5697, %v5717, 0.0
      %5726 = vadd.xlane.f32.xlu0 %v5725
      %v5727 = vpop.xlane.xlu0 %5726
      %v5728 = vsel %vm5697, %v5719, 0.0
      %5729 = vadd.xlane.f32.xlu0 %v5728
      %v5730 = vpop.xlane.xlu0 %5729
      %v5731 = vsel %vm5697, %v5721, 0.0
      %5732 = vadd.xlane.f32.xlu0 %v5731
      %v5733 = vpop.xlane.xlu0 %5732
      %v5734 = vrcp.pop %v5724
      %v5735 = vrcp.pop %v5727
      %v5736 = vrcp.pop %v5730
      %v5737 = vrcp.pop %v5733
      %v5738 = vmul.f32 %v5715, %v5734
      %v5739 = vmul.f32 %v5717, %v5735
      %v5740 = vmul.f32 %v5719, %v5736
      %v5741 = vmul.f32 %v5721, %v5737
      %v5742 = vpack.c.bf16 %v5738, %v5738
      %v5743 = vpack.c.bf16 %v5739, %v5739
      %v5744 = vpack.c.bf16 %v5740, %v5740
      %v5745 = vpack.c.bf16 %v5741, %v5741
      %v5747 = vsel %vm5697, %v5742, 0
      %vm5749 = vcmask 1046528
      %v5751 = vsel %vm5749, %v4040, 0
      %5753 = vmatprep.subr.bf16.mxu0 0
      %5754 = vmatpush1.bf16.msra.mxu0 %v5751
      %5755 = vmatprep.subr.bf16.mxu0 0
      %5756 = vmatpush1.bf16.msra.mxu0 0
      %5757 = vmatprep.subr.bf16.mxu0 0
      %5758 = vmatpush1.bf16.msra.mxu0 0
      %5759 = vmatprep.subr.bf16.mxu0 0
      %5760 = vmatpush1.bf16.msra.mxu0 0
      %5761 = vmatprep.subr.bf16.mxu0 0
      %5762 = vmatpush1.bf16.msra.mxu0 0
      %5763 = vmatprep.subr.bf16.mxu0 0
      %5764 = vmatpush1.bf16.msra.mxu0 0
      %5765 = vmatprep.subr.bf16.mxu0 0
      %5766 = vmatpush1.bf16.msra.mxu0 0
      %5767 = vmatprep.subr.bf16.mxu0 0
      %5768 = vmatpush1.bf16.msra.mxu0 0
      %5769 = vmatprep.subr.bf16.mxu0 0
      %5770 = vmatpush1.bf16.msra.mxu0 0
      %5771 = vmatprep.subr.bf16.mxu0 0
      %5772 = vmatpush1.bf16.msra.mxu0 0
      %5773 = vmatprep.subr.bf16.mxu0 0
      %5774 = vmatpush1.bf16.msra.mxu0 0
      %5775 = vmatprep.subr.bf16.mxu0 0
      %5776 = vmatpush1.bf16.msra.mxu0 0
      %5777 = vmatprep.subr.bf16.mxu0 0
      %5778 = vmatpush1.bf16.msra.mxu0 0
      %5779 = vmatprep.subr.bf16.mxu0 0
      %5780 = vmatpush1.bf16.msra.mxu0 0
      %5781 = vmatprep.subr.bf16.mxu0 0
      %5782 = vmatpush1.bf16.msra.mxu0 0
      %5783 = vmatprep.subr.bf16.mxu0 0
      %5784 = vmatpush1.bf16.msra.mxu0 0
      %5785 = vmatprep.mubr.bf16.mxu0 0
      %5786 = vmatmul.mubr.bf16.gmra.mrb[0].mxu0 %v5747
      %v5787 = vpop.f32.mrb[0].mxu0
      %v5788 = vadd.f32 0.0, %v5787
      %v5789 = vpop.f32.mrb[0].mxu0
      %v5790 = vpop.f32.mrb[0].mxu0
      %v5791 = vpop.f32.mrb[0].mxu0
      %5792 = vdwg.mxu0
      %v5794 = vsel %vm5697, %v5743, 0
      %v5797 = vsel %vm5749, %v4043, 0
      %5799 = vmatprep.subr.bf16.mxu0 0
      %5800 = vmatpush1.bf16.msra.mxu0 %v5797
      %5801 = vmatprep.subr.bf16.mxu0 0
      %5802 = vmatpush1.bf16.msra.mxu0 0
      %5803 = vmatprep.subr.bf16.mxu0 0
      %5804 = vmatpush1.bf16.msra.mxu0 0
      %5805 = vmatprep.subr.bf16.mxu0 0
      %5806 = vmatpush1.bf16.msra.mxu0 0
      %5807 = vmatprep.subr.bf16.mxu0 0
      %5808 = vmatpush1.bf16.msra.mxu0 0
      %5809 = vmatprep.subr.bf16.mxu0 0
      %5810 = vmatpush1.bf16.msra.mxu0 0
      %5811 = vmatprep.subr.bf16.mxu0 0
      %5812 = vmatpush1.bf16.msra.mxu0 0
      %5813 = vmatprep.subr.bf16.mxu0 0
      %5814 = vmatpush1.bf16.msra.mxu0 0
      %5815 = vmatprep.subr.bf16.mxu0 0
      %5816 = vmatpush1.bf16.msra.mxu0 0
      %5817 = vmatprep.subr.bf16.mxu0 0
      %5818 = vmatpush1.bf16.msra.mxu0 0
      %5819 = vmatprep.subr.bf16.mxu0 0
      %5820 = vmatpush1.bf16.msra.mxu0 0
      %5821 = vmatprep.subr.bf16.mxu0 0
      %5822 = vmatpush1.bf16.msra.mxu0 0
      %5823 = vmatprep.subr.bf16.mxu0 0
      %5824 = vmatpush1.bf16.msra.mxu0 0
      %5825 = vmatprep.subr.bf16.mxu0 0
      %5826 = vmatpush1.bf16.msra.mxu0 0
      %5827 = vmatprep.subr.bf16.mxu0 0
      %5828 = vmatpush1.bf16.msra.mxu0 0
      %5829 = vmatprep.subr.bf16.mxu0 0
      %5830 = vmatpush1.bf16.msra.mxu0 0
      %5831 = vmatprep.mubr.bf16.mxu0 0
      %5832 = vmatmul.mubr.bf16.gmra.mrb[0].mxu0 %v5794
      %v5833 = vpop.f32.mrb[0].mxu0
      %v5834 = vadd.f32 0.0, %v5833
      %v5835 = vpop.f32.mrb[0].mxu0
      %v5836 = vpop.f32.mrb[0].mxu0
      %v5837 = vpop.f32.mrb[0].mxu0
      %5838 = vdwg.mxu0
      %v5840 = vsel %vm5697, %v5744, 0
      %v5843 = vsel %vm5749, %v4046, 0
      %5845 = vmatprep.subr.bf16.mxu0 0
      %5846 = vmatpush1.bf16.msra.mxu0 %v5843
      %5847 = vmatprep.subr.bf16.mxu0 0
      %5848 = vmatpush1.bf16.msra.mxu0 0
      %5849 = vmatprep.subr.bf16.mxu0 0
      %5850 = vmatpush1.bf16.msra.mxu0 0
      %5851 = vmatprep.subr.bf16.mxu0 0
      %5852 = vmatpush1.bf16.msra.mxu0 0
      %5853 = vmatprep.subr.bf16.mxu0 0
      %5854 = vmatpush1.bf16.msra.mxu0 0
      %5855 = vmatprep.subr.bf16.mxu0 0
      %5856 = vmatpush1.bf16.msra.mxu0 0
      %5857 = vmatprep.subr.bf16.mxu0 0
      %5858 = vmatpush1.bf16.msra.mxu0 0
      %5859 = vmatprep.subr.bf16.mxu0 0
      %5860 = vmatpush1.bf16.msra.mxu0 0
      %5861 = vmatprep.subr.bf16.mxu0 0
      %5862 = vmatpush1.bf16.msra.mxu0 0
      %5863 = vmatprep.subr.bf16.mxu0 0
      %5864 = vmatpush1.bf16.msra.mxu0 0
      %5865 = vmatprep.subr.bf16.mxu0 0
      %5866 = vmatpush1.bf16.msra.mxu0 0
      %5867 = vmatprep.subr.bf16.mxu0 0
      %5868 = vmatpush1.bf16.msra.mxu0 0
      %5869 = vmatprep.subr.bf16.mxu0 0
      %5870 = vmatpush1.bf16.msra.mxu0 0
      %5871 = vmatprep.subr.bf16.mxu0 0
      %5872 = vmatpush1.bf16.msra.mxu0 0
      %5873 = vmatprep.subr.bf16.mxu0 0
      %5874 = vmatpush1.bf16.msra.mxu0 0
      %5875 = vmatprep.subr.bf16.mxu0 0
      %5876 = vmatpush1.bf16.msra.mxu0 0
      %5877 = vmatprep.mubr.bf16.mxu0 0
      %5878 = vmatmul.mubr.bf16.gmra.mrb[0].mxu0 %v5840
      %v5879 = vpop.f32.mrb[0].mxu0
      %v5880 = vadd.f32 0.0, %v5879
      %v5881 = vpop.f32.mrb[0].mxu0
      %v5882 = vpop.f32.mrb[0].mxu0
      %v5883 = vpop.f32.mrb[0].mxu0
      %5884 = vdwg.mxu0
      %v5886 = vsel %vm5697, %v5745, 0
      %v5889 = vsel %vm5749, %v4049, 0
      %5891 = vmatprep.subr.bf16.mxu0 0
      %5892 = vmatpush1.bf16.msra.mxu0 %v5889
      %5893 = vmatprep.subr.bf16.mxu0 0
      %5894 = vmatpush1.bf16.msra.mxu0 0
      %5895 = vmatprep.subr.bf16.mxu0 0
      %5896 = vmatpush1.bf16.msra.mxu0 0
      %5897 = vmatprep.subr.bf16.mxu0 0
      %5898 = vmatpush1.bf16.msra.mxu0 0
      %5899 = vmatprep.subr.bf16.mxu0 0
      %5900 = vmatpush1.bf16.msra.mxu0 0
      %5901 = vmatprep.subr.bf16.mxu0 0
      %5902 = vmatpush1.bf16.msra.mxu0 0
      %5903 = vmatprep.subr.bf16.mxu0 0
      %5904 = vmatpush1.bf16.msra.mxu0 0
      %5905 = vmatprep.subr.bf16.mxu0 0
      %5906 = vmatpush1.bf16.msra.mxu0 0
      %5907 = vmatprep.subr.bf16.mxu0 0
      %5908 = vmatpush1.bf16.msra.mxu0 0
      %5909 = vmatprep.subr.bf16.mxu0 0
      %5910 = vmatpush1.bf16.msra.mxu0 0
      %5911 = vmatprep.subr.bf16.mxu0 0
      %5912 = vmatpush1.bf16.msra.mxu0 0
      %5913 = vmatprep.subr.bf16.mxu0 0
      %5914 = vmatpush1.bf16.msra.mxu0 0
      %5915 = vmatprep.subr.bf16.mxu0 0
      %5916 = vmatpush1.bf16.msra.mxu0 0
      %5917 = vmatprep.subr.bf16.mxu0 0
      %5918 = vmatpush1.bf16.msra.mxu0 0
      %5919 = vmatprep.subr.bf16.mxu0 0
      %5920 = vmatpush1.bf16.msra.mxu0 0
      %5921 = vmatprep.subr.bf16.mxu0 0
      %5922 = vmatpush1.bf16.msra.mxu0 0
      %5923 = vmatprep.mubr.bf16.mxu0 0
      %5924 = vmatmul.mubr.bf16.gmra.mrb[0].mxu0 %v5886
      %v5925 = vpop.f32.mrb[0].mxu0
      %v5926 = vadd.f32 0.0, %v5925
      %v5927 = vpop.f32.mrb[0].mxu0
      %v5928 = vpop.f32.mrb[0].mxu0
      %v5929 = vpop.f32.mrb[0].mxu0
      %5930 = vdwg.mxu0
      %v5931 = vpack.c.bf16 %v5788, %v5788
      %v5933 = vunpack.c.l.s4 1983009808
      %v5934 = vunpack.c.0.s8 %v5933
      %v5935 = vlaneseq
      %v5936 = vshrl.u32 %v5935, 7
      %v5937 = vsub.s32 %v5934, %v5936
      %v5938 = vrot.slane %v5931, %v5937
      %v5939 = vpack.c.bf16 %v5880, %v5880
      %v5941 = vunpack.c.l.s4 1983009808
      %v5942 = vunpack.c.0.s8 %v5941
      %v5943 = vlaneseq
      %v5944 = vshrl.u32 %v5943, 7
      %v5945 = vsub.s32 %v5942, %v5944
      %v5946 = vrot.slane %v5939, %v5945
      %v5947 = vcombine.low %v5938, %v5946
      %v5948 = vcombine.high %v5938, %v5946
      %v5950 = vunpack.c.l.s4 1934713408
      %v5951 = vunpack.c.0.s8 %v5950
      %v5952 = vlaneseq
      %v5953 = vshrl.u32 %v5952, 7
      %v5954 = vsub.s32 %v5951, %v5953
      %v5955 = vrot.slane %v5947, %v5954
      %v5957 = vunpack.c.l.s4 1934713408
      %v5958 = vunpack.c.0.s8 %v5957
      %v5959 = vlaneseq
      %v5960 = vshrl.u32 %v5959, 7
      %v5961 = vsub.s32 %v5958, %v5960
      %v5962 = vrot.slane %v5948, %v5961
      %v5963 = vcombine.high %v5955, 0
      %v5964 = vcombine.high %v5962, 0
      %v5965 = vpack.c.bf16 %v5834, %v5834
      %v5967 = vunpack.c.l.s4 1983009808
      %v5968 = vunpack.c.0.s8 %v5967
      %v5969 = vlaneseq
      %v5970 = vshrl.u32 %v5969, 7
      %v5971 = vsub.s32 %v5968, %v5970
      %v5972 = vrot.slane %v5965, %v5971
      %v5973 = vpack.c.bf16 %v5926, %v5926
      %v5975 = vunpack.c.l.s4 1983009808
      %v5976 = vunpack.c.0.s8 %v5975
      %v5977 = vlaneseq
      %v5978 = vshrl.u32 %v5977, 7
      %v5979 = vsub.s32 %v5976, %v5978
      %v5980 = vrot.slane %v5973, %v5979
      %v5981 = vcombine.low %v5972, %v5980
      %v5982 = vcombine.high %v5972, %v5980
      %v5984 = vunpack.c.l.s4 1934713408
      %v5985 = vunpack.c.0.s8 %v5984
      %v5986 = vlaneseq
      %v5987 = vshrl.u32 %v5986, 7
      %v5988 = vsub.s32 %v5985, %v5987
      %v5989 = vrot.slane %v5981, %v5988
      %v5991 = vunpack.c.l.s4 1934713408
      %v5992 = vunpack.c.0.s8 %v5991
      %v5993 = vlaneseq
      %v5994 = vshrl.u32 %v5993, 7
      %v5995 = vsub.s32 %v5992, %v5994
      %v5996 = vrot.slane %v5982, %v5995
      %v5997 = vcombine.high %v5989, 0
      %v5998 = vcombine.high %v5996, 0
      %v6001 = vpack.i.b16 %v5989, %v5955
      %v6003 = vshrl.u32 %v5955, 16
      %v6004 = vshrl.u32 %v5989, 16
      %v6005 = vpack.i.b16 %v6004, %v6003
      %v6009 = vpack.i.b16 %v5997, %v5963
      %v6011 = vshrl.u32 %v5963, 16
      %v6012 = vshrl.u32 %v5997, 16
      %v6013 = vpack.i.b16 %v6012, %v6011
      %v6017 = vpack.i.b16 %v5996, %v5962
      %v6019 = vshrl.u32 %v5962, 16
      %v6020 = vshrl.u32 %v5996, 16
      %v6021 = vpack.i.b16 %v6020, %v6019
      %v6025 = vpack.i.b16 %v5998, %v5964
      %v6027 = vshrl.u32 %v5964, 16
      %v6028 = vshrl.u32 %v5998, 16
      %v6029 = vpack.i.b16 %v6028, %v6027
      %v6031 = vcombine.low %v6001, %v6017
      %v6033 = vunpack.c.l.s4 1983009808
      %v6034 = vunpack.c.0.s8 %v6033
      %v6035 = vlaneseq
      %v6036 = vshrl.u32 %v6035, 7
      %v6037 = vsub.s32 %v6034, %v6036
      %v6038 = vrot.slane %v6031, %v6037
      %v6039 = vcombine.low %v6009, %v6025
      %v6041 = vunpack.c.l.s4 1983009808
      %v6042 = vunpack.c.0.s8 %v6041
      %v6043 = vlaneseq
      %v6044 = vshrl.u32 %v6043, 7
      %v6045 = vsub.s32 %v6042, %v6044
      %v6046 = vrot.slane %v6039, %v6045
      %v6047 = vcombine.low %v6038, %v6046
      %v6049 = vunpack.c.l.s4 1934713408
      %v6050 = vunpack.c.0.s8 %v6049
      %v6051 = vlaneseq
      %v6052 = vshrl.u32 %v6051, 7
      %v6053 = vsub.s32 %v6050, %v6052
      %v6054 = vrot.slane %v6047, %v6053
      %v6055 = vcombine.high %v6054, 0
      %v6056 = vcombine.low %v6005, %v6021
      %v6058 = vunpack.c.l.s4 1983009808
      %v6059 = vunpack.c.0.s8 %v6058
      %v6060 = vlaneseq
      %v6061 = vshrl.u32 %v6060, 7
      %v6062 = vsub.s32 %v6059, %v6061
      %v6063 = vrot.slane %v6056, %v6062
      %v6064 = vcombine.low %v6013, %v6029
      %v6066 = vunpack.c.l.s4 1983009808
      %v6067 = vunpack.c.0.s8 %v6066
      %v6068 = vlaneseq
      %v6069 = vshrl.u32 %v6068, 7
      %v6070 = vsub.s32 %v6067, %v6069
      %v6071 = vrot.slane %v6064, %v6070
      %v6072 = vcombine.low %v6063, %v6071
      %v6074 = vunpack.c.l.s4 1934713408
      %v6075 = vunpack.c.0.s8 %v6074
      %v6076 = vlaneseq
      %v6077 = vshrl.u32 %v6076, 7
      %v6078 = vsub.s32 %v6075, %v6077
      %v6079 = vrot.slane %v6072, %v6078
      %v6080 = vcombine.high %v6079, 0
      %v6083 = vpack.i.b16 %v6079, %v6054
      %v6084 = vshrl.u32 %v6054, 16
      %v6085 = vshrl.u32 %v6079, 16
      %v6086 = vpack.i.b16 %v6085, %v6084
      %v6089 = vpack.i.b16 %v6080, %v6055
      %v6090 = vshrl.u32 %v6055, 16
      %v6091 = vshrl.u32 %v6080, 16
      %v6092 = vpack.i.b16 %v6091, %v6090
      %6093 = vrot.lane.b32.xlu0 %v6086, 8
      %v6094 = vpop.permute.xlu0 %6093
      %6095 = vrot.lane.b32.xlu0 %v6089, 16
      %v6096 = vpop.permute.xlu0 %6095
      %6097 = vrot.lane.b32.xlu0 %v6092, 24
      %v6098 = vpop.permute.xlu0 %6097
      %v6101 = vsel %vm1664, %v6083, %v6094
      %v6103 = vsel %vm2253, %v6101, %v6096
      %v6105 = vsel %vm2256, %v6103, %v6098
      %v6106 = vsel %vm1029, %v6105, 0
      %6108 = vmatprep.subr.bf16.mxu0 0
      %6109 = vmatpush1.bf16.msra.mxu0 %v4842
      %6110 = vmatprep.subr.bf16.mxu0 0
      %6111 = vmatpush1.bf16.msra.mxu0 %v4843
      %6112 = vmatprep.subr.bf16.mxu0 0
      %6113 = vmatpush1.bf16.msra.mxu0 0
      %6114 = vmatprep.subr.bf16.mxu0 0
      %6115 = vmatpush1.bf16.msra.mxu0 0
      %6116 = vmatprep.subr.bf16.mxu0 0
      %6117 = vmatpush1.bf16.msra.mxu0 0
      %6118 = vmatprep.subr.bf16.mxu0 0
      %6119 = vmatpush1.bf16.msra.mxu0 0
      %6120 = vmatprep.subr.bf16.mxu0 0
      %6121 = vmatpush1.bf16.msra.mxu0 0
      %6122 = vmatprep.subr.bf16.mxu0 0
      %6123 = vmatpush1.bf16.msra.mxu0 0
      %6124 = vmatprep.subr.bf16.mxu0 0
      %6125 = vmatpush1.bf16.msra.mxu0 0
      %6126 = vmatprep.subr.bf16.mxu0 0
      %6127 = vmatpush1.bf16.msra.mxu0 0
      %6128 = vmatprep.subr.bf16.mxu0 0
      %6129 = vmatpush1.bf16.msra.mxu0 0
      %6130 = vmatprep.subr.bf16.mxu0 0
      %6131 = vmatpush1.bf16.msra.mxu0 0
      %6132 = vmatprep.subr.bf16.mxu0 0
      %6133 = vmatpush1.bf16.msra.mxu0 0
      %6134 = vmatprep.subr.bf16.mxu0 0
      %6135 = vmatpush1.bf16.msra.mxu0 0
      %6136 = vmatprep.subr.bf16.mxu0 0
      %6137 = vmatpush1.bf16.msra.mxu0 0
      %6138 = vmatprep.subr.bf16.mxu0 0
      %6139 = vmatpush1.bf16.msra.mxu0 0
      %6140 = vmatprep.mubr.bf16.mxu0 0
      %6141 = vmatmul.mubr.bf16.gmra.mrb[0].mxu0 %v6106
      %v6142 = vpop.f32.mrb[0].mxu0
      %v6143 = vadd.f32 %v4832, %v6142
      %v6144 = vpop.f32.mrb[0].mxu0
      %v6145 = vpop.f32.mrb[0].mxu0
      %v6146 = vpop.f32.mrb[0].mxu0
      %6147 = vdwg.mxu0
      %v6148 = vadd.f32 %v5518, %v6143
      %v6149 = vpack.c.bf16 %v4883, %v4883
      %v6151 = vsel %vm1029, %v6149, 0
      %6153 = vmatprep.subr.bf16.mxu0 0
      %6154 = vmatpush1.bf16.msra.mxu0 %v2379
      %6155 = vmatprep.subr.bf16.mxu0 0
      %6156 = vmatpush1.bf16.msra.mxu0 %v2380
      %6157 = vmatprep.subr.bf16.mxu0 0
      %6158 = vmatpush1.bf16.msra.mxu0 0
      %6159 = vmatprep.subr.bf16.mxu0 0
      %6160 = vmatpush1.bf16.msra.mxu0 0
      %6161 = vmatprep.subr.bf16.mxu0 0
      %6162 = vmatpush1.bf16.msra.mxu0 0
      %6163 = vmatprep.subr.bf16.mxu0 0
      %6164 = vmatpush1.bf16.msra.mxu0 0
      %6165 = vmatprep.subr.bf16.mxu0 0
      %6166 = vmatpush1.bf16.msra.mxu0 0
      %6167 = vmatprep.subr.bf16.mxu0 0
      %6168 = vmatpush1.bf16.msra.mxu0 0
      %6169 = vmatprep.subr.bf16.mxu0 0
      %6170 = vmatpush1.bf16.msra.mxu0 0
      %6171 = vmatprep.subr.bf16.mxu0 0
      %6172 = vmatpush1.bf16.msra.mxu0 0
      %6173 = vmatprep.subr.bf16.mxu0 0
      %6174 = vmatpush1.bf16.msra.mxu0 0
      %6175 = vmatprep.subr.bf16.mxu0 0
      %6176 = vmatpush1.bf16.msra.mxu0 0
      %6177 = vmatprep.subr.bf16.mxu0 0
      %6178 = vmatpush1.bf16.msra.mxu0 0
      %6179 = vmatprep.subr.bf16.mxu0 0
      %6180 = vmatpush1.bf16.msra.mxu0 0
      %6181 = vmatprep.subr.bf16.mxu0 0
      %6182 = vmatpush1.bf16.msra.mxu0 0
      %6183 = vmatprep.subr.bf16.mxu0 0
      %6184 = vmatpush1.bf16.msra.mxu0 0
      %6185 = vmatprep.mubr.bf16.mxu0 0
      %6186 = vmatmul.mubr.bf16.gmra.mrb[0].mxu0 %v6151
      %v6187 = vpop.f32.mrb[0].mxu0
      %v6188 = vadd.f32 %v2369, %v6187
      %v6189 = vpop.f32.mrb[0].mxu0
      %v6190 = vpop.f32.mrb[0].mxu0
      %v6191 = vpop.f32.mrb[0].mxu0
      %6192 = vdwg.mxu0
      %v6193 = vmul.f32 %v6188, 0.35355338
      %v6194 = vpack.c.bf16 %v6193, %v6193
      %6196 = vrot.lane.b32.xlu0 %v6194, 120
      %v6197 = vpop.permute.xlu0 %6196
      %6198 = vrot.lane.b32.xlu0 %v6194, 112
      %v6199 = vpop.permute.xlu0 %6198
      %6200 = vrot.lane.b32.xlu0 %v6194, 104
      %v6201 = vpop.permute.xlu0 %6200
      %v6203 = vunpack.c.l.s4 1983009808
      %v6204 = vunpack.c.0.s8 %v6203
      %v6205 = vlaneseq
      %v6206 = vshrl.u32 %v6205, 7
      %v6207 = vsub.s32 %v6204, %v6206
      %v6208 = vrot.slane %v6194, %v6207
      %v6211 = vunpack.c.l.s4 1983009808
      %v6212 = vunpack.c.0.s8 %v6211
      %v6213 = vlaneseq
      %v6214 = vshrl.u32 %v6213, 7
      %v6215 = vsub.s32 %v6212, %v6214
      %v6216 = vrot.slane %v6199, %v6215
      %v6217 = vcombine.low %v6208, %v6216
      %v6218 = vcombine.high %v6208, %v6216
      %v6220 = vunpack.c.l.s4 1934713408
      %v6221 = vunpack.c.0.s8 %v6220
      %v6222 = vlaneseq
      %v6223 = vshrl.u32 %v6222, 7
      %v6224 = vsub.s32 %v6221, %v6223
      %v6225 = vrot.slane %v6217, %v6224
      %v6227 = vunpack.c.l.s4 1934713408
      %v6228 = vunpack.c.0.s8 %v6227
      %v6229 = vlaneseq
      %v6230 = vshrl.u32 %v6229, 7
      %v6231 = vsub.s32 %v6228, %v6230
      %v6232 = vrot.slane %v6218, %v6231
      %v6233 = vcombine.high %v6225, 0
      %v6234 = vcombine.high %v6232, 0
      %v6237 = vunpack.c.l.s4 1983009808
      %v6238 = vunpack.c.0.s8 %v6237
      %v6239 = vlaneseq
      %v6240 = vshrl.u32 %v6239, 7
      %v6241 = vsub.s32 %v6238, %v6240
      %v6242 = vrot.slane %v6197, %v6241
      %v6245 = vunpack.c.l.s4 1983009808
      %v6246 = vunpack.c.0.s8 %v6245
      %v6247 = vlaneseq
      %v6248 = vshrl.u32 %v6247, 7
      %v6249 = vsub.s32 %v6246, %v6248
      %v6250 = vrot.slane %v6201, %v6249
      %v6251 = vcombine.low %v6242, %v6250
      %v6252 = vcombine.high %v6242, %v6250
      %v6254 = vunpack.c.l.s4 1934713408
      %v6255 = vunpack.c.0.s8 %v6254
      %v6256 = vlaneseq
      %v6257 = vshrl.u32 %v6256, 7
      %v6258 = vsub.s32 %v6255, %v6257
      %v6259 = vrot.slane %v6251, %v6258
      %v6261 = vunpack.c.l.s4 1934713408
      %v6262 = vunpack.c.0.s8 %v6261
      %v6263 = vlaneseq
      %v6264 = vshrl.u32 %v6263, 7
      %v6265 = vsub.s32 %v6262, %v6264
      %v6266 = vrot.slane %v6252, %v6265
      %v6267 = vcombine.high %v6259, 0
      %v6268 = vcombine.high %v6266, 0
      %v6271 = vpack.i.b16 %v6259, %v6225
      %v6273 = vshrl.u32 %v6225, 16
      %v6274 = vshrl.u32 %v6259, 16
      %v6275 = vpack.i.b16 %v6274, %v6273
      %v6279 = vpack.i.b16 %v6267, %v6233
      %v6281 = vshrl.u32 %v6233, 16
      %v6282 = vshrl.u32 %v6267, 16
      %v6283 = vpack.i.b16 %v6282, %v6281
      %v6287 = vpack.i.b16 %v6266, %v6232
      %v6289 = vshrl.u32 %v6232, 16
      %v6290 = vshrl.u32 %v6266, 16
      %v6291 = vpack.i.b16 %v6290, %v6289
      %v6295 = vpack.i.b16 %v6268, %v6234
      %v6297 = vshrl.u32 %v6234, 16
      %v6298 = vshrl.u32 %v6268, 16
      %v6299 = vpack.i.b16 %v6298, %v6297
      %v6301 = vcombine.low %v6271, %v6287
      %v6303 = vunpack.c.l.s4 1983009808
      %v6304 = vunpack.c.0.s8 %v6303
      %v6305 = vlaneseq
      %v6306 = vshrl.u32 %v6305, 7
      %v6307 = vsub.s32 %v6304, %v6306
      %v6308 = vrot.slane %v6301, %v6307
      %v6309 = vcombine.low %v6279, %v6295
      %v6311 = vunpack.c.l.s4 1983009808
      %v6312 = vunpack.c.0.s8 %v6311
      %v6313 = vlaneseq
      %v6314 = vshrl.u32 %v6313, 7
      %v6315 = vsub.s32 %v6312, %v6314
      %v6316 = vrot.slane %v6309, %v6315
      %v6317 = vcombine.low %v6308, %v6316
      %v6319 = vunpack.c.l.s4 1934713408
      %v6320 = vunpack.c.0.s8 %v6319
      %v6321 = vlaneseq
      %v6322 = vshrl.u32 %v6321, 7
      %v6323 = vsub.s32 %v6320, %v6322
      %v6324 = vrot.slane %v6317, %v6323
      %v6325 = vcombine.high %v6324, 0
      %v6326 = vcombine.low %v6275, %v6291
      %v6328 = vunpack.c.l.s4 1983009808
      %v6329 = vunpack.c.0.s8 %v6328
      %v6330 = vlaneseq
      %v6331 = vshrl.u32 %v6330, 7
      %v6332 = vsub.s32 %v6329, %v6331
      %v6333 = vrot.slane %v6326, %v6332
      %v6334 = vcombine.low %v6283, %v6299
      %v6336 = vunpack.c.l.s4 1983009808
      %v6337 = vunpack.c.0.s8 %v6336
      %v6338 = vlaneseq
      %v6339 = vshrl.u32 %v6338, 7
      %v6340 = vsub.s32 %v6337, %v6339
      %v6341 = vrot.slane %v6334, %v6340
      %v6342 = vcombine.low %v6333, %v6341
      %v6344 = vunpack.c.l.s4 1934713408
      %v6345 = vunpack.c.0.s8 %v6344
      %v6346 = vlaneseq
      %v6347 = vshrl.u32 %v6346, 7
      %v6348 = vsub.s32 %v6345, %v6347
      %v6349 = vrot.slane %v6342, %v6348
      %v6350 = vcombine.high %v6349, 0
      %v6353 = vpack.i.b16 %v6349, %v6324
      %v6354 = vshrl.u32 %v6324, 16
      %v6355 = vshrl.u32 %v6349, 16
      %v6356 = vpack.i.b16 %v6355, %v6354
      %v6359 = vpack.i.b16 %v6350, %v6325
      %v6360 = vshrl.u32 %v6325, 16
      %v6361 = vshrl.u32 %v6350, 16
      %v6362 = vpack.i.b16 %v6361, %v6360
      %v6364 = vsel %vm1664, %v6353, 0
      %6366 = vmatprep.subr.bf16.mxu0 0
      %6367 = vmatpush1.bf16.xpose.msra.mxu0 %v4896
      %6368 = vmatprep.subr.bf16.mxu0 0
      %6369 = vmatpush1.bf16.xpose.msra.mxu0 0
      %6370 = vmatprep.subr.bf16.mxu0 0
      %6371 = vmatpush1.bf16.xpose.msra.mxu0 0
      %6372 = vmatprep.subr.bf16.mxu0 0
      %6373 = vmatpush1.bf16.xpose.msra.mxu0 0
      %6374 = vmatprep.subr.bf16.mxu0 0
      %6375 = vmatpush1.bf16.xpose.msra.mxu0 0
      %6376 = vmatprep.subr.bf16.mxu0 0
      %6377 = vmatpush1.bf16.xpose.msra.mxu0 0
      %6378 = vmatprep.subr.bf16.mxu0 0
      %6379 = vmatpush1.bf16.xpose.msra.mxu0 0
      %6380 = vmatprep.subr.bf16.mxu0 0
      %6381 = vmatpush1.bf16.xpose.msra.mxu0 0
      %6382 = vmatprep.subr.bf16.mxu0 0
      %6383 = vmatpush1.bf16.xpose.msra.mxu0 0
      %6384 = vmatprep.subr.bf16.mxu0 0
      %6385 = vmatpush1.bf16.xpose.msra.mxu0 0
      %6386 = vmatprep.subr.bf16.mxu0 0
      %6387 = vmatpush1.bf16.xpose.msra.mxu0 0
      %6388 = vmatprep.subr.bf16.mxu0 0
      %6389 = vmatpush1.bf16.xpose.msra.mxu0 0
      %6390 = vmatprep.subr.bf16.mxu0 0
      %6391 = vmatpush1.bf16.xpose.msra.mxu0 0
      %6392 = vmatprep.subr.bf16.mxu0 0
      %6393 = vmatpush1.bf16.xpose.msra.mxu0 0
      %6394 = vmatprep.subr.bf16.mxu0 0
      %6395 = vmatpush1.bf16.xpose.msra.mxu0 0
      %6396 = vmatprep.subr.bf16.mxu0 0
      %6397 = vmatpush1.bf16.xpose.msra.mxu0 0
      %6398 = vmatprep.mubr.bf16.mxu0 0
      %6399 = vmatmul.mubr.bf16.gmra.mrb[0].mxu0 %v6364
      %v6400 = vpop.f32.mrb[0].mxu0
      %v6401 = vadd.f32 %v4893, %v6400
      %v6402 = vpop.f32.mrb[0].mxu0
      %v6403 = vpop.f32.mrb[0].mxu0
      %v6404 = vpop.f32.mrb[0].mxu0
      %6405 = vdwg.mxu0
      %v6407 = vsel %vm1664, %v6356, 0
      %6409 = vmatprep.subr.bf16.mxu0 0
      %6410 = vmatpush1.bf16.xpose.msra.mxu0 %v4939
      %6411 = vmatprep.subr.bf16.mxu0 0
      %6412 = vmatpush1.bf16.xpose.msra.mxu0 0
      %6413 = vmatprep.subr.bf16.mxu0 0
      %6414 = vmatpush1.bf16.xpose.msra.mxu0 0
      %6415 = vmatprep.subr.bf16.mxu0 0
      %6416 = vmatpush1.bf16.xpose.msra.mxu0 0
      %6417 = vmatprep.subr.bf16.mxu0 0
      %6418 = vmatpush1.bf16.xpose.msra.mxu0 0
      %6419 = vmatprep.subr.bf16.mxu0 0
      %6420 = vmatpush1.bf16.xpose.msra.mxu0 0
      %6421 = vmatprep.subr.bf16.mxu0 0
      %6422 = vmatpush1.bf16.xpose.msra.mxu0 0
      %6423 = vmatprep.subr.bf16.mxu0 0
      %6424 = vmatpush1.bf16.xpose.msra.mxu0 0
      %6425 = vmatprep.subr.bf16.mxu0 0
      %6426 = vmatpush1.bf16.xpose.msra.mxu0 0
      %6427 = vmatprep.subr.bf16.mxu0 0
      %6428 = vmatpush1.bf16.xpose.msra.mxu0 0
      %6429 = vmatprep.subr.bf16.mxu0 0
      %6430 = vmatpush1.bf16.xpose.msra.mxu0 0
      %6431 = vmatprep.subr.bf16.mxu0 0
      %6432 = vmatpush1.bf16.xpose.msra.mxu0 0
      %6433 = vmatprep.subr.bf16.mxu0 0
      %6434 = vmatpush1.bf16.xpose.msra.mxu0 0
      %6435 = vmatprep.subr.bf16.mxu0 0
      %6436 = vmatpush1.bf16.xpose.msra.mxu0 0
      %6437 = vmatprep.subr.bf16.mxu0 0
      %6438 = vmatpush1.bf16.xpose.msra.mxu0 0
      %6439 = vmatprep.subr.bf16.mxu0 0
      %6440 = vmatpush1.bf16.xpose.msra.mxu0 0
      %6441 = vmatprep.mubr.bf16.mxu0 0
      %6442 = vmatmul.mubr.bf16.gmra.mrb[0].mxu0 %v6407
      %v6443 = vpop.f32.mrb[0].mxu0
      %v6444 = vadd.f32 %v4893, %v6443
      %v6445 = vpop.f32.mrb[0].mxu0
      %v6446 = vpop.f32.mrb[0].mxu0
      %v6447 = vpop.f32.mrb[0].mxu0
      %6448 = vdwg.mxu0
      %v6450 = vsel %vm1664, %v6359, 0
      %6452 = vmatprep.subr.bf16.mxu0 0
      %6453 = vmatpush1.bf16.xpose.msra.mxu0 %v4982
      %6454 = vmatprep.subr.bf16.mxu0 0
      %6455 = vmatpush1.bf16.xpose.msra.mxu0 0
      %6456 = vmatprep.subr.bf16.mxu0 0
      %6457 = vmatpush1.bf16.xpose.msra.mxu0 0
      %6458 = vmatprep.subr.bf16.mxu0 0
      %6459 = vmatpush1.bf16.xpose.msra.mxu0 0
      %6460 = vmatprep.subr.bf16.mxu0 0
      %6461 = vmatpush1.bf16.xpose.msra.mxu0 0
      %6462 = vmatprep.subr.bf16.mxu0 0
      %6463 = vmatpush1.bf16.xpose.msra.mxu0 0
      %6464 = vmatprep.subr.bf16.mxu0 0
      %6465 = vmatpush1.bf16.xpose.msra.mxu0 0
      %6466 = vmatprep.subr.bf16.mxu0 0
      %6467 = vmatpush1.bf16.xpose.msra.mxu0 0
      %6468 = vmatprep.subr.bf16.mxu0 0
      %6469 = vmatpush1.bf16.xpose.msra.mxu0 0
      %6470 = vmatprep.subr.bf16.mxu0 0
      %6471 = vmatpush1.bf16.xpose.msra.mxu0 0
      %6472 = vmatprep.subr.bf16.mxu0 0
      %6473 = vmatpush1.bf16.xpose.msra.mxu0 0
      %6474 = vmatprep.subr.bf16.mxu0 0
      %6475 = vmatpush1.bf16.xpose.msra.mxu0 0
      %6476 = vmatprep.subr.bf16.mxu0 0
      %6477 = vmatpush1.bf16.xpose.msra.mxu0 0
      %6478 = vmatprep.subr.bf16.mxu0 0
      %6479 = vmatpush1.bf16.xpose.msra.mxu0 0
      %6480 = vmatprep.subr.bf16.mxu0 0
      %6481 = vmatpush1.bf16.xpose.msra.mxu0 0
      %6482 = vmatprep.subr.bf16.mxu0 0
      %6483 = vmatpush1.bf16.xpose.msra.mxu0 0
      %6484 = vmatprep.mubr.bf16.mxu0 0
      %6485 = vmatmul.mubr.bf16.gmra.mrb[0].mxu0 %v6450
      %v6486 = vpop.f32.mrb[0].mxu0
      %v6487 = vadd.f32 %v4893, %v6486
      %v6488 = vpop.f32.mrb[0].mxu0
      %v6489 = vpop.f32.mrb[0].mxu0
      %v6490 = vpop.f32.mrb[0].mxu0
      %6491 = vdwg.mxu0
      %v6493 = vsel %vm1664, %v6362, 0
      %6495 = vmatprep.subr.bf16.mxu0 0
      %6496 = vmatpush1.bf16.xpose.msra.mxu0 %v5025
      %6497 = vmatprep.subr.bf16.mxu0 0
      %6498 = vmatpush1.bf16.xpose.msra.mxu0 0
      %6499 = vmatprep.subr.bf16.mxu0 0
      %6500 = vmatpush1.bf16.xpose.msra.mxu0 0
      %6501 = vmatprep.subr.bf16.mxu0 0
      %6502 = vmatpush1.bf16.xpose.msra.mxu0 0
      %6503 = vmatprep.subr.bf16.mxu0 0
      %6504 = vmatpush1.bf16.xpose.msra.mxu0 0
      %6505 = vmatprep.subr.bf16.mxu0 0
      %6506 = vmatpush1.bf16.xpose.msra.mxu0 0
      %6507 = vmatprep.subr.bf16.mxu0 0
      %6508 = vmatpush1.bf16.xpose.msra.mxu0 0
      %6509 = vmatprep.subr.bf16.mxu0 0
      %6510 = vmatpush1.bf16.xpose.msra.mxu0 0
      %6511 = vmatprep.subr.bf16.mxu0 0
      %6512 = vmatpush1.bf16.xpose.msra.mxu0 0
      %6513 = vmatprep.subr.bf16.mxu0 0
      %6514 = vmatpush1.bf16.xpose.msra.mxu0 0
      %6515 = vmatprep.subr.bf16.mxu0 0
      %6516 = vmatpush1.bf16.xpose.msra.mxu0 0
      %6517 = vmatprep.subr.bf16.mxu0 0
      %6518 = vmatpush1.bf16.xpose.msra.mxu0 0
      %6519 = vmatprep.subr.bf16.mxu0 0
      %6520 = vmatpush1.bf16.xpose.msra.mxu0 0
      %6521 = vmatprep.subr.bf16.mxu0 0
      %6522 = vmatpush1.bf16.xpose.msra.mxu0 0
      %6523 = vmatprep.subr.bf16.mxu0 0
      %6524 = vmatpush1.bf16.xpose.msra.mxu0 0
      %6525 = vmatprep.subr.bf16.mxu0 0
      %6526 = vmatpush1.bf16.xpose.msra.mxu0 0
      %6527 = vmatprep.mubr.bf16.mxu0 0
      %6528 = vmatmul.mubr.bf16.gmra.mrb[0].mxu0 %v6493
      %v6529 = vpop.f32.mrb[0].mxu0
      %v6530 = vadd.f32 %v4893, %v6529
      %v6531 = vpop.f32.mrb[0].mxu0
      %v6532 = vpop.f32.mrb[0].mxu0
      %v6533 = vpop.f32.mrb[0].mxu0
      %6534 = vdwg.mxu0
      %v6535 = vsel %vm5067, %v6401, -inf
      %6536 = vmax.xlane.f32.xlu0 %v6535
      %v6537 = vpop.xlane.xlu0 %6536
      %v6538 = vsel %vm5067, %v6444, -inf
      %6539 = vmax.xlane.f32.xlu0 %v6538
      %v6540 = vpop.xlane.xlu0 %6539
      %v6541 = vsel %vm5067, %v6487, -inf
      %6542 = vmax.xlane.f32.xlu0 %v6541
      %v6543 = vpop.xlane.xlu0 %6542
      %v6544 = vsel %vm5067, %v6530, -inf
      %6545 = vmax.xlane.f32.xlu0 %v6544
      %v6546 = vpop.xlane.xlu0 %6545
      %v6547 = vsub.f32 %v6401, %v6537
      %v6548 = vsub.f32 %v6444, %v6540
      %v6549 = vsub.f32 %v6487, %v6543
      %v6550 = vsub.f32 %v6530, %v6546
      %v6551 = vmul.f32 %v6547, 1.442695
      %v6552 = vpow.pop %v6551
      %v6553 = vmul.f32 %v6548, 1.442695
      %v6554 = vpow.pop %v6553
      %v6555 = vmul.f32 %v6549, 1.442695
      %v6556 = vpow.pop %v6555
      %v6557 = vmul.f32 %v6550, 1.442695
      %v6558 = vpow.pop %v6557
      %v6559 = vsel %vm5067, %v6552, 0.0
      %6560 = vadd.xlane.f32.xlu0 %v6559
      %v6561 = vpop.xlane.xlu0 %6560
      %v6562 = vsel %vm5067, %v6554, 0.0
      %6563 = vadd.xlane.f32.xlu0 %v6562
      %v6564 = vpop.xlane.xlu0 %6563
      %v6565 = vsel %vm5067, %v6556, 0.0
      %6566 = vadd.xlane.f32.xlu0 %v6565
      %v6567 = vpop.xlane.xlu0 %6566
      %v6568 = vsel %vm5067, %v6558, 0.0
      %6569 = vadd.xlane.f32.xlu0 %v6568
      %v6570 = vpop.xlane.xlu0 %6569
      %v6571 = vrcp.pop %v6561
      %v6572 = vrcp.pop %v6564
      %v6573 = vrcp.pop %v6567
      %v6574 = vrcp.pop %v6570
      %v6575 = vmul.f32 %v6552, %v6571
      %v6576 = vmul.f32 %v6554, %v6572
      %v6577 = vmul.f32 %v6556, %v6573
      %v6578 = vmul.f32 %v6558, %v6574
      %v6579 = vpack.c.bf16 %v6575, %v6575
      %v6580 = vpack.c.bf16 %v6576, %v6576
      %v6581 = vpack.c.bf16 %v6577, %v6577
      %v6582 = vpack.c.bf16 %v6578, %v6578
      %v6584 = vsel %vm5067, %v6579, 0
      %6586 = vmatprep.subr.bf16.mxu0 0
      %6587 = vmatpush1.bf16.msra.mxu0 %v5121
      %6588 = vmatprep.subr.bf16.mxu0 0
      %6589 = vmatpush1.bf16.msra.mxu0 0
      %6590 = vmatprep.subr.bf16.mxu0 0
      %6591 = vmatpush1.bf16.msra.mxu0 0
      %6592 = vmatprep.subr.bf16.mxu0 0
      %6593 = vmatpush1.bf16.msra.mxu0 0
      %6594 = vmatprep.subr.bf16.mxu0 0
      %6595 = vmatpush1.bf16.msra.mxu0 0
      %6596 = vmatprep.subr.bf16.mxu0 0
      %6597 = vmatpush1.bf16.msra.mxu0 0
      %6598 = vmatprep.subr.bf16.mxu0 0
      %6599 = vmatpush1.bf16.msra.mxu0 0
      %6600 = vmatprep.subr.bf16.mxu0 0
      %6601 = vmatpush1.bf16.msra.mxu0 0
      %6602 = vmatprep.subr.bf16.mxu0 0
      %6603 = vmatpush1.bf16.msra.mxu0 0
      %6604 = vmatprep.subr.bf16.mxu0 0
      %6605 = vmatpush1.bf16.msra.mxu0 0
      %6606 = vmatprep.subr.bf16.mxu0 0
      %6607 = vmatpush1.bf16.msra.mxu0 0
      %6608 = vmatprep.subr.bf16.mxu0 0
      %6609 = vmatpush1.bf16.msra.mxu0 0
      %6610 = vmatprep.subr.bf16.mxu0 0
      %6611 = vmatpush1.bf16.msra.mxu0 0
      %6612 = vmatprep.subr.bf16.mxu0 0
      %6613 = vmatpush1.bf16.msra.mxu0 0
      %6614 = vmatprep.subr.bf16.mxu0 0
      %6615 = vmatpush1.bf16.msra.mxu0 0
      %6616 = vmatprep.subr.bf16.mxu0 0
      %6617 = vmatpush1.bf16.msra.mxu0 0
      %6618 = vmatprep.mubr.bf16.mxu0 0
      %6619 = vmatmul.mubr.bf16.gmra.mrb[0].mxu0 %v6584
      %v6620 = vpop.f32.mrb[0].mxu0
      %v6621 = vadd.f32 0.0, %v6620
      %v6622 = vpop.f32.mrb[0].mxu0
      %v6623 = vpop.f32.mrb[0].mxu0
      %v6624 = vpop.f32.mrb[0].mxu0
      %6625 = vdwg.mxu0
      %v6627 = vsel %vm5067, %v6580, 0
      %6629 = vmatprep.subr.bf16.mxu0 0
      %6630 = vmatpush1.bf16.msra.mxu0 %v5167
      %6631 = vmatprep.subr.bf16.mxu0 0
      %6632 = vmatpush1.bf16.msra.mxu0 0
      %6633 = vmatprep.subr.bf16.mxu0 0
      %6634 = vmatpush1.bf16.msra.mxu0 0
      %6635 = vmatprep.subr.bf16.mxu0 0
      %6636 = vmatpush1.bf16.msra.mxu0 0
      %6637 = vmatprep.subr.bf16.mxu0 0
      %6638 = vmatpush1.bf16.msra.mxu0 0
      %6639 = vmatprep.subr.bf16.mxu0 0
      %6640 = vmatpush1.bf16.msra.mxu0 0
      %6641 = vmatprep.subr.bf16.mxu0 0
      %6642 = vmatpush1.bf16.msra.mxu0 0
      %6643 = vmatprep.subr.bf16.mxu0 0
      %6644 = vmatpush1.bf16.msra.mxu0 0
      %6645 = vmatprep.subr.bf16.mxu0 0
      %6646 = vmatpush1.bf16.msra.mxu0 0
      %6647 = vmatprep.subr.bf16.mxu0 0
      %6648 = vmatpush1.bf16.msra.mxu0 0
      %6649 = vmatprep.subr.bf16.mxu0 0
      %6650 = vmatpush1.bf16.msra.mxu0 0
      %6651 = vmatprep.subr.bf16.mxu0 0
      %6652 = vmatpush1.bf16.msra.mxu0 0
      %6653 = vmatprep.subr.bf16.mxu0 0
      %6654 = vmatpush1.bf16.msra.mxu0 0
      %6655 = vmatprep.subr.bf16.mxu0 0
      %6656 = vmatpush1.bf16.msra.mxu0 0
      %6657 = vmatprep.subr.bf16.mxu0 0
      %6658 = vmatpush1.bf16.msra.mxu0 0
      %6659 = vmatprep.subr.bf16.mxu0 0
      %6660 = vmatpush1.bf16.msra.mxu0 0
      %6661 = vmatprep.mubr.bf16.mxu0 0
      %6662 = vmatmul.mubr.bf16.gmra.mrb[0].mxu0 %v6627
      %v6663 = vpop.f32.mrb[0].mxu0
      %v6664 = vadd.f32 0.0, %v6663
      %v6665 = vpop.f32.mrb[0].mxu0
      %v6666 = vpop.f32.mrb[0].mxu0
      %v6667 = vpop.f32.mrb[0].mxu0
      %6668 = vdwg.mxu0
      %v6670 = vsel %vm5067, %v6581, 0
      %6672 = vmatprep.subr.bf16.mxu0 0
      %6673 = vmatpush1.bf16.msra.mxu0 %v5213
      %6674 = vmatprep.subr.bf16.mxu0 0
      %6675 = vmatpush1.bf16.msra.mxu0 0
      %6676 = vmatprep.subr.bf16.mxu0 0
      %6677 = vmatpush1.bf16.msra.mxu0 0
      %6678 = vmatprep.subr.bf16.mxu0 0
      %6679 = vmatpush1.bf16.msra.mxu0 0
      %6680 = vmatprep.subr.bf16.mxu0 0
      %6681 = vmatpush1.bf16.msra.mxu0 0
      %6682 = vmatprep.subr.bf16.mxu0 0
      %6683 = vmatpush1.bf16.msra.mxu0 0
      %6684 = vmatprep.subr.bf16.mxu0 0
      %6685 = vmatpush1.bf16.msra.mxu0 0
      %6686 = vmatprep.subr.bf16.mxu0 0
      %6687 = vmatpush1.bf16.msra.mxu0 0
      %6688 = vmatprep.subr.bf16.mxu0 0
      %6689 = vmatpush1.bf16.msra.mxu0 0
      %6690 = vmatprep.subr.bf16.mxu0 0
      %6691 = vmatpush1.bf16.msra.mxu0 0
      %6692 = vmatprep.subr.bf16.mxu0 0
      %6693 = vmatpush1.bf16.msra.mxu0 0
      %6694 = vmatprep.subr.bf16.mxu0 0
      %6695 = vmatpush1.bf16.msra.mxu0 0
      %6696 = vmatprep.subr.bf16.mxu0 0
      %6697 = vmatpush1.bf16.msra.mxu0 0
      %6698 = vmatprep.subr.bf16.mxu0 0
      %6699 = vmatpush1.bf16.msra.mxu0 0
      %6700 = vmatprep.subr.bf16.mxu0 0
      %6701 = vmatpush1.bf16.msra.mxu0 0
      %6702 = vmatprep.subr.bf16.mxu0 0
      %6703 = vmatpush1.bf16.msra.mxu0 0
      %6704 = vmatprep.mubr.bf16.mxu0 0
      %6705 = vmatmul.mubr.bf16.gmra.mrb[0].mxu0 %v6670
      %v6706 = vpop.f32.mrb[0].mxu0
      %v6707 = vadd.f32 0.0, %v6706
      %v6708 = vpop.f32.mrb[0].mxu0
      %v6709 = vpop.f32.mrb[0].mxu0
      %v6710 = vpop.f32.mrb[0].mxu0
      %6711 = vdwg.mxu0
      %v6713 = vsel %vm5067, %v6582, 0
      %6715 = vmatprep.subr.bf16.mxu0 0
      %6716 = vmatpush1.bf16.msra.mxu0 %v5259
      %6717 = vmatprep.subr.bf16.mxu0 0
      %6718 = vmatpush1.bf16.msra.mxu0 0
      %6719 = vmatprep.subr.bf16.mxu0 0
      %6720 = vmatpush1.bf16.msra.mxu0 0
      %6721 = vmatprep.subr.bf16.mxu0 0
      %6722 = vmatpush1.bf16.msra.mxu0 0
      %6723 = vmatprep.subr.bf16.mxu0 0
      %6724 = vmatpush1.bf16.msra.mxu0 0
      %6725 = vmatprep.subr.bf16.mxu0 0
      %6726 = vmatpush1.bf16.msra.mxu0 0
      %6727 = vmatprep.subr.bf16.mxu0 0
      %6728 = vmatpush1.bf16.msra.mxu0 0
      %6729 = vmatprep.subr.bf16.mxu0 0
      %6730 = vmatpush1.bf16.msra.mxu0 0
      %6731 = vmatprep.subr.bf16.mxu0 0
      %6732 = vmatpush1.bf16.msra.mxu0 0
      %6733 = vmatprep.subr.bf16.mxu0 0
      %6734 = vmatpush1.bf16.msra.mxu0 0
      %6735 = vmatprep.subr.bf16.mxu0 0
      %6736 = vmatpush1.bf16.msra.mxu0 0
      %6737 = vmatprep.subr.bf16.mxu0 0
      %6738 = vmatpush1.bf16.msra.mxu0 0
      %6739 = vmatprep.subr.bf16.mxu0 0
      %6740 = vmatpush1.bf16.msra.mxu0 0
      %6741 = vmatprep.subr.bf16.mxu0 0
      %6742 = vmatpush1.bf16.msra.mxu0 0
      %6743 = vmatprep.subr.bf16.mxu0 0
      %6744 = vmatpush1.bf16.msra.mxu0 0
      %6745 = vmatprep.subr.bf16.mxu0 0
      %6746 = vmatpush1.bf16.msra.mxu0 0
      %6747 = vmatprep.mubr.bf16.mxu0 0
      %6748 = vmatmul.mubr.bf16.gmra.mrb[0].mxu0 %v6713
      %v6749 = vpop.f32.mrb[0].mxu0
      %v6750 = vadd.f32 0.0, %v6749
      %v6751 = vpop.f32.mrb[0].mxu0
      %v6752 = vpop.f32.mrb[0].mxu0
      %v6753 = vpop.f32.mrb[0].mxu0
      %6754 = vdwg.mxu0
      %v6755 = vpack.c.bf16 %v6621, %v6621
      %v6757 = vunpack.c.l.s4 1983009808
      %v6758 = vunpack.c.0.s8 %v6757
      %v6759 = vlaneseq
      %v6760 = vshrl.u32 %v6759, 7
      %v6761 = vsub.s32 %v6758, %v6760
      %v6762 = vrot.slane %v6755, %v6761
      %v6763 = vpack.c.bf16 %v6707, %v6707
      %v6765 = vunpack.c.l.s4 1983009808
      %v6766 = vunpack.c.0.s8 %v6765
      %v6767 = vlaneseq
      %v6768 = vshrl.u32 %v6767, 7
      %v6769 = vsub.s32 %v6766, %v6768
      %v6770 = vrot.slane %v6763, %v6769
      %v6771 = vcombine.low %v6762, %v6770
      %v6772 = vcombine.high %v6762, %v6770
      %v6774 = vunpack.c.l.s4 1934713408
      %v6775 = vunpack.c.0.s8 %v6774
      %v6776 = vlaneseq
      %v6777 = vshrl.u32 %v6776, 7
      %v6778 = vsub.s32 %v6775, %v6777
      %v6779 = vrot.slane %v6771, %v6778
      %v6781 = vunpack.c.l.s4 1934713408
      %v6782 = vunpack.c.0.s8 %v6781
      %v6783 = vlaneseq
      %v6784 = vshrl.u32 %v6783, 7
      %v6785 = vsub.s32 %v6782, %v6784
      %v6786 = vrot.slane %v6772, %v6785
      %v6787 = vcombine.high %v6779, 0
      %v6788 = vcombine.high %v6786, 0
      %v6789 = vpack.c.bf16 %v6664, %v6664
      %v6791 = vunpack.c.l.s4 1983009808
      %v6792 = vunpack.c.0.s8 %v6791
      %v6793 = vlaneseq
      %v6794 = vshrl.u32 %v6793, 7
      %v6795 = vsub.s32 %v6792, %v6794
      %v6796 = vrot.slane %v6789, %v6795
      %v6797 = vpack.c.bf16 %v6750, %v6750
      %v6799 = vunpack.c.l.s4 1983009808
      %v6800 = vunpack.c.0.s8 %v6799
      %v6801 = vlaneseq
      %v6802 = vshrl.u32 %v6801, 7
      %v6803 = vsub.s32 %v6800, %v6802
      %v6804 = vrot.slane %v6797, %v6803
      %v6805 = vcombine.low %v6796, %v6804
      %v6806 = vcombine.high %v6796, %v6804
      %v6808 = vunpack.c.l.s4 1934713408
      %v6809 = vunpack.c.0.s8 %v6808
      %v6810 = vlaneseq
      %v6811 = vshrl.u32 %v6810, 7
      %v6812 = vsub.s32 %v6809, %v6811
      %v6813 = vrot.slane %v6805, %v6812
      %v6815 = vunpack.c.l.s4 1934713408
      %v6816 = vunpack.c.0.s8 %v6815
      %v6817 = vlaneseq
      %v6818 = vshrl.u32 %v6817, 7
      %v6819 = vsub.s32 %v6816, %v6818
      %v6820 = vrot.slane %v6806, %v6819
      %v6821 = vcombine.high %v6813, 0
      %v6822 = vcombine.high %v6820, 0
      %v6825 = vpack.i.b16 %v6813, %v6779
      %v6827 = vshrl.u32 %v6779, 16
      %v6828 = vshrl.u32 %v6813, 16
      %v6829 = vpack.i.b16 %v6828, %v6827
      %v6833 = vpack.i.b16 %v6821, %v6787
      %v6835 = vshrl.u32 %v6787, 16
      %v6836 = vshrl.u32 %v6821, 16
      %v6837 = vpack.i.b16 %v6836, %v6835
      %v6841 = vpack.i.b16 %v6820, %v6786
      %v6843 = vshrl.u32 %v6786, 16
      %v6844 = vshrl.u32 %v6820, 16
      %v6845 = vpack.i.b16 %v6844, %v6843
      %v6849 = vpack.i.b16 %v6822, %v6788
      %v6851 = vshrl.u32 %v6788, 16
      %v6852 = vshrl.u32 %v6822, 16
      %v6853 = vpack.i.b16 %v6852, %v6851
      %v6855 = vcombine.low %v6825, %v6841
      %v6857 = vunpack.c.l.s4 1983009808
      %v6858 = vunpack.c.0.s8 %v6857
      %v6859 = vlaneseq
      %v6860 = vshrl.u32 %v6859, 7
      %v6861 = vsub.s32 %v6858, %v6860
      %v6862 = vrot.slane %v6855, %v6861
      %v6863 = vcombine.low %v6833, %v6849
      %v6865 = vunpack.c.l.s4 1983009808
      %v6866 = vunpack.c.0.s8 %v6865
      %v6867 = vlaneseq
      %v6868 = vshrl.u32 %v6867, 7
      %v6869 = vsub.s32 %v6866, %v6868
      %v6870 = vrot.slane %v6863, %v6869
      %v6871 = vcombine.low %v6862, %v6870
      %v6873 = vunpack.c.l.s4 1934713408
      %v6874 = vunpack.c.0.s8 %v6873
      %v6875 = vlaneseq
      %v6876 = vshrl.u32 %v6875, 7
      %v6877 = vsub.s32 %v6874, %v6876
      %v6878 = vrot.slane %v6871, %v6877
      %v6879 = vcombine.high %v6878, 0
      %v6880 = vcombine.low %v6829, %v6845
      %v6882 = vunpack.c.l.s4 1983009808
      %v6883 = vunpack.c.0.s8 %v6882
      %v6884 = vlaneseq
      %v6885 = vshrl.u32 %v6884, 7
      %v6886 = vsub.s32 %v6883, %v6885
      %v6887 = vrot.slane %v6880, %v6886
      %v6888 = vcombine.low %v6837, %v6853
      %v6890 = vunpack.c.l.s4 1983009808
      %v6891 = vunpack.c.0.s8 %v6890
      %v6892 = vlaneseq
      %v6893 = vshrl.u32 %v6892, 7
      %v6894 = vsub.s32 %v6891, %v6893
      %v6895 = vrot.slane %v6888, %v6894
      %v6896 = vcombine.low %v6887, %v6895
      %v6898 = vunpack.c.l.s4 1934713408
      %v6899 = vunpack.c.0.s8 %v6898
      %v6900 = vlaneseq
      %v6901 = vshrl.u32 %v6900, 7
      %v6902 = vsub.s32 %v6899, %v6901
      %v6903 = vrot.slane %v6896, %v6902
      %v6904 = vcombine.high %v6903, 0
      %v6907 = vpack.i.b16 %v6903, %v6878
      %v6908 = vshrl.u32 %v6878, 16
      %v6909 = vshrl.u32 %v6903, 16
      %v6910 = vpack.i.b16 %v6909, %v6908
      %v6913 = vpack.i.b16 %v6904, %v6879
      %v6914 = vshrl.u32 %v6879, 16
      %v6915 = vshrl.u32 %v6904, 16
      %v6916 = vpack.i.b16 %v6915, %v6914
      %6917 = vrot.lane.b32.xlu0 %v6910, 8
      %v6918 = vpop.permute.xlu0 %6917
      %6919 = vrot.lane.b32.xlu0 %v6913, 16
      %v6920 = vpop.permute.xlu0 %6919
      %6921 = vrot.lane.b32.xlu0 %v6916, 24
      %v6922 = vpop.permute.xlu0 %6921
      %v6925 = vsel %vm1664, %v6907, %v6918
      %v6927 = vsel %vm2253, %v6925, %v6920
      %v6929 = vsel %vm2256, %v6927, %v6922
      %v6930 = vsel %vm1029, %v6929, 0
      %6932 = vmatprep.subr.bf16.mxu0 0
      %6933 = vmatpush1.bf16.msra.mxu0 %v4842
      %6934 = vmatprep.subr.bf16.mxu0 0
      %6935 = vmatpush1.bf16.msra.mxu0 %v4843
      %6936 = vmatprep.subr.bf16.mxu0 0
      %6937 = vmatpush1.bf16.msra.mxu0 0
      %6938 = vmatprep.subr.bf16.mxu0 0
      %6939 = vmatpush1.bf16.msra.mxu0 0
      %6940 = vmatprep.subr.bf16.mxu0 0
      %6941 = vmatpush1.bf16.msra.mxu0 0
      %6942 = vmatprep.subr.bf16.mxu0 0
      %6943 = vmatpush1.bf16.msra.mxu0 0
      %6944 = vmatprep.subr.bf16.mxu0 0
      %6945 = vmatpush1.bf16.msra.mxu0 0
      %6946 = vmatprep.subr.bf16.mxu0 0
      %6947 = vmatpush1.bf16.msra.mxu0 0
      %6948 = vmatprep.subr.bf16.mxu0 0
      %6949 = vmatpush1.bf16.msra.mxu0 0
      %6950 = vmatprep.subr.bf16.mxu0 0
      %6951 = vmatpush1.bf16.msra.mxu0 0
      %6952 = vmatprep.subr.bf16.mxu0 0
      %6953 = vmatpush1.bf16.msra.mxu0 0
      %6954 = vmatprep.subr.bf16.mxu0 0
      %6955 = vmatpush1.bf16.msra.mxu0 0
      %6956 = vmatprep.subr.bf16.mxu0 0
      %6957 = vmatpush1.bf16.msra.mxu0 0
      %6958 = vmatprep.subr.bf16.mxu0 0
      %6959 = vmatpush1.bf16.msra.mxu0 0
      %6960 = vmatprep.subr.bf16.mxu0 0
      %6961 = vmatpush1.bf16.msra.mxu0 0
      %6962 = vmatprep.subr.bf16.mxu0 0
      %6963 = vmatpush1.bf16.msra.mxu0 0
      %6964 = vmatprep.mubr.bf16.mxu0 0
      %6965 = vmatmul.mubr.bf16.gmra.mrb[0].mxu0 %v6930
      %v6966 = vpop.f32.mrb[0].mxu0
      %v6967 = vadd.f32 %v4832, %v6966
      %v6968 = vpop.f32.mrb[0].mxu0
      %v6969 = vpop.f32.mrb[0].mxu0
      %v6970 = vpop.f32.mrb[0].mxu0
      %6971 = vdwg.mxu0
      %v6972 = vadd.f32 %v6148, %v6967
      %6973 = vmatprep.subr.bf16.mxu0 0
      %6974 = vmatpush1.bf16.xpose.msra.mxu0 %v5526
      %6975 = vmatprep.subr.bf16.mxu0 0
      %6976 = vmatpush1.bf16.xpose.msra.mxu0 0
      %6977 = vmatprep.subr.bf16.mxu0 0
      %6978 = vmatpush1.bf16.xpose.msra.mxu0 0
      %6979 = vmatprep.subr.bf16.mxu0 0
      %6980 = vmatpush1.bf16.xpose.msra.mxu0 0
      %6981 = vmatprep.subr.bf16.mxu0 0
      %6982 = vmatpush1.bf16.xpose.msra.mxu0 0
      %6983 = vmatprep.subr.bf16.mxu0 0
      %6984 = vmatpush1.bf16.xpose.msra.mxu0 0
      %6985 = vmatprep.subr.bf16.mxu0 0
      %6986 = vmatpush1.bf16.xpose.msra.mxu0 0
      %6987 = vmatprep.subr.bf16.mxu0 0
      %6988 = vmatpush1.bf16.xpose.msra.mxu0 0
      %6989 = vmatprep.subr.bf16.mxu0 0
      %6990 = vmatpush1.bf16.xpose.msra.mxu0 0
      %6991 = vmatprep.subr.bf16.mxu0 0
      %6992 = vmatpush1.bf16.xpose.msra.mxu0 0
      %6993 = vmatprep.subr.bf16.mxu0 0
      %6994 = vmatpush1.bf16.xpose.msra.mxu0 0
      %6995 = vmatprep.subr.bf16.mxu0 0
      %6996 = vmatpush1.bf16.xpose.msra.mxu0 0
      %6997 = vmatprep.subr.bf16.mxu0 0
      %6998 = vmatpush1.bf16.xpose.msra.mxu0 0
      %6999 = vmatprep.subr.bf16.mxu0 0
      %7000 = vmatpush1.bf16.xpose.msra.mxu0 0
      %7001 = vmatprep.subr.bf16.mxu0 0
      %7002 = vmatpush1.bf16.xpose.msra.mxu0 0
      %7003 = vmatprep.subr.bf16.mxu0 0
      %7004 = vmatpush1.bf16.xpose.msra.mxu0 0
      %7005 = vmatprep.mubr.bf16.mxu0 0
      %7006 = vmatmul.mubr.bf16.gmra.mrb[0].mxu0 %v6364
      %v7007 = vpop.f32.mrb[0].mxu0
      %v7008 = vadd.f32 %v5523, %v7007
      %v7009 = vpop.f32.mrb[0].mxu0
      %v7010 = vpop.f32.mrb[0].mxu0
      %v7011 = vpop.f32.mrb[0].mxu0
      %7012 = vdwg.mxu0
      %7013 = vmatprep.subr.bf16.mxu0 0
      %7014 = vmatpush1.bf16.xpose.msra.mxu0 %v5569
      %7015 = vmatprep.subr.bf16.mxu0 0
      %7016 = vmatpush1.bf16.xpose.msra.mxu0 0
      %7017 = vmatprep.subr.bf16.mxu0 0
      %7018 = vmatpush1.bf16.xpose.msra.mxu0 0
      %7019 = vmatprep.subr.bf16.mxu0 0
      %7020 = vmatpush1.bf16.xpose.msra.mxu0 0
      %7021 = vmatprep.subr.bf16.mxu0 0
      %7022 = vmatpush1.bf16.xpose.msra.mxu0 0
      %7023 = vmatprep.subr.bf16.mxu0 0
      %7024 = vmatpush1.bf16.xpose.msra.mxu0 0
      %7025 = vmatprep.subr.bf16.mxu0 0
      %7026 = vmatpush1.bf16.xpose.msra.mxu0 0
      %7027 = vmatprep.subr.bf16.mxu0 0
      %7028 = vmatpush1.bf16.xpose.msra.mxu0 0
      %7029 = vmatprep.subr.bf16.mxu0 0
      %7030 = vmatpush1.bf16.xpose.msra.mxu0 0
      %7031 = vmatprep.subr.bf16.mxu0 0
      %7032 = vmatpush1.bf16.xpose.msra.mxu0 0
      %7033 = vmatprep.subr.bf16.mxu0 0
      %7034 = vmatpush1.bf16.xpose.msra.mxu0 0
      %7035 = vmatprep.subr.bf16.mxu0 0
      %7036 = vmatpush1.bf16.xpose.msra.mxu0 0
      %7037 = vmatprep.subr.bf16.mxu0 0
      %7038 = vmatpush1.bf16.xpose.msra.mxu0 0
      %7039 = vmatprep.subr.bf16.mxu0 0
      %7040 = vmatpush1.bf16.xpose.msra.mxu0 0
      %7041 = vmatprep.subr.bf16.mxu0 0
      %7042 = vmatpush1.bf16.xpose.msra.mxu0 0
      %7043 = vmatprep.subr.bf16.mxu0 0
      %7044 = vmatpush1.bf16.xpose.msra.mxu0 0
      %7045 = vmatprep.mubr.bf16.mxu0 0
      %7046 = vmatmul.mubr.bf16.gmra.mrb[0].mxu0 %v6407
      %v7047 = vpop.f32.mrb[0].mxu0
      %v7048 = vadd.f32 %v5523, %v7047
      %v7049 = vpop.f32.mrb[0].mxu0
      %v7050 = vpop.f32.mrb[0].mxu0
      %v7051 = vpop.f32.mrb[0].mxu0
      %7052 = vdwg.mxu0
      %7053 = vmatprep.subr.bf16.mxu0 0
      %7054 = vmatpush1.bf16.xpose.msra.mxu0 %v5612
      %7055 = vmatprep.subr.bf16.mxu0 0
      %7056 = vmatpush1.bf16.xpose.msra.mxu0 0
      %7057 = vmatprep.subr.bf16.mxu0 0
      %7058 = vmatpush1.bf16.xpose.msra.mxu0 0
      %7059 = vmatprep.subr.bf16.mxu0 0
      %7060 = vmatpush1.bf16.xpose.msra.mxu0 0
      %7061 = vmatprep.subr.bf16.mxu0 0
      %7062 = vmatpush1.bf16.xpose.msra.mxu0 0
      %7063 = vmatprep.subr.bf16.mxu0 0
      %7064 = vmatpush1.bf16.xpose.msra.mxu0 0
      %7065 = vmatprep.subr.bf16.mxu0 0
      %7066 = vmatpush1.bf16.xpose.msra.mxu0 0
      %7067 = vmatprep.subr.bf16.mxu0 0
      %7068 = vmatpush1.bf16.xpose.msra.mxu0 0
      %7069 = vmatprep.subr.bf16.mxu0 0
      %7070 = vmatpush1.bf16.xpose.msra.mxu0 0
      %7071 = vmatprep.subr.bf16.mxu0 0
      %7072 = vmatpush1.bf16.xpose.msra.mxu0 0
      %7073 = vmatprep.subr.bf16.mxu0 0
      %7074 = vmatpush1.bf16.xpose.msra.mxu0 0
      %7075 = vmatprep.subr.bf16.mxu0 0
      %7076 = vmatpush1.bf16.xpose.msra.mxu0 0
      %7077 = vmatprep.subr.bf16.mxu0 0
      %7078 = vmatpush1.bf16.xpose.msra.mxu0 0
      %7079 = vmatprep.subr.bf16.mxu0 0
      %7080 = vmatpush1.bf16.xpose.msra.mxu0 0
      %7081 = vmatprep.subr.bf16.mxu0 0
      %7082 = vmatpush1.bf16.xpose.msra.mxu0 0
      %7083 = vmatprep.subr.bf16.mxu0 0
      %7084 = vmatpush1.bf16.xpose.msra.mxu0 0
      %7085 = vmatprep.mubr.bf16.mxu0 0
      %7086 = vmatmul.mubr.bf16.gmra.mrb[0].mxu0 %v6450
      %v7087 = vpop.f32.mrb[0].mxu0
      %v7088 = vadd.f32 %v5523, %v7087
      %v7089 = vpop.f32.mrb[0].mxu0
      %v7090 = vpop.f32.mrb[0].mxu0
      %v7091 = vpop.f32.mrb[0].mxu0
      %7092 = vdwg.mxu0
      %7093 = vmatprep.subr.bf16.mxu0 0
      %7094 = vmatpush1.bf16.xpose.msra.mxu0 %v5655
      %7095 = vmatprep.subr.bf16.mxu0 0
      %7096 = vmatpush1.bf16.xpose.msra.mxu0 0
      %7097 = vmatprep.subr.bf16.mxu0 0
      %7098 = vmatpush1.bf16.xpose.msra.mxu0 0
      %7099 = vmatprep.subr.bf16.mxu0 0
      %7100 = vmatpush1.bf16.xpose.msra.mxu0 0
      %7101 = vmatprep.subr.bf16.mxu0 0
      %7102 = vmatpush1.bf16.xpose.msra.mxu0 0
      %7103 = vmatprep.subr.bf16.mxu0 0
      %7104 = vmatpush1.bf16.xpose.msra.mxu0 0
      %7105 = vmatprep.subr.bf16.mxu0 0
      %7106 = vmatpush1.bf16.xpose.msra.mxu0 0
      %7107 = vmatprep.subr.bf16.mxu0 0
      %7108 = vmatpush1.bf16.xpose.msra.mxu0 0
      %7109 = vmatprep.subr.bf16.mxu0 0
      %7110 = vmatpush1.bf16.xpose.msra.mxu0 0
      %7111 = vmatprep.subr.bf16.mxu0 0
      %7112 = vmatpush1.bf16.xpose.msra.mxu0 0
      %7113 = vmatprep.subr.bf16.mxu0 0
      %7114 = vmatpush1.bf16.xpose.msra.mxu0 0
      %7115 = vmatprep.subr.bf16.mxu0 0
      %7116 = vmatpush1.bf16.xpose.msra.mxu0 0
      %7117 = vmatprep.subr.bf16.mxu0 0
      %7118 = vmatpush1.bf16.xpose.msra.mxu0 0
      %7119 = vmatprep.subr.bf16.mxu0 0
      %7120 = vmatpush1.bf16.xpose.msra.mxu0 0
      %7121 = vmatprep.subr.bf16.mxu0 0
      %7122 = vmatpush1.bf16.xpose.msra.mxu0 0
      %7123 = vmatprep.subr.bf16.mxu0 0
      %7124 = vmatpush1.bf16.xpose.msra.mxu0 0
      %7125 = vmatprep.mubr.bf16.mxu0 0
      %7126 = vmatmul.mubr.bf16.gmra.mrb[0].mxu0 %v6493
      %v7127 = vpop.f32.mrb[0].mxu0
      %v7128 = vadd.f32 %v5523, %v7127
      %v7129 = vpop.f32.mrb[0].mxu0
      %v7130 = vpop.f32.mrb[0].mxu0
      %v7131 = vpop.f32.mrb[0].mxu0
      %7132 = vdwg.mxu0
      %v7133 = vsel %vm5697, %v7008, -inf
      %7134 = vmax.xlane.f32.xlu0 %v7133
      %v7135 = vpop.xlane.xlu0 %7134
      %v7136 = vsel %vm5697, %v7048, -inf
      %7137 = vmax.xlane.f32.xlu0 %v7136
      %v7138 = vpop.xlane.xlu0 %7137
      %v7139 = vsel %vm5697, %v7088, -inf
      %7140 = vmax.xlane.f32.xlu0 %v7139
      %v7141 = vpop.xlane.xlu0 %7140
      %v7142 = vsel %vm5697, %v7128, -inf
      %7143 = vmax.xlane.f32.xlu0 %v7142
      %v7144 = vpop.xlane.xlu0 %7143
      %v7145 = vsub.f32 %v7008, %v7135
      %v7146 = vsub.f32 %v7048, %v7138
      %v7147 = vsub.f32 %v7088, %v7141
      %v7148 = vsub.f32 %v7128, %v7144
      %v7149 = vmul.f32 %v7145, 1.442695
      %v7150 = vpow.pop %v7149
      %v7151 = vmul.f32 %v7146, 1.442695
      %v7152 = vpow.pop %v7151
      %v7153 = vmul.f32 %v7147, 1.442695
      %v7154 = vpow.pop %v7153
      %v7155 = vmul.f32 %v7148, 1.442695
      %v7156 = vpow.pop %v7155
      %v7157 = vsel %vm5697, %v7150, 0.0
      %7158 = vadd.xlane.f32.xlu0 %v7157
      %v7159 = vpop.xlane.xlu0 %7158
      %v7160 = vsel %vm5697, %v7152, 0.0
      %7161 = vadd.xlane.f32.xlu0 %v7160
      %v7162 = vpop.xlane.xlu0 %7161
      %v7163 = vsel %vm5697, %v7154, 0.0
      %7164 = vadd.xlane.f32.xlu0 %v7163
      %v7165 = vpop.xlane.xlu0 %7164
      %v7166 = vsel %vm5697, %v7156, 0.0
      %7167 = vadd.xlane.f32.xlu0 %v7166
      %v7168 = vpop.xlane.xlu0 %7167
      %v7169 = vrcp.pop %v7159
      %v7170 = vrcp.pop %v7162
      %v7171 = vrcp.pop %v7165
      %v7172 = vrcp.pop %v7168
      %v7173 = vmul.f32 %v7150, %v7169
      %v7174 = vmul.f32 %v7152, %v7170
      %v7175 = vmul.f32 %v7154, %v7171
      %v7176 = vmul.f32 %v7156, %v7172
      %v7177 = vpack.c.bf16 %v7173, %v7173
      %v7178 = vpack.c.bf16 %v7174, %v7174
      %v7179 = vpack.c.bf16 %v7175, %v7175
      %v7180 = vpack.c.bf16 %v7176, %v7176
      %v7182 = vsel %vm5697, %v7177, 0
      %7184 = vmatprep.subr.bf16.mxu0 0
      %7185 = vmatpush1.bf16.msra.mxu0 %v5751
      %7186 = vmatprep.subr.bf16.mxu0 0
      %7187 = vmatpush1.bf16.msra.mxu0 0
      %7188 = vmatprep.subr.bf16.mxu0 0
      %7189 = vmatpush1.bf16.msra.mxu0 0
      %7190 = vmatprep.subr.bf16.mxu0 0
      %7191 = vmatpush1.bf16.msra.mxu0 0
      %7192 = vmatprep.subr.bf16.mxu0 0
      %7193 = vmatpush1.bf16.msra.mxu0 0
      %7194 = vmatprep.subr.bf16.mxu0 0
      %7195 = vmatpush1.bf16.msra.mxu0 0
      %7196 = vmatprep.subr.bf16.mxu0 0
      %7197 = vmatpush1.bf16.msra.mxu0 0
      %7198 = vmatprep.subr.bf16.mxu0 0
      %7199 = vmatpush1.bf16.msra.mxu0 0
      %7200 = vmatprep.subr.bf16.mxu0 0
      %7201 = vmatpush1.bf16.msra.mxu0 0
      %7202 = vmatprep.subr.bf16.mxu0 0
      %7203 = vmatpush1.bf16.msra.mxu0 0
      %7204 = vmatprep.subr.bf16.mxu0 0
      %7205 = vmatpush1.bf16.msra.mxu0 0
      %7206 = vmatprep.subr.bf16.mxu0 0
      %7207 = vmatpush1.bf16.msra.mxu0 0
      %7208 = vmatprep.subr.bf16.mxu0 0
      %7209 = vmatpush1.bf16.msra.mxu0 0
      %7210 = vmatprep.subr.bf16.mxu0 0
      %7211 = vmatpush1.bf16.msra.mxu0 0
      %7212 = vmatprep.subr.bf16.mxu0 0
      %7213 = vmatpush1.bf16.msra.mxu0 0
      %7214 = vmatprep.subr.bf16.mxu0 0
      %7215 = vmatpush1.bf16.msra.mxu0 0
      %7216 = vmatprep.mubr.bf16.mxu0 0
      %7217 = vmatmul.mubr.bf16.gmra.mrb[0].mxu0 %v7182
      %v7218 = vpop.f32.mrb[0].mxu0
      %v7219 = vadd.f32 0.0, %v7218
      %v7220 = vpop.f32.mrb[0].mxu0
      %v7221 = vpop.f32.mrb[0].mxu0
      %v7222 = vpop.f32.mrb[0].mxu0
      %7223 = vdwg.mxu0
      %v7225 = vsel %vm5697, %v7178, 0
      %7227 = vmatprep.subr.bf16.mxu0 0
      %7228 = vmatpush1.bf16.msra.mxu0 %v5797
      %7229 = vmatprep.subr.bf16.mxu0 0
      %7230 = vmatpush1.bf16.msra.mxu0 0
      %7231 = vmatprep.subr.bf16.mxu0 0
      %7232 = vmatpush1.bf16.msra.mxu0 0
      %7233 = vmatprep.subr.bf16.mxu0 0
      %7234 = vmatpush1.bf16.msra.mxu0 0
      %7235 = vmatprep.subr.bf16.mxu0 0
      %7236 = vmatpush1.bf16.msra.mxu0 0
      %7237 = vmatprep.subr.bf16.mxu0 0
      %7238 = vmatpush1.bf16.msra.mxu0 0
      %7239 = vmatprep.subr.bf16.mxu0 0
      %7240 = vmatpush1.bf16.msra.mxu0 0
      %7241 = vmatprep.subr.bf16.mxu0 0
      %7242 = vmatpush1.bf16.msra.mxu0 0
      %7243 = vmatprep.subr.bf16.mxu0 0
      %7244 = vmatpush1.bf16.msra.mxu0 0
      %7245 = vmatprep.subr.bf16.mxu0 0
      %7246 = vmatpush1.bf16.msra.mxu0 0
      %7247 = vmatprep.subr.bf16.mxu0 0
      %7248 = vmatpush1.bf16.msra.mxu0 0
      %7249 = vmatprep.subr.bf16.mxu0 0
      %7250 = vmatpush1.bf16.msra.mxu0 0
      %7251 = vmatprep.subr.bf16.mxu0 0
      %7252 = vmatpush1.bf16.msra.mxu0 0
      %7253 = vmatprep.subr.bf16.mxu0 0
      %7254 = vmatpush1.bf16.msra.mxu0 0
      %7255 = vmatprep.subr.bf16.mxu0 0
      %7256 = vmatpush1.bf16.msra.mxu0 0
      %7257 = vmatprep.subr.bf16.mxu0 0
      %7258 = vmatpush1.bf16.msra.mxu0 0
      %7259 = vmatprep.mubr.bf16.mxu0 0
      %7260 = vmatmul.mubr.bf16.gmra.mrb[0].mxu0 %v7225
      %v7261 = vpop.f32.mrb[0].mxu0
      %v7262 = vadd.f32 0.0, %v7261
      %v7263 = vpop.f32.mrb[0].mxu0
      %v7264 = vpop.f32.mrb[0].mxu0
      %v7265 = vpop.f32.mrb[0].mxu0
      %7266 = vdwg.mxu0
      %v7268 = vsel %vm5697, %v7179, 0
      %7270 = vmatprep.subr.bf16.mxu0 0
      %7271 = vmatpush1.bf16.msra.mxu0 %v5843
      %7272 = vmatprep.subr.bf16.mxu0 0
      %7273 = vmatpush1.bf16.msra.mxu0 0
      %7274 = vmatprep.subr.bf16.mxu0 0
      %7275 = vmatpush1.bf16.msra.mxu0 0
      %7276 = vmatprep.subr.bf16.mxu0 0
      %7277 = vmatpush1.bf16.msra.mxu0 0
      %7278 = vmatprep.subr.bf16.mxu0 0
      %7279 = vmatpush1.bf16.msra.mxu0 0
      %7280 = vmatprep.subr.bf16.mxu0 0
      %7281 = vmatpush1.bf16.msra.mxu0 0
      %7282 = vmatprep.subr.bf16.mxu0 0
      %7283 = vmatpush1.bf16.msra.mxu0 0
      %7284 = vmatprep.subr.bf16.mxu0 0
      %7285 = vmatpush1.bf16.msra.mxu0 0
      %7286 = vmatprep.subr.bf16.mxu0 0
      %7287 = vmatpush1.bf16.msra.mxu0 0
      %7288 = vmatprep.subr.bf16.mxu0 0
      %7289 = vmatpush1.bf16.msra.mxu0 0
      %7290 = vmatprep.subr.bf16.mxu0 0
      %7291 = vmatpush1.bf16.msra.mxu0 0
      %7292 = vmatprep.subr.bf16.mxu0 0
      %7293 = vmatpush1.bf16.msra.mxu0 0
      %7294 = vmatprep.subr.bf16.mxu0 0
      %7295 = vmatpush1.bf16.msra.mxu0 0
      %7296 = vmatprep.subr.bf16.mxu0 0
      %7297 = vmatpush1.bf16.msra.mxu0 0
      %7298 = vmatprep.subr.bf16.mxu0 0
      %7299 = vmatpush1.bf16.msra.mxu0 0
      %7300 = vmatprep.subr.bf16.mxu0 0
      %7301 = vmatpush1.bf16.msra.mxu0 0
      %7302 = vmatprep.mubr.bf16.mxu0 0
      %7303 = vmatmul.mubr.bf16.gmra.mrb[0].mxu0 %v7268
      %v7304 = vpop.f32.mrb[0].mxu0
      %v7305 = vadd.f32 0.0, %v7304
      %v7306 = vpop.f32.mrb[0].mxu0
      %v7307 = vpop.f32.mrb[0].mxu0
      %v7308 = vpop.f32.mrb[0].mxu0
      %7309 = vdwg.mxu0
      %v7311 = vsel %vm5697, %v7180, 0
      %7313 = vmatprep.subr.bf16.mxu0 0
      %7314 = vmatpush1.bf16.msra.mxu0 %v5889
      %7315 = vmatprep.subr.bf16.mxu0 0
      %7316 = vmatpush1.bf16.msra.mxu0 0
      %7317 = vmatprep.subr.bf16.mxu0 0
      %7318 = vmatpush1.bf16.msra.mxu0 0
      %7319 = vmatprep.subr.bf16.mxu0 0
      %7320 = vmatpush1.bf16.msra.mxu0 0
      %7321 = vmatprep.subr.bf16.mxu0 0
      %7322 = vmatpush1.bf16.msra.mxu0 0
      %7323 = vmatprep.subr.bf16.mxu0 0
      %7324 = vmatpush1.bf16.msra.mxu0 0
      %7325 = vmatprep.subr.bf16.mxu0 0
      %7326 = vmatpush1.bf16.msra.mxu0 0
      %7327 = vmatprep.subr.bf16.mxu0 0
      %7328 = vmatpush1.bf16.msra.mxu0 0
      %7329 = vmatprep.subr.bf16.mxu0 0
      %7330 = vmatpush1.bf16.msra.mxu0 0
      %7331 = vmatprep.subr.bf16.mxu0 0
      %7332 = vmatpush1.bf16.msra.mxu0 0
      %7333 = vmatprep.subr.bf16.mxu0 0
      %7334 = vmatpush1.bf16.msra.mxu0 0
      %7335 = vmatprep.subr.bf16.mxu0 0
      %7336 = vmatpush1.bf16.msra.mxu0 0
      %7337 = vmatprep.subr.bf16.mxu0 0
      %7338 = vmatpush1.bf16.msra.mxu0 0
      %7339 = vmatprep.subr.bf16.mxu0 0
      %7340 = vmatpush1.bf16.msra.mxu0 0
      %7341 = vmatprep.subr.bf16.mxu0 0
      %7342 = vmatpush1.bf16.msra.mxu0 0
      %7343 = vmatprep.subr.bf16.mxu0 0
      %7344 = vmatpush1.bf16.msra.mxu0 0
      %7345 = vmatprep.mubr.bf16.mxu0 0
      %7346 = vmatmul.mubr.bf16.gmra.mrb[0].mxu0 %v7311
      %v7347 = vpop.f32.mrb[0].mxu0
      %v7348 = vadd.f32 0.0, %v7347
      %v7349 = vpop.f32.mrb[0].mxu0
      %v7350 = vpop.f32.mrb[0].mxu0
      %v7351 = vpop.f32.mrb[0].mxu0
      %7352 = vdwg.mxu0
      %v7353 = vpack.c.bf16 %v7219, %v7219
      %v7355 = vunpack.c.l.s4 1983009808
      %v7356 = vunpack.c.0.s8 %v7355
      %v7357 = vlaneseq
      %v7358 = vshrl.u32 %v7357, 7
      %v7359 = vsub.s32 %v7356, %v7358
      %v7360 = vrot.slane %v7353, %v7359
      %v7361 = vpack.c.bf16 %v7305, %v7305
      %v7363 = vunpack.c.l.s4 1983009808
      %v7364 = vunpack.c.0.s8 %v7363
      %v7365 = vlaneseq
      %v7366 = vshrl.u32 %v7365, 7
      %v7367 = vsub.s32 %v7364, %v7366
      %v7368 = vrot.slane %v7361, %v7367
      %v7369 = vcombine.low %v7360, %v7368
      %v7370 = vcombine.high %v7360, %v7368
      %v7372 = vunpack.c.l.s4 1934713408
      %v7373 = vunpack.c.0.s8 %v7372
      %v7374 = vlaneseq
      %v7375 = vshrl.u32 %v7374, 7
      %v7376 = vsub.s32 %v7373, %v7375
      %v7377 = vrot.slane %v7369, %v7376
      %v7379 = vunpack.c.l.s4 1934713408
      %v7380 = vunpack.c.0.s8 %v7379
      %v7381 = vlaneseq
      %v7382 = vshrl.u32 %v7381, 7
      %v7383 = vsub.s32 %v7380, %v7382
      %v7384 = vrot.slane %v7370, %v7383
      %v7385 = vcombine.high %v7377, 0
      %v7386 = vcombine.high %v7384, 0
      %v7387 = vpack.c.bf16 %v7262, %v7262
      %v7389 = vunpack.c.l.s4 1983009808
      %v7390 = vunpack.c.0.s8 %v7389
      %v7391 = vlaneseq
      %v7392 = vshrl.u32 %v7391, 7
      %v7393 = vsub.s32 %v7390, %v7392
      %v7394 = vrot.slane %v7387, %v7393
      %v7395 = vpack.c.bf16 %v7348, %v7348
      %v7397 = vunpack.c.l.s4 1983009808
      %v7398 = vunpack.c.0.s8 %v7397
      %v7399 = vlaneseq
      %v7400 = vshrl.u32 %v7399, 7
      %v7401 = vsub.s32 %v7398, %v7400
      %v7402 = vrot.slane %v7395, %v7401
      %v7403 = vcombine.low %v7394, %v7402
      %v7404 = vcombine.high %v7394, %v7402
      %v7406 = vunpack.c.l.s4 1934713408
      %v7407 = vunpack.c.0.s8 %v7406
      %v7408 = vlaneseq
      %v7409 = vshrl.u32 %v7408, 7
      %v7410 = vsub.s32 %v7407, %v7409
      %v7411 = vrot.slane %v7403, %v7410
      %v7413 = vunpack.c.l.s4 1934713408
      %v7414 = vunpack.c.0.s8 %v7413
      %v7415 = vlaneseq
      %v7416 = vshrl.u32 %v7415, 7
      %v7417 = vsub.s32 %v7414, %v7416
      %v7418 = vrot.slane %v7404, %v7417
      %v7419 = vcombine.high %v7411, 0
      %v7420 = vcombine.high %v7418, 0
      %v7423 = vpack.i.b16 %v7411, %v7377
      %v7425 = vshrl.u32 %v7377, 16
      %v7426 = vshrl.u32 %v7411, 16
      %v7427 = vpack.i.b16 %v7426, %v7425
      %v7431 = vpack.i.b16 %v7419, %v7385
      %v7433 = vshrl.u32 %v7385, 16
      %v7434 = vshrl.u32 %v7419, 16
      %v7435 = vpack.i.b16 %v7434, %v7433
      %v7439 = vpack.i.b16 %v7418, %v7384
      %v7441 = vshrl.u32 %v7384, 16
      %v7442 = vshrl.u32 %v7418, 16
      %v7443 = vpack.i.b16 %v7442, %v7441
      %v7447 = vpack.i.b16 %v7420, %v7386
      %v7449 = vshrl.u32 %v7386, 16
      %v7450 = vshrl.u32 %v7420, 16
      %v7451 = vpack.i.b16 %v7450, %v7449
      %v7453 = vcombine.low %v7423, %v7439
      %v7455 = vunpack.c.l.s4 1983009808
      %v7456 = vunpack.c.0.s8 %v7455
      %v7457 = vlaneseq
      %v7458 = vshrl.u32 %v7457, 7
      %v7459 = vsub.s32 %v7456, %v7458
      %v7460 = vrot.slane %v7453, %v7459
      %v7461 = vcombine.low %v7431, %v7447
      %v7463 = vunpack.c.l.s4 1983009808
      %v7464 = vunpack.c.0.s8 %v7463
      %v7465 = vlaneseq
      %v7466 = vshrl.u32 %v7465, 7
      %v7467 = vsub.s32 %v7464, %v7466
      %v7468 = vrot.slane %v7461, %v7467
      %v7469 = vcombine.low %v7460, %v7468
      %v7471 = vunpack.c.l.s4 1934713408
      %v7472 = vunpack.c.0.s8 %v7471
      %v7473 = vlaneseq
      %v7474 = vshrl.u32 %v7473, 7
      %v7475 = vsub.s32 %v7472, %v7474
      %v7476 = vrot.slane %v7469, %v7475
      %v7477 = vcombine.high %v7476, 0
      %v7478 = vcombine.low %v7427, %v7443
      %v7480 = vunpack.c.l.s4 1983009808
      %v7481 = vunpack.c.0.s8 %v7480
      %v7482 = vlaneseq
      %v7483 = vshrl.u32 %v7482, 7
      %v7484 = vsub.s32 %v7481, %v7483
      %v7485 = vrot.slane %v7478, %v7484
      %v7486 = vcombine.low %v7435, %v7451
      %v7488 = vunpack.c.l.s4 1983009808
      %v7489 = vunpack.c.0.s8 %v7488
      %v7490 = vlaneseq
      %v7491 = vshrl.u32 %v7490, 7
      %v7492 = vsub.s32 %v7489, %v7491
      %v7493 = vrot.slane %v7486, %v7492
      %v7494 = vcombine.low %v7485, %v7493
      %v7496 = vunpack.c.l.s4 1934713408
      %v7497 = vunpack.c.0.s8 %v7496
      %v7498 = vlaneseq
      %v7499 = vshrl.u32 %v7498, 7
      %v7500 = vsub.s32 %v7497, %v7499
      %v7501 = vrot.slane %v7494, %v7500
      %v7502 = vcombine.high %v7501, 0
      %v7505 = vpack.i.b16 %v7501, %v7476
      %v7506 = vshrl.u32 %v7476, 16
      %v7507 = vshrl.u32 %v7501, 16
      %v7508 = vpack.i.b16 %v7507, %v7506
      %v7511 = vpack.i.b16 %v7502, %v7477
      %v7512 = vshrl.u32 %v7477, 16
      %v7513 = vshrl.u32 %v7502, 16
      %v7514 = vpack.i.b16 %v7513, %v7512
      %7515 = vrot.lane.b32.xlu0 %v7508, 8
      %v7516 = vpop.permute.xlu0 %7515
      %7517 = vrot.lane.b32.xlu0 %v7511, 16
      %v7518 = vpop.permute.xlu0 %7517
      %7519 = vrot.lane.b32.xlu0 %v7514, 24
      %v7520 = vpop.permute.xlu0 %7519
      %v7523 = vsel %vm1664, %v7505, %v7516
      %v7525 = vsel %vm2253, %v7523, %v7518
      %v7527 = vsel %vm2256, %v7525, %v7520
      %v7528 = vsel %vm1029, %v7527, 0
      %7530 = vmatprep.subr.bf16.mxu0 0
      %7531 = vmatpush1.bf16.msra.mxu0 %v4842
      %7532 = vmatprep.subr.bf16.mxu0 0
      %7533 = vmatpush1.bf16.msra.mxu0 %v4843
      %7534 = vmatprep.subr.bf16.mxu0 0
      %7535 = vmatpush1.bf16.msra.mxu0 0
      %7536 = vmatprep.subr.bf16.mxu0 0
      %7537 = vmatpush1.bf16.msra.mxu0 0
      %7538 = vmatprep.subr.bf16.mxu0 0
      %7539 = vmatpush1.bf16.msra.mxu0 0
      %7540 = vmatprep.subr.bf16.mxu0 0
      %7541 = vmatpush1.bf16.msra.mxu0 0
      %7542 = vmatprep.subr.bf16.mxu0 0
      %7543 = vmatpush1.bf16.msra.mxu0 0
      %7544 = vmatprep.subr.bf16.mxu0 0
      %7545 = vmatpush1.bf16.msra.mxu0 0
      %7546 = vmatprep.subr.bf16.mxu0 0
      %7547 = vmatpush1.bf16.msra.mxu0 0
      %7548 = vmatprep.subr.bf16.mxu0 0
      %7549 = vmatpush1.bf16.msra.mxu0 0
      %7550 = vmatprep.subr.bf16.mxu0 0
      %7551 = vmatpush1.bf16.msra.mxu0 0
      %7552 = vmatprep.subr.bf16.mxu0 0
      %7553 = vmatpush1.bf16.msra.mxu0 0
      %7554 = vmatprep.subr.bf16.mxu0 0
      %7555 = vmatpush1.bf16.msra.mxu0 0
      %7556 = vmatprep.subr.bf16.mxu0 0
      %7557 = vmatpush1.bf16.msra.mxu0 0
      %7558 = vmatprep.subr.bf16.mxu0 0
      %7559 = vmatpush1.bf16.msra.mxu0 0
      %7560 = vmatprep.subr.bf16.mxu0 0
      %7561 = vmatpush1.bf16.msra.mxu0 0
      %7562 = vmatprep.mubr.bf16.mxu0 0
      %7563 = vmatmul.mubr.bf16.gmra.mrb[0].mxu0 %v7528
      %v7564 = vpop.f32.mrb[0].mxu0
      %v7565 = vadd.f32 %v4832, %v7564
      %v7566 = vpop.f32.mrb[0].mxu0
      %v7567 = vpop.f32.mrb[0].mxu0
      %v7568 = vpop.f32.mrb[0].mxu0
      %7569 = vdwg.mxu0
      %v7570 = vadd.f32 %v6972, %v7565
      %v7571 = vld [vmem:[%s45] sm:$0x1]
      %v7572 = vld [vmem:[%s47] sm:$0x1]
      %v7573 = vsel %vm1029, %v7570, 0.0
      %7574 = vadd.xlane.f32.xlu0 %v7573
      %v7575 = vpop.xlane.xlu0 %7574
      %v7576 = vmul.f32 %v7575, %v1033
      %v7577 = vsub.f32 %v7570, %v7576
      %v7578 = vmul.f32 %v7577, %v7577
      %v7579 = vsel %vm1029, %v7578, 0.0
      %7580 = vadd.xlane.f32.xlu0 %v7579
      %v7581 = vpop.xlane.xlu0 %7580
      %v7582 = vmul.f32 %v7581, %v1033
      %v7583 = vadd.f32 %v7582, 1e-06
      %v7584 = vrsqrt.pop %v7583
      %v7585 = vmul.f32 %v7577, %v7584
      %v7587 = vlaneseq
      %v7588 = vshrl.u32 %v7587, 7
      %v7589 = vsub.s32 0, %v7588
      %v7590 = vrot.slane %v7571, %v7589
      %v7592 = vmul.f32 %v7585, %v7590
      %v7594 = vlaneseq
      %v7595 = vshrl.u32 %v7594, 7
      %v7596 = vsub.s32 0, %v7595
      %v7597 = vrot.slane %v7572, %v7596
      %v7599 = vadd.f32 %v7592, %v7597
      %v7600 = vpack.c.bf16 %v7599, %v7599
      %v7601 = vld [vmem:[%s49] sm:$0xf]
      %v7602 = vld [vmem:[%s49 + $0x4] sm:$0xf]
      %v7603 = vld [vmem:[%s49 + $0x8] sm:$0xf]
      %v7604 = vld [vmem:[%s49 + $0xc] sm:$0xf]
      %v7605 = vld [vmem:[%s51] sm:$0x1]
      %v7607 = vlaneseq
      %v7608 = vshrl.u32 %v7607, 7
      %v7609 = vsub.s32 0, %v7608
      %v7610 = vrot.slane %v7605, %v7609
      %v7616 = vunpack.c.l.b16 %v7601
      %v7617 = vunpack.c.l.b16 %v7602
      %v7618 = vunpack.c.l.b16 %v7603
      %v7619 = vunpack.c.l.b16 %v7604
      %v7620 = vpack.c.b16 %v7617, %v7616
      %v7621 = vpack.c.b16 %v7619, %v7618
      %v7625 = vsel %vm1029, %v7600, 0
      %7627 = vmatprep.subr.bf16.mxu0 0
      %7628 = vmatpush1.bf16.msra.mxu0 %v7620
      %7629 = vmatprep.subr.bf16.mxu0 0
      %7630 = vmatpush1.bf16.msra.mxu0 %v7621
      %7631 = vmatprep.subr.bf16.mxu0 0
      %7632 = vmatpush1.bf16.msra.mxu0 0
      %7633 = vmatprep.subr.bf16.mxu0 0
      %7634 = vmatpush1.bf16.msra.mxu0 0
      %7635 = vmatprep.subr.bf16.mxu0 0
      %7636 = vmatpush1.bf16.msra.mxu0 0
      %7637 = vmatprep.subr.bf16.mxu0 0
      %7638 = vmatpush1.bf16.msra.mxu0 0
      %7639 = vmatprep.subr.bf16.mxu0 0
      %7640 = vmatpush1.bf16.msra.mxu0 0
      %7641 = vmatprep.subr.bf16.mxu0 0
      %7642 = vmatpush1.bf16.msra.mxu0 0
      %7643 = vmatprep.subr.bf16.mxu0 0
      %7644 = vmatpush1.bf16.msra.mxu0 0
      %7645 = vmatprep.subr.bf16.mxu0 0
      %7646 = vmatpush1.bf16.msra.mxu0 0
      %7647 = vmatprep.subr.bf16.mxu0 0
      %7648 = vmatpush1.bf16.msra.mxu0 0
      %7649 = vmatprep.subr.bf16.mxu0 0
      %7650 = vmatpush1.bf16.msra.mxu0 0
      %7651 = vmatprep.subr.bf16.mxu0 0
      %7652 = vmatpush1.bf16.msra.mxu0 0
      %7653 = vmatprep.subr.bf16.mxu0 0
      %7654 = vmatpush1.bf16.msra.mxu0 0
      %7655 = vmatprep.subr.bf16.mxu0 0
      %7656 = vmatpush1.bf16.msra.mxu0 0
      %7657 = vmatprep.subr.bf16.mxu0 0
      %7658 = vmatpush1.bf16.msra.mxu0 0
      %7659 = vmatprep.mubr.bf16.mxu0 0
      %7660 = vmatmul.mubr.bf16.gmra.mrb[0].mxu0 %v7625
      %v7661 = vpop.f32.mrb[0].mxu0
      %v7662 = vadd.f32 %v7610, %v7661
      %v7663 = vpop.f32.mrb[0].mxu0
      %v7664 = vpop.f32.mrb[0].mxu0
      %v7665 = vpop.f32.mrb[0].mxu0
      %7666 = vdwg.mxu0
      %v7667 = vmul.f32 %v7662, 0.5
      %v7668 = vmul.f32 %v7662, 0.044715
      %v7669 = vmul.f32 %v7668, %v7662
      %v7670 = vmul.f32 %v7669, %v7662
      %v7671 = vadd.f32 %v7662, %v7670
      %v7672 = vmul.f32 %v7671, 0.7978846
      %v7673 = vtanh.pop %v7672
      %v7674 = vadd.f32 %v7673, 1.0
      %v7675 = vmul.f32 %v7667, %v7674
      %v7676 = vpack.c.bf16 %v7675, %v7675
      %v7677 = vld [vmem:[%s53] sm:$0xf]
      %v7678 = vld [vmem:[%s53 + $0x4] sm:$0xf]
      %v7679 = vld [vmem:[%s53 + $0x8] sm:$0xf]
      %v7680 = vld [vmem:[%s53 + $0xc] sm:$0xf]
      %v7681 = vld [vmem:[%s53 + $0x10] sm:$0xf]
      %v7682 = vld [vmem:[%s53 + $0x14] sm:$0xf]
      %v7683 = vld [vmem:[%s53 + $0x18] sm:$0xf]
      %v7684 = vld [vmem:[%s53 + $0x1c] sm:$0xf]
      %v7685 = vld [vmem:[%s55] sm:$0x1]
      %v7687 = vlaneseq
      %v7688 = vshrl.u32 %v7687, 7
      %v7689 = vsub.s32 0, %v7688
      %v7690 = vrot.slane %v7685, %v7689
      %v7700 = vunpack.c.l.b16 %v7677
      %v7701 = vunpack.c.l.b16 %v7678
      %v7702 = vunpack.c.l.b16 %v7679
      %v7703 = vunpack.c.l.b16 %v7680
      %v7704 = vunpack.c.l.b16 %v7681
      %v7705 = vunpack.c.l.b16 %v7682
      %v7706 = vunpack.c.l.b16 %v7683
      %v7707 = vunpack.c.l.b16 %v7684
      %v7708 = vpack.c.b16 %v7701, %v7700
      %v7709 = vpack.c.b16 %v7703, %v7702
      %v7710 = vpack.c.b16 %v7705, %v7704
      %v7711 = vpack.c.b16 %v7707, %v7706
      %vm7716 = vcmask 523264
      %v7718 = vsel %vm7716, %v7676, 0
      %7720 = vmatprep.subr.bf16.mxu0 0
      %7721 = vmatpush1.bf16.msra.mxu0 %v7708
      %7722 = vmatprep.subr.bf16.mxu0 0
      %7723 = vmatpush1.bf16.msra.mxu0 %v7709
      %7724 = vmatprep.subr.bf16.mxu0 0
      %7725 = vmatpush1.bf16.msra.mxu0 %v7710
      %7726 = vmatprep.subr.bf16.mxu0 0
      %7727 = vmatpush1.bf16.msra.mxu0 %v7711
      %7728 = vmatprep.subr.bf16.mxu0 0
      %7729 = vmatpush1.bf16.msra.mxu0 0
      %7730 = vmatprep.subr.bf16.mxu0 0
      %7731 = vmatpush1.bf16.msra.mxu0 0
      %7732 = vmatprep.subr.bf16.mxu0 0
      %7733 = vmatpush1.bf16.msra.mxu0 0
      %7734 = vmatprep.subr.bf16.mxu0 0
      %7735 = vmatpush1.bf16.msra.mxu0 0
      %7736 = vmatprep.subr.bf16.mxu0 0
      %7737 = vmatpush1.bf16.msra.mxu0 0
      %7738 = vmatprep.subr.bf16.mxu0 0
      %7739 = vmatpush1.bf16.msra.mxu0 0
      %7740 = vmatprep.subr.bf16.mxu0 0
      %7741 = vmatpush1.bf16.msra.mxu0 0
      %7742 = vmatprep.subr.bf16.mxu0 0
      %7743 = vmatpush1.bf16.msra.mxu0 0
      %7744 = vmatprep.subr.bf16.mxu0 0
      %7745 = vmatpush1.bf16.msra.mxu0 0
      %7746 = vmatprep.subr.bf16.mxu0 0
      %7747 = vmatpush1.bf16.msra.mxu0 0
      %7748 = vmatprep.subr.bf16.mxu0 0
      %7749 = vmatpush1.bf16.msra.mxu0 0
      %7750 = vmatprep.subr.bf16.mxu0 0
      %7751 = vmatpush1.bf16.msra.mxu0 0
      %7752 = vmatprep.mubr.bf16.mxu0 0
      %7753 = vmatmul.mubr.bf16.gmra.mrb[0].mxu0 %v7718
      %v7754 = vpop.f32.mrb[0].mxu0
      %v7755 = vadd.f32 %v7690, %v7754
      %v7756 = vpop.f32.mrb[0].mxu0
      %v7757 = vpop.f32.mrb[0].mxu0
      %v7758 = vpop.f32.mrb[0].mxu0
      %7759 = vdwg.mxu0
      %v7760 = vadd.f32 %v7755, %v7570
      %7761 = vst.msk [vmem:[%s1020] sm:$0xff] %vm1029, %v7760
      %p7762 = scmp.lt.s32.totalorder %s71, 1
      %s7763 = scalar_select %p7762, %s71, 1
      %s7764 = smul.addr %s7763, 8
      %s7765 = scalar_lea.vmem %s57, %s7764
      %p7766 = scmp.lt.s32.totalorder %s71, 1
      %s7767 = scalar_select %p7766, %s71, 1
      %s7768 = smul.addr %s7767, 8
      %s7769 = scalar_lea.vmem %s59, %s7768
      // Predicated region
      $region133: #{decoder_forward.3} parent=131 // pred_check
        %p7770 = pneg %p717
      $region134: #{decoder_forward.3} parent=131 // pred_check_branch
        %7772 = sbr.rel (%p7770) target = $region136
      $region135: #{decoder_forward.3} parent=131 // pred_region
        _
      $region136: #{decoder_forward.3} parent=131 // pred_fallthru
        _
      // Predicated region
      $region137: #{decoder_forward.3} parent=131 // pred_check
        %p7773 = pneg %p743
      $region138: #{decoder_forward.3} parent=131 // pred_check_branch
        %7775 = sbr.rel (%p7773) target = $region140
      $region139: #{decoder_forward.3} parent=131 // pred_region
        _
      $region140: #{decoder_forward.3} parent=131 // pred_fallthru
        _
    $region132: #{decoder_forward.3} parent=5 // pred_fallthru
      _
    %p7776 = scmp.le.s32.totalorder 2, %s66
    // Predicated region
    $region141: #{decoder_forward.3} parent=5 // pred_check
      %p7777 = pneg %p7776
    $region142: #{decoder_forward.3} parent=5 // pred_check_branch
      %7779 = sbr.rel (%p7777) target = $region144
    $region143: #{decoder_forward.3} parent=5 // pred_region
      %s7780 = ssub.s32 %s66, 2
      // Predicated region
      $region145: #{decoder_forward.3} parent=143 // pred_check
        %p7781 = pneg %p723
      $region146: #{decoder_forward.3} parent=143 // pred_check_branch
        %7783 = sbr.rel (%p7781) target = $region148
      $region147: #{decoder_forward.3} parent=143 // pred_region
        %p7784 = scmp.lt.s32.totalorder %s72, 1
        %s7785 = scalar_select %p7784, %s72, 1
        %s7786 = smul.addr %s7785, 8
        %s7787 = scalar_lea.vmem %s57, %s7786
      $region148: #{decoder_forward.3} parent=143 // pred_fallthru
        _
      // Predicated region
      $region149: #{decoder_forward.3} parent=143 // pred_check
        %p7788 = pneg %p749
      $region150: #{decoder_forward.3} parent=143 // pred_check_branch
        %7790 = sbr.rel (%p7788) target = $region152
      $region151: #{decoder_forward.3} parent=143 // pred_region
        %p7791 = scmp.lt.s32.totalorder %s72, 1
        %s7792 = scalar_select %p7791, %s72, 1
        %s7793 = smul.addr %s7792, 8
        %s7794 = scalar_lea.vmem %s59, %s7793
      $region152: #{decoder_forward.3} parent=143 // pred_fallthru
        _
    $region144: #{decoder_forward.3} parent=5 // pred_fallthru
      _
  $region6: #{decoder_forward.3} parent=0 // loop_footer
    %s70 = sadd.s32 1, %s66
  $region7: #{decoder_forward.3} parent=0 // loop_footer_branch
    %65 = sbr.rel target = $region3
  $region8: #{decoder_forward.3} parent=0 // loop_exit
    _

</llo_original>
